<compile_context>
chip_gen: v7x
topology: tpu7x:2x2x1
jax: 0.10.0
libtpu: 0.0.40
codegen_flags: <defaults>
</compile_context>

<pallas_src>
import functools

import jax
import jax.numpy as jnp
from jax import lax
from jax.experimental import pallas as pl
from jax.experimental.pallas import tpu as pltpu


def _additive_attention_kernel(vl_ref, q_ref, k_ref, v_ref,
                               wq_ref, wk_ref, wv_ref, out_ref,
                               *, matmul_dtype):
    TB, Q, Dq = q_ref.shape
    _, K, Dk = k_ref.shape

    # ---- Projections: one big MXU matmul each (rows = TB*Q / TB*K) ----
    q2 = q_ref[...].reshape(TB * Q, Dq).astype(matmul_dtype)
    k2 = k_ref[...].reshape(TB * K, Dk).astype(matmul_dtype)
    qp = jnp.dot(q2, wq_ref[...].astype(matmul_dtype),
                 preferred_element_type=jnp.float32)               # (TB*Q, H) f32
    kp = jnp.dot(k2, wk_ref[...].astype(matmul_dtype),
                 preferred_element_type=jnp.float32)               # (TB*K, H) f32

    H = qp.shape[-1]
    qp = qp.reshape(TB, Q, H)
    kpT = jnp.transpose(kp.reshape(TB, K, H), (0, 2, 1))           # (TB, H, K)

    # ---- Additive scoring, K on lanes: w_v . tanh(q_i + k_j) ----
    feats = jnp.tanh(qp[:, :, :, None] + kpT[:, None, :, :])       # (TB, Q, H, K)
    wv = wv_ref[...]                                               # (H, 1) f32
    scores = jnp.sum(feats * wv[None, None, :, :], axis=2)         # (TB, Q, K)
    scores = scores.reshape(TB * Q, K)

    # ---- masked softmax: positions >= valid_len get -1e6 ----
    valid = vl_ref[...]                                            # (TB*Q, 1) i32
    kidx = lax.broadcasted_iota(jnp.int32, (TB * Q, K), 1)
    scores = jnp.where(kidx < valid, scores, jnp.float32(-1e6))

    m = jnp.max(scores, axis=-1, keepdims=True)
    e = jnp.exp(scores - m)
    denom = jnp.sum(e, axis=-1, keepdims=True)
    attn = e * pl.reciprocal(denom, approx=True)                   # (TB*Q, K)

    # ---- out = attn @ values (batched) ----
    attn_b = attn.reshape(TB, Q, K).astype(matmul_dtype)
    out = jnp.einsum("bqk,bkd->bqd", attn_b,
                     v_ref[...].astype(matmul_dtype),
                     preferred_element_type=jnp.float32)           # (TB, Q, Dv)
    out_ref[...] = out.astype(out_ref.dtype)


def _pick_block_b(B, Q, target_rows=128):
    """Largest divisor of B with block_b * Q roughly target_rows (>= MXU rows)."""
    want = max(1, target_rows // max(Q, 1))
    tb = min(B, want)
    while B % tb != 0:
        tb -= 1
    return max(tb, 1)


def additive_attention(queries, keys, values, valid_lens, w_q, w_k, w_v,
                       *, block_b=None, matmul_dtype=jnp.float32):
    """queries (B,Q,Dq), keys (B,K,Dk), values (B,K,Dv), valid_lens (B,) int.

    Weights pre-transposed: w_q = W_q.weight.T (Dq,H), w_k = W_k.weight.T (Dk,H),
    w_v = w_v.weight.T (H,1). Set matmul_dtype=jnp.bfloat16 on v6e/v7x for 2x
    MXU throughput (f32 accumulation / elementwise path preserved).
    """
    B, Q, Dq = queries.shape
    _, K, Dk = keys.shape
    Dv = values.shape[-1]
    H = w_q.shape[-1]

    TB = _pick_block_b(B, Q) if block_b is None else block_b
    assert B % TB == 0, "batch must be divisible by the batch block size"
    grid = (B // TB,)

    # Per-row valid lengths, matching masked_softmax's repeat_interleave.
    vl_rows = jnp.repeat(valid_lens.astype(jnp.int32), Q).reshape(B * Q, 1)

    kernel = functools.partial(_additive_attention_kernel,
                               matmul_dtype=matmul_dtype)

    grid_spec = pltpu.PrefetchScalarGridSpec(
        num_scalar_prefetch=0,
        grid=grid,
        in_specs=[
            pl.BlockSpec((TB * Q, 1), lambda b: (b, 0)),      # per-row valid lens
            pl.BlockSpec((TB, Q, Dq), lambda b: (b, 0, 0)),   # queries block
            pl.BlockSpec((TB, K, Dk), lambda b: (b, 0, 0)),   # keys block
            pl.BlockSpec((TB, K, Dv), lambda b: (b, 0, 0)),   # values block
            pl.BlockSpec((Dq, H),     lambda b: (0, 0)),      # W_q^T
            pl.BlockSpec((Dk, H),     lambda b: (0, 0)),      # W_k^T
            pl.BlockSpec((H, 1),      lambda b: (0, 0)),      # w_v^T (column)
        ],
        out_specs=pl.BlockSpec((TB, Q, Dv), lambda b: (b, 0, 0)),
    )

    return pl.pallas_call(
        kernel,
        out_shape=jax.ShapeDtypeStruct((B, Q, Dv), jnp.float32),
        grid_spec=grid_spec,
        compiler_params=pltpu.CompilerParams(
            dimension_semantics=("parallel",)),   # independent batch blocks
    )(vl_rows, queries, keys, values, w_q, w_k, w_v)


def reference(queries, keys, values, valid_lens, w_q, w_k, w_v):
    qp = queries @ w_q                                            # (B, Q, H)
    kp = keys @ w_k                                               # (B, K, H)
    feats = jnp.tanh(qp[:, :, None, :] + kp[:, None, :, :])       # (B, Q, K, H)
    scores = jnp.squeeze(feats @ w_v, -1)                         # (B, Q, K)
    K = keys.shape[1]
    mask = jnp.arange(K)[None, None, :] < valid_lens[:, None, None]
    scores = jnp.where(mask, scores, -1e6)
    attn = jax.nn.softmax(scores, axis=-1)
    return jnp.einsum("bqk,bkd->bqd", attn, values)


if __name__ == "__main__":
    B, Q, K = 32, 8, 8
    Dq, Dk, Dv, H = 20, 16, 24, 32

    key = jax.random.PRNGKey(0)
    k1, k2, k3, k4, k5, k6, k7 = jax.random.split(key, 7)

    queries = jax.random.normal(k1, (B, Q, Dq), dtype=jnp.float32)
    keys_   = jax.random.normal(k2, (B, K, Dk), dtype=jnp.float32)
    values  = jax.random.normal(k3, (B, K, Dv), dtype=jnp.float32)
    valid_lens = jax.random.randint(k7, (B,), 1, K + 1).astype(jnp.int32)

    # "Linear" weights (bias=False), stored pre-transposed.
    w_q = jax.random.normal(k4, (Dq, H), dtype=jnp.float32) * 0.1
    w_k = jax.random.normal(k5, (Dk, H), dtype=jnp.float32) * 0.1
    w_v = jax.random.normal(k6, (H, 1),  dtype=jnp.float32) * 0.1

    out = additive_attention(queries, keys_, values, valid_lens, w_q, w_k, w_v)
    out = jax.block_until_ready(out)

    ref = reference(queries, keys_, values, valid_lens, w_q, w_k, w_v)
    assert out.shape == (B, Q, Dv)
    # Tolerance accounts for the approx-reciprocal softmax denominator.
    max_err = float(jnp.max(jnp.abs(out - ref)))
    assert jnp.allclose(out, ref, atol=2e-3, rtol=2e-3), max_err

    print("KERNEL_OK")
</pallas_src>

<mosaic_0001>
module attributes {stable_mosaic.version = 11 : i64} {
  func.func @_additive_attention_kernel(%arg0: i32, %arg1: memref<128x1xi32, #tpu.memory_space<vmem>>, %arg2: memref<16x8x20xf32, #tpu.memory_space<vmem>>, %arg3: memref<16x8x16xf32, #tpu.memory_space<vmem>>, %arg4: memref<16x8x24xf32, #tpu.memory_space<vmem>>, %arg5: memref<20x32xf32, #tpu.memory_space<vmem>>, %arg6: memref<16x32xf32, #tpu.memory_space<vmem>>, %arg7: memref<32x1xf32, #tpu.memory_space<vmem>>, %arg8: memref<16x8x24xf32, #tpu.memory_space<vmem>>) attributes {dimension_semantics = [#tpu.dimension_semantics<parallel>], iteration_bounds = array<i64: 2>, scalar_prefetch = 0 : i64, scratch_operands = 0 : i64, tpu.core_type = #tpu.core_type<tc>, window_params = [{transform_indices = @transform_0, window_bounds = array<i64: 128, 1>}, {transform_indices = @transform_1, window_bounds = array<i64: 16, 8, 20>}, {transform_indices = @transform_2, window_bounds = array<i64: 16, 8, 16>}, {transform_indices = @transform_3, window_bounds = array<i64: 16, 8, 24>}, {pipeline_mode = #tpu.pipeline_mode<synchronous>, transform_indices = @transform_4, window_bounds = array<i64: 20, 32>}, {pipeline_mode = #tpu.pipeline_mode<synchronous>, transform_indices = @transform_5, window_bounds = array<i64: 16, 32>}, {pipeline_mode = #tpu.pipeline_mode<synchronous>, transform_indices = @transform_6, window_bounds = array<i64: 32, 1>}, {transform_indices = @transform_7, window_bounds = array<i64: 16, 8, 24>}]} {
    %c0 = arith.constant 0 : index
    %c0_0 = arith.constant 0 : index
    %c0_1 = arith.constant 0 : index
    %0 = vector.load %arg2[%c0, %c0_0, %c0_1] : memref<16x8x20xf32, #tpu.memory_space<vmem>>, vector<16x8x20xf32>
    %1 = vector.shape_cast %0 : vector<16x8x20xf32> to vector<128x20xf32>
    %c0_2 = arith.constant 0 : index
    %c0_3 = arith.constant 0 : index
    %c0_4 = arith.constant 0 : index
    %2 = vector.load %arg3[%c0_2, %c0_3, %c0_4] : memref<16x8x16xf32, #tpu.memory_space<vmem>>, vector<16x8x16xf32>
    %3 = vector.shape_cast %2 : vector<16x8x16xf32> to vector<128x16xf32>
    %c0_5 = arith.constant 0 : index
    %c0_6 = arith.constant 0 : index
    %4 = vector.load %arg5[%c0_5, %c0_6] : memref<20x32xf32, #tpu.memory_space<vmem>>, vector<20x32xf32>
    %cst = arith.constant dense<0.000000e+00> : vector<128x32xf32>
    %5 = tpu.matmul %1, %4, %cst {dimension_numbers = #tpu.dot_dimension_numbers<[1], [0], [0], [1], [0, 0, 1, 1], [], []>} : vector<128x20xf32>, vector<20x32xf32>, vector<128x32xf32> -> vector<128x32xf32>
    %c0_7 = arith.constant 0 : index
    %c0_8 = arith.constant 0 : index
    %6 = vector.load %arg6[%c0_7, %c0_8] : memref<16x32xf32, #tpu.memory_space<vmem>>, vector<16x32xf32>
    %cst_9 = arith.constant dense<0.000000e+00> : vector<128x32xf32>
    %7 = tpu.matmul %3, %6, %cst_9 {dimension_numbers = #tpu.dot_dimension_numbers<[1], [0], [0], [1], [0, 0, 1, 1], [], []>} : vector<128x16xf32>, vector<16x32xf32>, vector<128x32xf32> -> vector<128x32xf32>
    %8 = vector.shape_cast %5 : vector<128x32xf32> to vector<16x8x32xf32>
    %9 = vector.shape_cast %7 : vector<128x32xf32> to vector<16x8x32xf32>
    %10 = tpu.transpose %9, [0, 2, 1] : vector<16x8x32xf32> -> vector<16x32x8xf32>
    %11 = vector.shape_cast %8 : vector<16x8x32xf32> to vector<16x8x32x1xf32>
    %12 = vector.shape_cast %10 : vector<16x32x8xf32> to vector<16x1x32x8xf32>
    %13 = vector.broadcast %11 : vector<16x8x32x1xf32> to vector<16x8x32x8xf32>
    %14 = vector.broadcast %12 : vector<16x1x32x8xf32> to vector<16x8x32x8xf32>
    %15 = arith.addf %13, %14 : vector<16x8x32x8xf32>
    %16 = math.tanh %15 : vector<16x8x32x8xf32>
    %c0_10 = arith.constant 0 : index
    %c0_11 = arith.constant 0 : index
    %17 = vector.load %arg7[%c0_10, %c0_11] : memref<32x1xf32, #tpu.memory_space<vmem>>, vector<32x1xf32>
    %18 = vector.shape_cast %17 : vector<32x1xf32> to vector<1x1x32x1xf32>
    %19 = vector.broadcast %18 : vector<1x1x32x1xf32> to vector<16x8x32x8xf32>
    %20 = arith.mulf %16, %19 : vector<16x8x32x8xf32>
    %cst_12 = arith.constant dense<0.000000e+00> : vector<16x8x8xf32>
    %21 = vector.multi_reduction <add>, %20, %cst_12 [2] : vector<16x8x32x8xf32> to vector<16x8x8xf32>
    %22 = vector.shape_cast %21 : vector<16x8x8xf32> to vector<128x8xf32>
    %c0_13 = arith.constant 0 : index
    %c0_14 = arith.constant 0 : index
    %23 = vector.load %arg1[%c0_13, %c0_14] : memref<128x1xi32, #tpu.memory_space<vmem>>, vector<128x1xi32>
    %24 = tpu.iota {dimensions = array<i32: 1>} : vector<128x8xi32>
    %25 = vector.broadcast %23 : vector<128x1xi32> to vector<128x8xi32>
    %26 = arith.cmpi slt, %24, %25 : vector<128x8xi32>
    %cst_15 = arith.constant -1.000000e+06 : f32
    %27 = vector.broadcast %cst_15 : f32 to vector<128x8xf32>
    %28 = arith.select %26, %22, %27 : vector<128x8xi1>, vector<128x8xf32>
    %cst_16 = arith.constant dense<0xFF800000> : vector<128xf32>
    %29 = vector.multi_reduction <maximumf>, %28, %cst_16 [1] : vector<128x8xf32> to vector<128xf32>
    %30 = vector.shape_cast %29 : vector<128xf32> to vector<128x1xf32>
    %31 = vector.broadcast %30 : vector<128x1xf32> to vector<128x8xf32>
    %32 = arith.subf %28, %31 : vector<128x8xf32>
    %33 = math.exp %32 : vector<128x8xf32>
    %cst_17 = arith.constant dense<0.000000e+00> : vector<128xf32>
    %34 = vector.multi_reduction <add>, %33, %cst_17 [1] : vector<128x8xf32> to vector<128xf32>
    %35 = vector.shape_cast %34 : vector<128xf32> to vector<128x1xf32>
    %36 = tpu.reciprocal %35 {approx = true} : vector<128x1xf32> -> vector<128x1xf32>
    %37 = vector.broadcast %36 : vector<128x1xf32> to vector<128x8xf32>
    %38 = arith.mulf %33, %37 : vector<128x8xf32>
    %39 = vector.shape_cast %38 : vector<128x8xf32> to vector<16x8x8xf32>
    %c0_18 = arith.constant 0 : index
    %c0_19 = arith.constant 0 : index
    %c0_20 = arith.constant 0 : index
    %40 = vector.load %arg4[%c0_18, %c0_19, %c0_20] : memref<16x8x24xf32, #tpu.memory_space<vmem>>, vector<16x8x24xf32>
    "tpu.trace_start"() <{level = 10 : i32, message = "bqk,bkd->bqd"}> : () -> ()
    %cst_21 = arith.constant dense<0.000000e+00> : vector<16x8x24xf32>
    %41 = tpu.matmul %39, %40, %cst_21 {dimension_numbers = #tpu.dot_dimension_numbers<[2], [1], [1], [2], [0, 0, 0, 1, 1, 2], [0], [0]>} : vector<16x8x8xf32>, vector<16x8x24xf32>, vector<16x8x24xf32> -> vector<16x8x24xf32>
    "tpu.trace_stop"() : () -> ()
    %c0_22 = arith.constant 0 : index
    %c0_23 = arith.constant 0 : index
    %c0_24 = arith.constant 0 : index
    %42 = vector.load %arg8[%c0_22, %c0_23, %c0_24] : memref<16x8x24xf32, #tpu.memory_space<vmem>>, vector<16x8x24xf32>
    tpu.vector_store %arg8[%c0_22, %c0_23, %c0_24], %41 {strides = array<i32>} : memref<16x8x24xf32, #tpu.memory_space<vmem>>, vector<16x8x24xf32>,
    return
  }
  func.func @transform_0(%arg0: i32) -> (i32, i32) {
    %c0_i32 = arith.constant 0 : i32
    %c0_i32_0 = arith.constant 0 : i32
    return %arg0, %c0_i32 : i32, i32
  }
  func.func @transform_1(%arg0: i32) -> (i32, i32, i32) {
    %c0_i32 = arith.constant 0 : i32
    %c0_i32_0 = arith.constant 0 : i32
    %c0_i32_1 = arith.constant 0 : i32
    return %arg0, %c0_i32, %c0_i32_0 : i32, i32, i32
  }
  func.func @transform_2(%arg0: i32) -> (i32, i32, i32) {
    %c0_i32 = arith.constant 0 : i32
    %c0_i32_0 = arith.constant 0 : i32
    %c0_i32_1 = arith.constant 0 : i32
    return %arg0, %c0_i32, %c0_i32_0 : i32, i32, i32
  }
  func.func @transform_3(%arg0: i32) -> (i32, i32, i32) {
    %c0_i32 = arith.constant 0 : i32
    %c0_i32_0 = arith.constant 0 : i32
    %c0_i32_1 = arith.constant 0 : i32
    return %arg0, %c0_i32, %c0_i32_0 : i32, i32, i32
  }
  func.func @transform_4(%arg0: i32) -> (i32, i32) {
    %c0_i32 = arith.constant 0 : i32
    %c0_i32_0 = arith.constant 0 : i32
    %c0_i32_1 = arith.constant 0 : i32
    return %c0_i32, %c0_i32_0 : i32, i32
  }
  func.func @transform_5(%arg0: i32) -> (i32, i32) {
    %c0_i32 = arith.constant 0 : i32
    %c0_i32_0 = arith.constant 0 : i32
    %c0_i32_1 = arith.constant 0 : i32
    return %c0_i32, %c0_i32_0 : i32, i32
  }
  func.func @transform_6(%arg0: i32) -> (i32, i32) {
    %c0_i32 = arith.constant 0 : i32
    %c0_i32_0 = arith.constant 0 : i32
    %c0_i32_1 = arith.constant 0 : i32
    return %c0_i32, %c0_i32_0 : i32, i32
  }
  func.func @transform_7(%arg0: i32) -> (i32, i32, i32) {
    %c0_i32 = arith.constant 0 : i32
    %c0_i32_0 = arith.constant 0 : i32
    %c0_i32_1 = arith.constant 0 : i32
    return %arg0, %c0_i32, %c0_i32_0 : i32, i32, i32
  }
}

</mosaic_0001>

<llo_original>
// kernel: tpu_custom_call.1
$region0: #{tpu_custom_call.1}
  #allocation0 [shape = 'u32[]', space=smem, size = 0x4, offset = 0x4, fixed_abs, tag = 'smem constant byte address 0x4 - core index']
  #allocation1 [shape = 'u32[144,128]{1,0:T(1,128)}', space=vmem, size = 0x12000, scoped, tag = 'internal scratch']
  %s0 = inlined_call_operand.vmem [shape: s32[256,1], index: 0, kind: input, shape index: {}]
  %s1 = inlined_call_operand.vmem [shape: f32[32,8,20], index: 1, kind: input, shape index: {}]
  %s2 = inlined_call_operand.vmem [shape: f32[32,8,16], index: 2, kind: input, shape index: {}]
  %s3 = inlined_call_operand.vmem [shape: f32[32,8,24], index: 3, kind: input, shape index: {}]
  %s4 = inlined_call_operand.vmem [shape: f32[20,32], index: 4, kind: input, shape index: {}]
  %s5 = inlined_call_operand.vmem [shape: f32[16,32], index: 5, kind: input, shape index: {}]
  %s6 = inlined_call_operand.vmem [shape: f32[32,1], index: 6, kind: input, shape index: {}]
  %s7 = inlined_call_operand.vmem [shape: f32[32,8,24], index: 7, kind: output, shape index: {}]
  %s8 = sld [smem:[#allocation0]]
  $region61: #{tpu_custom_call.1} parent=0
    _
  %s10 = ssub.s32 1, %s8
  %s11 = scalar_select 0, %s10, %s8
  loop: start=0, step=1, limit=4
  $region2: #{tpu_custom_call.1} parent=0 // loop_pre_header
    _
  $region3: #{tpu_custom_call.1} parent=0 // loop_header
    %s13 = sphi 0, %s17
    %p14 = scmp.ge.s32.totalorder %s13, 4
    %s23 = sphi 0, %s25
    %s26 = sphi 0, %s23
    %s27 = sphi 0, %s26
    %s43 = sphi 0, %s27
    %s49 = sphi 0, %s51
    %s52 = sphi 0, %s49
    %s53 = sphi 0, %s52
    %s69 = sphi 0, %s53
    %s75 = sphi 0, %s77
    %s78 = sphi 0, %s75
    %s79 = sphi 0, %s78
    %s95 = sphi 0, %s79
    %s101 = sphi 0, %s103
    %s104 = sphi 0, %s101
    %s105 = sphi 0, %s104
    %s121 = sphi 0, %s105
    %s125 = sphi 0, %s125
    %s127 = sphi 0, %s125
    %s128 = sphi 0, %s127
    %s142 = sphi 0, %s128
    %s146 = sphi 0, %s146
    %s148 = sphi 0, %s146
    %s149 = sphi 0, %s148
    %s163 = sphi 0, %s149
    %s167 = sphi 0, %s167
    %s169 = sphi 0, %s167
    %s170 = sphi 0, %s169
    %s184 = sphi 0, %s170
    %s190 = sphi 0, %s192
    %s193 = sphi 0, %s190
    %s194 = sphi 0, %s193
    %s210 = sphi 0, %s194
  $region4: #{tpu_custom_call.1} parent=0 // loop_header_branch
    %16 = sbr.rel (%p14) target = $region8
  $region5: #{tpu_custom_call.1} parent=0 // loop_body
    %s18 = ssub.s32 %s13, 1
    %s19 = ssub.s32 %s13, 2
    %s20 = sadd.s32 %s13, 1
    %s21 = ssub.s32 %s13, %s20
    %p22 = scmp.eq.s32.totalorder %s21, 0
    %s24 = sadd.s32 %s23, 1
    %s25 = scalar_select %p22, %s23, %s24
    %p28 = pneg %p22
    %p29 = scmp.eq.s32.totalorder %s13, 1
    %p30 = por %p28, %p29
    %p31 = scmp.ne.s32.totalorder %s23, %s26
    %p32 = scmp.eq.s32.totalorder %s13, 0
    %p33 = por %p31, %p32
    %p34 = scmp.ne.s32.totalorder %s23, %s26
    %p35 = scmp.eq.s32.totalorder %s18, 1
    %p36 = por %p34, %p35
    %p37 = scmp.ne.s32.totalorder %s26, %s27
    %p38 = scmp.eq.s32.totalorder %s18, 0
    %p39 = por %p37, %p38
    %p40 = scmp.ne.s32.totalorder %s26, %s27
    %p41 = scmp.eq.s32.totalorder %s19, 1
    %p42 = por %p40, %p41
    %p44 = scmp.ne.s32.totalorder %s27, %s43
    %p45 = scmp.eq.s32.totalorder %s19, 0
    %p46 = por %p44, %p45
    %s47 = ssub.s32 %s13, %s20
    %p48 = scmp.eq.s32.totalorder %s47, 0
    %s50 = sadd.s32 %s49, 1
    %s51 = scalar_select %p48, %s49, %s50
    %p54 = pneg %p48
    %p55 = scmp.eq.s32.totalorder %s13, 1
    %p56 = por %p54, %p55
    %p57 = scmp.ne.s32.totalorder %s49, %s52
    %p58 = scmp.eq.s32.totalorder %s13, 0
    %p59 = por %p57, %p58
    %p60 = scmp.ne.s32.totalorder %s49, %s52
    %p61 = scmp.eq.s32.totalorder %s18, 1
    %p62 = por %p60, %p61
    %p63 = scmp.ne.s32.totalorder %s52, %s53
    %p64 = scmp.eq.s32.totalorder %s18, 0
    %p65 = por %p63, %p64
    %p66 = scmp.ne.s32.totalorder %s52, %s53
    %p67 = scmp.eq.s32.totalorder %s19, 1
    %p68 = por %p66, %p67
    %p70 = scmp.ne.s32.totalorder %s53, %s69
    %p71 = scmp.eq.s32.totalorder %s19, 0
    %p72 = por %p70, %p71
    %s73 = ssub.s32 %s13, %s20
    %p74 = scmp.eq.s32.totalorder %s73, 0
    %s76 = sadd.s32 %s75, 1
    %s77 = scalar_select %p74, %s75, %s76
    %p80 = pneg %p74
    %p81 = scmp.eq.s32.totalorder %s13, 1
    %p82 = por %p80, %p81
    %p83 = scmp.ne.s32.totalorder %s75, %s78
    %p84 = scmp.eq.s32.totalorder %s13, 0
    %p85 = por %p83, %p84
    %p86 = scmp.ne.s32.totalorder %s75, %s78
    %p87 = scmp.eq.s32.totalorder %s18, 1
    %p88 = por %p86, %p87
    %p89 = scmp.ne.s32.totalorder %s78, %s79
    %p90 = scmp.eq.s32.totalorder %s18, 0
    %p91 = por %p89, %p90
    %p92 = scmp.ne.s32.totalorder %s78, %s79
    %p93 = scmp.eq.s32.totalorder %s19, 1
    %p94 = por %p92, %p93
    %p96 = scmp.ne.s32.totalorder %s79, %s95
    %p97 = scmp.eq.s32.totalorder %s19, 0
    %p98 = por %p96, %p97
    %s99 = ssub.s32 %s13, %s20
    %p100 = scmp.eq.s32.totalorder %s99, 0
    %s102 = sadd.s32 %s101, 1
    %s103 = scalar_select %p100, %s101, %s102
    %p106 = pneg %p100
    %p107 = scmp.eq.s32.totalorder %s13, 1
    %p108 = por %p106, %p107
    %p109 = scmp.ne.s32.totalorder %s101, %s104
    %p110 = scmp.eq.s32.totalorder %s13, 0
    %p111 = por %p109, %p110
    %p112 = scmp.ne.s32.totalorder %s101, %s104
    %p113 = scmp.eq.s32.totalorder %s18, 1
    %p114 = por %p112, %p113
    %p115 = scmp.ne.s32.totalorder %s104, %s105
    %p116 = scmp.eq.s32.totalorder %s18, 0
    %p117 = por %p115, %p116
    %p118 = scmp.ne.s32.totalorder %s104, %s105
    %p119 = scmp.eq.s32.totalorder %s19, 1
    %p120 = por %p118, %p119
    %p122 = scmp.ne.s32.totalorder %s105, %s121
    %p123 = scmp.eq.s32.totalorder %s19, 0
    %p124 = por %p122, %p123
    %s126 = sadd.s32 %s125, 1
    %p129 = scmp.eq.s32.totalorder %s13, 1
    %p130 = scmp.ne.s32.totalorder %s125, %s127
    %p131 = scmp.eq.s32.totalorder %s13, 0
    %p132 = por %p130, %p131
    %p133 = scmp.ne.s32.totalorder %s125, %s127
    %p134 = scmp.eq.s32.totalorder %s18, 1
    %p135 = por %p133, %p134
    %p136 = scmp.ne.s32.totalorder %s127, %s128
    %p137 = scmp.eq.s32.totalorder %s18, 0
    %p138 = por %p136, %p137
    %p139 = scmp.ne.s32.totalorder %s127, %s128
    %p140 = scmp.eq.s32.totalorder %s19, 1
    %p141 = por %p139, %p140
    %p143 = scmp.ne.s32.totalorder %s128, %s142
    %p144 = scmp.eq.s32.totalorder %s19, 0
    %p145 = por %p143, %p144
    %s147 = sadd.s32 %s146, 1
    %p150 = scmp.eq.s32.totalorder %s13, 1
    %p151 = scmp.ne.s32.totalorder %s146, %s148
    %p152 = scmp.eq.s32.totalorder %s13, 0
    %p153 = por %p151, %p152
    %p154 = scmp.ne.s32.totalorder %s146, %s148
    %p155 = scmp.eq.s32.totalorder %s18, 1
    %p156 = por %p154, %p155
    %p157 = scmp.ne.s32.totalorder %s148, %s149
    %p158 = scmp.eq.s32.totalorder %s18, 0
    %p159 = por %p157, %p158
    %p160 = scmp.ne.s32.totalorder %s148, %s149
    %p161 = scmp.eq.s32.totalorder %s19, 1
    %p162 = por %p160, %p161
    %p164 = scmp.ne.s32.totalorder %s149, %s163
    %p165 = scmp.eq.s32.totalorder %s19, 0
    %p166 = por %p164, %p165
    %s168 = sadd.s32 %s167, 1
    %p171 = scmp.eq.s32.totalorder %s13, 1
    %p172 = scmp.ne.s32.totalorder %s167, %s169
    %p173 = scmp.eq.s32.totalorder %s13, 0
    %p174 = por %p172, %p173
    %p175 = scmp.ne.s32.totalorder %s167, %s169
    %p176 = scmp.eq.s32.totalorder %s18, 1
    %p177 = por %p175, %p176
    %p178 = scmp.ne.s32.totalorder %s169, %s170
    %p179 = scmp.eq.s32.totalorder %s18, 0
    %p180 = por %p178, %p179
    %p181 = scmp.ne.s32.totalorder %s169, %s170
    %p182 = scmp.eq.s32.totalorder %s19, 1
    %p183 = por %p181, %p182
    %p185 = scmp.ne.s32.totalorder %s170, %s184
    %p186 = scmp.eq.s32.totalorder %s19, 0
    %p187 = por %p185, %p186
    %s188 = ssub.s32 %s13, %s20
    %p189 = scmp.eq.s32.totalorder %s188, 0
    %s191 = sadd.s32 %s190, 1
    %s192 = scalar_select %p189, %s190, %s191
    %p195 = pneg %p189
    %p196 = scmp.eq.s32.totalorder %s13, 1
    %p197 = por %p195, %p196
    %p198 = scmp.ne.s32.totalorder %s190, %s193
    %p199 = scmp.eq.s32.totalorder %s13, 0
    %p200 = por %p198, %p199
    %p201 = scmp.ne.s32.totalorder %s190, %s193
    %p202 = scmp.eq.s32.totalorder %s18, 1
    %p203 = por %p201, %p202
    %p204 = scmp.ne.s32.totalorder %s193, %s194
    %p205 = scmp.eq.s32.totalorder %s18, 0
    %p206 = por %p204, %p205
    %p207 = scmp.ne.s32.totalorder %s193, %s194
    %p208 = scmp.eq.s32.totalorder %s19, 1
    %p209 = por %p207, %p208
    %p211 = scmp.ne.s32.totalorder %s194, %s210
    %p212 = scmp.eq.s32.totalorder %s19, 0
    %p213 = por %p211, %p212
    %p214 = scmp.le.s32.totalorder 1, %s13
    %p215 = scmp.lt.s32.totalorder %s13, 3
    %p216 = pnand %p214, %p215
    %p217 = pneg %p216
    // Predicated region
    $region9: #{tpu_custom_call.1} parent=5 // pred_check
      _
    $region10: #{tpu_custom_call.1} parent=5 // pred_check_branch
      %219 = sbr.rel (%p216) target = $region12
    $region11: #{tpu_custom_call.1} parent=5 // pred_region
      %s220 = ssub.s32 %s13, 1
      // Predicated region
      $region13: #{tpu_custom_call.1} parent=11 // pred_check
        %p221 = pneg %p138
      $region14: #{tpu_custom_call.1} parent=11 // pred_check_branch
        %223 = sbr.rel (%p221) target = $region16
      $region15: #{tpu_custom_call.1} parent=11 // pred_region
        _
      $region16: #{tpu_custom_call.1} parent=11 // pred_fallthru
        _
      // Predicated region
      $region17: #{tpu_custom_call.1} parent=11 // pred_check
        %p224 = pneg %p159
      $region18: #{tpu_custom_call.1} parent=11 // pred_check_branch
        %226 = sbr.rel (%p224) target = $region20
      $region19: #{tpu_custom_call.1} parent=11 // pred_region
        _
      $region20: #{tpu_custom_call.1} parent=11 // pred_fallthru
        _
      // Predicated region
      $region21: #{tpu_custom_call.1} parent=11 // pred_check
        %p227 = pneg %p180
      $region22: #{tpu_custom_call.1} parent=11 // pred_check_branch
        %229 = sbr.rel (%p227) target = $region24
      $region23: #{tpu_custom_call.1} parent=11 // pred_region
        _
      $region24: #{tpu_custom_call.1} parent=11 // pred_fallthru
        _
    $region12: #{tpu_custom_call.1} parent=5 // pred_fallthru
      _
    %p230 = scmp.lt.s32.totalorder %s13, 2
    // Predicated region
    $region25: #{tpu_custom_call.1} parent=5 // pred_check
      %p231 = pneg %p230
    $region26: #{tpu_custom_call.1} parent=5 // pred_check_branch
      %233 = sbr.rel (%p231) target = $region28
    $region27: #{tpu_custom_call.1} parent=5 // pred_region
      // Predicated region
      $region29: #{tpu_custom_call.1} parent=27 // pred_check
        %p234 = pneg %p33
      $region30: #{tpu_custom_call.1} parent=27 // pred_check_branch
        %236 = sbr.rel (%p234) target = $region32
      $region31: #{tpu_custom_call.1} parent=27 // pred_region
        %s237 = smul.u32 16, %s13
        %p238 = scmp.lt.s32.totalorder %s237, 31
        %s239 = scalar_select %p238, %s237, 31
        %s240 = smul.addr %s239, 8
        %s241 = scalar_lea.vmem %s0, %s240
        %s242 = smul.u32 16, %s13
      $region32: #{tpu_custom_call.1} parent=27 // pred_fallthru
        _
      // Predicated region
      $region33: #{tpu_custom_call.1} parent=27 // pred_check
        %p243 = pneg %p59
      $region34: #{tpu_custom_call.1} parent=27 // pred_check_branch
        %245 = sbr.rel (%p243) target = $region36
      $region35: #{tpu_custom_call.1} parent=27 // pred_region
        %s246 = smul.u32 16, %s13
        %p247 = scmp.lt.s32.totalorder %s246, 31
        %s248 = scalar_select %p247, %s246, 31
        %s249 = smul.addr %s248, 8
        %s250 = scalar_lea.vmem %s1, %s249
        %s251 = smul.u32 16, %s13
      $region36: #{tpu_custom_call.1} parent=27 // pred_fallthru
        _
      // Predicated region
      $region37: #{tpu_custom_call.1} parent=27 // pred_check
        %p252 = pneg %p85
      $region38: #{tpu_custom_call.1} parent=27 // pred_check_branch
        %254 = sbr.rel (%p252) target = $region40
      $region39: #{tpu_custom_call.1} parent=27 // pred_region
        %s255 = smul.u32 16, %s13
        %p256 = scmp.lt.s32.totalorder %s255, 31
        %s257 = scalar_select %p256, %s255, 31
        %s258 = smul.addr %s257, 8
        %s259 = scalar_lea.vmem %s2, %s258
        %s260 = smul.u32 16, %s13
      $region40: #{tpu_custom_call.1} parent=27 // pred_fallthru
        _
      // Predicated region
      $region41: #{tpu_custom_call.1} parent=27 // pred_check
        %p261 = pneg %p111
      $region42: #{tpu_custom_call.1} parent=27 // pred_check_branch
        %263 = sbr.rel (%p261) target = $region44
      $region43: #{tpu_custom_call.1} parent=27 // pred_region
        %s264 = smul.u32 16, %s13
        %p265 = scmp.lt.s32.totalorder %s264, 31
        %s266 = scalar_select %p265, %s264, 31
        %s267 = smul.addr %s266, 8
        %s268 = scalar_lea.vmem %s3, %s267
        %s269 = smul.u32 16, %s13
      $region44: #{tpu_custom_call.1} parent=27 // pred_fallthru
        _
    $region28: #{tpu_custom_call.1} parent=5 // pred_fallthru
      _
    %p270 = scmp.le.s32.totalorder 1, %s13
    %p271 = scmp.lt.s32.totalorder %s13, 3
    %p272 = pnand %p270, %p271
    %p273 = pneg %p272
    // Predicated region
    $region45: #{tpu_custom_call.1} parent=5 // pred_check
      _
    $region46: #{tpu_custom_call.1} parent=5 // pred_check_branch
      %275 = sbr.rel (%p272) target = $region48
    $region47: #{tpu_custom_call.1} parent=5 // pred_region
      %s276 = ssub.s32 %s13, 1
      %s277 = smul.u32 16, %s18
      %p278 = scmp.lt.s32.totalorder %s277, 31
      %s279 = scalar_select %p278, %s277, 31
      %s280 = smul.addr %s279, 8
      %s281 = scalar_lea.vmem %s0, %s280
      %p282 = pneg %p39
      %p283 = pneg %p36
      %s284 = smul.u32 16, %s18
      %p285 = scmp.lt.s32.totalorder %s284, 31
      %s286 = scalar_select %p285, %s284, 31
      %s287 = smul.addr %s286, 8
      %s288 = scalar_lea.vmem %s1, %s287
      %p289 = pneg %p65
      %p290 = pneg %p62
      %s291 = smul.u32 16, %s18
      %p292 = scmp.lt.s32.totalorder %s291, 31
      %s293 = scalar_select %p292, %s291, 31
      %s294 = smul.addr %s293, 8
      %s295 = scalar_lea.vmem %s2, %s294
      %p296 = pneg %p91
      %p297 = pneg %p88
      %s298 = smul.u32 16, %s18
      %p299 = scmp.lt.s32.totalorder %s298, 31
      %s300 = scalar_select %p299, %s298, 31
      %s301 = smul.addr %s300, 8
      %s302 = scalar_lea.vmem %s3, %s301
      %p303 = pneg %p117
      %p304 = pneg %p114
      %p305 = pneg %p138
      %p306 = pneg %p135
      %p307 = pneg %p159
      %p308 = pneg %p156
      %p309 = pneg %p180
      %p310 = pneg %p177
      %p311 = pneg %p206
      %p312 = pneg %p203
      %s313 = smul.u32 16, %s18
      %p314 = scmp.lt.s32.totalorder %s313, 31
      %s315 = scalar_select %p314, %s313, 31
      %s316 = smul.addr %s315, 8
      %s317 = scalar_lea.vmem %s7, %s316
      %s318 = smul.u32 16, %s18
      %p319 = scmp.lt.s32.totalorder %s318, 31
      %s320 = scalar_select %p319, %s318, 31
      %s321 = smul.addr %s320, 8
      %s322 = scalar_lea.vmem %s0, %s321
      %s323 = smul.u32 16, %s18
      %s324 = smul.u32 16, %s18
      %p325 = scmp.lt.s32.totalorder %s324, 31
      %s326 = scalar_select %p325, %s324, 31
      %s327 = smul.addr %s326, 8
      %s328 = scalar_lea.vmem %s1, %s327
      %s329 = smul.u32 16, %s18
      %s330 = smul.u32 16, %s18
      %p331 = scmp.lt.s32.totalorder %s330, 31
      %s332 = scalar_select %p331, %s330, 31
      %s333 = smul.addr %s332, 8
      %s334 = scalar_lea.vmem %s2, %s333
      %s335 = smul.u32 16, %s18
      %s336 = smul.u32 16, %s18
      %p337 = scmp.lt.s32.totalorder %s336, 31
      %s338 = scalar_select %p337, %s336, 31
      %s339 = smul.addr %s338, 8
      %s340 = scalar_lea.vmem %s3, %s339
      %s341 = smul.u32 16, %s18
      %s342 = smul.u32 16, %s18
      %p343 = scmp.lt.s32.totalorder %s342, 31
      %s344 = scalar_select %p343, %s342, 31
      %s345 = smul.addr %s344, 8
      %s346 = scalar_lea.vmem %s7, %s345
      %s347 = smul.u32 16, %s18
      %v348 = vld [vmem:[%s328] sm:$0xff]
      %v349 = vld [vmem:[%s328 + $0x8] sm:$0xff]
      %v350 = vld [vmem:[%s328 + $0x10] sm:$0xff]
      %v351 = vld [vmem:[%s328 + $0x18] sm:$0xff]
      %v352 = vld [vmem:[%s328 + $0x20] sm:$0xff]
      %v353 = vld [vmem:[%s328 + $0x28] sm:$0xff]
      %v354 = vld [vmem:[%s328 + $0x30] sm:$0xff]
      %v355 = vld [vmem:[%s328 + $0x38] sm:$0xff]
      %v356 = vld [vmem:[%s328 + $0x40] sm:$0xff]
      %v357 = vld [vmem:[%s328 + $0x48] sm:$0xff]
      %v358 = vld [vmem:[%s328 + $0x50] sm:$0xff]
      %v359 = vld [vmem:[%s328 + $0x58] sm:$0xff]
      %v360 = vld [vmem:[%s328 + $0x60] sm:$0xff]
      %v361 = vld [vmem:[%s328 + $0x68] sm:$0xff]
      %v362 = vld [vmem:[%s328 + $0x70] sm:$0xff]
      %v363 = vld [vmem:[%s328 + $0x78] sm:$0xff]
      %v364 = vld [vmem:[%s334] sm:$0xff]
      %v365 = vld [vmem:[%s334 + $0x8] sm:$0xff]
      %v366 = vld [vmem:[%s334 + $0x10] sm:$0xff]
      %v367 = vld [vmem:[%s334 + $0x18] sm:$0xff]
      %v368 = vld [vmem:[%s334 + $0x20] sm:$0xff]
      %v369 = vld [vmem:[%s334 + $0x28] sm:$0xff]
      %v370 = vld [vmem:[%s334 + $0x30] sm:$0xff]
      %v371 = vld [vmem:[%s334 + $0x38] sm:$0xff]
      %v372 = vld [vmem:[%s334 + $0x40] sm:$0xff]
      %v373 = vld [vmem:[%s334 + $0x48] sm:$0xff]
      %v374 = vld [vmem:[%s334 + $0x50] sm:$0xff]
      %v375 = vld [vmem:[%s334 + $0x58] sm:$0xff]
      %v376 = vld [vmem:[%s334 + $0x60] sm:$0xff]
      %v377 = vld [vmem:[%s334 + $0x68] sm:$0xff]
      %v378 = vld [vmem:[%s334 + $0x70] sm:$0xff]
      %v379 = vld [vmem:[%s334 + $0x78] sm:$0xff]
      %v380 = vld [vmem:[%s4] sm:$0xff]
      %v381 = vld [vmem:[%s4 + $0x8] sm:$0xff]
      %v382 = vld [vmem:[%s4 + $0x10] sm:$0xf]
      %vm383 = vcmask 162816
      %v385 = vsel %vm383, %v348, 0
      %v388 = vsel %vm383, %v349, 0
      %v391 = vsel %vm383, %v350, 0
      %v394 = vsel %vm383, %v351, 0
      %v397 = vsel %vm383, %v352, 0
      %v400 = vsel %vm383, %v353, 0
      %v403 = vsel %vm383, %v354, 0
      %v406 = vsel %vm383, %v355, 0
      %v409 = vsel %vm383, %v356, 0
      %v412 = vsel %vm383, %v357, 0
      %v415 = vsel %vm383, %v358, 0
      %v418 = vsel %vm383, %v359, 0
      %v421 = vsel %vm383, %v360, 0
      %v424 = vsel %vm383, %v361, 0
      %v427 = vsel %vm383, %v362, 0
      %v430 = vsel %vm383, %v363, 0
      %vm432 = vcmask 1043456
      %v434 = vsel %vm432, %v382, 0
      %436 = vmatprep.subr.mxu0 0.0
      %437 = vmatpush1.msra.mxu0 %v380
      %438 = vmatprep.subr.mxu0 0.0
      %439 = vmatpush1.msra.mxu0 %v381
      %440 = vmatprep.subr.mxu0 0.0
      %441 = vmatpush1.msra.mxu0 %v434
      %442 = vmatprep.subr.mxu0 0.0
      %443 = vmatpush1.msra.mxu0 0.0
      %444 = vmatprep.subr.mxu0 0.0
      %445 = vmatpush1.msra.mxu0 0.0
      %446 = vmatprep.subr.mxu0 0.0
      %447 = vmatpush1.msra.mxu0 0.0
      %448 = vmatprep.subr.mxu0 0.0
      %449 = vmatpush1.msra.mxu0 0.0
      %450 = vmatprep.subr.mxu0 0.0
      %451 = vmatpush1.msra.mxu0 0.0
      %452 = vmatprep.subr.mxu0 0.0
      %453 = vmatpush1.msra.mxu0 0.0
      %454 = vmatprep.subr.mxu0 0.0
      %455 = vmatpush1.msra.mxu0 0.0
      %456 = vmatprep.subr.mxu0 0.0
      %457 = vmatpush1.msra.mxu0 0.0
      %458 = vmatprep.subr.mxu0 0.0
      %459 = vmatpush1.msra.mxu0 0.0
      %460 = vmatprep.subr.mxu0 0.0
      %461 = vmatpush1.msra.mxu0 0.0
      %462 = vmatprep.subr.mxu0 0.0
      %463 = vmatpush1.msra.mxu0 0.0
      %464 = vmatprep.subr.mxu0 0.0
      %465 = vmatpush1.msra.mxu0 0.0
      %466 = vmatprep.subr.mxu0 0.0
      %467 = vmatpush1.msra.mxu0 0.0
      %468 = vmatprep.subr.mxu0 0.0
      %469 = vmatpush1.msra.mxu0 0.0
      %470 = vmatprep.subr.mxu0 0.0
      %471 = vmatpush1.msra.mxu0 0.0
      %472 = vmatprep.subr.mxu0 0.0
      %473 = vmatpush1.msra.mxu0 0.0
      %474 = vmatprep.subr.mxu0 0.0
      %475 = vmatpush1.msra.mxu0 0.0
      %476 = vmatprep.subr.mxu0 0.0
      %477 = vmatpush1.msra.mxu0 0.0
      %478 = vmatprep.subr.mxu0 0.0
      %479 = vmatpush1.msra.mxu0 0.0
      %480 = vmatprep.subr.mxu0 0.0
      %481 = vmatpush1.msra.mxu0 0.0
      %482 = vmatprep.subr.mxu0 0.0
      %483 = vmatpush1.msra.mxu0 0.0
      %484 = vmatprep.subr.mxu0 0.0
      %485 = vmatpush1.msra.mxu0 0.0
      %486 = vmatprep.subr.mxu0 0.0
      %487 = vmatpush1.msra.mxu0 0.0
      %488 = vmatprep.subr.mxu0 0.0
      %489 = vmatpush1.msra.mxu0 0.0
      %490 = vmatprep.subr.mxu0 0.0
      %491 = vmatpush1.msra.mxu0 0.0
      %492 = vmatprep.subr.mxu0 0.0
      %493 = vmatpush1.msra.mxu0 0.0
      %494 = vmatprep.subr.mxu0 0.0
      %495 = vmatpush1.msra.mxu0 0.0
      %496 = vmatprep.subr.mxu0 0.0
      %497 = vmatpush1.msra.mxu0 0.0
      %498 = vmatprep.subr.mxu0 0.0
      %499 = vmatpush1.msra.mxu0 0.0
      %500 = vmatprep.mubr.f32.mxu0 0.0
      %501 = vmatmul.mubr.f32.gmra.mrb[0].mxu0 %v385
      %v502 = vpop.f32.mrb[0].mxu0
      %v503 = vadd.f32 0.0, %v502
      %v504 = vpop.f32.mrb[0].mxu0
      %505 = vmatprep.mubr.f32.mxu0 0.0
      %506 = vmatmul.mubr.f32.gmra.mrb[0].mxu0 %v388
      %v507 = vpop.f32.mrb[0].mxu0
      %v508 = vadd.f32 0.0, %v507
      %v509 = vpop.f32.mrb[0].mxu0
      %510 = vmatprep.mubr.f32.mxu0 0.0
      %511 = vmatmul.mubr.f32.gmra.mrb[0].mxu0 %v391
      %v512 = vpop.f32.mrb[0].mxu0
      %v513 = vadd.f32 0.0, %v512
      %v514 = vpop.f32.mrb[0].mxu0
      %515 = vmatprep.mubr.f32.mxu0 0.0
      %516 = vmatmul.mubr.f32.gmra.mrb[0].mxu0 %v394
      %v517 = vpop.f32.mrb[0].mxu0
      %v518 = vadd.f32 0.0, %v517
      %v519 = vpop.f32.mrb[0].mxu0
      %520 = vmatprep.mubr.f32.mxu0 0.0
      %521 = vmatmul.mubr.f32.gmra.mrb[0].mxu0 %v397
      %v522 = vpop.f32.mrb[0].mxu0
      %v523 = vadd.f32 0.0, %v522
      %v524 = vpop.f32.mrb[0].mxu0
      %525 = vmatprep.mubr.f32.mxu0 0.0
      %526 = vmatmul.mubr.f32.gmra.mrb[0].mxu0 %v400
      %v527 = vpop.f32.mrb[0].mxu0
      %v528 = vadd.f32 0.0, %v527
      %v529 = vpop.f32.mrb[0].mxu0
      %530 = vmatprep.mubr.f32.mxu0 0.0
      %531 = vmatmul.mubr.f32.gmra.mrb[0].mxu0 %v403
      %v532 = vpop.f32.mrb[0].mxu0
      %v533 = vadd.f32 0.0, %v532
      %v534 = vpop.f32.mrb[0].mxu0
      %535 = vmatprep.mubr.f32.mxu0 0.0
      %536 = vmatmul.mubr.f32.gmra.mrb[0].mxu0 %v406
      %v537 = vpop.f32.mrb[0].mxu0
      %v538 = vadd.f32 0.0, %v537
      %v539 = vpop.f32.mrb[0].mxu0
      %540 = vmatprep.mubr.f32.mxu0 0.0
      %541 = vmatmul.mubr.f32.gmra.mrb[0].mxu0 %v409
      %v542 = vpop.f32.mrb[0].mxu0
      %v543 = vadd.f32 0.0, %v542
      %v544 = vpop.f32.mrb[0].mxu0
      %545 = vmatprep.mubr.f32.mxu0 0.0
      %546 = vmatmul.mubr.f32.gmra.mrb[0].mxu0 %v412
      %v547 = vpop.f32.mrb[0].mxu0
      %v548 = vadd.f32 0.0, %v547
      %v549 = vpop.f32.mrb[0].mxu0
      %550 = vmatprep.mubr.f32.mxu0 0.0
      %551 = vmatmul.mubr.f32.gmra.mrb[0].mxu0 %v415
      %v552 = vpop.f32.mrb[0].mxu0
      %v553 = vadd.f32 0.0, %v552
      %v554 = vpop.f32.mrb[0].mxu0
      %555 = vmatprep.mubr.f32.mxu0 0.0
      %556 = vmatmul.mubr.f32.gmra.mrb[0].mxu0 %v418
      %v557 = vpop.f32.mrb[0].mxu0
      %v558 = vadd.f32 0.0, %v557
      %v559 = vpop.f32.mrb[0].mxu0
      %560 = vmatprep.mubr.f32.mxu0 0.0
      %561 = vmatmul.mubr.f32.gmra.mrb[0].mxu0 %v421
      %v562 = vpop.f32.mrb[0].mxu0
      %v563 = vadd.f32 0.0, %v562
      %v564 = vpop.f32.mrb[0].mxu0
      %565 = vmatprep.mubr.f32.mxu0 0.0
      %566 = vmatmul.mubr.f32.gmra.mrb[0].mxu0 %v424
      %v567 = vpop.f32.mrb[0].mxu0
      %v568 = vadd.f32 0.0, %v567
      %v569 = vpop.f32.mrb[0].mxu0
      %570 = vmatprep.mubr.f32.mxu0 0.0
      %571 = vmatmul.mubr.f32.gmra.mrb[0].mxu0 %v427
      %v572 = vpop.f32.mrb[0].mxu0
      %v573 = vadd.f32 0.0, %v572
      %v574 = vpop.f32.mrb[0].mxu0
      %575 = vmatprep.mubr.f32.mxu0 0.0
      %576 = vmatmul.mubr.f32.gmra.mrb[0].mxu0 %v430
      %v577 = vpop.f32.mrb[0].mxu0
      %v578 = vadd.f32 0.0, %v577
      %v579 = vpop.f32.mrb[0].mxu0
      %580 = vdwg.mxu0
      %v581 = vld [vmem:[%s5] sm:$0xff]
      %v582 = vld [vmem:[%s5 + $0x8] sm:$0xff]
      %vm583 = vcmask 130048
      %v585 = vsel %vm583, %v364, 0
      %v588 = vsel %vm583, %v365, 0
      %v591 = vsel %vm583, %v366, 0
      %v594 = vsel %vm583, %v367, 0
      %v597 = vsel %vm583, %v368, 0
      %v600 = vsel %vm583, %v369, 0
      %v603 = vsel %vm583, %v370, 0
      %v606 = vsel %vm583, %v371, 0
      %v609 = vsel %vm583, %v372, 0
      %v612 = vsel %vm583, %v373, 0
      %v615 = vsel %vm583, %v374, 0
      %v618 = vsel %vm583, %v375, 0
      %v621 = vsel %vm583, %v376, 0
      %v624 = vsel %vm583, %v377, 0
      %v627 = vsel %vm583, %v378, 0
      %v630 = vsel %vm583, %v379, 0
      %632 = vmatprep.subr.mxu0 0.0
      %633 = vmatpush1.msra.mxu0 %v581
      %634 = vmatprep.subr.mxu0 0.0
      %635 = vmatpush1.msra.mxu0 %v582
      %636 = vmatprep.subr.mxu0 0.0
      %637 = vmatpush1.msra.mxu0 0.0
      %638 = vmatprep.subr.mxu0 0.0
      %639 = vmatpush1.msra.mxu0 0.0
      %640 = vmatprep.subr.mxu0 0.0
      %641 = vmatpush1.msra.mxu0 0.0
      %642 = vmatprep.subr.mxu0 0.0
      %643 = vmatpush1.msra.mxu0 0.0
      %644 = vmatprep.subr.mxu0 0.0
      %645 = vmatpush1.msra.mxu0 0.0
      %646 = vmatprep.subr.mxu0 0.0
      %647 = vmatpush1.msra.mxu0 0.0
      %648 = vmatprep.subr.mxu0 0.0
      %649 = vmatpush1.msra.mxu0 0.0
      %650 = vmatprep.subr.mxu0 0.0
      %651 = vmatpush1.msra.mxu0 0.0
      %652 = vmatprep.subr.mxu0 0.0
      %653 = vmatpush1.msra.mxu0 0.0
      %654 = vmatprep.subr.mxu0 0.0
      %655 = vmatpush1.msra.mxu0 0.0
      %656 = vmatprep.subr.mxu0 0.0
      %657 = vmatpush1.msra.mxu0 0.0
      %658 = vmatprep.subr.mxu0 0.0
      %659 = vmatpush1.msra.mxu0 0.0
      %660 = vmatprep.subr.mxu0 0.0
      %661 = vmatpush1.msra.mxu0 0.0
      %662 = vmatprep.subr.mxu0 0.0
      %663 = vmatpush1.msra.mxu0 0.0
      %664 = vmatprep.subr.mxu0 0.0
      %665 = vmatpush1.msra.mxu0 0.0
      %666 = vmatprep.subr.mxu0 0.0
      %667 = vmatpush1.msra.mxu0 0.0
      %668 = vmatprep.subr.mxu0 0.0
      %669 = vmatpush1.msra.mxu0 0.0
      %670 = vmatprep.subr.mxu0 0.0
      %671 = vmatpush1.msra.mxu0 0.0
      %672 = vmatprep.subr.mxu0 0.0
      %673 = vmatpush1.msra.mxu0 0.0
      %674 = vmatprep.subr.mxu0 0.0
      %675 = vmatpush1.msra.mxu0 0.0
      %676 = vmatprep.subr.mxu0 0.0
      %677 = vmatpush1.msra.mxu0 0.0
      %678 = vmatprep.subr.mxu0 0.0
      %679 = vmatpush1.msra.mxu0 0.0
      %680 = vmatprep.subr.mxu0 0.0
      %681 = vmatpush1.msra.mxu0 0.0
      %682 = vmatprep.subr.mxu0 0.0
      %683 = vmatpush1.msra.mxu0 0.0
      %684 = vmatprep.subr.mxu0 0.0
      %685 = vmatpush1.msra.mxu0 0.0
      %686 = vmatprep.subr.mxu0 0.0
      %687 = vmatpush1.msra.mxu0 0.0
      %688 = vmatprep.subr.mxu0 0.0
      %689 = vmatpush1.msra.mxu0 0.0
      %690 = vmatprep.subr.mxu0 0.0
      %691 = vmatpush1.msra.mxu0 0.0
      %692 = vmatprep.subr.mxu0 0.0
      %693 = vmatpush1.msra.mxu0 0.0
      %694 = vmatprep.subr.mxu0 0.0
      %695 = vmatpush1.msra.mxu0 0.0
      %696 = vmatprep.mubr.f32.mxu0 0.0
      %697 = vmatmul.mubr.f32.gmra.mrb[0].mxu0 %v585
      %v698 = vpop.f32.mrb[0].mxu0
      %v699 = vadd.f32 0.0, %v698
      %v700 = vpop.f32.mrb[0].mxu0
      %701 = vmatprep.mubr.f32.mxu0 0.0
      %702 = vmatmul.mubr.f32.gmra.mrb[0].mxu0 %v588
      %v703 = vpop.f32.mrb[0].mxu0
      %v704 = vadd.f32 0.0, %v703
      %v705 = vpop.f32.mrb[0].mxu0
      %706 = vmatprep.mubr.f32.mxu0 0.0
      %707 = vmatmul.mubr.f32.gmra.mrb[0].mxu0 %v591
      %v708 = vpop.f32.mrb[0].mxu0
      %v709 = vadd.f32 0.0, %v708
      %v710 = vpop.f32.mrb[0].mxu0
      %711 = vmatprep.mubr.f32.mxu0 0.0
      %712 = vmatmul.mubr.f32.gmra.mrb[0].mxu0 %v594
      %v713 = vpop.f32.mrb[0].mxu0
      %v714 = vadd.f32 0.0, %v713
      %v715 = vpop.f32.mrb[0].mxu0
      %716 = vmatprep.mubr.f32.mxu0 0.0
      %717 = vmatmul.mubr.f32.gmra.mrb[0].mxu0 %v597
      %v718 = vpop.f32.mrb[0].mxu0
      %v719 = vadd.f32 0.0, %v718
      %v720 = vpop.f32.mrb[0].mxu0
      %721 = vmatprep.mubr.f32.mxu0 0.0
      %722 = vmatmul.mubr.f32.gmra.mrb[0].mxu0 %v600
      %v723 = vpop.f32.mrb[0].mxu0
      %v724 = vadd.f32 0.0, %v723
      %v725 = vpop.f32.mrb[0].mxu0
      %726 = vmatprep.mubr.f32.mxu0 0.0
      %727 = vmatmul.mubr.f32.gmra.mrb[0].mxu0 %v603
      %v728 = vpop.f32.mrb[0].mxu0
      %v729 = vadd.f32 0.0, %v728
      %v730 = vpop.f32.mrb[0].mxu0
      %731 = vmatprep.mubr.f32.mxu0 0.0
      %732 = vmatmul.mubr.f32.gmra.mrb[0].mxu0 %v606
      %v733 = vpop.f32.mrb[0].mxu0
      %v734 = vadd.f32 0.0, %v733
      %v735 = vpop.f32.mrb[0].mxu0
      %736 = vmatprep.mubr.f32.mxu0 0.0
      %737 = vmatmul.mubr.f32.gmra.mrb[0].mxu0 %v609
      %v738 = vpop.f32.mrb[0].mxu0
      %v739 = vadd.f32 0.0, %v738
      %v740 = vpop.f32.mrb[0].mxu0
      %741 = vmatprep.mubr.f32.mxu0 0.0
      %742 = vmatmul.mubr.f32.gmra.mrb[0].mxu0 %v612
      %v743 = vpop.f32.mrb[0].mxu0
      %v744 = vadd.f32 0.0, %v743
      %v745 = vpop.f32.mrb[0].mxu0
      %746 = vmatprep.mubr.f32.mxu0 0.0
      %747 = vmatmul.mubr.f32.gmra.mrb[0].mxu0 %v615
      %v748 = vpop.f32.mrb[0].mxu0
      %v749 = vadd.f32 0.0, %v748
      %v750 = vpop.f32.mrb[0].mxu0
      %751 = vmatprep.mubr.f32.mxu0 0.0
      %752 = vmatmul.mubr.f32.gmra.mrb[0].mxu0 %v618
      %v753 = vpop.f32.mrb[0].mxu0
      %v754 = vadd.f32 0.0, %v753
      %v755 = vpop.f32.mrb[0].mxu0
      %756 = vmatprep.mubr.f32.mxu0 0.0
      %757 = vmatmul.mubr.f32.gmra.mrb[0].mxu0 %v621
      %v758 = vpop.f32.mrb[0].mxu0
      %v759 = vadd.f32 0.0, %v758
      %v760 = vpop.f32.mrb[0].mxu0
      %761 = vmatprep.mubr.f32.mxu0 0.0
      %762 = vmatmul.mubr.f32.gmra.mrb[0].mxu0 %v624
      %v763 = vpop.f32.mrb[0].mxu0
      %v764 = vadd.f32 0.0, %v763
      %v765 = vpop.f32.mrb[0].mxu0
      %766 = vmatprep.mubr.f32.mxu0 0.0
      %767 = vmatmul.mubr.f32.gmra.mrb[0].mxu0 %v627
      %v768 = vpop.f32.mrb[0].mxu0
      %v769 = vadd.f32 0.0, %v768
      %v770 = vpop.f32.mrb[0].mxu0
      %771 = vmatprep.mubr.f32.mxu0 0.0
      %772 = vmatmul.mubr.f32.gmra.mrb[0].mxu0 %v630
      %v773 = vpop.f32.mrb[0].mxu0
      %v774 = vadd.f32 0.0, %v773
      %v775 = vpop.f32.mrb[0].mxu0
      %776 = vdwg.mxu0
      %777 = vxpose.xlu0.b32.start [1/16] %v699, 128
      %778 = vxpose.xlu0.b32.cont [2/16] 0.0, 128
      %779 = vxpose.xlu0.b32.cont [3/16] 0.0, 128
      %780 = vxpose.xlu0.b32.cont [4/16] 0.0, 128
      %781 = vxpose.xlu0.b32.cont [5/16] 0.0, 128
      %782 = vxpose.xlu0.b32.cont [6/16] 0.0, 128
      %783 = vxpose.xlu0.b32.cont [7/16] 0.0, 128
      %784 = vxpose.xlu0.b32.cont [8/16] 0.0, 128
      %785 = vxpose.xlu0.b32.cont [9/16] 0.0, 128
      %786 = vxpose.xlu0.b32.cont [10/16] 0.0, 128
      %787 = vxpose.xlu0.b32.cont [11/16] 0.0, 128
      %788 = vxpose.xlu0.b32.cont [12/16] 0.0, 128
      %789 = vxpose.xlu0.b32.cont [13/16] 0.0, 128
      %790 = vxpose.xlu0.b32.cont [14/16] 0.0, 128
      %791 = vxpose.xlu0.b32.cont [15/16] 0.0, 128
      %792 = vxpose.xlu0.b32.end [16/16] 0.0, 128
      %v793 = vpop.trf.xlu0
      %v794 = vpop.trf.xlu0
      %v795 = vpop.trf.xlu0
      %v796 = vpop.trf.xlu0
      %v797 = vpop.trf.xlu0
      %v798 = vpop.trf.xlu0
      %v799 = vpop.trf.xlu0
      %v800 = vpop.trf.xlu0
      %v801 = vpop.trf.xlu0
      %v802 = vpop.trf.xlu0
      %v803 = vpop.trf.xlu0
      %v804 = vpop.trf.xlu0
      %v805 = vpop.trf.xlu0
      %v806 = vpop.trf.xlu0
      %v807 = vpop.trf.xlu0
      %v808 = vpop.trf.xlu0
      %809 = vxpose.xlu0.b32.start [1/16] %v704, 128
      %810 = vxpose.xlu0.b32.cont [2/16] 0.0, 128
      %811 = vxpose.xlu0.b32.cont [3/16] 0.0, 128
      %812 = vxpose.xlu0.b32.cont [4/16] 0.0, 128
      %813 = vxpose.xlu0.b32.cont [5/16] 0.0, 128
      %814 = vxpose.xlu0.b32.cont [6/16] 0.0, 128
      %815 = vxpose.xlu0.b32.cont [7/16] 0.0, 128
      %816 = vxpose.xlu0.b32.cont [8/16] 0.0, 128
      %817 = vxpose.xlu0.b32.cont [9/16] 0.0, 128
      %818 = vxpose.xlu0.b32.cont [10/16] 0.0, 128
      %819 = vxpose.xlu0.b32.cont [11/16] 0.0, 128
      %820 = vxpose.xlu0.b32.cont [12/16] 0.0, 128
      %821 = vxpose.xlu0.b32.cont [13/16] 0.0, 128
      %822 = vxpose.xlu0.b32.cont [14/16] 0.0, 128
      %823 = vxpose.xlu0.b32.cont [15/16] 0.0, 128
      %824 = vxpose.xlu0.b32.end [16/16] 0.0, 128
      %v825 = vpop.trf.xlu0
      %v826 = vpop.trf.xlu0
      %v827 = vpop.trf.xlu0
      %v828 = vpop.trf.xlu0
      %v829 = vpop.trf.xlu0
      %v830 = vpop.trf.xlu0
      %v831 = vpop.trf.xlu0
      %v832 = vpop.trf.xlu0
      %v833 = vpop.trf.xlu0
      %v834 = vpop.trf.xlu0
      %v835 = vpop.trf.xlu0
      %v836 = vpop.trf.xlu0
      %v837 = vpop.trf.xlu0
      %v838 = vpop.trf.xlu0
      %v839 = vpop.trf.xlu0
      %v840 = vpop.trf.xlu0
      %841 = vxpose.xlu0.b32.start [1/16] %v709, 128
      %842 = vxpose.xlu0.b32.cont [2/16] 0.0, 128
      %843 = vxpose.xlu0.b32.cont [3/16] 0.0, 128
      %844 = vxpose.xlu0.b32.cont [4/16] 0.0, 128
      %845 = vxpose.xlu0.b32.cont [5/16] 0.0, 128
      %846 = vxpose.xlu0.b32.cont [6/16] 0.0, 128
      %847 = vxpose.xlu0.b32.cont [7/16] 0.0, 128
      %848 = vxpose.xlu0.b32.cont [8/16] 0.0, 128
      %849 = vxpose.xlu0.b32.cont [9/16] 0.0, 128
      %850 = vxpose.xlu0.b32.cont [10/16] 0.0, 128
      %851 = vxpose.xlu0.b32.cont [11/16] 0.0, 128
      %852 = vxpose.xlu0.b32.cont [12/16] 0.0, 128
      %853 = vxpose.xlu0.b32.cont [13/16] 0.0, 128
      %854 = vxpose.xlu0.b32.cont [14/16] 0.0, 128
      %855 = vxpose.xlu0.b32.cont [15/16] 0.0, 128
      %856 = vxpose.xlu0.b32.end [16/16] 0.0, 128
      %v857 = vpop.trf.xlu0
      %v858 = vpop.trf.xlu0
      %v859 = vpop.trf.xlu0
      %v860 = vpop.trf.xlu0
      %v861 = vpop.trf.xlu0
      %v862 = vpop.trf.xlu0
      %v863 = vpop.trf.xlu0
      %v864 = vpop.trf.xlu0
      %v865 = vpop.trf.xlu0
      %v866 = vpop.trf.xlu0
      %v867 = vpop.trf.xlu0
      %v868 = vpop.trf.xlu0
      %v869 = vpop.trf.xlu0
      %v870 = vpop.trf.xlu0
      %v871 = vpop.trf.xlu0
      %v872 = vpop.trf.xlu0
      %873 = vxpose.xlu0.b32.start [1/16] %v714, 128
      %874 = vxpose.xlu0.b32.cont [2/16] 0.0, 128
      %875 = vxpose.xlu0.b32.cont [3/16] 0.0, 128
      %876 = vxpose.xlu0.b32.cont [4/16] 0.0, 128
      %877 = vxpose.xlu0.b32.cont [5/16] 0.0, 128
      %878 = vxpose.xlu0.b32.cont [6/16] 0.0, 128
      %879 = vxpose.xlu0.b32.cont [7/16] 0.0, 128
      %880 = vxpose.xlu0.b32.cont [8/16] 0.0, 128
      %881 = vxpose.xlu0.b32.cont [9/16] 0.0, 128
      %882 = vxpose.xlu0.b32.cont [10/16] 0.0, 128
      %883 = vxpose.xlu0.b32.cont [11/16] 0.0, 128
      %884 = vxpose.xlu0.b32.cont [12/16] 0.0, 128
      %885 = vxpose.xlu0.b32.cont [13/16] 0.0, 128
      %886 = vxpose.xlu0.b32.cont [14/16] 0.0, 128
      %887 = vxpose.xlu0.b32.cont [15/16] 0.0, 128
      %888 = vxpose.xlu0.b32.end [16/16] 0.0, 128
      %v889 = vpop.trf.xlu0
      %v890 = vpop.trf.xlu0
      %v891 = vpop.trf.xlu0
      %v892 = vpop.trf.xlu0
      %v893 = vpop.trf.xlu0
      %v894 = vpop.trf.xlu0
      %v895 = vpop.trf.xlu0
      %v896 = vpop.trf.xlu0
      %v897 = vpop.trf.xlu0
      %v898 = vpop.trf.xlu0
      %v899 = vpop.trf.xlu0
      %v900 = vpop.trf.xlu0
      %v901 = vpop.trf.xlu0
      %v902 = vpop.trf.xlu0
      %v903 = vpop.trf.xlu0
      %v904 = vpop.trf.xlu0
      %905 = vxpose.xlu0.b32.start [1/16] %v719, 128
      %906 = vxpose.xlu0.b32.cont [2/16] 0.0, 128
      %907 = vxpose.xlu0.b32.cont [3/16] 0.0, 128
      %908 = vxpose.xlu0.b32.cont [4/16] 0.0, 128
      %909 = vxpose.xlu0.b32.cont [5/16] 0.0, 128
      %910 = vxpose.xlu0.b32.cont [6/16] 0.0, 128
      %911 = vxpose.xlu0.b32.cont [7/16] 0.0, 128
      %912 = vxpose.xlu0.b32.cont [8/16] 0.0, 128
      %913 = vxpose.xlu0.b32.cont [9/16] 0.0, 128
      %914 = vxpose.xlu0.b32.cont [10/16] 0.0, 128
      %915 = vxpose.xlu0.b32.cont [11/16] 0.0, 128
      %916 = vxpose.xlu0.b32.cont [12/16] 0.0, 128
      %917 = vxpose.xlu0.b32.cont [13/16] 0.0, 128
      %918 = vxpose.xlu0.b32.cont [14/16] 0.0, 128
      %919 = vxpose.xlu0.b32.cont [15/16] 0.0, 128
      %920 = vxpose.xlu0.b32.end [16/16] 0.0, 128
      %v921 = vpop.trf.xlu0
      %v922 = vpop.trf.xlu0
      %v923 = vpop.trf.xlu0
      %v924 = vpop.trf.xlu0
      %v925 = vpop.trf.xlu0
      %v926 = vpop.trf.xlu0
      %v927 = vpop.trf.xlu0
      %v928 = vpop.trf.xlu0
      %v929 = vpop.trf.xlu0
      %v930 = vpop.trf.xlu0
      %v931 = vpop.trf.xlu0
      %v932 = vpop.trf.xlu0
      %v933 = vpop.trf.xlu0
      %v934 = vpop.trf.xlu0
      %v935 = vpop.trf.xlu0
      %v936 = vpop.trf.xlu0
      %937 = vxpose.xlu0.b32.start [1/16] %v724, 128
      %938 = vxpose.xlu0.b32.cont [2/16] 0.0, 128
      %939 = vxpose.xlu0.b32.cont [3/16] 0.0, 128
      %940 = vxpose.xlu0.b32.cont [4/16] 0.0, 128
      %941 = vxpose.xlu0.b32.cont [5/16] 0.0, 128
      %942 = vxpose.xlu0.b32.cont [6/16] 0.0, 128
      %943 = vxpose.xlu0.b32.cont [7/16] 0.0, 128
      %944 = vxpose.xlu0.b32.cont [8/16] 0.0, 128
      %945 = vxpose.xlu0.b32.cont [9/16] 0.0, 128
      %946 = vxpose.xlu0.b32.cont [10/16] 0.0, 128
      %947 = vxpose.xlu0.b32.cont [11/16] 0.0, 128
      %948 = vxpose.xlu0.b32.cont [12/16] 0.0, 128
      %949 = vxpose.xlu0.b32.cont [13/16] 0.0, 128
      %950 = vxpose.xlu0.b32.cont [14/16] 0.0, 128
      %951 = vxpose.xlu0.b32.cont [15/16] 0.0, 128
      %952 = vxpose.xlu0.b32.end [16/16] 0.0, 128
      %v953 = vpop.trf.xlu0
      %v954 = vpop.trf.xlu0
      %v955 = vpop.trf.xlu0
      %v956 = vpop.trf.xlu0
      %v957 = vpop.trf.xlu0
      %v958 = vpop.trf.xlu0
      %v959 = vpop.trf.xlu0
      %v960 = vpop.trf.xlu0
      %v961 = vpop.trf.xlu0
      %v962 = vpop.trf.xlu0
      %v963 = vpop.trf.xlu0
      %v964 = vpop.trf.xlu0
      %v965 = vpop.trf.xlu0
      %v966 = vpop.trf.xlu0
      %v967 = vpop.trf.xlu0
      %v968 = vpop.trf.xlu0
      %969 = vxpose.xlu0.b32.start [1/16] %v729, 128
      %970 = vxpose.xlu0.b32.cont [2/16] 0.0, 128
      %971 = vxpose.xlu0.b32.cont [3/16] 0.0, 128
      %972 = vxpose.xlu0.b32.cont [4/16] 0.0, 128
      %973 = vxpose.xlu0.b32.cont [5/16] 0.0, 128
      %974 = vxpose.xlu0.b32.cont [6/16] 0.0, 128
      %975 = vxpose.xlu0.b32.cont [7/16] 0.0, 128
      %976 = vxpose.xlu0.b32.cont [8/16] 0.0, 128
      %977 = vxpose.xlu0.b32.cont [9/16] 0.0, 128
      %978 = vxpose.xlu0.b32.cont [10/16] 0.0, 128
      %979 = vxpose.xlu0.b32.cont [11/16] 0.0, 128
      %980 = vxpose.xlu0.b32.cont [12/16] 0.0, 128
      %981 = vxpose.xlu0.b32.cont [13/16] 0.0, 128
      %982 = vxpose.xlu0.b32.cont [14/16] 0.0, 128
      %983 = vxpose.xlu0.b32.cont [15/16] 0.0, 128
      %984 = vxpose.xlu0.b32.end [16/16] 0.0, 128
      %v985 = vpop.trf.xlu0
      %v986 = vpop.trf.xlu0
      %v987 = vpop.trf.xlu0
      %v988 = vpop.trf.xlu0
      %v989 = vpop.trf.xlu0
      %v990 = vpop.trf.xlu0
      %v991 = vpop.trf.xlu0
      %v992 = vpop.trf.xlu0
      %v993 = vpop.trf.xlu0
      %v994 = vpop.trf.xlu0
      %v995 = vpop.trf.xlu0
      %v996 = vpop.trf.xlu0
      %v997 = vpop.trf.xlu0
      %v998 = vpop.trf.xlu0
      %v999 = vpop.trf.xlu0
      %v1000 = vpop.trf.xlu0
      %1001 = vxpose.xlu0.b32.start [1/16] %v734, 128
      %1002 = vxpose.xlu0.b32.cont [2/16] 0.0, 128
      %1003 = vxpose.xlu0.b32.cont [3/16] 0.0, 128
      %1004 = vxpose.xlu0.b32.cont [4/16] 0.0, 128
      %1005 = vxpose.xlu0.b32.cont [5/16] 0.0, 128
      %1006 = vxpose.xlu0.b32.cont [6/16] 0.0, 128
      %1007 = vxpose.xlu0.b32.cont [7/16] 0.0, 128
      %1008 = vxpose.xlu0.b32.cont [8/16] 0.0, 128
      %1009 = vxpose.xlu0.b32.cont [9/16] 0.0, 128
      %1010 = vxpose.xlu0.b32.cont [10/16] 0.0, 128
      %1011 = vxpose.xlu0.b32.cont [11/16] 0.0, 128
      %1012 = vxpose.xlu0.b32.cont [12/16] 0.0, 128
      %1013 = vxpose.xlu0.b32.cont [13/16] 0.0, 128
      %1014 = vxpose.xlu0.b32.cont [14/16] 0.0, 128
      %1015 = vxpose.xlu0.b32.cont [15/16] 0.0, 128
      %1016 = vxpose.xlu0.b32.end [16/16] 0.0, 128
      %v1017 = vpop.trf.xlu0
      %v1018 = vpop.trf.xlu0
      %v1019 = vpop.trf.xlu0
      %v1020 = vpop.trf.xlu0
      %v1021 = vpop.trf.xlu0
      %v1022 = vpop.trf.xlu0
      %v1023 = vpop.trf.xlu0
      %v1024 = vpop.trf.xlu0
      %v1025 = vpop.trf.xlu0
      %v1026 = vpop.trf.xlu0
      %v1027 = vpop.trf.xlu0
      %v1028 = vpop.trf.xlu0
      %v1029 = vpop.trf.xlu0
      %v1030 = vpop.trf.xlu0
      %v1031 = vpop.trf.xlu0
      %v1032 = vpop.trf.xlu0
      %1033 = vxpose.xlu0.b32.start [1/16] %v739, 128
      %1034 = vxpose.xlu0.b32.cont [2/16] 0.0, 128
      %1035 = vxpose.xlu0.b32.cont [3/16] 0.0, 128
      %1036 = vxpose.xlu0.b32.cont [4/16] 0.0, 128
      %1037 = vxpose.xlu0.b32.cont [5/16] 0.0, 128
      %1038 = vxpose.xlu0.b32.cont [6/16] 0.0, 128
      %1039 = vxpose.xlu0.b32.cont [7/16] 0.0, 128
      %1040 = vxpose.xlu0.b32.cont [8/16] 0.0, 128
      %1041 = vxpose.xlu0.b32.cont [9/16] 0.0, 128
      %1042 = vxpose.xlu0.b32.cont [10/16] 0.0, 128
      %1043 = vxpose.xlu0.b32.cont [11/16] 0.0, 128
      %1044 = vxpose.xlu0.b32.cont [12/16] 0.0, 128
      %1045 = vxpose.xlu0.b32.cont [13/16] 0.0, 128
      %1046 = vxpose.xlu0.b32.cont [14/16] 0.0, 128
      %1047 = vxpose.xlu0.b32.cont [15/16] 0.0, 128
      %1048 = vxpose.xlu0.b32.end [16/16] 0.0, 128
      %v1049 = vpop.trf.xlu0
      %v1050 = vpop.trf.xlu0
      %v1051 = vpop.trf.xlu0
      %v1052 = vpop.trf.xlu0
      %v1053 = vpop.trf.xlu0
      %v1054 = vpop.trf.xlu0
      %v1055 = vpop.trf.xlu0
      %v1056 = vpop.trf.xlu0
      %v1057 = vpop.trf.xlu0
      %v1058 = vpop.trf.xlu0
      %v1059 = vpop.trf.xlu0
      %v1060 = vpop.trf.xlu0
      %v1061 = vpop.trf.xlu0
      %v1062 = vpop.trf.xlu0
      %v1063 = vpop.trf.xlu0
      %v1064 = vpop.trf.xlu0
      %1065 = vxpose.xlu0.b32.start [1/16] %v744, 128
      %1066 = vxpose.xlu0.b32.cont [2/16] 0.0, 128
      %1067 = vxpose.xlu0.b32.cont [3/16] 0.0, 128
      %1068 = vxpose.xlu0.b32.cont [4/16] 0.0, 128
      %1069 = vxpose.xlu0.b32.cont [5/16] 0.0, 128
      %1070 = vxpose.xlu0.b32.cont [6/16] 0.0, 128
      %1071 = vxpose.xlu0.b32.cont [7/16] 0.0, 128
      %1072 = vxpose.xlu0.b32.cont [8/16] 0.0, 128
      %1073 = vxpose.xlu0.b32.cont [9/16] 0.0, 128
      %1074 = vxpose.xlu0.b32.cont [10/16] 0.0, 128
      %1075 = vxpose.xlu0.b32.cont [11/16] 0.0, 128
      %1076 = vxpose.xlu0.b32.cont [12/16] 0.0, 128
      %1077 = vxpose.xlu0.b32.cont [13/16] 0.0, 128
      %1078 = vxpose.xlu0.b32.cont [14/16] 0.0, 128
      %1079 = vxpose.xlu0.b32.cont [15/16] 0.0, 128
      %1080 = vxpose.xlu0.b32.end [16/16] 0.0, 128
      %v1081 = vpop.trf.xlu0
      %v1082 = vpop.trf.xlu0
      %v1083 = vpop.trf.xlu0
      %v1084 = vpop.trf.xlu0
      %v1085 = vpop.trf.xlu0
      %v1086 = vpop.trf.xlu0
      %v1087 = vpop.trf.xlu0
      %v1088 = vpop.trf.xlu0
      %v1089 = vpop.trf.xlu0
      %v1090 = vpop.trf.xlu0
      %v1091 = vpop.trf.xlu0
      %v1092 = vpop.trf.xlu0
      %v1093 = vpop.trf.xlu0
      %v1094 = vpop.trf.xlu0
      %v1095 = vpop.trf.xlu0
      %v1096 = vpop.trf.xlu0
      %1097 = vxpose.xlu0.b32.start [1/16] %v749, 128
      %1098 = vxpose.xlu0.b32.cont [2/16] 0.0, 128
      %1099 = vxpose.xlu0.b32.cont [3/16] 0.0, 128
      %1100 = vxpose.xlu0.b32.cont [4/16] 0.0, 128
      %1101 = vxpose.xlu0.b32.cont [5/16] 0.0, 128
      %1102 = vxpose.xlu0.b32.cont [6/16] 0.0, 128
      %1103 = vxpose.xlu0.b32.cont [7/16] 0.0, 128
      %1104 = vxpose.xlu0.b32.cont [8/16] 0.0, 128
      %1105 = vxpose.xlu0.b32.cont [9/16] 0.0, 128
      %1106 = vxpose.xlu0.b32.cont [10/16] 0.0, 128
      %1107 = vxpose.xlu0.b32.cont [11/16] 0.0, 128
      %1108 = vxpose.xlu0.b32.cont [12/16] 0.0, 128
      %1109 = vxpose.xlu0.b32.cont [13/16] 0.0, 128
      %1110 = vxpose.xlu0.b32.cont [14/16] 0.0, 128
      %1111 = vxpose.xlu0.b32.cont [15/16] 0.0, 128
      %1112 = vxpose.xlu0.b32.end [16/16] 0.0, 128
      %v1113 = vpop.trf.xlu0
      %v1114 = vpop.trf.xlu0
      %v1115 = vpop.trf.xlu0
      %v1116 = vpop.trf.xlu0
      %v1117 = vpop.trf.xlu0
      %v1118 = vpop.trf.xlu0
      %v1119 = vpop.trf.xlu0
      %v1120 = vpop.trf.xlu0
      %v1121 = vpop.trf.xlu0
      %v1122 = vpop.trf.xlu0
      %v1123 = vpop.trf.xlu0
      %v1124 = vpop.trf.xlu0
      %v1125 = vpop.trf.xlu0
      %v1126 = vpop.trf.xlu0
      %v1127 = vpop.trf.xlu0
      %v1128 = vpop.trf.xlu0
      %1129 = vxpose.xlu0.b32.start [1/16] %v754, 128
      %1130 = vxpose.xlu0.b32.cont [2/16] 0.0, 128
      %1131 = vxpose.xlu0.b32.cont [3/16] 0.0, 128
      %1132 = vxpose.xlu0.b32.cont [4/16] 0.0, 128
      %1133 = vxpose.xlu0.b32.cont [5/16] 0.0, 128
      %1134 = vxpose.xlu0.b32.cont [6/16] 0.0, 128
      %1135 = vxpose.xlu0.b32.cont [7/16] 0.0, 128
      %1136 = vxpose.xlu0.b32.cont [8/16] 0.0, 128
      %1137 = vxpose.xlu0.b32.cont [9/16] 0.0, 128
      %1138 = vxpose.xlu0.b32.cont [10/16] 0.0, 128
      %1139 = vxpose.xlu0.b32.cont [11/16] 0.0, 128
      %1140 = vxpose.xlu0.b32.cont [12/16] 0.0, 128
      %1141 = vxpose.xlu0.b32.cont [13/16] 0.0, 128
      %1142 = vxpose.xlu0.b32.cont [14/16] 0.0, 128
      %1143 = vxpose.xlu0.b32.cont [15/16] 0.0, 128
      %1144 = vxpose.xlu0.b32.end [16/16] 0.0, 128
      %v1145 = vpop.trf.xlu0
      %v1146 = vpop.trf.xlu0
      %v1147 = vpop.trf.xlu0
      %v1148 = vpop.trf.xlu0
      %v1149 = vpop.trf.xlu0
      %v1150 = vpop.trf.xlu0
      %v1151 = vpop.trf.xlu0
      %v1152 = vpop.trf.xlu0
      %v1153 = vpop.trf.xlu0
      %v1154 = vpop.trf.xlu0
      %v1155 = vpop.trf.xlu0
      %v1156 = vpop.trf.xlu0
      %v1157 = vpop.trf.xlu0
      %v1158 = vpop.trf.xlu0
      %v1159 = vpop.trf.xlu0
      %v1160 = vpop.trf.xlu0
      %1161 = vxpose.xlu0.b32.start [1/16] %v759, 128
      %1162 = vxpose.xlu0.b32.cont [2/16] 0.0, 128
      %1163 = vxpose.xlu0.b32.cont [3/16] 0.0, 128
      %1164 = vxpose.xlu0.b32.cont [4/16] 0.0, 128
      %1165 = vxpose.xlu0.b32.cont [5/16] 0.0, 128
      %1166 = vxpose.xlu0.b32.cont [6/16] 0.0, 128
      %1167 = vxpose.xlu0.b32.cont [7/16] 0.0, 128
      %1168 = vxpose.xlu0.b32.cont [8/16] 0.0, 128
      %1169 = vxpose.xlu0.b32.cont [9/16] 0.0, 128
      %1170 = vxpose.xlu0.b32.cont [10/16] 0.0, 128
      %1171 = vxpose.xlu0.b32.cont [11/16] 0.0, 128
      %1172 = vxpose.xlu0.b32.cont [12/16] 0.0, 128
      %1173 = vxpose.xlu0.b32.cont [13/16] 0.0, 128
      %1174 = vxpose.xlu0.b32.cont [14/16] 0.0, 128
      %1175 = vxpose.xlu0.b32.cont [15/16] 0.0, 128
      %1176 = vxpose.xlu0.b32.end [16/16] 0.0, 128
      %v1177 = vpop.trf.xlu0
      %v1178 = vpop.trf.xlu0
      %v1179 = vpop.trf.xlu0
      %v1180 = vpop.trf.xlu0
      %v1181 = vpop.trf.xlu0
      %v1182 = vpop.trf.xlu0
      %v1183 = vpop.trf.xlu0
      %v1184 = vpop.trf.xlu0
      %v1185 = vpop.trf.xlu0
      %v1186 = vpop.trf.xlu0
      %v1187 = vpop.trf.xlu0
      %v1188 = vpop.trf.xlu0
      %v1189 = vpop.trf.xlu0
      %v1190 = vpop.trf.xlu0
      %v1191 = vpop.trf.xlu0
      %v1192 = vpop.trf.xlu0
      %1193 = vxpose.xlu0.b32.start [1/16] %v764, 128
      %1194 = vxpose.xlu0.b32.cont [2/16] 0.0, 128
      %1195 = vxpose.xlu0.b32.cont [3/16] 0.0, 128
      %1196 = vxpose.xlu0.b32.cont [4/16] 0.0, 128
      %1197 = vxpose.xlu0.b32.cont [5/16] 0.0, 128
      %1198 = vxpose.xlu0.b32.cont [6/16] 0.0, 128
      %1199 = vxpose.xlu0.b32.cont [7/16] 0.0, 128
      %1200 = vxpose.xlu0.b32.cont [8/16] 0.0, 128
      %1201 = vxpose.xlu0.b32.cont [9/16] 0.0, 128
      %1202 = vxpose.xlu0.b32.cont [10/16] 0.0, 128
      %1203 = vxpose.xlu0.b32.cont [11/16] 0.0, 128
      %1204 = vxpose.xlu0.b32.cont [12/16] 0.0, 128
      %1205 = vxpose.xlu0.b32.cont [13/16] 0.0, 128
      %1206 = vxpose.xlu0.b32.cont [14/16] 0.0, 128
      %1207 = vxpose.xlu0.b32.cont [15/16] 0.0, 128
      %1208 = vxpose.xlu0.b32.end [16/16] 0.0, 128
      %v1209 = vpop.trf.xlu0
      %v1210 = vpop.trf.xlu0
      %v1211 = vpop.trf.xlu0
      %v1212 = vpop.trf.xlu0
      %v1213 = vpop.trf.xlu0
      %v1214 = vpop.trf.xlu0
      %v1215 = vpop.trf.xlu0
      %v1216 = vpop.trf.xlu0
      %v1217 = vpop.trf.xlu0
      %v1218 = vpop.trf.xlu0
      %v1219 = vpop.trf.xlu0
      %v1220 = vpop.trf.xlu0
      %v1221 = vpop.trf.xlu0
      %v1222 = vpop.trf.xlu0
      %v1223 = vpop.trf.xlu0
      %v1224 = vpop.trf.xlu0
      %1225 = vxpose.xlu0.b32.start [1/16] %v769, 128
      %1226 = vxpose.xlu0.b32.cont [2/16] 0.0, 128
      %1227 = vxpose.xlu0.b32.cont [3/16] 0.0, 128
      %1228 = vxpose.xlu0.b32.cont [4/16] 0.0, 128
      %1229 = vxpose.xlu0.b32.cont [5/16] 0.0, 128
      %1230 = vxpose.xlu0.b32.cont [6/16] 0.0, 128
      %1231 = vxpose.xlu0.b32.cont [7/16] 0.0, 128
      %1232 = vxpose.xlu0.b32.cont [8/16] 0.0, 128
      %1233 = vxpose.xlu0.b32.cont [9/16] 0.0, 128
      %1234 = vxpose.xlu0.b32.cont [10/16] 0.0, 128
      %1235 = vxpose.xlu0.b32.cont [11/16] 0.0, 128
      %1236 = vxpose.xlu0.b32.cont [12/16] 0.0, 128
      %1237 = vxpose.xlu0.b32.cont [13/16] 0.0, 128
      %1238 = vxpose.xlu0.b32.cont [14/16] 0.0, 128
      %1239 = vxpose.xlu0.b32.cont [15/16] 0.0, 128
      %1240 = vxpose.xlu0.b32.end [16/16] 0.0, 128
      %v1241 = vpop.trf.xlu0
      %v1242 = vpop.trf.xlu0
      %v1243 = vpop.trf.xlu0
      %v1244 = vpop.trf.xlu0
      %v1245 = vpop.trf.xlu0
      %v1246 = vpop.trf.xlu0
      %v1247 = vpop.trf.xlu0
      %v1248 = vpop.trf.xlu0
      %v1249 = vpop.trf.xlu0
      %v1250 = vpop.trf.xlu0
      %v1251 = vpop.trf.xlu0
      %v1252 = vpop.trf.xlu0
      %v1253 = vpop.trf.xlu0
      %v1254 = vpop.trf.xlu0
      %v1255 = vpop.trf.xlu0
      %v1256 = vpop.trf.xlu0
      %1257 = vxpose.xlu0.b32.start [1/16] %v774, 128
      %1258 = vxpose.xlu0.b32.cont [2/16] 0.0, 128
      %1259 = vxpose.xlu0.b32.cont [3/16] 0.0, 128
      %1260 = vxpose.xlu0.b32.cont [4/16] 0.0, 128
      %1261 = vxpose.xlu0.b32.cont [5/16] 0.0, 128
      %1262 = vxpose.xlu0.b32.cont [6/16] 0.0, 128
      %1263 = vxpose.xlu0.b32.cont [7/16] 0.0, 128
      %1264 = vxpose.xlu0.b32.cont [8/16] 0.0, 128
      %1265 = vxpose.xlu0.b32.cont [9/16] 0.0, 128
      %1266 = vxpose.xlu0.b32.cont [10/16] 0.0, 128
      %1267 = vxpose.xlu0.b32.cont [11/16] 0.0, 128
      %1268 = vxpose.xlu0.b32.cont [12/16] 0.0, 128
      %1269 = vxpose.xlu0.b32.cont [13/16] 0.0, 128
      %1270 = vxpose.xlu0.b32.cont [14/16] 0.0, 128
      %1271 = vxpose.xlu0.b32.cont [15/16] 0.0, 128
      %1272 = vxpose.xlu0.b32.end [16/16] 0.0, 128
      %v1273 = vpop.trf.xlu0
      %v1274 = vpop.trf.xlu0
      %v1275 = vpop.trf.xlu0
      %v1276 = vpop.trf.xlu0
      %v1277 = vpop.trf.xlu0
      %v1278 = vpop.trf.xlu0
      %v1279 = vpop.trf.xlu0
      %v1280 = vpop.trf.xlu0
      %v1281 = vpop.trf.xlu0
      %v1282 = vpop.trf.xlu0
      %v1283 = vpop.trf.xlu0
      %v1284 = vpop.trf.xlu0
      %v1285 = vpop.trf.xlu0
      %v1286 = vpop.trf.xlu0
      %v1287 = vpop.trf.xlu0
      %v1288 = vpop.trf.xlu0
      %v1289 = vlaneseq
      %v1290 = vshrl.u32 %v1289, 7
      %v1291 = vsub.s32 0, %v1290
      %v1292 = vrot.slane %v503, %v1291
      %1294 = vbcast.lane.b32.xlu0 %v1292, 256
      %v1295 = vpop.permute.xlu0 %1294
      %s1297 = sor.u32 256, 8
      %1298 = vbcast.lane.b32.xlu0 %v1292, %s1297
      %v1299 = vpop.permute.xlu0 %1298
      %s1301 = sor.u32 256, 16
      %1302 = vbcast.lane.b32.xlu0 %v1292, %s1301
      %v1303 = vpop.permute.xlu0 %1302
      %s1305 = sor.u32 256, 24
      %1306 = vbcast.lane.b32.xlu0 %v1292, %s1305
      %v1307 = vpop.permute.xlu0 %1306
      %v1308 = vlaneseq
      %v1309 = vshrl.u32 %v1308, 7
      %v1310 = vsub.s32 1, %v1309
      %v1311 = vrot.slane %v503, %v1310
      %1313 = vbcast.lane.b32.xlu0 %v1311, 256
      %v1314 = vpop.permute.xlu0 %1313
      %s1316 = sor.u32 256, 8
      %1317 = vbcast.lane.b32.xlu0 %v1311, %s1316
      %v1318 = vpop.permute.xlu0 %1317
      %s1320 = sor.u32 256, 16
      %1321 = vbcast.lane.b32.xlu0 %v1311, %s1320
      %v1322 = vpop.permute.xlu0 %1321
      %s1324 = sor.u32 256, 24
      %1325 = vbcast.lane.b32.xlu0 %v1311, %s1324
      %v1326 = vpop.permute.xlu0 %1325
      %v1327 = vlaneseq
      %v1328 = vshrl.u32 %v1327, 7
      %v1329 = vsub.s32 2, %v1328
      %v1330 = vrot.slane %v503, %v1329
      %1332 = vbcast.lane.b32.xlu0 %v1330, 256
      %v1333 = vpop.permute.xlu0 %1332
      %s1335 = sor.u32 256, 8
      %1336 = vbcast.lane.b32.xlu0 %v1330, %s1335
      %v1337 = vpop.permute.xlu0 %1336
      %s1339 = sor.u32 256, 16
      %1340 = vbcast.lane.b32.xlu0 %v1330, %s1339
      %v1341 = vpop.permute.xlu0 %1340
      %s1343 = sor.u32 256, 24
      %1344 = vbcast.lane.b32.xlu0 %v1330, %s1343
      %v1345 = vpop.permute.xlu0 %1344
      %v1346 = vlaneseq
      %v1347 = vshrl.u32 %v1346, 7
      %v1348 = vsub.s32 3, %v1347
      %v1349 = vrot.slane %v503, %v1348
      %1351 = vbcast.lane.b32.xlu0 %v1349, 256
      %v1352 = vpop.permute.xlu0 %1351
      %s1354 = sor.u32 256, 8
      %1355 = vbcast.lane.b32.xlu0 %v1349, %s1354
      %v1356 = vpop.permute.xlu0 %1355
      %s1358 = sor.u32 256, 16
      %1359 = vbcast.lane.b32.xlu0 %v1349, %s1358
      %v1360 = vpop.permute.xlu0 %1359
      %s1362 = sor.u32 256, 24
      %1363 = vbcast.lane.b32.xlu0 %v1349, %s1362
      %v1364 = vpop.permute.xlu0 %1363
      %v1365 = vlaneseq
      %v1366 = vshrl.u32 %v1365, 7
      %v1367 = vsub.s32 4, %v1366
      %v1368 = vrot.slane %v503, %v1367
      %1370 = vbcast.lane.b32.xlu0 %v1368, 256
      %v1371 = vpop.permute.xlu0 %1370
      %s1373 = sor.u32 256, 8
      %1374 = vbcast.lane.b32.xlu0 %v1368, %s1373
      %v1375 = vpop.permute.xlu0 %1374
      %s1377 = sor.u32 256, 16
      %1378 = vbcast.lane.b32.xlu0 %v1368, %s1377
      %v1379 = vpop.permute.xlu0 %1378
      %s1381 = sor.u32 256, 24
      %1382 = vbcast.lane.b32.xlu0 %v1368, %s1381
      %v1383 = vpop.permute.xlu0 %1382
      %v1384 = vlaneseq
      %v1385 = vshrl.u32 %v1384, 7
      %v1386 = vsub.s32 5, %v1385
      %v1387 = vrot.slane %v503, %v1386
      %1389 = vbcast.lane.b32.xlu0 %v1387, 256
      %v1390 = vpop.permute.xlu0 %1389
      %s1392 = sor.u32 256, 8
      %1393 = vbcast.lane.b32.xlu0 %v1387, %s1392
      %v1394 = vpop.permute.xlu0 %1393
      %s1396 = sor.u32 256, 16
      %1397 = vbcast.lane.b32.xlu0 %v1387, %s1396
      %v1398 = vpop.permute.xlu0 %1397
      %s1400 = sor.u32 256, 24
      %1401 = vbcast.lane.b32.xlu0 %v1387, %s1400
      %v1402 = vpop.permute.xlu0 %1401
      %v1403 = vlaneseq
      %v1404 = vshrl.u32 %v1403, 7
      %v1405 = vsub.s32 6, %v1404
      %v1406 = vrot.slane %v503, %v1405
      %1408 = vbcast.lane.b32.xlu0 %v1406, 256
      %v1409 = vpop.permute.xlu0 %1408
      %s1411 = sor.u32 256, 8
      %1412 = vbcast.lane.b32.xlu0 %v1406, %s1411
      %v1413 = vpop.permute.xlu0 %1412
      %s1415 = sor.u32 256, 16
      %1416 = vbcast.lane.b32.xlu0 %v1406, %s1415
      %v1417 = vpop.permute.xlu0 %1416
      %s1419 = sor.u32 256, 24
      %1420 = vbcast.lane.b32.xlu0 %v1406, %s1419
      %v1421 = vpop.permute.xlu0 %1420
      %v1422 = vlaneseq
      %v1423 = vshrl.u32 %v1422, 7
      %v1424 = vsub.s32 7, %v1423
      %v1425 = vrot.slane %v503, %v1424
      %1427 = vbcast.lane.b32.xlu0 %v1425, 256
      %v1428 = vpop.permute.xlu0 %1427
      %s1430 = sor.u32 256, 8
      %1431 = vbcast.lane.b32.xlu0 %v1425, %s1430
      %v1432 = vpop.permute.xlu0 %1431
      %s1434 = sor.u32 256, 16
      %1435 = vbcast.lane.b32.xlu0 %v1425, %s1434
      %v1436 = vpop.permute.xlu0 %1435
      %s1438 = sor.u32 256, 24
      %1439 = vbcast.lane.b32.xlu0 %v1425, %s1438
      %v1440 = vpop.permute.xlu0 %1439
      %v1441 = vlaneseq
      %v1442 = vshrl.u32 %v1441, 7
      %v1443 = vsub.s32 0, %v1442
      %v1444 = vrot.slane %v508, %v1443
      %1446 = vbcast.lane.b32.xlu0 %v1444, 256
      %v1447 = vpop.permute.xlu0 %1446
      %s1449 = sor.u32 256, 8
      %1450 = vbcast.lane.b32.xlu0 %v1444, %s1449
      %v1451 = vpop.permute.xlu0 %1450
      %s1453 = sor.u32 256, 16
      %1454 = vbcast.lane.b32.xlu0 %v1444, %s1453
      %v1455 = vpop.permute.xlu0 %1454
      %s1457 = sor.u32 256, 24
      %1458 = vbcast.lane.b32.xlu0 %v1444, %s1457
      %v1459 = vpop.permute.xlu0 %1458
      %v1460 = vlaneseq
      %v1461 = vshrl.u32 %v1460, 7
      %v1462 = vsub.s32 1, %v1461
      %v1463 = vrot.slane %v508, %v1462
      %1465 = vbcast.lane.b32.xlu0 %v1463, 256
      %v1466 = vpop.permute.xlu0 %1465
      %s1468 = sor.u32 256, 8
      %1469 = vbcast.lane.b32.xlu0 %v1463, %s1468
      %v1470 = vpop.permute.xlu0 %1469
      %s1472 = sor.u32 256, 16
      %1473 = vbcast.lane.b32.xlu0 %v1463, %s1472
      %v1474 = vpop.permute.xlu0 %1473
      %s1476 = sor.u32 256, 24
      %1477 = vbcast.lane.b32.xlu0 %v1463, %s1476
      %v1478 = vpop.permute.xlu0 %1477
      %v1479 = vlaneseq
      %v1480 = vshrl.u32 %v1479, 7
      %v1481 = vsub.s32 2, %v1480
      %v1482 = vrot.slane %v508, %v1481
      %1484 = vbcast.lane.b32.xlu0 %v1482, 256
      %v1485 = vpop.permute.xlu0 %1484
      %s1487 = sor.u32 256, 8
      %1488 = vbcast.lane.b32.xlu0 %v1482, %s1487
      %v1489 = vpop.permute.xlu0 %1488
      %s1491 = sor.u32 256, 16
      %1492 = vbcast.lane.b32.xlu0 %v1482, %s1491
      %v1493 = vpop.permute.xlu0 %1492
      %s1495 = sor.u32 256, 24
      %1496 = vbcast.lane.b32.xlu0 %v1482, %s1495
      %v1497 = vpop.permute.xlu0 %1496
      %v1498 = vlaneseq
      %v1499 = vshrl.u32 %v1498, 7
      %v1500 = vsub.s32 3, %v1499
      %v1501 = vrot.slane %v508, %v1500
      %1503 = vbcast.lane.b32.xlu0 %v1501, 256
      %v1504 = vpop.permute.xlu0 %1503
      %s1506 = sor.u32 256, 8
      %1507 = vbcast.lane.b32.xlu0 %v1501, %s1506
      %v1508 = vpop.permute.xlu0 %1507
      %s1510 = sor.u32 256, 16
      %1511 = vbcast.lane.b32.xlu0 %v1501, %s1510
      %v1512 = vpop.permute.xlu0 %1511
      %s1514 = sor.u32 256, 24
      %1515 = vbcast.lane.b32.xlu0 %v1501, %s1514
      %v1516 = vpop.permute.xlu0 %1515
      %v1517 = vlaneseq
      %v1518 = vshrl.u32 %v1517, 7
      %v1519 = vsub.s32 4, %v1518
      %v1520 = vrot.slane %v508, %v1519
      %1522 = vbcast.lane.b32.xlu0 %v1520, 256
      %v1523 = vpop.permute.xlu0 %1522
      %s1525 = sor.u32 256, 8
      %1526 = vbcast.lane.b32.xlu0 %v1520, %s1525
      %v1527 = vpop.permute.xlu0 %1526
      %s1529 = sor.u32 256, 16
      %1530 = vbcast.lane.b32.xlu0 %v1520, %s1529
      %v1531 = vpop.permute.xlu0 %1530
      %s1533 = sor.u32 256, 24
      %1534 = vbcast.lane.b32.xlu0 %v1520, %s1533
      %v1535 = vpop.permute.xlu0 %1534
      %v1536 = vlaneseq
      %v1537 = vshrl.u32 %v1536, 7
      %v1538 = vsub.s32 5, %v1537
      %v1539 = vrot.slane %v508, %v1538
      %1541 = vbcast.lane.b32.xlu0 %v1539, 256
      %v1542 = vpop.permute.xlu0 %1541
      %s1544 = sor.u32 256, 8
      %1545 = vbcast.lane.b32.xlu0 %v1539, %s1544
      %v1546 = vpop.permute.xlu0 %1545
      %s1548 = sor.u32 256, 16
      %1549 = vbcast.lane.b32.xlu0 %v1539, %s1548
      %v1550 = vpop.permute.xlu0 %1549
      %s1552 = sor.u32 256, 24
      %1553 = vbcast.lane.b32.xlu0 %v1539, %s1552
      %v1554 = vpop.permute.xlu0 %1553
      %v1555 = vlaneseq
      %v1556 = vshrl.u32 %v1555, 7
      %v1557 = vsub.s32 6, %v1556
      %v1558 = vrot.slane %v508, %v1557
      %1560 = vbcast.lane.b32.xlu0 %v1558, 256
      %v1561 = vpop.permute.xlu0 %1560
      %s1563 = sor.u32 256, 8
      %1564 = vbcast.lane.b32.xlu0 %v1558, %s1563
      %v1565 = vpop.permute.xlu0 %1564
      %s1567 = sor.u32 256, 16
      %1568 = vbcast.lane.b32.xlu0 %v1558, %s1567
      %v1569 = vpop.permute.xlu0 %1568
      %s1571 = sor.u32 256, 24
      %1572 = vbcast.lane.b32.xlu0 %v1558, %s1571
      %v1573 = vpop.permute.xlu0 %1572
      %v1574 = vlaneseq
      %v1575 = vshrl.u32 %v1574, 7
      %v1576 = vsub.s32 7, %v1575
      %v1577 = vrot.slane %v508, %v1576
      %1579 = vbcast.lane.b32.xlu0 %v1577, 256
      %v1580 = vpop.permute.xlu0 %1579
      %s1582 = sor.u32 256, 8
      %1583 = vbcast.lane.b32.xlu0 %v1577, %s1582
      %v1584 = vpop.permute.xlu0 %1583
      %s1586 = sor.u32 256, 16
      %1587 = vbcast.lane.b32.xlu0 %v1577, %s1586
      %v1588 = vpop.permute.xlu0 %1587
      %s1590 = sor.u32 256, 24
      %1591 = vbcast.lane.b32.xlu0 %v1577, %s1590
      %v1592 = vpop.permute.xlu0 %1591
      %v1593 = vlaneseq
      %v1594 = vshrl.u32 %v1593, 7
      %v1595 = vsub.s32 0, %v1594
      %v1596 = vrot.slane %v513, %v1595
      %1598 = vbcast.lane.b32.xlu0 %v1596, 256
      %v1599 = vpop.permute.xlu0 %1598
      %s1601 = sor.u32 256, 8
      %1602 = vbcast.lane.b32.xlu0 %v1596, %s1601
      %v1603 = vpop.permute.xlu0 %1602
      %s1605 = sor.u32 256, 16
      %1606 = vbcast.lane.b32.xlu0 %v1596, %s1605
      %v1607 = vpop.permute.xlu0 %1606
      %s1609 = sor.u32 256, 24
      %1610 = vbcast.lane.b32.xlu0 %v1596, %s1609
      %v1611 = vpop.permute.xlu0 %1610
      %v1612 = vlaneseq
      %v1613 = vshrl.u32 %v1612, 7
      %v1614 = vsub.s32 1, %v1613
      %v1615 = vrot.slane %v513, %v1614
      %1617 = vbcast.lane.b32.xlu0 %v1615, 256
      %v1618 = vpop.permute.xlu0 %1617
      %s1620 = sor.u32 256, 8
      %1621 = vbcast.lane.b32.xlu0 %v1615, %s1620
      %v1622 = vpop.permute.xlu0 %1621
      %s1624 = sor.u32 256, 16
      %1625 = vbcast.lane.b32.xlu0 %v1615, %s1624
      %v1626 = vpop.permute.xlu0 %1625
      %s1628 = sor.u32 256, 24
      %1629 = vbcast.lane.b32.xlu0 %v1615, %s1628
      %v1630 = vpop.permute.xlu0 %1629
      %v1631 = vlaneseq
      %v1632 = vshrl.u32 %v1631, 7
      %v1633 = vsub.s32 2, %v1632
      %v1634 = vrot.slane %v513, %v1633
      %1636 = vbcast.lane.b32.xlu0 %v1634, 256
      %v1637 = vpop.permute.xlu0 %1636
      %s1639 = sor.u32 256, 8
      %1640 = vbcast.lane.b32.xlu0 %v1634, %s1639
      %v1641 = vpop.permute.xlu0 %1640
      %s1643 = sor.u32 256, 16
      %1644 = vbcast.lane.b32.xlu0 %v1634, %s1643
      %v1645 = vpop.permute.xlu0 %1644
      %s1647 = sor.u32 256, 24
      %1648 = vbcast.lane.b32.xlu0 %v1634, %s1647
      %v1649 = vpop.permute.xlu0 %1648
      %v1650 = vlaneseq
      %v1651 = vshrl.u32 %v1650, 7
      %v1652 = vsub.s32 3, %v1651
      %v1653 = vrot.slane %v513, %v1652
      %1655 = vbcast.lane.b32.xlu0 %v1653, 256
      %v1656 = vpop.permute.xlu0 %1655
      %s1658 = sor.u32 256, 8
      %1659 = vbcast.lane.b32.xlu0 %v1653, %s1658
      %v1660 = vpop.permute.xlu0 %1659
      %s1662 = sor.u32 256, 16
      %1663 = vbcast.lane.b32.xlu0 %v1653, %s1662
      %v1664 = vpop.permute.xlu0 %1663
      %s1666 = sor.u32 256, 24
      %1667 = vbcast.lane.b32.xlu0 %v1653, %s1666
      %v1668 = vpop.permute.xlu0 %1667
      %v1669 = vlaneseq
      %v1670 = vshrl.u32 %v1669, 7
      %v1671 = vsub.s32 4, %v1670
      %v1672 = vrot.slane %v513, %v1671
      %1674 = vbcast.lane.b32.xlu0 %v1672, 256
      %v1675 = vpop.permute.xlu0 %1674
      %s1677 = sor.u32 256, 8
      %1678 = vbcast.lane.b32.xlu0 %v1672, %s1677
      %v1679 = vpop.permute.xlu0 %1678
      %s1681 = sor.u32 256, 16
      %1682 = vbcast.lane.b32.xlu0 %v1672, %s1681
      %v1683 = vpop.permute.xlu0 %1682
      %s1685 = sor.u32 256, 24
      %1686 = vbcast.lane.b32.xlu0 %v1672, %s1685
      %v1687 = vpop.permute.xlu0 %1686
      %v1688 = vlaneseq
      %v1689 = vshrl.u32 %v1688, 7
      %v1690 = vsub.s32 5, %v1689
      %v1691 = vrot.slane %v513, %v1690
      %1693 = vbcast.lane.b32.xlu0 %v1691, 256
      %v1694 = vpop.permute.xlu0 %1693
      %s1696 = sor.u32 256, 8
      %1697 = vbcast.lane.b32.xlu0 %v1691, %s1696
      %v1698 = vpop.permute.xlu0 %1697
      %s1700 = sor.u32 256, 16
      %1701 = vbcast.lane.b32.xlu0 %v1691, %s1700
      %v1702 = vpop.permute.xlu0 %1701
      %s1704 = sor.u32 256, 24
      %1705 = vbcast.lane.b32.xlu0 %v1691, %s1704
      %v1706 = vpop.permute.xlu0 %1705
      %v1707 = vlaneseq
      %v1708 = vshrl.u32 %v1707, 7
      %v1709 = vsub.s32 6, %v1708
      %v1710 = vrot.slane %v513, %v1709
      %1712 = vbcast.lane.b32.xlu0 %v1710, 256
      %v1713 = vpop.permute.xlu0 %1712
      %s1715 = sor.u32 256, 8
      %1716 = vbcast.lane.b32.xlu0 %v1710, %s1715
      %v1717 = vpop.permute.xlu0 %1716
      %s1719 = sor.u32 256, 16
      %1720 = vbcast.lane.b32.xlu0 %v1710, %s1719
      %v1721 = vpop.permute.xlu0 %1720
      %s1723 = sor.u32 256, 24
      %1724 = vbcast.lane.b32.xlu0 %v1710, %s1723
      %v1725 = vpop.permute.xlu0 %1724
      %v1726 = vlaneseq
      %v1727 = vshrl.u32 %v1726, 7
      %v1728 = vsub.s32 7, %v1727
      %v1729 = vrot.slane %v513, %v1728
      %1731 = vbcast.lane.b32.xlu0 %v1729, 256
      %v1732 = vpop.permute.xlu0 %1731
      %s1734 = sor.u32 256, 8
      %1735 = vbcast.lane.b32.xlu0 %v1729, %s1734
      %v1736 = vpop.permute.xlu0 %1735
      %s1738 = sor.u32 256, 16
      %1739 = vbcast.lane.b32.xlu0 %v1729, %s1738
      %v1740 = vpop.permute.xlu0 %1739
      %s1742 = sor.u32 256, 24
      %1743 = vbcast.lane.b32.xlu0 %v1729, %s1742
      %v1744 = vpop.permute.xlu0 %1743
      %v1745 = vlaneseq
      %v1746 = vshrl.u32 %v1745, 7
      %v1747 = vsub.s32 0, %v1746
      %v1748 = vrot.slane %v518, %v1747
      %1750 = vbcast.lane.b32.xlu0 %v1748, 256
      %v1751 = vpop.permute.xlu0 %1750
      %s1753 = sor.u32 256, 8
      %1754 = vbcast.lane.b32.xlu0 %v1748, %s1753
      %v1755 = vpop.permute.xlu0 %1754
      %s1757 = sor.u32 256, 16
      %1758 = vbcast.lane.b32.xlu0 %v1748, %s1757
      %v1759 = vpop.permute.xlu0 %1758
      %s1761 = sor.u32 256, 24
      %1762 = vbcast.lane.b32.xlu0 %v1748, %s1761
      %v1763 = vpop.permute.xlu0 %1762
      %v1764 = vlaneseq
      %v1765 = vshrl.u32 %v1764, 7
      %v1766 = vsub.s32 1, %v1765
      %v1767 = vrot.slane %v518, %v1766
      %1769 = vbcast.lane.b32.xlu0 %v1767, 256
      %v1770 = vpop.permute.xlu0 %1769
      %s1772 = sor.u32 256, 8
      %1773 = vbcast.lane.b32.xlu0 %v1767, %s1772
      %v1774 = vpop.permute.xlu0 %1773
      %s1776 = sor.u32 256, 16
      %1777 = vbcast.lane.b32.xlu0 %v1767, %s1776
      %v1778 = vpop.permute.xlu0 %1777
      %s1780 = sor.u32 256, 24
      %1781 = vbcast.lane.b32.xlu0 %v1767, %s1780
      %v1782 = vpop.permute.xlu0 %1781
      %v1783 = vlaneseq
      %v1784 = vshrl.u32 %v1783, 7
      %v1785 = vsub.s32 2, %v1784
      %v1786 = vrot.slane %v518, %v1785
      %1788 = vbcast.lane.b32.xlu0 %v1786, 256
      %v1789 = vpop.permute.xlu0 %1788
      %s1791 = sor.u32 256, 8
      %1792 = vbcast.lane.b32.xlu0 %v1786, %s1791
      %v1793 = vpop.permute.xlu0 %1792
      %s1795 = sor.u32 256, 16
      %1796 = vbcast.lane.b32.xlu0 %v1786, %s1795
      %v1797 = vpop.permute.xlu0 %1796
      %s1799 = sor.u32 256, 24
      %1800 = vbcast.lane.b32.xlu0 %v1786, %s1799
      %v1801 = vpop.permute.xlu0 %1800
      %v1802 = vlaneseq
      %v1803 = vshrl.u32 %v1802, 7
      %v1804 = vsub.s32 3, %v1803
      %v1805 = vrot.slane %v518, %v1804
      %1807 = vbcast.lane.b32.xlu0 %v1805, 256
      %v1808 = vpop.permute.xlu0 %1807
      %s1810 = sor.u32 256, 8
      %1811 = vbcast.lane.b32.xlu0 %v1805, %s1810
      %v1812 = vpop.permute.xlu0 %1811
      %s1814 = sor.u32 256, 16
      %1815 = vbcast.lane.b32.xlu0 %v1805, %s1814
      %v1816 = vpop.permute.xlu0 %1815
      %s1818 = sor.u32 256, 24
      %1819 = vbcast.lane.b32.xlu0 %v1805, %s1818
      %v1820 = vpop.permute.xlu0 %1819
      %v1821 = vlaneseq
      %v1822 = vshrl.u32 %v1821, 7
      %v1823 = vsub.s32 4, %v1822
      %v1824 = vrot.slane %v518, %v1823
      %1826 = vbcast.lane.b32.xlu0 %v1824, 256
      %v1827 = vpop.permute.xlu0 %1826
      %s1829 = sor.u32 256, 8
      %1830 = vbcast.lane.b32.xlu0 %v1824, %s1829
      %v1831 = vpop.permute.xlu0 %1830
      %s1833 = sor.u32 256, 16
      %1834 = vbcast.lane.b32.xlu0 %v1824, %s1833
      %v1835 = vpop.permute.xlu0 %1834
      %s1837 = sor.u32 256, 24
      %1838 = vbcast.lane.b32.xlu0 %v1824, %s1837
      %v1839 = vpop.permute.xlu0 %1838
      %v1840 = vlaneseq
      %v1841 = vshrl.u32 %v1840, 7
      %v1842 = vsub.s32 5, %v1841
      %v1843 = vrot.slane %v518, %v1842
      %1845 = vbcast.lane.b32.xlu0 %v1843, 256
      %v1846 = vpop.permute.xlu0 %1845
      %s1848 = sor.u32 256, 8
      %1849 = vbcast.lane.b32.xlu0 %v1843, %s1848
      %v1850 = vpop.permute.xlu0 %1849
      %s1852 = sor.u32 256, 16
      %1853 = vbcast.lane.b32.xlu0 %v1843, %s1852
      %v1854 = vpop.permute.xlu0 %1853
      %s1856 = sor.u32 256, 24
      %1857 = vbcast.lane.b32.xlu0 %v1843, %s1856
      %v1858 = vpop.permute.xlu0 %1857
      %v1859 = vlaneseq
      %v1860 = vshrl.u32 %v1859, 7
      %v1861 = vsub.s32 6, %v1860
      %v1862 = vrot.slane %v518, %v1861
      %1864 = vbcast.lane.b32.xlu0 %v1862, 256
      %v1865 = vpop.permute.xlu0 %1864
      %s1867 = sor.u32 256, 8
      %1868 = vbcast.lane.b32.xlu0 %v1862, %s1867
      %v1869 = vpop.permute.xlu0 %1868
      %s1871 = sor.u32 256, 16
      %1872 = vbcast.lane.b32.xlu0 %v1862, %s1871
      %v1873 = vpop.permute.xlu0 %1872
      %s1875 = sor.u32 256, 24
      %1876 = vbcast.lane.b32.xlu0 %v1862, %s1875
      %v1877 = vpop.permute.xlu0 %1876
      %v1878 = vlaneseq
      %v1879 = vshrl.u32 %v1878, 7
      %v1880 = vsub.s32 7, %v1879
      %v1881 = vrot.slane %v518, %v1880
      %1883 = vbcast.lane.b32.xlu0 %v1881, 256
      %v1884 = vpop.permute.xlu0 %1883
      %s1886 = sor.u32 256, 8
      %1887 = vbcast.lane.b32.xlu0 %v1881, %s1886
      %v1888 = vpop.permute.xlu0 %1887
      %s1890 = sor.u32 256, 16
      %1891 = vbcast.lane.b32.xlu0 %v1881, %s1890
      %v1892 = vpop.permute.xlu0 %1891
      %s1894 = sor.u32 256, 24
      %1895 = vbcast.lane.b32.xlu0 %v1881, %s1894
      %v1896 = vpop.permute.xlu0 %1895
      %v1897 = vlaneseq
      %v1898 = vshrl.u32 %v1897, 7
      %v1899 = vsub.s32 0, %v1898
      %v1900 = vrot.slane %v523, %v1899
      %1902 = vbcast.lane.b32.xlu0 %v1900, 256
      %v1903 = vpop.permute.xlu0 %1902
      %s1905 = sor.u32 256, 8
      %1906 = vbcast.lane.b32.xlu0 %v1900, %s1905
      %v1907 = vpop.permute.xlu0 %1906
      %s1909 = sor.u32 256, 16
      %1910 = vbcast.lane.b32.xlu0 %v1900, %s1909
      %v1911 = vpop.permute.xlu0 %1910
      %s1913 = sor.u32 256, 24
      %1914 = vbcast.lane.b32.xlu0 %v1900, %s1913
      %v1915 = vpop.permute.xlu0 %1914
      %v1916 = vlaneseq
      %v1917 = vshrl.u32 %v1916, 7
      %v1918 = vsub.s32 1, %v1917
      %v1919 = vrot.slane %v523, %v1918
      %1921 = vbcast.lane.b32.xlu0 %v1919, 256
      %v1922 = vpop.permute.xlu0 %1921
      %s1924 = sor.u32 256, 8
      %1925 = vbcast.lane.b32.xlu0 %v1919, %s1924
      %v1926 = vpop.permute.xlu0 %1925
      %s1928 = sor.u32 256, 16
      %1929 = vbcast.lane.b32.xlu0 %v1919, %s1928
      %v1930 = vpop.permute.xlu0 %1929
      %s1932 = sor.u32 256, 24
      %1933 = vbcast.lane.b32.xlu0 %v1919, %s1932
      %v1934 = vpop.permute.xlu0 %1933
      %v1935 = vlaneseq
      %v1936 = vshrl.u32 %v1935, 7
      %v1937 = vsub.s32 2, %v1936
      %v1938 = vrot.slane %v523, %v1937
      %1940 = vbcast.lane.b32.xlu0 %v1938, 256
      %v1941 = vpop.permute.xlu0 %1940
      %s1943 = sor.u32 256, 8
      %1944 = vbcast.lane.b32.xlu0 %v1938, %s1943
      %v1945 = vpop.permute.xlu0 %1944
      %s1947 = sor.u32 256, 16
      %1948 = vbcast.lane.b32.xlu0 %v1938, %s1947
      %v1949 = vpop.permute.xlu0 %1948
      %s1951 = sor.u32 256, 24
      %1952 = vbcast.lane.b32.xlu0 %v1938, %s1951
      %v1953 = vpop.permute.xlu0 %1952
      %v1954 = vlaneseq
      %v1955 = vshrl.u32 %v1954, 7
      %v1956 = vsub.s32 3, %v1955
      %v1957 = vrot.slane %v523, %v1956
      %1959 = vbcast.lane.b32.xlu0 %v1957, 256
      %v1960 = vpop.permute.xlu0 %1959
      %s1962 = sor.u32 256, 8
      %1963 = vbcast.lane.b32.xlu0 %v1957, %s1962
      %v1964 = vpop.permute.xlu0 %1963
      %s1966 = sor.u32 256, 16
      %1967 = vbcast.lane.b32.xlu0 %v1957, %s1966
      %v1968 = vpop.permute.xlu0 %1967
      %s1970 = sor.u32 256, 24
      %1971 = vbcast.lane.b32.xlu0 %v1957, %s1970
      %v1972 = vpop.permute.xlu0 %1971
      %v1973 = vlaneseq
      %v1974 = vshrl.u32 %v1973, 7
      %v1975 = vsub.s32 4, %v1974
      %v1976 = vrot.slane %v523, %v1975
      %1978 = vbcast.lane.b32.xlu0 %v1976, 256
      %v1979 = vpop.permute.xlu0 %1978
      %s1981 = sor.u32 256, 8
      %1982 = vbcast.lane.b32.xlu0 %v1976, %s1981
      %v1983 = vpop.permute.xlu0 %1982
      %s1985 = sor.u32 256, 16
      %1986 = vbcast.lane.b32.xlu0 %v1976, %s1985
      %v1987 = vpop.permute.xlu0 %1986
      %s1989 = sor.u32 256, 24
      %1990 = vbcast.lane.b32.xlu0 %v1976, %s1989
      %v1991 = vpop.permute.xlu0 %1990
      %v1992 = vlaneseq
      %v1993 = vshrl.u32 %v1992, 7
      %v1994 = vsub.s32 5, %v1993
      %v1995 = vrot.slane %v523, %v1994
      %1997 = vbcast.lane.b32.xlu0 %v1995, 256
      %v1998 = vpop.permute.xlu0 %1997
      %s2000 = sor.u32 256, 8
      %2001 = vbcast.lane.b32.xlu0 %v1995, %s2000
      %v2002 = vpop.permute.xlu0 %2001
      %s2004 = sor.u32 256, 16
      %2005 = vbcast.lane.b32.xlu0 %v1995, %s2004
      %v2006 = vpop.permute.xlu0 %2005
      %s2008 = sor.u32 256, 24
      %2009 = vbcast.lane.b32.xlu0 %v1995, %s2008
      %v2010 = vpop.permute.xlu0 %2009
      %v2011 = vlaneseq
      %v2012 = vshrl.u32 %v2011, 7
      %v2013 = vsub.s32 6, %v2012
      %v2014 = vrot.slane %v523, %v2013
      %2016 = vbcast.lane.b32.xlu0 %v2014, 256
      %v2017 = vpop.permute.xlu0 %2016
      %s2019 = sor.u32 256, 8
      %2020 = vbcast.lane.b32.xlu0 %v2014, %s2019
      %v2021 = vpop.permute.xlu0 %2020
      %s2023 = sor.u32 256, 16
      %2024 = vbcast.lane.b32.xlu0 %v2014, %s2023
      %v2025 = vpop.permute.xlu0 %2024
      %s2027 = sor.u32 256, 24
      %2028 = vbcast.lane.b32.xlu0 %v2014, %s2027
      %v2029 = vpop.permute.xlu0 %2028
      %v2030 = vlaneseq
      %v2031 = vshrl.u32 %v2030, 7
      %v2032 = vsub.s32 7, %v2031
      %v2033 = vrot.slane %v523, %v2032
      %2035 = vbcast.lane.b32.xlu0 %v2033, 256
      %v2036 = vpop.permute.xlu0 %2035
      %s2038 = sor.u32 256, 8
      %2039 = vbcast.lane.b32.xlu0 %v2033, %s2038
      %v2040 = vpop.permute.xlu0 %2039
      %s2042 = sor.u32 256, 16
      %2043 = vbcast.lane.b32.xlu0 %v2033, %s2042
      %v2044 = vpop.permute.xlu0 %2043
      %s2046 = sor.u32 256, 24
      %2047 = vbcast.lane.b32.xlu0 %v2033, %s2046
      %v2048 = vpop.permute.xlu0 %2047
      %v2049 = vlaneseq
      %v2050 = vshrl.u32 %v2049, 7
      %v2051 = vsub.s32 0, %v2050
      %v2052 = vrot.slane %v528, %v2051
      %2054 = vbcast.lane.b32.xlu0 %v2052, 256
      %v2055 = vpop.permute.xlu0 %2054
      %s2057 = sor.u32 256, 8
      %2058 = vbcast.lane.b32.xlu0 %v2052, %s2057
      %v2059 = vpop.permute.xlu0 %2058
      %s2061 = sor.u32 256, 16
      %2062 = vbcast.lane.b32.xlu0 %v2052, %s2061
      %v2063 = vpop.permute.xlu0 %2062
      %s2065 = sor.u32 256, 24
      %2066 = vbcast.lane.b32.xlu0 %v2052, %s2065
      %v2067 = vpop.permute.xlu0 %2066
      %v2068 = vlaneseq
      %v2069 = vshrl.u32 %v2068, 7
      %v2070 = vsub.s32 1, %v2069
      %v2071 = vrot.slane %v528, %v2070
      %2073 = vbcast.lane.b32.xlu0 %v2071, 256
      %v2074 = vpop.permute.xlu0 %2073
      %s2076 = sor.u32 256, 8
      %2077 = vbcast.lane.b32.xlu0 %v2071, %s2076
      %v2078 = vpop.permute.xlu0 %2077
      %s2080 = sor.u32 256, 16
      %2081 = vbcast.lane.b32.xlu0 %v2071, %s2080
      %v2082 = vpop.permute.xlu0 %2081
      %s2084 = sor.u32 256, 24
      %2085 = vbcast.lane.b32.xlu0 %v2071, %s2084
      %v2086 = vpop.permute.xlu0 %2085
      %v2087 = vlaneseq
      %v2088 = vshrl.u32 %v2087, 7
      %v2089 = vsub.s32 2, %v2088
      %v2090 = vrot.slane %v528, %v2089
      %2092 = vbcast.lane.b32.xlu0 %v2090, 256
      %v2093 = vpop.permute.xlu0 %2092
      %s2095 = sor.u32 256, 8
      %2096 = vbcast.lane.b32.xlu0 %v2090, %s2095
      %v2097 = vpop.permute.xlu0 %2096
      %s2099 = sor.u32 256, 16
      %2100 = vbcast.lane.b32.xlu0 %v2090, %s2099
      %v2101 = vpop.permute.xlu0 %2100
      %s2103 = sor.u32 256, 24
      %2104 = vbcast.lane.b32.xlu0 %v2090, %s2103
      %v2105 = vpop.permute.xlu0 %2104
      %v2106 = vlaneseq
      %v2107 = vshrl.u32 %v2106, 7
      %v2108 = vsub.s32 3, %v2107
      %v2109 = vrot.slane %v528, %v2108
      %2111 = vbcast.lane.b32.xlu0 %v2109, 256
      %v2112 = vpop.permute.xlu0 %2111
      %s2114 = sor.u32 256, 8
      %2115 = vbcast.lane.b32.xlu0 %v2109, %s2114
      %v2116 = vpop.permute.xlu0 %2115
      %s2118 = sor.u32 256, 16
      %2119 = vbcast.lane.b32.xlu0 %v2109, %s2118
      %v2120 = vpop.permute.xlu0 %2119
      %s2122 = sor.u32 256, 24
      %2123 = vbcast.lane.b32.xlu0 %v2109, %s2122
      %v2124 = vpop.permute.xlu0 %2123
      %v2125 = vlaneseq
      %v2126 = vshrl.u32 %v2125, 7
      %v2127 = vsub.s32 4, %v2126
      %v2128 = vrot.slane %v528, %v2127
      %2130 = vbcast.lane.b32.xlu0 %v2128, 256
      %v2131 = vpop.permute.xlu0 %2130
      %s2133 = sor.u32 256, 8
      %2134 = vbcast.lane.b32.xlu0 %v2128, %s2133
      %v2135 = vpop.permute.xlu0 %2134
      %s2137 = sor.u32 256, 16
      %2138 = vbcast.lane.b32.xlu0 %v2128, %s2137
      %v2139 = vpop.permute.xlu0 %2138
      %s2141 = sor.u32 256, 24
      %2142 = vbcast.lane.b32.xlu0 %v2128, %s2141
      %v2143 = vpop.permute.xlu0 %2142
      %v2144 = vlaneseq
      %v2145 = vshrl.u32 %v2144, 7
      %v2146 = vsub.s32 5, %v2145
      %v2147 = vrot.slane %v528, %v2146
      %2149 = vbcast.lane.b32.xlu0 %v2147, 256
      %v2150 = vpop.permute.xlu0 %2149
      %s2152 = sor.u32 256, 8
      %2153 = vbcast.lane.b32.xlu0 %v2147, %s2152
      %v2154 = vpop.permute.xlu0 %2153
      %s2156 = sor.u32 256, 16
      %2157 = vbcast.lane.b32.xlu0 %v2147, %s2156
      %v2158 = vpop.permute.xlu0 %2157
      %s2160 = sor.u32 256, 24
      %2161 = vbcast.lane.b32.xlu0 %v2147, %s2160
      %v2162 = vpop.permute.xlu0 %2161
      %v2163 = vlaneseq
      %v2164 = vshrl.u32 %v2163, 7
      %v2165 = vsub.s32 6, %v2164
      %v2166 = vrot.slane %v528, %v2165
      %2168 = vbcast.lane.b32.xlu0 %v2166, 256
      %v2169 = vpop.permute.xlu0 %2168
      %s2171 = sor.u32 256, 8
      %2172 = vbcast.lane.b32.xlu0 %v2166, %s2171
      %v2173 = vpop.permute.xlu0 %2172
      %s2175 = sor.u32 256, 16
      %2176 = vbcast.lane.b32.xlu0 %v2166, %s2175
      %v2177 = vpop.permute.xlu0 %2176
      %s2179 = sor.u32 256, 24
      %2180 = vbcast.lane.b32.xlu0 %v2166, %s2179
      %v2181 = vpop.permute.xlu0 %2180
      %v2182 = vlaneseq
      %v2183 = vshrl.u32 %v2182, 7
      %v2184 = vsub.s32 7, %v2183
      %v2185 = vrot.slane %v528, %v2184
      %2187 = vbcast.lane.b32.xlu0 %v2185, 256
      %v2188 = vpop.permute.xlu0 %2187
      %s2190 = sor.u32 256, 8
      %2191 = vbcast.lane.b32.xlu0 %v2185, %s2190
      %v2192 = vpop.permute.xlu0 %2191
      %s2194 = sor.u32 256, 16
      %2195 = vbcast.lane.b32.xlu0 %v2185, %s2194
      %v2196 = vpop.permute.xlu0 %2195
      %s2198 = sor.u32 256, 24
      %2199 = vbcast.lane.b32.xlu0 %v2185, %s2198
      %v2200 = vpop.permute.xlu0 %2199
      %v2201 = vlaneseq
      %v2202 = vshrl.u32 %v2201, 7
      %v2203 = vsub.s32 0, %v2202
      %v2204 = vrot.slane %v533, %v2203
      %2206 = vbcast.lane.b32.xlu0 %v2204, 256
      %v2207 = vpop.permute.xlu0 %2206
      %s2209 = sor.u32 256, 8
      %2210 = vbcast.lane.b32.xlu0 %v2204, %s2209
      %v2211 = vpop.permute.xlu0 %2210
      %s2213 = sor.u32 256, 16
      %2214 = vbcast.lane.b32.xlu0 %v2204, %s2213
      %v2215 = vpop.permute.xlu0 %2214
      %s2217 = sor.u32 256, 24
      %2218 = vbcast.lane.b32.xlu0 %v2204, %s2217
      %v2219 = vpop.permute.xlu0 %2218
      %v2220 = vlaneseq
      %v2221 = vshrl.u32 %v2220, 7
      %v2222 = vsub.s32 1, %v2221
      %v2223 = vrot.slane %v533, %v2222
      %2225 = vbcast.lane.b32.xlu0 %v2223, 256
      %v2226 = vpop.permute.xlu0 %2225
      %s2228 = sor.u32 256, 8
      %2229 = vbcast.lane.b32.xlu0 %v2223, %s2228
      %v2230 = vpop.permute.xlu0 %2229
      %s2232 = sor.u32 256, 16
      %2233 = vbcast.lane.b32.xlu0 %v2223, %s2232
      %v2234 = vpop.permute.xlu0 %2233
      %s2236 = sor.u32 256, 24
      %2237 = vbcast.lane.b32.xlu0 %v2223, %s2236
      %v2238 = vpop.permute.xlu0 %2237
      %v2239 = vlaneseq
      %v2240 = vshrl.u32 %v2239, 7
      %v2241 = vsub.s32 2, %v2240
      %v2242 = vrot.slane %v533, %v2241
      %2244 = vbcast.lane.b32.xlu0 %v2242, 256
      %v2245 = vpop.permute.xlu0 %2244
      %s2247 = sor.u32 256, 8
      %2248 = vbcast.lane.b32.xlu0 %v2242, %s2247
      %v2249 = vpop.permute.xlu0 %2248
      %s2251 = sor.u32 256, 16
      %2252 = vbcast.lane.b32.xlu0 %v2242, %s2251
      %v2253 = vpop.permute.xlu0 %2252
      %s2255 = sor.u32 256, 24
      %2256 = vbcast.lane.b32.xlu0 %v2242, %s2255
      %v2257 = vpop.permute.xlu0 %2256
      %v2258 = vlaneseq
      %v2259 = vshrl.u32 %v2258, 7
      %v2260 = vsub.s32 3, %v2259
      %v2261 = vrot.slane %v533, %v2260
      %2263 = vbcast.lane.b32.xlu0 %v2261, 256
      %v2264 = vpop.permute.xlu0 %2263
      %s2266 = sor.u32 256, 8
      %2267 = vbcast.lane.b32.xlu0 %v2261, %s2266
      %v2268 = vpop.permute.xlu0 %2267
      %s2270 = sor.u32 256, 16
      %2271 = vbcast.lane.b32.xlu0 %v2261, %s2270
      %v2272 = vpop.permute.xlu0 %2271
      %s2274 = sor.u32 256, 24
      %2275 = vbcast.lane.b32.xlu0 %v2261, %s2274
      %v2276 = vpop.permute.xlu0 %2275
      %v2277 = vlaneseq
      %v2278 = vshrl.u32 %v2277, 7
      %v2279 = vsub.s32 4, %v2278
      %v2280 = vrot.slane %v533, %v2279
      %2282 = vbcast.lane.b32.xlu0 %v2280, 256
      %v2283 = vpop.permute.xlu0 %2282
      %s2285 = sor.u32 256, 8
      %2286 = vbcast.lane.b32.xlu0 %v2280, %s2285
      %v2287 = vpop.permute.xlu0 %2286
      %s2289 = sor.u32 256, 16
      %2290 = vbcast.lane.b32.xlu0 %v2280, %s2289
      %v2291 = vpop.permute.xlu0 %2290
      %s2293 = sor.u32 256, 24
      %2294 = vbcast.lane.b32.xlu0 %v2280, %s2293
      %v2295 = vpop.permute.xlu0 %2294
      %v2296 = vlaneseq
      %v2297 = vshrl.u32 %v2296, 7
      %v2298 = vsub.s32 5, %v2297
      %v2299 = vrot.slane %v533, %v2298
      %2301 = vbcast.lane.b32.xlu0 %v2299, 256
      %v2302 = vpop.permute.xlu0 %2301
      %s2304 = sor.u32 256, 8
      %2305 = vbcast.lane.b32.xlu0 %v2299, %s2304
      %v2306 = vpop.permute.xlu0 %2305
      %s2308 = sor.u32 256, 16
      %2309 = vbcast.lane.b32.xlu0 %v2299, %s2308
      %v2310 = vpop.permute.xlu0 %2309
      %s2312 = sor.u32 256, 24
      %2313 = vbcast.lane.b32.xlu0 %v2299, %s2312
      %v2314 = vpop.permute.xlu0 %2313
      %v2315 = vlaneseq
      %v2316 = vshrl.u32 %v2315, 7
      %v2317 = vsub.s32 6, %v2316
      %v2318 = vrot.slane %v533, %v2317
      %2320 = vbcast.lane.b32.xlu0 %v2318, 256
      %v2321 = vpop.permute.xlu0 %2320
      %s2323 = sor.u32 256, 8
      %2324 = vbcast.lane.b32.xlu0 %v2318, %s2323
      %v2325 = vpop.permute.xlu0 %2324
      %s2327 = sor.u32 256, 16
      %2328 = vbcast.lane.b32.xlu0 %v2318, %s2327
      %v2329 = vpop.permute.xlu0 %2328
      %s2331 = sor.u32 256, 24
      %2332 = vbcast.lane.b32.xlu0 %v2318, %s2331
      %v2333 = vpop.permute.xlu0 %2332
      %v2334 = vlaneseq
      %v2335 = vshrl.u32 %v2334, 7
      %v2336 = vsub.s32 7, %v2335
      %v2337 = vrot.slane %v533, %v2336
      %2339 = vbcast.lane.b32.xlu0 %v2337, 256
      %v2340 = vpop.permute.xlu0 %2339
      %s2342 = sor.u32 256, 8
      %2343 = vbcast.lane.b32.xlu0 %v2337, %s2342
      %v2344 = vpop.permute.xlu0 %2343
      %s2346 = sor.u32 256, 16
      %2347 = vbcast.lane.b32.xlu0 %v2337, %s2346
      %v2348 = vpop.permute.xlu0 %2347
      %s2350 = sor.u32 256, 24
      %2351 = vbcast.lane.b32.xlu0 %v2337, %s2350
      %v2352 = vpop.permute.xlu0 %2351
      %v2353 = vlaneseq
      %v2354 = vshrl.u32 %v2353, 7
      %v2355 = vsub.s32 0, %v2354
      %v2356 = vrot.slane %v538, %v2355
      %2358 = vbcast.lane.b32.xlu0 %v2356, 256
      %v2359 = vpop.permute.xlu0 %2358
      %s2361 = sor.u32 256, 8
      %2362 = vbcast.lane.b32.xlu0 %v2356, %s2361
      %v2363 = vpop.permute.xlu0 %2362
      %s2365 = sor.u32 256, 16
      %2366 = vbcast.lane.b32.xlu0 %v2356, %s2365
      %v2367 = vpop.permute.xlu0 %2366
      %s2369 = sor.u32 256, 24
      %2370 = vbcast.lane.b32.xlu0 %v2356, %s2369
      %v2371 = vpop.permute.xlu0 %2370
      %v2372 = vlaneseq
      %v2373 = vshrl.u32 %v2372, 7
      %v2374 = vsub.s32 1, %v2373
      %v2375 = vrot.slane %v538, %v2374
      %2377 = vbcast.lane.b32.xlu0 %v2375, 256
      %v2378 = vpop.permute.xlu0 %2377
      %s2380 = sor.u32 256, 8
      %2381 = vbcast.lane.b32.xlu0 %v2375, %s2380
      %v2382 = vpop.permute.xlu0 %2381
      %s2384 = sor.u32 256, 16
      %2385 = vbcast.lane.b32.xlu0 %v2375, %s2384
      %v2386 = vpop.permute.xlu0 %2385
      %s2388 = sor.u32 256, 24
      %2389 = vbcast.lane.b32.xlu0 %v2375, %s2388
      %v2390 = vpop.permute.xlu0 %2389
      %v2391 = vlaneseq
      %v2392 = vshrl.u32 %v2391, 7
      %v2393 = vsub.s32 2, %v2392
      %v2394 = vrot.slane %v538, %v2393
      %2396 = vbcast.lane.b32.xlu0 %v2394, 256
      %v2397 = vpop.permute.xlu0 %2396
      %s2399 = sor.u32 256, 8
      %2400 = vbcast.lane.b32.xlu0 %v2394, %s2399
      %v2401 = vpop.permute.xlu0 %2400
      %s2403 = sor.u32 256, 16
      %2404 = vbcast.lane.b32.xlu0 %v2394, %s2403
      %v2405 = vpop.permute.xlu0 %2404
      %s2407 = sor.u32 256, 24
      %2408 = vbcast.lane.b32.xlu0 %v2394, %s2407
      %v2409 = vpop.permute.xlu0 %2408
      %v2410 = vlaneseq
      %v2411 = vshrl.u32 %v2410, 7
      %v2412 = vsub.s32 3, %v2411
      %v2413 = vrot.slane %v538, %v2412
      %2415 = vbcast.lane.b32.xlu0 %v2413, 256
      %v2416 = vpop.permute.xlu0 %2415
      %s2418 = sor.u32 256, 8
      %2419 = vbcast.lane.b32.xlu0 %v2413, %s2418
      %v2420 = vpop.permute.xlu0 %2419
      %s2422 = sor.u32 256, 16
      %2423 = vbcast.lane.b32.xlu0 %v2413, %s2422
      %v2424 = vpop.permute.xlu0 %2423
      %s2426 = sor.u32 256, 24
      %2427 = vbcast.lane.b32.xlu0 %v2413, %s2426
      %v2428 = vpop.permute.xlu0 %2427
      %v2429 = vlaneseq
      %v2430 = vshrl.u32 %v2429, 7
      %v2431 = vsub.s32 4, %v2430
      %v2432 = vrot.slane %v538, %v2431
      %2434 = vbcast.lane.b32.xlu0 %v2432, 256
      %v2435 = vpop.permute.xlu0 %2434
      %s2437 = sor.u32 256, 8
      %2438 = vbcast.lane.b32.xlu0 %v2432, %s2437
      %v2439 = vpop.permute.xlu0 %2438
      %s2441 = sor.u32 256, 16
      %2442 = vbcast.lane.b32.xlu0 %v2432, %s2441
      %v2443 = vpop.permute.xlu0 %2442
      %s2445 = sor.u32 256, 24
      %2446 = vbcast.lane.b32.xlu0 %v2432, %s2445
      %v2447 = vpop.permute.xlu0 %2446
      %v2448 = vlaneseq
      %v2449 = vshrl.u32 %v2448, 7
      %v2450 = vsub.s32 5, %v2449
      %v2451 = vrot.slane %v538, %v2450
      %2453 = vbcast.lane.b32.xlu0 %v2451, 256
      %v2454 = vpop.permute.xlu0 %2453
      %s2456 = sor.u32 256, 8
      %2457 = vbcast.lane.b32.xlu0 %v2451, %s2456
      %v2458 = vpop.permute.xlu0 %2457
      %s2460 = sor.u32 256, 16
      %2461 = vbcast.lane.b32.xlu0 %v2451, %s2460
      %v2462 = vpop.permute.xlu0 %2461
      %s2464 = sor.u32 256, 24
      %2465 = vbcast.lane.b32.xlu0 %v2451, %s2464
      %v2466 = vpop.permute.xlu0 %2465
      %v2467 = vlaneseq
      %v2468 = vshrl.u32 %v2467, 7
      %v2469 = vsub.s32 6, %v2468
      %v2470 = vrot.slane %v538, %v2469
      %2472 = vbcast.lane.b32.xlu0 %v2470, 256
      %v2473 = vpop.permute.xlu0 %2472
      %s2475 = sor.u32 256, 8
      %2476 = vbcast.lane.b32.xlu0 %v2470, %s2475
      %v2477 = vpop.permute.xlu0 %2476
      %s2479 = sor.u32 256, 16
      %2480 = vbcast.lane.b32.xlu0 %v2470, %s2479
      %v2481 = vpop.permute.xlu0 %2480
      %s2483 = sor.u32 256, 24
      %2484 = vbcast.lane.b32.xlu0 %v2470, %s2483
      %v2485 = vpop.permute.xlu0 %2484
      %v2486 = vlaneseq
      %v2487 = vshrl.u32 %v2486, 7
      %v2488 = vsub.s32 7, %v2487
      %v2489 = vrot.slane %v538, %v2488
      %2491 = vbcast.lane.b32.xlu0 %v2489, 256
      %v2492 = vpop.permute.xlu0 %2491
      %s2494 = sor.u32 256, 8
      %2495 = vbcast.lane.b32.xlu0 %v2489, %s2494
      %v2496 = vpop.permute.xlu0 %2495
      %s2498 = sor.u32 256, 16
      %2499 = vbcast.lane.b32.xlu0 %v2489, %s2498
      %v2500 = vpop.permute.xlu0 %2499
      %s2502 = sor.u32 256, 24
      %2503 = vbcast.lane.b32.xlu0 %v2489, %s2502
      %v2504 = vpop.permute.xlu0 %2503
      %v2505 = vlaneseq
      %v2506 = vshrl.u32 %v2505, 7
      %v2507 = vsub.s32 0, %v2506
      %v2508 = vrot.slane %v543, %v2507
      %2510 = vbcast.lane.b32.xlu0 %v2508, 256
      %v2511 = vpop.permute.xlu0 %2510
      %s2513 = sor.u32 256, 8
      %2514 = vbcast.lane.b32.xlu0 %v2508, %s2513
      %v2515 = vpop.permute.xlu0 %2514
      %s2517 = sor.u32 256, 16
      %2518 = vbcast.lane.b32.xlu0 %v2508, %s2517
      %v2519 = vpop.permute.xlu0 %2518
      %s2521 = sor.u32 256, 24
      %2522 = vbcast.lane.b32.xlu0 %v2508, %s2521
      %v2523 = vpop.permute.xlu0 %2522
      %v2524 = vlaneseq
      %v2525 = vshrl.u32 %v2524, 7
      %v2526 = vsub.s32 1, %v2525
      %v2527 = vrot.slane %v543, %v2526
      %2529 = vbcast.lane.b32.xlu0 %v2527, 256
      %v2530 = vpop.permute.xlu0 %2529
      %s2532 = sor.u32 256, 8
      %2533 = vbcast.lane.b32.xlu0 %v2527, %s2532
      %v2534 = vpop.permute.xlu0 %2533
      %s2536 = sor.u32 256, 16
      %2537 = vbcast.lane.b32.xlu0 %v2527, %s2536
      %v2538 = vpop.permute.xlu0 %2537
      %s2540 = sor.u32 256, 24
      %2541 = vbcast.lane.b32.xlu0 %v2527, %s2540
      %v2542 = vpop.permute.xlu0 %2541
      %v2543 = vlaneseq
      %v2544 = vshrl.u32 %v2543, 7
      %v2545 = vsub.s32 2, %v2544
      %v2546 = vrot.slane %v543, %v2545
      %2548 = vbcast.lane.b32.xlu0 %v2546, 256
      %v2549 = vpop.permute.xlu0 %2548
      %s2551 = sor.u32 256, 8
      %2552 = vbcast.lane.b32.xlu0 %v2546, %s2551
      %v2553 = vpop.permute.xlu0 %2552
      %s2555 = sor.u32 256, 16
      %2556 = vbcast.lane.b32.xlu0 %v2546, %s2555
      %v2557 = vpop.permute.xlu0 %2556
      %s2559 = sor.u32 256, 24
      %2560 = vbcast.lane.b32.xlu0 %v2546, %s2559
      %v2561 = vpop.permute.xlu0 %2560
      %v2562 = vlaneseq
      %v2563 = vshrl.u32 %v2562, 7
      %v2564 = vsub.s32 3, %v2563
      %v2565 = vrot.slane %v543, %v2564
      %2567 = vbcast.lane.b32.xlu0 %v2565, 256
      %v2568 = vpop.permute.xlu0 %2567
      %s2570 = sor.u32 256, 8
      %2571 = vbcast.lane.b32.xlu0 %v2565, %s2570
      %v2572 = vpop.permute.xlu0 %2571
      %s2574 = sor.u32 256, 16
      %2575 = vbcast.lane.b32.xlu0 %v2565, %s2574
      %v2576 = vpop.permute.xlu0 %2575
      %s2578 = sor.u32 256, 24
      %2579 = vbcast.lane.b32.xlu0 %v2565, %s2578
      %v2580 = vpop.permute.xlu0 %2579
      %v2581 = vlaneseq
      %v2582 = vshrl.u32 %v2581, 7
      %v2583 = vsub.s32 4, %v2582
      %v2584 = vrot.slane %v543, %v2583
      %2586 = vbcast.lane.b32.xlu0 %v2584, 256
      %v2587 = vpop.permute.xlu0 %2586
      %s2589 = sor.u32 256, 8
      %2590 = vbcast.lane.b32.xlu0 %v2584, %s2589
      %v2591 = vpop.permute.xlu0 %2590
      %s2593 = sor.u32 256, 16
      %2594 = vbcast.lane.b32.xlu0 %v2584, %s2593
      %v2595 = vpop.permute.xlu0 %2594
      %s2597 = sor.u32 256, 24
      %2598 = vbcast.lane.b32.xlu0 %v2584, %s2597
      %v2599 = vpop.permute.xlu0 %2598
      %v2600 = vlaneseq
      %v2601 = vshrl.u32 %v2600, 7
      %v2602 = vsub.s32 5, %v2601
      %v2603 = vrot.slane %v543, %v2602
      %2605 = vbcast.lane.b32.xlu0 %v2603, 256
      %v2606 = vpop.permute.xlu0 %2605
      %s2608 = sor.u32 256, 8
      %2609 = vbcast.lane.b32.xlu0 %v2603, %s2608
      %v2610 = vpop.permute.xlu0 %2609
      %s2612 = sor.u32 256, 16
      %2613 = vbcast.lane.b32.xlu0 %v2603, %s2612
      %v2614 = vpop.permute.xlu0 %2613
      %s2616 = sor.u32 256, 24
      %2617 = vbcast.lane.b32.xlu0 %v2603, %s2616
      %v2618 = vpop.permute.xlu0 %2617
      %v2619 = vlaneseq
      %v2620 = vshrl.u32 %v2619, 7
      %v2621 = vsub.s32 6, %v2620
      %v2622 = vrot.slane %v543, %v2621
      %2624 = vbcast.lane.b32.xlu0 %v2622, 256
      %v2625 = vpop.permute.xlu0 %2624
      %s2627 = sor.u32 256, 8
      %2628 = vbcast.lane.b32.xlu0 %v2622, %s2627
      %v2629 = vpop.permute.xlu0 %2628
      %s2631 = sor.u32 256, 16
      %2632 = vbcast.lane.b32.xlu0 %v2622, %s2631
      %v2633 = vpop.permute.xlu0 %2632
      %s2635 = sor.u32 256, 24
      %2636 = vbcast.lane.b32.xlu0 %v2622, %s2635
      %v2637 = vpop.permute.xlu0 %2636
      %v2638 = vlaneseq
      %v2639 = vshrl.u32 %v2638, 7
      %v2640 = vsub.s32 7, %v2639
      %v2641 = vrot.slane %v543, %v2640
      %2643 = vbcast.lane.b32.xlu0 %v2641, 256
      %v2644 = vpop.permute.xlu0 %2643
      %s2646 = sor.u32 256, 8
      %2647 = vbcast.lane.b32.xlu0 %v2641, %s2646
      %v2648 = vpop.permute.xlu0 %2647
      %s2650 = sor.u32 256, 16
      %2651 = vbcast.lane.b32.xlu0 %v2641, %s2650
      %v2652 = vpop.permute.xlu0 %2651
      %s2654 = sor.u32 256, 24
      %2655 = vbcast.lane.b32.xlu0 %v2641, %s2654
      %v2656 = vpop.permute.xlu0 %2655
      %v2657 = vlaneseq
      %v2658 = vshrl.u32 %v2657, 7
      %v2659 = vsub.s32 0, %v2658
      %v2660 = vrot.slane %v548, %v2659
      %2662 = vbcast.lane.b32.xlu0 %v2660, 256
      %v2663 = vpop.permute.xlu0 %2662
      %s2665 = sor.u32 256, 8
      %2666 = vbcast.lane.b32.xlu0 %v2660, %s2665
      %v2667 = vpop.permute.xlu0 %2666
      %s2669 = sor.u32 256, 16
      %2670 = vbcast.lane.b32.xlu0 %v2660, %s2669
      %v2671 = vpop.permute.xlu0 %2670
      %s2673 = sor.u32 256, 24
      %2674 = vbcast.lane.b32.xlu0 %v2660, %s2673
      %v2675 = vpop.permute.xlu0 %2674
      %v2676 = vlaneseq
      %v2677 = vshrl.u32 %v2676, 7
      %v2678 = vsub.s32 1, %v2677
      %v2679 = vrot.slane %v548, %v2678
      %2681 = vbcast.lane.b32.xlu0 %v2679, 256
      %v2682 = vpop.permute.xlu0 %2681
      %s2684 = sor.u32 256, 8
      %2685 = vbcast.lane.b32.xlu0 %v2679, %s2684
      %v2686 = vpop.permute.xlu0 %2685
      %s2688 = sor.u32 256, 16
      %2689 = vbcast.lane.b32.xlu0 %v2679, %s2688
      %v2690 = vpop.permute.xlu0 %2689
      %s2692 = sor.u32 256, 24
      %2693 = vbcast.lane.b32.xlu0 %v2679, %s2692
      %v2694 = vpop.permute.xlu0 %2693
      %v2695 = vlaneseq
      %v2696 = vshrl.u32 %v2695, 7
      %v2697 = vsub.s32 2, %v2696
      %v2698 = vrot.slane %v548, %v2697
      %2700 = vbcast.lane.b32.xlu0 %v2698, 256
      %v2701 = vpop.permute.xlu0 %2700
      %s2703 = sor.u32 256, 8
      %2704 = vbcast.lane.b32.xlu0 %v2698, %s2703
      %v2705 = vpop.permute.xlu0 %2704
      %s2707 = sor.u32 256, 16
      %2708 = vbcast.lane.b32.xlu0 %v2698, %s2707
      %v2709 = vpop.permute.xlu0 %2708
      %s2711 = sor.u32 256, 24
      %2712 = vbcast.lane.b32.xlu0 %v2698, %s2711
      %v2713 = vpop.permute.xlu0 %2712
      %v2714 = vlaneseq
      %v2715 = vshrl.u32 %v2714, 7
      %v2716 = vsub.s32 3, %v2715
      %v2717 = vrot.slane %v548, %v2716
      %2719 = vbcast.lane.b32.xlu0 %v2717, 256
      %v2720 = vpop.permute.xlu0 %2719
      %s2722 = sor.u32 256, 8
      %2723 = vbcast.lane.b32.xlu0 %v2717, %s2722
      %v2724 = vpop.permute.xlu0 %2723
      %s2726 = sor.u32 256, 16
      %2727 = vbcast.lane.b32.xlu0 %v2717, %s2726
      %v2728 = vpop.permute.xlu0 %2727
      %s2730 = sor.u32 256, 24
      %2731 = vbcast.lane.b32.xlu0 %v2717, %s2730
      %v2732 = vpop.permute.xlu0 %2731
      %v2733 = vlaneseq
      %v2734 = vshrl.u32 %v2733, 7
      %v2735 = vsub.s32 4, %v2734
      %v2736 = vrot.slane %v548, %v2735
      %2738 = vbcast.lane.b32.xlu0 %v2736, 256
      %v2739 = vpop.permute.xlu0 %2738
      %s2741 = sor.u32 256, 8
      %2742 = vbcast.lane.b32.xlu0 %v2736, %s2741
      %v2743 = vpop.permute.xlu0 %2742
      %s2745 = sor.u32 256, 16
      %2746 = vbcast.lane.b32.xlu0 %v2736, %s2745
      %v2747 = vpop.permute.xlu0 %2746
      %s2749 = sor.u32 256, 24
      %2750 = vbcast.lane.b32.xlu0 %v2736, %s2749
      %v2751 = vpop.permute.xlu0 %2750
      %v2752 = vlaneseq
      %v2753 = vshrl.u32 %v2752, 7
      %v2754 = vsub.s32 5, %v2753
      %v2755 = vrot.slane %v548, %v2754
      %2757 = vbcast.lane.b32.xlu0 %v2755, 256
      %v2758 = vpop.permute.xlu0 %2757
      %s2760 = sor.u32 256, 8
      %2761 = vbcast.lane.b32.xlu0 %v2755, %s2760
      %v2762 = vpop.permute.xlu0 %2761
      %s2764 = sor.u32 256, 16
      %2765 = vbcast.lane.b32.xlu0 %v2755, %s2764
      %v2766 = vpop.permute.xlu0 %2765
      %s2768 = sor.u32 256, 24
      %2769 = vbcast.lane.b32.xlu0 %v2755, %s2768
      %v2770 = vpop.permute.xlu0 %2769
      %v2771 = vlaneseq
      %v2772 = vshrl.u32 %v2771, 7
      %v2773 = vsub.s32 6, %v2772
      %v2774 = vrot.slane %v548, %v2773
      %2776 = vbcast.lane.b32.xlu0 %v2774, 256
      %v2777 = vpop.permute.xlu0 %2776
      %s2779 = sor.u32 256, 8
      %2780 = vbcast.lane.b32.xlu0 %v2774, %s2779
      %v2781 = vpop.permute.xlu0 %2780
      %s2783 = sor.u32 256, 16
      %2784 = vbcast.lane.b32.xlu0 %v2774, %s2783
      %v2785 = vpop.permute.xlu0 %2784
      %s2787 = sor.u32 256, 24
      %2788 = vbcast.lane.b32.xlu0 %v2774, %s2787
      %v2789 = vpop.permute.xlu0 %2788
      %v2790 = vlaneseq
      %v2791 = vshrl.u32 %v2790, 7
      %v2792 = vsub.s32 7, %v2791
      %v2793 = vrot.slane %v548, %v2792
      %2795 = vbcast.lane.b32.xlu0 %v2793, 256
      %v2796 = vpop.permute.xlu0 %2795
      %s2798 = sor.u32 256, 8
      %2799 = vbcast.lane.b32.xlu0 %v2793, %s2798
      %v2800 = vpop.permute.xlu0 %2799
      %s2802 = sor.u32 256, 16
      %2803 = vbcast.lane.b32.xlu0 %v2793, %s2802
      %v2804 = vpop.permute.xlu0 %2803
      %s2806 = sor.u32 256, 24
      %2807 = vbcast.lane.b32.xlu0 %v2793, %s2806
      %v2808 = vpop.permute.xlu0 %2807
      %v2809 = vlaneseq
      %v2810 = vshrl.u32 %v2809, 7
      %v2811 = vsub.s32 0, %v2810
      %v2812 = vrot.slane %v553, %v2811
      %2814 = vbcast.lane.b32.xlu0 %v2812, 256
      %v2815 = vpop.permute.xlu0 %2814
      %s2817 = sor.u32 256, 8
      %2818 = vbcast.lane.b32.xlu0 %v2812, %s2817
      %v2819 = vpop.permute.xlu0 %2818
      %s2821 = sor.u32 256, 16
      %2822 = vbcast.lane.b32.xlu0 %v2812, %s2821
      %v2823 = vpop.permute.xlu0 %2822
      %s2825 = sor.u32 256, 24
      %2826 = vbcast.lane.b32.xlu0 %v2812, %s2825
      %v2827 = vpop.permute.xlu0 %2826
      %v2828 = vlaneseq
      %v2829 = vshrl.u32 %v2828, 7
      %v2830 = vsub.s32 1, %v2829
      %v2831 = vrot.slane %v553, %v2830
      %2833 = vbcast.lane.b32.xlu0 %v2831, 256
      %v2834 = vpop.permute.xlu0 %2833
      %s2836 = sor.u32 256, 8
      %2837 = vbcast.lane.b32.xlu0 %v2831, %s2836
      %v2838 = vpop.permute.xlu0 %2837
      %s2840 = sor.u32 256, 16
      %2841 = vbcast.lane.b32.xlu0 %v2831, %s2840
      %v2842 = vpop.permute.xlu0 %2841
      %s2844 = sor.u32 256, 24
      %2845 = vbcast.lane.b32.xlu0 %v2831, %s2844
      %v2846 = vpop.permute.xlu0 %2845
      %v2847 = vlaneseq
      %v2848 = vshrl.u32 %v2847, 7
      %v2849 = vsub.s32 2, %v2848
      %v2850 = vrot.slane %v553, %v2849
      %2852 = vbcast.lane.b32.xlu0 %v2850, 256
      %v2853 = vpop.permute.xlu0 %2852
      %s2855 = sor.u32 256, 8
      %2856 = vbcast.lane.b32.xlu0 %v2850, %s2855
      %v2857 = vpop.permute.xlu0 %2856
      %s2859 = sor.u32 256, 16
      %2860 = vbcast.lane.b32.xlu0 %v2850, %s2859
      %v2861 = vpop.permute.xlu0 %2860
      %s2863 = sor.u32 256, 24
      %2864 = vbcast.lane.b32.xlu0 %v2850, %s2863
      %v2865 = vpop.permute.xlu0 %2864
      %v2866 = vlaneseq
      %v2867 = vshrl.u32 %v2866, 7
      %v2868 = vsub.s32 3, %v2867
      %v2869 = vrot.slane %v553, %v2868
      %2871 = vbcast.lane.b32.xlu0 %v2869, 256
      %v2872 = vpop.permute.xlu0 %2871
      %s2874 = sor.u32 256, 8
      %2875 = vbcast.lane.b32.xlu0 %v2869, %s2874
      %v2876 = vpop.permute.xlu0 %2875
      %s2878 = sor.u32 256, 16
      %2879 = vbcast.lane.b32.xlu0 %v2869, %s2878
      %v2880 = vpop.permute.xlu0 %2879
      %s2882 = sor.u32 256, 24
      %2883 = vbcast.lane.b32.xlu0 %v2869, %s2882
      %v2884 = vpop.permute.xlu0 %2883
      %v2885 = vlaneseq
      %v2886 = vshrl.u32 %v2885, 7
      %v2887 = vsub.s32 4, %v2886
      %v2888 = vrot.slane %v553, %v2887
      %2890 = vbcast.lane.b32.xlu0 %v2888, 256
      %v2891 = vpop.permute.xlu0 %2890
      %s2893 = sor.u32 256, 8
      %2894 = vbcast.lane.b32.xlu0 %v2888, %s2893
      %v2895 = vpop.permute.xlu0 %2894
      %s2897 = sor.u32 256, 16
      %2898 = vbcast.lane.b32.xlu0 %v2888, %s2897
      %v2899 = vpop.permute.xlu0 %2898
      %s2901 = sor.u32 256, 24
      %2902 = vbcast.lane.b32.xlu0 %v2888, %s2901
      %v2903 = vpop.permute.xlu0 %2902
      %v2904 = vlaneseq
      %v2905 = vshrl.u32 %v2904, 7
      %v2906 = vsub.s32 5, %v2905
      %v2907 = vrot.slane %v553, %v2906
      %2909 = vbcast.lane.b32.xlu0 %v2907, 256
      %v2910 = vpop.permute.xlu0 %2909
      %s2912 = sor.u32 256, 8
      %2913 = vbcast.lane.b32.xlu0 %v2907, %s2912
      %v2914 = vpop.permute.xlu0 %2913
      %s2916 = sor.u32 256, 16
      %2917 = vbcast.lane.b32.xlu0 %v2907, %s2916
      %v2918 = vpop.permute.xlu0 %2917
      %s2920 = sor.u32 256, 24
      %2921 = vbcast.lane.b32.xlu0 %v2907, %s2920
      %v2922 = vpop.permute.xlu0 %2921
      %v2923 = vlaneseq
      %v2924 = vshrl.u32 %v2923, 7
      %v2925 = vsub.s32 6, %v2924
      %v2926 = vrot.slane %v553, %v2925
      %2928 = vbcast.lane.b32.xlu0 %v2926, 256
      %v2929 = vpop.permute.xlu0 %2928
      %s2931 = sor.u32 256, 8
      %2932 = vbcast.lane.b32.xlu0 %v2926, %s2931
      %v2933 = vpop.permute.xlu0 %2932
      %s2935 = sor.u32 256, 16
      %2936 = vbcast.lane.b32.xlu0 %v2926, %s2935
      %v2937 = vpop.permute.xlu0 %2936
      %s2939 = sor.u32 256, 24
      %2940 = vbcast.lane.b32.xlu0 %v2926, %s2939
      %v2941 = vpop.permute.xlu0 %2940
      %v2942 = vlaneseq
      %v2943 = vshrl.u32 %v2942, 7
      %v2944 = vsub.s32 7, %v2943
      %v2945 = vrot.slane %v553, %v2944
      %2947 = vbcast.lane.b32.xlu0 %v2945, 256
      %v2948 = vpop.permute.xlu0 %2947
      %s2950 = sor.u32 256, 8
      %2951 = vbcast.lane.b32.xlu0 %v2945, %s2950
      %v2952 = vpop.permute.xlu0 %2951
      %s2954 = sor.u32 256, 16
      %2955 = vbcast.lane.b32.xlu0 %v2945, %s2954
      %v2956 = vpop.permute.xlu0 %2955
      %s2958 = sor.u32 256, 24
      %2959 = vbcast.lane.b32.xlu0 %v2945, %s2958
      %v2960 = vpop.permute.xlu0 %2959
      %v2961 = vlaneseq
      %v2962 = vshrl.u32 %v2961, 7
      %v2963 = vsub.s32 0, %v2962
      %v2964 = vrot.slane %v558, %v2963
      %2966 = vbcast.lane.b32.xlu0 %v2964, 256
      %v2967 = vpop.permute.xlu0 %2966
      %s2969 = sor.u32 256, 8
      %2970 = vbcast.lane.b32.xlu0 %v2964, %s2969
      %v2971 = vpop.permute.xlu0 %2970
      %s2973 = sor.u32 256, 16
      %2974 = vbcast.lane.b32.xlu0 %v2964, %s2973
      %v2975 = vpop.permute.xlu0 %2974
      %s2977 = sor.u32 256, 24
      %2978 = vbcast.lane.b32.xlu0 %v2964, %s2977
      %v2979 = vpop.permute.xlu0 %2978
      %v2980 = vlaneseq
      %v2981 = vshrl.u32 %v2980, 7
      %v2982 = vsub.s32 1, %v2981
      %v2983 = vrot.slane %v558, %v2982
      %2985 = vbcast.lane.b32.xlu0 %v2983, 256
      %v2986 = vpop.permute.xlu0 %2985
      %s2988 = sor.u32 256, 8
      %2989 = vbcast.lane.b32.xlu0 %v2983, %s2988
      %v2990 = vpop.permute.xlu0 %2989
      %s2992 = sor.u32 256, 16
      %2993 = vbcast.lane.b32.xlu0 %v2983, %s2992
      %v2994 = vpop.permute.xlu0 %2993
      %s2996 = sor.u32 256, 24
      %2997 = vbcast.lane.b32.xlu0 %v2983, %s2996
      %v2998 = vpop.permute.xlu0 %2997
      %v2999 = vlaneseq
      %v3000 = vshrl.u32 %v2999, 7
      %v3001 = vsub.s32 2, %v3000
      %v3002 = vrot.slane %v558, %v3001
      %3004 = vbcast.lane.b32.xlu0 %v3002, 256
      %v3005 = vpop.permute.xlu0 %3004
      %s3007 = sor.u32 256, 8
      %3008 = vbcast.lane.b32.xlu0 %v3002, %s3007
      %v3009 = vpop.permute.xlu0 %3008
      %s3011 = sor.u32 256, 16
      %3012 = vbcast.lane.b32.xlu0 %v3002, %s3011
      %v3013 = vpop.permute.xlu0 %3012
      %s3015 = sor.u32 256, 24
      %3016 = vbcast.lane.b32.xlu0 %v3002, %s3015
      %v3017 = vpop.permute.xlu0 %3016
      %v3018 = vlaneseq
      %v3019 = vshrl.u32 %v3018, 7
      %v3020 = vsub.s32 3, %v3019
      %v3021 = vrot.slane %v558, %v3020
      %3023 = vbcast.lane.b32.xlu0 %v3021, 256
      %v3024 = vpop.permute.xlu0 %3023
      %s3026 = sor.u32 256, 8
      %3027 = vbcast.lane.b32.xlu0 %v3021, %s3026
      %v3028 = vpop.permute.xlu0 %3027
      %s3030 = sor.u32 256, 16
      %3031 = vbcast.lane.b32.xlu0 %v3021, %s3030
      %v3032 = vpop.permute.xlu0 %3031
      %s3034 = sor.u32 256, 24
      %3035 = vbcast.lane.b32.xlu0 %v3021, %s3034
      %v3036 = vpop.permute.xlu0 %3035
      %v3037 = vlaneseq
      %v3038 = vshrl.u32 %v3037, 7
      %v3039 = vsub.s32 4, %v3038
      %v3040 = vrot.slane %v558, %v3039
      %3042 = vbcast.lane.b32.xlu0 %v3040, 256
      %v3043 = vpop.permute.xlu0 %3042
      %s3045 = sor.u32 256, 8
      %3046 = vbcast.lane.b32.xlu0 %v3040, %s3045
      %v3047 = vpop.permute.xlu0 %3046
      %s3049 = sor.u32 256, 16
      %3050 = vbcast.lane.b32.xlu0 %v3040, %s3049
      %v3051 = vpop.permute.xlu0 %3050
      %s3053 = sor.u32 256, 24
      %3054 = vbcast.lane.b32.xlu0 %v3040, %s3053
      %v3055 = vpop.permute.xlu0 %3054
      %v3056 = vlaneseq
      %v3057 = vshrl.u32 %v3056, 7
      %v3058 = vsub.s32 5, %v3057
      %v3059 = vrot.slane %v558, %v3058
      %3061 = vbcast.lane.b32.xlu0 %v3059, 256
      %v3062 = vpop.permute.xlu0 %3061
      %s3064 = sor.u32 256, 8
      %3065 = vbcast.lane.b32.xlu0 %v3059, %s3064
      %v3066 = vpop.permute.xlu0 %3065
      %s3068 = sor.u32 256, 16
      %3069 = vbcast.lane.b32.xlu0 %v3059, %s3068
      %v3070 = vpop.permute.xlu0 %3069
      %s3072 = sor.u32 256, 24
      %3073 = vbcast.lane.b32.xlu0 %v3059, %s3072
      %v3074 = vpop.permute.xlu0 %3073
      %v3075 = vlaneseq
      %v3076 = vshrl.u32 %v3075, 7
      %v3077 = vsub.s32 6, %v3076
      %v3078 = vrot.slane %v558, %v3077
      %3080 = vbcast.lane.b32.xlu0 %v3078, 256
      %v3081 = vpop.permute.xlu0 %3080
      %s3083 = sor.u32 256, 8
      %3084 = vbcast.lane.b32.xlu0 %v3078, %s3083
      %v3085 = vpop.permute.xlu0 %3084
      %s3087 = sor.u32 256, 16
      %3088 = vbcast.lane.b32.xlu0 %v3078, %s3087
      %v3089 = vpop.permute.xlu0 %3088
      %s3091 = sor.u32 256, 24
      %3092 = vbcast.lane.b32.xlu0 %v3078, %s3091
      %v3093 = vpop.permute.xlu0 %3092
      %v3094 = vlaneseq
      %v3095 = vshrl.u32 %v3094, 7
      %v3096 = vsub.s32 7, %v3095
      %v3097 = vrot.slane %v558, %v3096
      %3099 = vbcast.lane.b32.xlu0 %v3097, 256
      %v3100 = vpop.permute.xlu0 %3099
      %s3102 = sor.u32 256, 8
      %3103 = vbcast.lane.b32.xlu0 %v3097, %s3102
      %v3104 = vpop.permute.xlu0 %3103
      %s3106 = sor.u32 256, 16
      %3107 = vbcast.lane.b32.xlu0 %v3097, %s3106
      %v3108 = vpop.permute.xlu0 %3107
      %s3110 = sor.u32 256, 24
      %3111 = vbcast.lane.b32.xlu0 %v3097, %s3110
      %v3112 = vpop.permute.xlu0 %3111
      %v3113 = vlaneseq
      %v3114 = vshrl.u32 %v3113, 7
      %v3115 = vsub.s32 0, %v3114
      %v3116 = vrot.slane %v563, %v3115
      %3118 = vbcast.lane.b32.xlu0 %v3116, 256
      %v3119 = vpop.permute.xlu0 %3118
      %s3121 = sor.u32 256, 8
      %3122 = vbcast.lane.b32.xlu0 %v3116, %s3121
      %v3123 = vpop.permute.xlu0 %3122
      %s3125 = sor.u32 256, 16
      %3126 = vbcast.lane.b32.xlu0 %v3116, %s3125
      %v3127 = vpop.permute.xlu0 %3126
      %s3129 = sor.u32 256, 24
      %3130 = vbcast.lane.b32.xlu0 %v3116, %s3129
      %v3131 = vpop.permute.xlu0 %3130
      %v3132 = vlaneseq
      %v3133 = vshrl.u32 %v3132, 7
      %v3134 = vsub.s32 1, %v3133
      %v3135 = vrot.slane %v563, %v3134
      %3137 = vbcast.lane.b32.xlu0 %v3135, 256
      %v3138 = vpop.permute.xlu0 %3137
      %s3140 = sor.u32 256, 8
      %3141 = vbcast.lane.b32.xlu0 %v3135, %s3140
      %v3142 = vpop.permute.xlu0 %3141
      %s3144 = sor.u32 256, 16
      %3145 = vbcast.lane.b32.xlu0 %v3135, %s3144
      %v3146 = vpop.permute.xlu0 %3145
      %s3148 = sor.u32 256, 24
      %3149 = vbcast.lane.b32.xlu0 %v3135, %s3148
      %v3150 = vpop.permute.xlu0 %3149
      %v3151 = vlaneseq
      %v3152 = vshrl.u32 %v3151, 7
      %v3153 = vsub.s32 2, %v3152
      %v3154 = vrot.slane %v563, %v3153
      %3156 = vbcast.lane.b32.xlu0 %v3154, 256
      %v3157 = vpop.permute.xlu0 %3156
      %s3159 = sor.u32 256, 8
      %3160 = vbcast.lane.b32.xlu0 %v3154, %s3159
      %v3161 = vpop.permute.xlu0 %3160
      %s3163 = sor.u32 256, 16
      %3164 = vbcast.lane.b32.xlu0 %v3154, %s3163
      %v3165 = vpop.permute.xlu0 %3164
      %s3167 = sor.u32 256, 24
      %3168 = vbcast.lane.b32.xlu0 %v3154, %s3167
      %v3169 = vpop.permute.xlu0 %3168
      %v3170 = vlaneseq
      %v3171 = vshrl.u32 %v3170, 7
      %v3172 = vsub.s32 3, %v3171
      %v3173 = vrot.slane %v563, %v3172
      %3175 = vbcast.lane.b32.xlu0 %v3173, 256
      %v3176 = vpop.permute.xlu0 %3175
      %s3178 = sor.u32 256, 8
      %3179 = vbcast.lane.b32.xlu0 %v3173, %s3178
      %v3180 = vpop.permute.xlu0 %3179
      %s3182 = sor.u32 256, 16
      %3183 = vbcast.lane.b32.xlu0 %v3173, %s3182
      %v3184 = vpop.permute.xlu0 %3183
      %s3186 = sor.u32 256, 24
      %3187 = vbcast.lane.b32.xlu0 %v3173, %s3186
      %v3188 = vpop.permute.xlu0 %3187
      %v3189 = vlaneseq
      %v3190 = vshrl.u32 %v3189, 7
      %v3191 = vsub.s32 4, %v3190
      %v3192 = vrot.slane %v563, %v3191
      %3194 = vbcast.lane.b32.xlu0 %v3192, 256
      %v3195 = vpop.permute.xlu0 %3194
      %s3197 = sor.u32 256, 8
      %3198 = vbcast.lane.b32.xlu0 %v3192, %s3197
      %v3199 = vpop.permute.xlu0 %3198
      %s3201 = sor.u32 256, 16
      %3202 = vbcast.lane.b32.xlu0 %v3192, %s3201
      %v3203 = vpop.permute.xlu0 %3202
      %s3205 = sor.u32 256, 24
      %3206 = vbcast.lane.b32.xlu0 %v3192, %s3205
      %v3207 = vpop.permute.xlu0 %3206
      %v3208 = vlaneseq
      %v3209 = vshrl.u32 %v3208, 7
      %v3210 = vsub.s32 5, %v3209
      %v3211 = vrot.slane %v563, %v3210
      %3213 = vbcast.lane.b32.xlu0 %v3211, 256
      %v3214 = vpop.permute.xlu0 %3213
      %s3216 = sor.u32 256, 8
      %3217 = vbcast.lane.b32.xlu0 %v3211, %s3216
      %v3218 = vpop.permute.xlu0 %3217
      %s3220 = sor.u32 256, 16
      %3221 = vbcast.lane.b32.xlu0 %v3211, %s3220
      %v3222 = vpop.permute.xlu0 %3221
      %s3224 = sor.u32 256, 24
      %3225 = vbcast.lane.b32.xlu0 %v3211, %s3224
      %v3226 = vpop.permute.xlu0 %3225
      %v3227 = vlaneseq
      %v3228 = vshrl.u32 %v3227, 7
      %v3229 = vsub.s32 6, %v3228
      %v3230 = vrot.slane %v563, %v3229
      %3232 = vbcast.lane.b32.xlu0 %v3230, 256
      %v3233 = vpop.permute.xlu0 %3232
      %s3235 = sor.u32 256, 8
      %3236 = vbcast.lane.b32.xlu0 %v3230, %s3235
      %v3237 = vpop.permute.xlu0 %3236
      %s3239 = sor.u32 256, 16
      %3240 = vbcast.lane.b32.xlu0 %v3230, %s3239
      %v3241 = vpop.permute.xlu0 %3240
      %s3243 = sor.u32 256, 24
      %3244 = vbcast.lane.b32.xlu0 %v3230, %s3243
      %v3245 = vpop.permute.xlu0 %3244
      %v3246 = vlaneseq
      %v3247 = vshrl.u32 %v3246, 7
      %v3248 = vsub.s32 7, %v3247
      %v3249 = vrot.slane %v563, %v3248
      %3251 = vbcast.lane.b32.xlu0 %v3249, 256
      %v3252 = vpop.permute.xlu0 %3251
      %s3254 = sor.u32 256, 8
      %3255 = vbcast.lane.b32.xlu0 %v3249, %s3254
      %v3256 = vpop.permute.xlu0 %3255
      %s3258 = sor.u32 256, 16
      %3259 = vbcast.lane.b32.xlu0 %v3249, %s3258
      %v3260 = vpop.permute.xlu0 %3259
      %s3262 = sor.u32 256, 24
      %3263 = vbcast.lane.b32.xlu0 %v3249, %s3262
      %v3264 = vpop.permute.xlu0 %3263
      %v3265 = vlaneseq
      %v3266 = vshrl.u32 %v3265, 7
      %v3267 = vsub.s32 0, %v3266
      %v3268 = vrot.slane %v568, %v3267
      %3270 = vbcast.lane.b32.xlu0 %v3268, 256
      %v3271 = vpop.permute.xlu0 %3270
      %s3273 = sor.u32 256, 8
      %3274 = vbcast.lane.b32.xlu0 %v3268, %s3273
      %v3275 = vpop.permute.xlu0 %3274
      %s3277 = sor.u32 256, 16
      %3278 = vbcast.lane.b32.xlu0 %v3268, %s3277
      %v3279 = vpop.permute.xlu0 %3278
      %s3281 = sor.u32 256, 24
      %3282 = vbcast.lane.b32.xlu0 %v3268, %s3281
      %v3283 = vpop.permute.xlu0 %3282
      %v3284 = vlaneseq
      %v3285 = vshrl.u32 %v3284, 7
      %v3286 = vsub.s32 1, %v3285
      %v3287 = vrot.slane %v568, %v3286
      %3289 = vbcast.lane.b32.xlu0 %v3287, 256
      %v3290 = vpop.permute.xlu0 %3289
      %s3292 = sor.u32 256, 8
      %3293 = vbcast.lane.b32.xlu0 %v3287, %s3292
      %v3294 = vpop.permute.xlu0 %3293
      %s3296 = sor.u32 256, 16
      %3297 = vbcast.lane.b32.xlu0 %v3287, %s3296
      %v3298 = vpop.permute.xlu0 %3297
      %s3300 = sor.u32 256, 24
      %3301 = vbcast.lane.b32.xlu0 %v3287, %s3300
      %v3302 = vpop.permute.xlu0 %3301
      %v3303 = vlaneseq
      %v3304 = vshrl.u32 %v3303, 7
      %v3305 = vsub.s32 2, %v3304
      %v3306 = vrot.slane %v568, %v3305
      %3308 = vbcast.lane.b32.xlu0 %v3306, 256
      %v3309 = vpop.permute.xlu0 %3308
      %s3311 = sor.u32 256, 8
      %3312 = vbcast.lane.b32.xlu0 %v3306, %s3311
      %v3313 = vpop.permute.xlu0 %3312
      %s3315 = sor.u32 256, 16
      %3316 = vbcast.lane.b32.xlu0 %v3306, %s3315
      %v3317 = vpop.permute.xlu0 %3316
      %s3319 = sor.u32 256, 24
      %3320 = vbcast.lane.b32.xlu0 %v3306, %s3319
      %v3321 = vpop.permute.xlu0 %3320
      %v3322 = vlaneseq
      %v3323 = vshrl.u32 %v3322, 7
      %v3324 = vsub.s32 3, %v3323
      %v3325 = vrot.slane %v568, %v3324
      %3327 = vbcast.lane.b32.xlu0 %v3325, 256
      %v3328 = vpop.permute.xlu0 %3327
      %s3330 = sor.u32 256, 8
      %3331 = vbcast.lane.b32.xlu0 %v3325, %s3330
      %v3332 = vpop.permute.xlu0 %3331
      %s3334 = sor.u32 256, 16
      %3335 = vbcast.lane.b32.xlu0 %v3325, %s3334
      %v3336 = vpop.permute.xlu0 %3335
      %s3338 = sor.u32 256, 24
      %3339 = vbcast.lane.b32.xlu0 %v3325, %s3338
      %v3340 = vpop.permute.xlu0 %3339
      %v3341 = vlaneseq
      %v3342 = vshrl.u32 %v3341, 7
      %v3343 = vsub.s32 4, %v3342
      %v3344 = vrot.slane %v568, %v3343
      %3346 = vbcast.lane.b32.xlu0 %v3344, 256
      %v3347 = vpop.permute.xlu0 %3346
      %s3349 = sor.u32 256, 8
      %3350 = vbcast.lane.b32.xlu0 %v3344, %s3349
      %v3351 = vpop.permute.xlu0 %3350
      %s3353 = sor.u32 256, 16
      %3354 = vbcast.lane.b32.xlu0 %v3344, %s3353
      %v3355 = vpop.permute.xlu0 %3354
      %s3357 = sor.u32 256, 24
      %3358 = vbcast.lane.b32.xlu0 %v3344, %s3357
      %v3359 = vpop.permute.xlu0 %3358
      %v3360 = vlaneseq
      %v3361 = vshrl.u32 %v3360, 7
      %v3362 = vsub.s32 5, %v3361
      %v3363 = vrot.slane %v568, %v3362
      %3365 = vbcast.lane.b32.xlu0 %v3363, 256
      %v3366 = vpop.permute.xlu0 %3365
      %s3368 = sor.u32 256, 8
      %3369 = vbcast.lane.b32.xlu0 %v3363, %s3368
      %v3370 = vpop.permute.xlu0 %3369
      %s3372 = sor.u32 256, 16
      %3373 = vbcast.lane.b32.xlu0 %v3363, %s3372
      %v3374 = vpop.permute.xlu0 %3373
      %s3376 = sor.u32 256, 24
      %3377 = vbcast.lane.b32.xlu0 %v3363, %s3376
      %v3378 = vpop.permute.xlu0 %3377
      %v3379 = vlaneseq
      %v3380 = vshrl.u32 %v3379, 7
      %v3381 = vsub.s32 6, %v3380
      %v3382 = vrot.slane %v568, %v3381
      %3384 = vbcast.lane.b32.xlu0 %v3382, 256
      %v3385 = vpop.permute.xlu0 %3384
      %s3387 = sor.u32 256, 8
      %3388 = vbcast.lane.b32.xlu0 %v3382, %s3387
      %v3389 = vpop.permute.xlu0 %3388
      %s3391 = sor.u32 256, 16
      %3392 = vbcast.lane.b32.xlu0 %v3382, %s3391
      %v3393 = vpop.permute.xlu0 %3392
      %s3395 = sor.u32 256, 24
      %3396 = vbcast.lane.b32.xlu0 %v3382, %s3395
      %v3397 = vpop.permute.xlu0 %3396
      %v3398 = vlaneseq
      %v3399 = vshrl.u32 %v3398, 7
      %v3400 = vsub.s32 7, %v3399
      %v3401 = vrot.slane %v568, %v3400
      %3403 = vbcast.lane.b32.xlu0 %v3401, 256
      %v3404 = vpop.permute.xlu0 %3403
      %s3406 = sor.u32 256, 8
      %3407 = vbcast.lane.b32.xlu0 %v3401, %s3406
      %v3408 = vpop.permute.xlu0 %3407
      %s3410 = sor.u32 256, 16
      %3411 = vbcast.lane.b32.xlu0 %v3401, %s3410
      %v3412 = vpop.permute.xlu0 %3411
      %s3414 = sor.u32 256, 24
      %3415 = vbcast.lane.b32.xlu0 %v3401, %s3414
      %v3416 = vpop.permute.xlu0 %3415
      %v3417 = vlaneseq
      %v3418 = vshrl.u32 %v3417, 7
      %v3419 = vsub.s32 0, %v3418
      %v3420 = vrot.slane %v573, %v3419
      %3422 = vbcast.lane.b32.xlu0 %v3420, 256
      %v3423 = vpop.permute.xlu0 %3422
      %s3425 = sor.u32 256, 8
      %3426 = vbcast.lane.b32.xlu0 %v3420, %s3425
      %v3427 = vpop.permute.xlu0 %3426
      %s3429 = sor.u32 256, 16
      %3430 = vbcast.lane.b32.xlu0 %v3420, %s3429
      %v3431 = vpop.permute.xlu0 %3430
      %s3433 = sor.u32 256, 24
      %3434 = vbcast.lane.b32.xlu0 %v3420, %s3433
      %v3435 = vpop.permute.xlu0 %3434
      %v3436 = vlaneseq
      %v3437 = vshrl.u32 %v3436, 7
      %v3438 = vsub.s32 1, %v3437
      %v3439 = vrot.slane %v573, %v3438
      %3441 = vbcast.lane.b32.xlu0 %v3439, 256
      %v3442 = vpop.permute.xlu0 %3441
      %s3444 = sor.u32 256, 8
      %3445 = vbcast.lane.b32.xlu0 %v3439, %s3444
      %v3446 = vpop.permute.xlu0 %3445
      %s3448 = sor.u32 256, 16
      %3449 = vbcast.lane.b32.xlu0 %v3439, %s3448
      %v3450 = vpop.permute.xlu0 %3449
      %s3452 = sor.u32 256, 24
      %3453 = vbcast.lane.b32.xlu0 %v3439, %s3452
      %v3454 = vpop.permute.xlu0 %3453
      %v3455 = vlaneseq
      %v3456 = vshrl.u32 %v3455, 7
      %v3457 = vsub.s32 2, %v3456
      %v3458 = vrot.slane %v573, %v3457
      %3460 = vbcast.lane.b32.xlu0 %v3458, 256
      %v3461 = vpop.permute.xlu0 %3460
      %s3463 = sor.u32 256, 8
      %3464 = vbcast.lane.b32.xlu0 %v3458, %s3463
      %v3465 = vpop.permute.xlu0 %3464
      %s3467 = sor.u32 256, 16
      %3468 = vbcast.lane.b32.xlu0 %v3458, %s3467
      %v3469 = vpop.permute.xlu0 %3468
      %s3471 = sor.u32 256, 24
      %3472 = vbcast.lane.b32.xlu0 %v3458, %s3471
      %v3473 = vpop.permute.xlu0 %3472
      %v3474 = vlaneseq
      %v3475 = vshrl.u32 %v3474, 7
      %v3476 = vsub.s32 3, %v3475
      %v3477 = vrot.slane %v573, %v3476
      %3479 = vbcast.lane.b32.xlu0 %v3477, 256
      %v3480 = vpop.permute.xlu0 %3479
      %s3482 = sor.u32 256, 8
      %3483 = vbcast.lane.b32.xlu0 %v3477, %s3482
      %v3484 = vpop.permute.xlu0 %3483
      %s3486 = sor.u32 256, 16
      %3487 = vbcast.lane.b32.xlu0 %v3477, %s3486
      %v3488 = vpop.permute.xlu0 %3487
      %s3490 = sor.u32 256, 24
      %3491 = vbcast.lane.b32.xlu0 %v3477, %s3490
      %v3492 = vpop.permute.xlu0 %3491
      %v3493 = vlaneseq
      %v3494 = vshrl.u32 %v3493, 7
      %v3495 = vsub.s32 4, %v3494
      %v3496 = vrot.slane %v573, %v3495
      %3498 = vbcast.lane.b32.xlu0 %v3496, 256
      %v3499 = vpop.permute.xlu0 %3498
      %s3501 = sor.u32 256, 8
      %3502 = vbcast.lane.b32.xlu0 %v3496, %s3501
      %v3503 = vpop.permute.xlu0 %3502
      %s3505 = sor.u32 256, 16
      %3506 = vbcast.lane.b32.xlu0 %v3496, %s3505
      %v3507 = vpop.permute.xlu0 %3506
      %s3509 = sor.u32 256, 24
      %3510 = vbcast.lane.b32.xlu0 %v3496, %s3509
      %v3511 = vpop.permute.xlu0 %3510
      %v3512 = vlaneseq
      %v3513 = vshrl.u32 %v3512, 7
      %v3514 = vsub.s32 5, %v3513
      %v3515 = vrot.slane %v573, %v3514
      %3517 = vbcast.lane.b32.xlu0 %v3515, 256
      %v3518 = vpop.permute.xlu0 %3517
      %s3520 = sor.u32 256, 8
      %3521 = vbcast.lane.b32.xlu0 %v3515, %s3520
      %v3522 = vpop.permute.xlu0 %3521
      %s3524 = sor.u32 256, 16
      %3525 = vbcast.lane.b32.xlu0 %v3515, %s3524
      %v3526 = vpop.permute.xlu0 %3525
      %s3528 = sor.u32 256, 24
      %3529 = vbcast.lane.b32.xlu0 %v3515, %s3528
      %v3530 = vpop.permute.xlu0 %3529
      %v3531 = vlaneseq
      %v3532 = vshrl.u32 %v3531, 7
      %v3533 = vsub.s32 6, %v3532
      %v3534 = vrot.slane %v573, %v3533
      %3536 = vbcast.lane.b32.xlu0 %v3534, 256
      %v3537 = vpop.permute.xlu0 %3536
      %s3539 = sor.u32 256, 8
      %3540 = vbcast.lane.b32.xlu0 %v3534, %s3539
      %v3541 = vpop.permute.xlu0 %3540
      %s3543 = sor.u32 256, 16
      %3544 = vbcast.lane.b32.xlu0 %v3534, %s3543
      %v3545 = vpop.permute.xlu0 %3544
      %s3547 = sor.u32 256, 24
      %3548 = vbcast.lane.b32.xlu0 %v3534, %s3547
      %v3549 = vpop.permute.xlu0 %3548
      %v3550 = vlaneseq
      %v3551 = vshrl.u32 %v3550, 7
      %v3552 = vsub.s32 7, %v3551
      %v3553 = vrot.slane %v573, %v3552
      %3555 = vbcast.lane.b32.xlu0 %v3553, 256
      %v3556 = vpop.permute.xlu0 %3555
      %s3558 = sor.u32 256, 8
      %3559 = vbcast.lane.b32.xlu0 %v3553, %s3558
      %v3560 = vpop.permute.xlu0 %3559
      %s3562 = sor.u32 256, 16
      %3563 = vbcast.lane.b32.xlu0 %v3553, %s3562
      %v3564 = vpop.permute.xlu0 %3563
      %s3566 = sor.u32 256, 24
      %3567 = vbcast.lane.b32.xlu0 %v3553, %s3566
      %v3568 = vpop.permute.xlu0 %3567
      %v3569 = vlaneseq
      %v3570 = vshrl.u32 %v3569, 7
      %v3571 = vsub.s32 0, %v3570
      %v3572 = vrot.slane %v578, %v3571
      %3574 = vbcast.lane.b32.xlu0 %v3572, 256
      %v3575 = vpop.permute.xlu0 %3574
      %s3577 = sor.u32 256, 8
      %3578 = vbcast.lane.b32.xlu0 %v3572, %s3577
      %v3579 = vpop.permute.xlu0 %3578
      %s3581 = sor.u32 256, 16
      %3582 = vbcast.lane.b32.xlu0 %v3572, %s3581
      %v3583 = vpop.permute.xlu0 %3582
      %s3585 = sor.u32 256, 24
      %3586 = vbcast.lane.b32.xlu0 %v3572, %s3585
      %v3587 = vpop.permute.xlu0 %3586
      %v3588 = vlaneseq
      %v3589 = vshrl.u32 %v3588, 7
      %v3590 = vsub.s32 1, %v3589
      %v3591 = vrot.slane %v578, %v3590
      %3593 = vbcast.lane.b32.xlu0 %v3591, 256
      %v3594 = vpop.permute.xlu0 %3593
      %s3596 = sor.u32 256, 8
      %3597 = vbcast.lane.b32.xlu0 %v3591, %s3596
      %v3598 = vpop.permute.xlu0 %3597
      %s3600 = sor.u32 256, 16
      %3601 = vbcast.lane.b32.xlu0 %v3591, %s3600
      %v3602 = vpop.permute.xlu0 %3601
      %s3604 = sor.u32 256, 24
      %3605 = vbcast.lane.b32.xlu0 %v3591, %s3604
      %v3606 = vpop.permute.xlu0 %3605
      %v3607 = vlaneseq
      %v3608 = vshrl.u32 %v3607, 7
      %v3609 = vsub.s32 2, %v3608
      %v3610 = vrot.slane %v578, %v3609
      %3612 = vbcast.lane.b32.xlu0 %v3610, 256
      %v3613 = vpop.permute.xlu0 %3612
      %s3615 = sor.u32 256, 8
      %3616 = vbcast.lane.b32.xlu0 %v3610, %s3615
      %v3617 = vpop.permute.xlu0 %3616
      %s3619 = sor.u32 256, 16
      %3620 = vbcast.lane.b32.xlu0 %v3610, %s3619
      %v3621 = vpop.permute.xlu0 %3620
      %s3623 = sor.u32 256, 24
      %3624 = vbcast.lane.b32.xlu0 %v3610, %s3623
      %v3625 = vpop.permute.xlu0 %3624
      %v3626 = vlaneseq
      %v3627 = vshrl.u32 %v3626, 7
      %v3628 = vsub.s32 3, %v3627
      %v3629 = vrot.slane %v578, %v3628
      %3631 = vbcast.lane.b32.xlu0 %v3629, 256
      %v3632 = vpop.permute.xlu0 %3631
      %s3634 = sor.u32 256, 8
      %3635 = vbcast.lane.b32.xlu0 %v3629, %s3634
      %v3636 = vpop.permute.xlu0 %3635
      %s3638 = sor.u32 256, 16
      %3639 = vbcast.lane.b32.xlu0 %v3629, %s3638
      %v3640 = vpop.permute.xlu0 %3639
      %s3642 = sor.u32 256, 24
      %3643 = vbcast.lane.b32.xlu0 %v3629, %s3642
      %v3644 = vpop.permute.xlu0 %3643
      %v3645 = vlaneseq
      %v3646 = vshrl.u32 %v3645, 7
      %v3647 = vsub.s32 4, %v3646
      %v3648 = vrot.slane %v578, %v3647
      %3650 = vbcast.lane.b32.xlu0 %v3648, 256
      %v3651 = vpop.permute.xlu0 %3650
      %s3653 = sor.u32 256, 8
      %3654 = vbcast.lane.b32.xlu0 %v3648, %s3653
      %v3655 = vpop.permute.xlu0 %3654
      %s3657 = sor.u32 256, 16
      %3658 = vbcast.lane.b32.xlu0 %v3648, %s3657
      %v3659 = vpop.permute.xlu0 %3658
      %s3661 = sor.u32 256, 24
      %3662 = vbcast.lane.b32.xlu0 %v3648, %s3661
      %v3663 = vpop.permute.xlu0 %3662
      %v3664 = vlaneseq
      %v3665 = vshrl.u32 %v3664, 7
      %v3666 = vsub.s32 5, %v3665
      %v3667 = vrot.slane %v578, %v3666
      %3669 = vbcast.lane.b32.xlu0 %v3667, 256
      %v3670 = vpop.permute.xlu0 %3669
      %s3672 = sor.u32 256, 8
      %3673 = vbcast.lane.b32.xlu0 %v3667, %s3672
      %v3674 = vpop.permute.xlu0 %3673
      %s3676 = sor.u32 256, 16
      %3677 = vbcast.lane.b32.xlu0 %v3667, %s3676
      %v3678 = vpop.permute.xlu0 %3677
      %s3680 = sor.u32 256, 24
      %3681 = vbcast.lane.b32.xlu0 %v3667, %s3680
      %v3682 = vpop.permute.xlu0 %3681
      %v3683 = vlaneseq
      %v3684 = vshrl.u32 %v3683, 7
      %v3685 = vsub.s32 6, %v3684
      %v3686 = vrot.slane %v578, %v3685
      %3688 = vbcast.lane.b32.xlu0 %v3686, 256
      %v3689 = vpop.permute.xlu0 %3688
      %s3691 = sor.u32 256, 8
      %3692 = vbcast.lane.b32.xlu0 %v3686, %s3691
      %v3693 = vpop.permute.xlu0 %3692
      %s3695 = sor.u32 256, 16
      %3696 = vbcast.lane.b32.xlu0 %v3686, %s3695
      %v3697 = vpop.permute.xlu0 %3696
      %s3699 = sor.u32 256, 24
      %3700 = vbcast.lane.b32.xlu0 %v3686, %s3699
      %v3701 = vpop.permute.xlu0 %3700
      %v3702 = vlaneseq
      %v3703 = vshrl.u32 %v3702, 7
      %v3704 = vsub.s32 7, %v3703
      %v3705 = vrot.slane %v578, %v3704
      %3707 = vbcast.lane.b32.xlu0 %v3705, 256
      %v3708 = vpop.permute.xlu0 %3707
      %s3710 = sor.u32 256, 8
      %3711 = vbcast.lane.b32.xlu0 %v3705, %s3710
      %v3712 = vpop.permute.xlu0 %3711
      %s3714 = sor.u32 256, 16
      %3715 = vbcast.lane.b32.xlu0 %v3705, %s3714
      %v3716 = vpop.permute.xlu0 %3715
      %s3718 = sor.u32 256, 24
      %3719 = vbcast.lane.b32.xlu0 %v3705, %s3718
      %v3720 = vpop.permute.xlu0 %3719
      %v3721 = vadd.f32 %v1295, %v793
      %v3722 = vadd.f32 %v1299, %v794
      %v3723 = vadd.f32 %v1303, %v795
      %v3724 = vadd.f32 %v1307, %v796
      %v3725 = vadd.f32 %v1314, %v793
      %v3726 = vadd.f32 %v1318, %v794
      %v3727 = vadd.f32 %v1322, %v795
      %v3728 = vadd.f32 %v1326, %v796
      %v3729 = vadd.f32 %v1333, %v793
      %v3730 = vadd.f32 %v1337, %v794
      %v3731 = vadd.f32 %v1341, %v795
      %v3732 = vadd.f32 %v1345, %v796
      %v3733 = vadd.f32 %v1352, %v793
      %v3734 = vadd.f32 %v1356, %v794
      %v3735 = vadd.f32 %v1360, %v795
      %v3736 = vadd.f32 %v1364, %v796
      %v3737 = vadd.f32 %v1371, %v793
      %v3738 = vadd.f32 %v1375, %v794
      %v3739 = vadd.f32 %v1379, %v795
      %v3740 = vadd.f32 %v1383, %v796
      %v3741 = vadd.f32 %v1390, %v793
      %v3742 = vadd.f32 %v1394, %v794
      %v3743 = vadd.f32 %v1398, %v795
      %v3744 = vadd.f32 %v1402, %v796
      %v3745 = vadd.f32 %v1409, %v793
      %v3746 = vadd.f32 %v1413, %v794
      %v3747 = vadd.f32 %v1417, %v795
      %v3748 = vadd.f32 %v1421, %v796
      %v3749 = vadd.f32 %v1428, %v793
      %v3750 = vadd.f32 %v1432, %v794
      %v3751 = vadd.f32 %v1436, %v795
      %v3752 = vadd.f32 %v1440, %v796
      %v3753 = vadd.f32 %v1447, %v825
      %v3754 = vadd.f32 %v1451, %v826
      %v3755 = vadd.f32 %v1455, %v827
      %v3756 = vadd.f32 %v1459, %v828
      %v3757 = vadd.f32 %v1466, %v825
      %v3758 = vadd.f32 %v1470, %v826
      %v3759 = vadd.f32 %v1474, %v827
      %v3760 = vadd.f32 %v1478, %v828
      %v3761 = vadd.f32 %v1485, %v825
      %v3762 = vadd.f32 %v1489, %v826
      %v3763 = vadd.f32 %v1493, %v827
      %v3764 = vadd.f32 %v1497, %v828
      %v3765 = vadd.f32 %v1504, %v825
      %v3766 = vadd.f32 %v1508, %v826
      %v3767 = vadd.f32 %v1512, %v827
      %v3768 = vadd.f32 %v1516, %v828
      %v3769 = vadd.f32 %v1523, %v825
      %v3770 = vadd.f32 %v1527, %v826
      %v3771 = vadd.f32 %v1531, %v827
      %v3772 = vadd.f32 %v1535, %v828
      %v3773 = vadd.f32 %v1542, %v825
      %v3774 = vadd.f32 %v1546, %v826
      %v3775 = vadd.f32 %v1550, %v827
      %v3776 = vadd.f32 %v1554, %v828
      %v3777 = vadd.f32 %v1561, %v825
      %v3778 = vadd.f32 %v1565, %v826
      %v3779 = vadd.f32 %v1569, %v827
      %v3780 = vadd.f32 %v1573, %v828
      %v3781 = vadd.f32 %v1580, %v825
      %v3782 = vadd.f32 %v1584, %v826
      %v3783 = vadd.f32 %v1588, %v827
      %v3784 = vadd.f32 %v1592, %v828
      %v3785 = vadd.f32 %v1599, %v857
      %v3786 = vadd.f32 %v1603, %v858
      %v3787 = vadd.f32 %v1607, %v859
      %v3788 = vadd.f32 %v1611, %v860
      %v3789 = vadd.f32 %v1618, %v857
      %v3790 = vadd.f32 %v1622, %v858
      %v3791 = vadd.f32 %v1626, %v859
      %v3792 = vadd.f32 %v1630, %v860
      %v3793 = vadd.f32 %v1637, %v857
      %v3794 = vadd.f32 %v1641, %v858
      %v3795 = vadd.f32 %v1645, %v859
      %v3796 = vadd.f32 %v1649, %v860
      %v3797 = vadd.f32 %v1656, %v857
      %v3798 = vadd.f32 %v1660, %v858
      %v3799 = vadd.f32 %v1664, %v859
      %v3800 = vadd.f32 %v1668, %v860
      %v3801 = vadd.f32 %v1675, %v857
      %v3802 = vadd.f32 %v1679, %v858
      %v3803 = vadd.f32 %v1683, %v859
      %v3804 = vadd.f32 %v1687, %v860
      %v3805 = vadd.f32 %v1694, %v857
      %v3806 = vadd.f32 %v1698, %v858
      %v3807 = vadd.f32 %v1702, %v859
      %v3808 = vadd.f32 %v1706, %v860
      %v3809 = vadd.f32 %v1713, %v857
      %v3810 = vadd.f32 %v1717, %v858
      %v3811 = vadd.f32 %v1721, %v859
      %v3812 = vadd.f32 %v1725, %v860
      %v3813 = vadd.f32 %v1732, %v857
      %v3814 = vadd.f32 %v1736, %v858
      %v3815 = vadd.f32 %v1740, %v859
      %v3816 = vadd.f32 %v1744, %v860
      %v3817 = vadd.f32 %v1751, %v889
      %v3818 = vadd.f32 %v1755, %v890
      %v3819 = vadd.f32 %v1759, %v891
      %v3820 = vadd.f32 %v1763, %v892
      %v3821 = vadd.f32 %v1770, %v889
      %v3822 = vadd.f32 %v1774, %v890
      %v3823 = vadd.f32 %v1778, %v891
      %v3824 = vadd.f32 %v1782, %v892
      %v3825 = vadd.f32 %v1789, %v889
      %v3826 = vadd.f32 %v1793, %v890
      %v3827 = vadd.f32 %v1797, %v891
      %v3828 = vadd.f32 %v1801, %v892
      %v3829 = vadd.f32 %v1808, %v889
      %v3830 = vadd.f32 %v1812, %v890
      %v3831 = vadd.f32 %v1816, %v891
      %v3832 = vadd.f32 %v1820, %v892
      %v3833 = vadd.f32 %v1827, %v889
      %v3834 = vadd.f32 %v1831, %v890
      %v3835 = vadd.f32 %v1835, %v891
      %v3836 = vadd.f32 %v1839, %v892
      %v3837 = vadd.f32 %v1846, %v889
      %v3838 = vadd.f32 %v1850, %v890
      %v3839 = vadd.f32 %v1854, %v891
      %v3840 = vadd.f32 %v1858, %v892
      %v3841 = vadd.f32 %v1865, %v889
      %v3842 = vadd.f32 %v1869, %v890
      %v3843 = vadd.f32 %v1873, %v891
      %v3844 = vadd.f32 %v1877, %v892
      %v3845 = vadd.f32 %v1884, %v889
      %v3846 = vadd.f32 %v1888, %v890
      %v3847 = vadd.f32 %v1892, %v891
      %v3848 = vadd.f32 %v1896, %v892
      %v3849 = vadd.f32 %v1903, %v921
      %v3850 = vadd.f32 %v1907, %v922
      %v3851 = vadd.f32 %v1911, %v923
      %v3852 = vadd.f32 %v1915, %v924
      %v3853 = vadd.f32 %v1922, %v921
      %v3854 = vadd.f32 %v1926, %v922
      %v3855 = vadd.f32 %v1930, %v923
      %v3856 = vadd.f32 %v1934, %v924
      %v3857 = vadd.f32 %v1941, %v921
      %v3858 = vadd.f32 %v1945, %v922
      %v3859 = vadd.f32 %v1949, %v923
      %v3860 = vadd.f32 %v1953, %v924
      %v3861 = vadd.f32 %v1960, %v921
      %v3862 = vadd.f32 %v1964, %v922
      %v3863 = vadd.f32 %v1968, %v923
      %v3864 = vadd.f32 %v1972, %v924
      %v3865 = vadd.f32 %v1979, %v921
      %v3866 = vadd.f32 %v1983, %v922
      %v3867 = vadd.f32 %v1987, %v923
      %v3868 = vadd.f32 %v1991, %v924
      %v3869 = vadd.f32 %v1998, %v921
      %v3870 = vadd.f32 %v2002, %v922
      %v3871 = vadd.f32 %v2006, %v923
      %v3872 = vadd.f32 %v2010, %v924
      %v3873 = vadd.f32 %v2017, %v921
      %v3874 = vadd.f32 %v2021, %v922
      %v3875 = vadd.f32 %v2025, %v923
      %v3876 = vadd.f32 %v2029, %v924
      %v3877 = vadd.f32 %v2036, %v921
      %v3878 = vadd.f32 %v2040, %v922
      %v3879 = vadd.f32 %v2044, %v923
      %v3880 = vadd.f32 %v2048, %v924
      %v3881 = vadd.f32 %v2055, %v953
      %v3882 = vadd.f32 %v2059, %v954
      %v3883 = vadd.f32 %v2063, %v955
      %v3884 = vadd.f32 %v2067, %v956
      %v3885 = vadd.f32 %v2074, %v953
      %v3886 = vadd.f32 %v2078, %v954
      %v3887 = vadd.f32 %v2082, %v955
      %v3888 = vadd.f32 %v2086, %v956
      %v3889 = vadd.f32 %v2093, %v953
      %v3890 = vadd.f32 %v2097, %v954
      %v3891 = vadd.f32 %v2101, %v955
      %v3892 = vadd.f32 %v2105, %v956
      %v3893 = vadd.f32 %v2112, %v953
      %v3894 = vadd.f32 %v2116, %v954
      %v3895 = vadd.f32 %v2120, %v955
      %v3896 = vadd.f32 %v2124, %v956
      %v3897 = vadd.f32 %v2131, %v953
      %v3898 = vadd.f32 %v2135, %v954
      %v3899 = vadd.f32 %v2139, %v955
      %v3900 = vadd.f32 %v2143, %v956
      %v3901 = vadd.f32 %v2150, %v953
      %v3902 = vadd.f32 %v2154, %v954
      %v3903 = vadd.f32 %v2158, %v955
      %v3904 = vadd.f32 %v2162, %v956
      %v3905 = vadd.f32 %v2169, %v953
      %v3906 = vadd.f32 %v2173, %v954
      %v3907 = vadd.f32 %v2177, %v955
      %v3908 = vadd.f32 %v2181, %v956
      %v3909 = vadd.f32 %v2188, %v953
      %v3910 = vadd.f32 %v2192, %v954
      %v3911 = vadd.f32 %v2196, %v955
      %v3912 = vadd.f32 %v2200, %v956
      %v3913 = vadd.f32 %v2207, %v985
      %v3914 = vadd.f32 %v2211, %v986
      %v3915 = vadd.f32 %v2215, %v987
      %v3916 = vadd.f32 %v2219, %v988
      %v3917 = vadd.f32 %v2226, %v985
      %v3918 = vadd.f32 %v2230, %v986
      %v3919 = vadd.f32 %v2234, %v987
      %v3920 = vadd.f32 %v2238, %v988
      %v3921 = vadd.f32 %v2245, %v985
      %v3922 = vadd.f32 %v2249, %v986
      %v3923 = vadd.f32 %v2253, %v987
      %v3924 = vadd.f32 %v2257, %v988
      %v3925 = vadd.f32 %v2264, %v985
      %v3926 = vadd.f32 %v2268, %v986
      %v3927 = vadd.f32 %v2272, %v987
      %v3928 = vadd.f32 %v2276, %v988
      %v3929 = vadd.f32 %v2283, %v985
      %v3930 = vadd.f32 %v2287, %v986
      %v3931 = vadd.f32 %v2291, %v987
      %v3932 = vadd.f32 %v2295, %v988
      %v3933 = vadd.f32 %v2302, %v985
      %v3934 = vadd.f32 %v2306, %v986
      %v3935 = vadd.f32 %v2310, %v987
      %v3936 = vadd.f32 %v2314, %v988
      %v3937 = vadd.f32 %v2321, %v985
      %v3938 = vadd.f32 %v2325, %v986
      %v3939 = vadd.f32 %v2329, %v987
      %v3940 = vadd.f32 %v2333, %v988
      %v3941 = vadd.f32 %v2340, %v985
      %v3942 = vadd.f32 %v2344, %v986
      %v3943 = vadd.f32 %v2348, %v987
      %v3944 = vadd.f32 %v2352, %v988
      %v3945 = vadd.f32 %v2359, %v1017
      %v3946 = vadd.f32 %v2363, %v1018
      %v3947 = vadd.f32 %v2367, %v1019
      %v3948 = vadd.f32 %v2371, %v1020
      %v3949 = vadd.f32 %v2378, %v1017
      %v3950 = vadd.f32 %v2382, %v1018
      %v3951 = vadd.f32 %v2386, %v1019
      %v3952 = vadd.f32 %v2390, %v1020
      %v3953 = vadd.f32 %v2397, %v1017
      %v3954 = vadd.f32 %v2401, %v1018
      %v3955 = vadd.f32 %v2405, %v1019
      %v3956 = vadd.f32 %v2409, %v1020
      %v3957 = vadd.f32 %v2416, %v1017
      %v3958 = vadd.f32 %v2420, %v1018
      %v3959 = vadd.f32 %v2424, %v1019
      %v3960 = vadd.f32 %v2428, %v1020
      %v3961 = vadd.f32 %v2435, %v1017
      %v3962 = vadd.f32 %v2439, %v1018
      %v3963 = vadd.f32 %v2443, %v1019
      %v3964 = vadd.f32 %v2447, %v1020
      %v3965 = vadd.f32 %v2454, %v1017
      %v3966 = vadd.f32 %v2458, %v1018
      %v3967 = vadd.f32 %v2462, %v1019
      %v3968 = vadd.f32 %v2466, %v1020
      %v3969 = vadd.f32 %v2473, %v1017
      %v3970 = vadd.f32 %v2477, %v1018
      %v3971 = vadd.f32 %v2481, %v1019
      %v3972 = vadd.f32 %v2485, %v1020
      %v3973 = vadd.f32 %v2492, %v1017
      %v3974 = vadd.f32 %v2496, %v1018
      %v3975 = vadd.f32 %v2500, %v1019
      %v3976 = vadd.f32 %v2504, %v1020
      %v3977 = vadd.f32 %v2511, %v1049
      %v3978 = vadd.f32 %v2515, %v1050
      %v3979 = vadd.f32 %v2519, %v1051
      %v3980 = vadd.f32 %v2523, %v1052
      %v3981 = vadd.f32 %v2530, %v1049
      %v3982 = vadd.f32 %v2534, %v1050
      %v3983 = vadd.f32 %v2538, %v1051
      %v3984 = vadd.f32 %v2542, %v1052
      %v3985 = vadd.f32 %v2549, %v1049
      %v3986 = vadd.f32 %v2553, %v1050
      %v3987 = vadd.f32 %v2557, %v1051
      %v3988 = vadd.f32 %v2561, %v1052
      %v3989 = vadd.f32 %v2568, %v1049
      %v3990 = vadd.f32 %v2572, %v1050
      %v3991 = vadd.f32 %v2576, %v1051
      %v3992 = vadd.f32 %v2580, %v1052
      %v3993 = vadd.f32 %v2587, %v1049
      %v3994 = vadd.f32 %v2591, %v1050
      %v3995 = vadd.f32 %v2595, %v1051
      %v3996 = vadd.f32 %v2599, %v1052
      %v3997 = vadd.f32 %v2606, %v1049
      %v3998 = vadd.f32 %v2610, %v1050
      %v3999 = vadd.f32 %v2614, %v1051
      %v4000 = vadd.f32 %v2618, %v1052
      %v4001 = vadd.f32 %v2625, %v1049
      %v4002 = vadd.f32 %v2629, %v1050
      %v4003 = vadd.f32 %v2633, %v1051
      %v4004 = vadd.f32 %v2637, %v1052
      %v4005 = vadd.f32 %v2644, %v1049
      %v4006 = vadd.f32 %v2648, %v1050
      %v4007 = vadd.f32 %v2652, %v1051
      %v4008 = vadd.f32 %v2656, %v1052
      %v4009 = vadd.f32 %v2663, %v1081
      %v4010 = vadd.f32 %v2667, %v1082
      %v4011 = vadd.f32 %v2671, %v1083
      %v4012 = vadd.f32 %v2675, %v1084
      %v4013 = vadd.f32 %v2682, %v1081
      %v4014 = vadd.f32 %v2686, %v1082
      %v4015 = vadd.f32 %v2690, %v1083
      %v4016 = vadd.f32 %v2694, %v1084
      %v4017 = vadd.f32 %v2701, %v1081
      %v4018 = vadd.f32 %v2705, %v1082
      %v4019 = vadd.f32 %v2709, %v1083
      %v4020 = vadd.f32 %v2713, %v1084
      %v4021 = vadd.f32 %v2720, %v1081
      %v4022 = vadd.f32 %v2724, %v1082
      %v4023 = vadd.f32 %v2728, %v1083
      %v4024 = vadd.f32 %v2732, %v1084
      %v4025 = vadd.f32 %v2739, %v1081
      %v4026 = vadd.f32 %v2743, %v1082
      %v4027 = vadd.f32 %v2747, %v1083
      %v4028 = vadd.f32 %v2751, %v1084
      %v4029 = vadd.f32 %v2758, %v1081
      %v4030 = vadd.f32 %v2762, %v1082
      %v4031 = vadd.f32 %v2766, %v1083
      %v4032 = vadd.f32 %v2770, %v1084
      %v4033 = vadd.f32 %v2777, %v1081
      %v4034 = vadd.f32 %v2781, %v1082
      %v4035 = vadd.f32 %v2785, %v1083
      %v4036 = vadd.f32 %v2789, %v1084
      %v4037 = vadd.f32 %v2796, %v1081
      %v4038 = vadd.f32 %v2800, %v1082
      %v4039 = vadd.f32 %v2804, %v1083
      %v4040 = vadd.f32 %v2808, %v1084
      %v4041 = vadd.f32 %v2815, %v1113
      %v4042 = vadd.f32 %v2819, %v1114
      %v4043 = vadd.f32 %v2823, %v1115
      %v4044 = vadd.f32 %v2827, %v1116
      %v4045 = vadd.f32 %v2834, %v1113
      %v4046 = vadd.f32 %v2838, %v1114
      %v4047 = vadd.f32 %v2842, %v1115
      %v4048 = vadd.f32 %v2846, %v1116
      %v4049 = vadd.f32 %v2853, %v1113
      %v4050 = vadd.f32 %v2857, %v1114
      %v4051 = vadd.f32 %v2861, %v1115
      %v4052 = vadd.f32 %v2865, %v1116
      %v4053 = vadd.f32 %v2872, %v1113
      %v4054 = vadd.f32 %v2876, %v1114
      %v4055 = vadd.f32 %v2880, %v1115
      %v4056 = vadd.f32 %v2884, %v1116
      %v4057 = vadd.f32 %v2891, %v1113
      %v4058 = vadd.f32 %v2895, %v1114
      %v4059 = vadd.f32 %v2899, %v1115
      %v4060 = vadd.f32 %v2903, %v1116
      %v4061 = vadd.f32 %v2910, %v1113
      %v4062 = vadd.f32 %v2914, %v1114
      %v4063 = vadd.f32 %v2918, %v1115
      %v4064 = vadd.f32 %v2922, %v1116
      %v4065 = vadd.f32 %v2929, %v1113
      %v4066 = vadd.f32 %v2933, %v1114
      %v4067 = vadd.f32 %v2937, %v1115
      %v4068 = vadd.f32 %v2941, %v1116
      %v4069 = vadd.f32 %v2948, %v1113
      %v4070 = vadd.f32 %v2952, %v1114
      %v4071 = vadd.f32 %v2956, %v1115
      %v4072 = vadd.f32 %v2960, %v1116
      %v4073 = vadd.f32 %v2967, %v1145
      %v4074 = vadd.f32 %v2971, %v1146
      %v4075 = vadd.f32 %v2975, %v1147
      %v4076 = vadd.f32 %v2979, %v1148
      %v4077 = vadd.f32 %v2986, %v1145
      %v4078 = vadd.f32 %v2990, %v1146
      %v4079 = vadd.f32 %v2994, %v1147
      %v4080 = vadd.f32 %v2998, %v1148
      %v4081 = vadd.f32 %v3005, %v1145
      %v4082 = vadd.f32 %v3009, %v1146
      %v4083 = vadd.f32 %v3013, %v1147
      %v4084 = vadd.f32 %v3017, %v1148
      %v4085 = vadd.f32 %v3024, %v1145
      %v4086 = vadd.f32 %v3028, %v1146
      %v4087 = vadd.f32 %v3032, %v1147
      %v4088 = vadd.f32 %v3036, %v1148
      %v4089 = vadd.f32 %v3043, %v1145
      %v4090 = vadd.f32 %v3047, %v1146
      %v4091 = vadd.f32 %v3051, %v1147
      %v4092 = vadd.f32 %v3055, %v1148
      %v4093 = vadd.f32 %v3062, %v1145
      %v4094 = vadd.f32 %v3066, %v1146
      %v4095 = vadd.f32 %v3070, %v1147
      %v4096 = vadd.f32 %v3074, %v1148
      %v4097 = vadd.f32 %v3081, %v1145
      %v4098 = vadd.f32 %v3085, %v1146
      %v4099 = vadd.f32 %v3089, %v1147
      %v4100 = vadd.f32 %v3093, %v1148
      %v4101 = vadd.f32 %v3100, %v1145
      %v4102 = vadd.f32 %v3104, %v1146
      %v4103 = vadd.f32 %v3108, %v1147
      %v4104 = vadd.f32 %v3112, %v1148
      %v4105 = vadd.f32 %v3119, %v1177
      %v4106 = vadd.f32 %v3123, %v1178
      %v4107 = vadd.f32 %v3127, %v1179
      %v4108 = vadd.f32 %v3131, %v1180
      %v4109 = vadd.f32 %v3138, %v1177
      %v4110 = vadd.f32 %v3142, %v1178
      %v4111 = vadd.f32 %v3146, %v1179
      %v4112 = vadd.f32 %v3150, %v1180
      %v4113 = vadd.f32 %v3157, %v1177
      %v4114 = vadd.f32 %v3161, %v1178
      %v4115 = vadd.f32 %v3165, %v1179
      %v4116 = vadd.f32 %v3169, %v1180
      %v4117 = vadd.f32 %v3176, %v1177
      %v4118 = vadd.f32 %v3180, %v1178
      %v4119 = vadd.f32 %v3184, %v1179
      %v4120 = vadd.f32 %v3188, %v1180
      %v4121 = vadd.f32 %v3195, %v1177
      %v4122 = vadd.f32 %v3199, %v1178
      %v4123 = vadd.f32 %v3203, %v1179
      %v4124 = vadd.f32 %v3207, %v1180
      %v4125 = vadd.f32 %v3214, %v1177
      %v4126 = vadd.f32 %v3218, %v1178
      %v4127 = vadd.f32 %v3222, %v1179
      %v4128 = vadd.f32 %v3226, %v1180
      %v4129 = vadd.f32 %v3233, %v1177
      %v4130 = vadd.f32 %v3237, %v1178
      %v4131 = vadd.f32 %v3241, %v1179
      %v4132 = vadd.f32 %v3245, %v1180
      %v4133 = vadd.f32 %v3252, %v1177
      %v4134 = vadd.f32 %v3256, %v1178
      %v4135 = vadd.f32 %v3260, %v1179
      %v4136 = vadd.f32 %v3264, %v1180
      %v4137 = vadd.f32 %v3271, %v1209
      %v4138 = vadd.f32 %v3275, %v1210
      %v4139 = vadd.f32 %v3279, %v1211
      %v4140 = vadd.f32 %v3283, %v1212
      %v4141 = vadd.f32 %v3290, %v1209
      %v4142 = vadd.f32 %v3294, %v1210
      %v4143 = vadd.f32 %v3298, %v1211
      %v4144 = vadd.f32 %v3302, %v1212
      %v4145 = vadd.f32 %v3309, %v1209
      %v4146 = vadd.f32 %v3313, %v1210
      %v4147 = vadd.f32 %v3317, %v1211
      %v4148 = vadd.f32 %v3321, %v1212
      %v4149 = vadd.f32 %v3328, %v1209
      %v4150 = vadd.f32 %v3332, %v1210
      %v4151 = vadd.f32 %v3336, %v1211
      %v4152 = vadd.f32 %v3340, %v1212
      %v4153 = vadd.f32 %v3347, %v1209
      %v4154 = vadd.f32 %v3351, %v1210
      %v4155 = vadd.f32 %v3355, %v1211
      %v4156 = vadd.f32 %v3359, %v1212
      %v4157 = vadd.f32 %v3366, %v1209
      %v4158 = vadd.f32 %v3370, %v1210
      %v4159 = vadd.f32 %v3374, %v1211
      %v4160 = vadd.f32 %v3378, %v1212
      %v4161 = vadd.f32 %v3385, %v1209
      %v4162 = vadd.f32 %v3389, %v1210
      %v4163 = vadd.f32 %v3393, %v1211
      %v4164 = vadd.f32 %v3397, %v1212
      %v4165 = vadd.f32 %v3404, %v1209
      %v4166 = vadd.f32 %v3408, %v1210
      %v4167 = vadd.f32 %v3412, %v1211
      %v4168 = vadd.f32 %v3416, %v1212
      %v4169 = vadd.f32 %v3423, %v1241
      %v4170 = vadd.f32 %v3427, %v1242
      %v4171 = vadd.f32 %v3431, %v1243
      %v4172 = vadd.f32 %v3435, %v1244
      %v4173 = vadd.f32 %v3442, %v1241
      %v4174 = vadd.f32 %v3446, %v1242
      %v4175 = vadd.f32 %v3450, %v1243
      %v4176 = vadd.f32 %v3454, %v1244
      %v4177 = vadd.f32 %v3461, %v1241
      %v4178 = vadd.f32 %v3465, %v1242
      %v4179 = vadd.f32 %v3469, %v1243
      %v4180 = vadd.f32 %v3473, %v1244
      %v4181 = vadd.f32 %v3480, %v1241
      %v4182 = vadd.f32 %v3484, %v1242
      %v4183 = vadd.f32 %v3488, %v1243
      %v4184 = vadd.f32 %v3492, %v1244
      %v4185 = vadd.f32 %v3499, %v1241
      %v4186 = vadd.f32 %v3503, %v1242
      %v4187 = vadd.f32 %v3507, %v1243
      %v4188 = vadd.f32 %v3511, %v1244
      %v4189 = vadd.f32 %v3518, %v1241
      %v4190 = vadd.f32 %v3522, %v1242
      %v4191 = vadd.f32 %v3526, %v1243
      %v4192 = vadd.f32 %v3530, %v1244
      %v4193 = vadd.f32 %v3537, %v1241
      %v4194 = vadd.f32 %v3541, %v1242
      %v4195 = vadd.f32 %v3545, %v1243
      %v4196 = vadd.f32 %v3549, %v1244
      %v4197 = vadd.f32 %v3556, %v1241
      %v4198 = vadd.f32 %v3560, %v1242
      %v4199 = vadd.f32 %v3564, %v1243
      %v4200 = vadd.f32 %v3568, %v1244
      %v4201 = vadd.f32 %v3575, %v1273
      %v4202 = vadd.f32 %v3579, %v1274
      %v4203 = vadd.f32 %v3583, %v1275
      %v4204 = vadd.f32 %v3587, %v1276
      %v4205 = vadd.f32 %v3594, %v1273
      %v4206 = vadd.f32 %v3598, %v1274
      %v4207 = vadd.f32 %v3602, %v1275
      %v4208 = vadd.f32 %v3606, %v1276
      %v4209 = vadd.f32 %v3613, %v1273
      %v4210 = vadd.f32 %v3617, %v1274
      %v4211 = vadd.f32 %v3621, %v1275
      %v4212 = vadd.f32 %v3625, %v1276
      %v4213 = vadd.f32 %v3632, %v1273
      %v4214 = vadd.f32 %v3636, %v1274
      %v4215 = vadd.f32 %v3640, %v1275
      %v4216 = vadd.f32 %v3644, %v1276
      %v4217 = vadd.f32 %v3651, %v1273
      %v4218 = vadd.f32 %v3655, %v1274
      %v4219 = vadd.f32 %v3659, %v1275
      %v4220 = vadd.f32 %v3663, %v1276
      %v4221 = vadd.f32 %v3670, %v1273
      %v4222 = vadd.f32 %v3674, %v1274
      %v4223 = vadd.f32 %v3678, %v1275
      %v4224 = vadd.f32 %v3682, %v1276
      %v4225 = vadd.f32 %v3689, %v1273
      %v4226 = vadd.f32 %v3693, %v1274
      %v4227 = vadd.f32 %v3697, %v1275
      %v4228 = vadd.f32 %v3701, %v1276
      %v4229 = vadd.f32 %v3708, %v1273
      %v4230 = vadd.f32 %v3712, %v1274
      %v4231 = vadd.f32 %v3716, %v1275
      %v4232 = vadd.f32 %v3720, %v1276
      %v4233 = vtanh.pop %v3721
      %v4234 = vtanh.pop %v3722
      %v4235 = vtanh.pop %v3723
      %v4236 = vtanh.pop %v3724
      %v4237 = vtanh.pop %v3725
      %v4238 = vtanh.pop %v3726
      %v4239 = vtanh.pop %v3727
      %v4240 = vtanh.pop %v3728
      %v4241 = vtanh.pop %v3729
      %v4242 = vtanh.pop %v3730
      %v4243 = vtanh.pop %v3731
      %v4244 = vtanh.pop %v3732
      %v4245 = vtanh.pop %v3733
      %v4246 = vtanh.pop %v3734
      %v4247 = vtanh.pop %v3735
      %v4248 = vtanh.pop %v3736
      %v4249 = vtanh.pop %v3737
      %v4250 = vtanh.pop %v3738
      %v4251 = vtanh.pop %v3739
      %v4252 = vtanh.pop %v3740
      %v4253 = vtanh.pop %v3741
      %v4254 = vtanh.pop %v3742
      %v4255 = vtanh.pop %v3743
      %v4256 = vtanh.pop %v3744
      %v4257 = vtanh.pop %v3745
      %v4258 = vtanh.pop %v3746
      %v4259 = vtanh.pop %v3747
      %v4260 = vtanh.pop %v3748
      %v4261 = vtanh.pop %v3749
      %v4262 = vtanh.pop %v3750
      %v4263 = vtanh.pop %v3751
      %v4264 = vtanh.pop %v3752
      %v4265 = vtanh.pop %v3753
      %v4266 = vtanh.pop %v3754
      %v4267 = vtanh.pop %v3755
      %v4268 = vtanh.pop %v3756
      %v4269 = vtanh.pop %v3757
      %v4270 = vtanh.pop %v3758
      %v4271 = vtanh.pop %v3759
      %v4272 = vtanh.pop %v3760
      %v4273 = vtanh.pop %v3761
      %v4274 = vtanh.pop %v3762
      %v4275 = vtanh.pop %v3763
      %v4276 = vtanh.pop %v3764
      %v4277 = vtanh.pop %v3765
      %v4278 = vtanh.pop %v3766
      %v4279 = vtanh.pop %v3767
      %v4280 = vtanh.pop %v3768
      %v4281 = vtanh.pop %v3769
      %v4282 = vtanh.pop %v3770
      %v4283 = vtanh.pop %v3771
      %v4284 = vtanh.pop %v3772
      %v4285 = vtanh.pop %v3773
      %v4286 = vtanh.pop %v3774
      %v4287 = vtanh.pop %v3775
      %v4288 = vtanh.pop %v3776
      %v4289 = vtanh.pop %v3777
      %v4290 = vtanh.pop %v3778
      %v4291 = vtanh.pop %v3779
      %v4292 = vtanh.pop %v3780
      %v4293 = vtanh.pop %v3781
      %v4294 = vtanh.pop %v3782
      %v4295 = vtanh.pop %v3783
      %v4296 = vtanh.pop %v3784
      %v4297 = vtanh.pop %v3785
      %v4298 = vtanh.pop %v3786
      %v4299 = vtanh.pop %v3787
      %v4300 = vtanh.pop %v3788
      %v4301 = vtanh.pop %v3789
      %v4302 = vtanh.pop %v3790
      %v4303 = vtanh.pop %v3791
      %v4304 = vtanh.pop %v3792
      %v4305 = vtanh.pop %v3793
      %v4306 = vtanh.pop %v3794
      %v4307 = vtanh.pop %v3795
      %v4308 = vtanh.pop %v3796
      %v4309 = vtanh.pop %v3797
      %v4310 = vtanh.pop %v3798
      %v4311 = vtanh.pop %v3799
      %v4312 = vtanh.pop %v3800
      %v4313 = vtanh.pop %v3801
      %v4314 = vtanh.pop %v3802
      %v4315 = vtanh.pop %v3803
      %v4316 = vtanh.pop %v3804
      %v4317 = vtanh.pop %v3805
      %v4318 = vtanh.pop %v3806
      %v4319 = vtanh.pop %v3807
      %v4320 = vtanh.pop %v3808
      %v4321 = vtanh.pop %v3809
      %v4322 = vtanh.pop %v3810
      %v4323 = vtanh.pop %v3811
      %v4324 = vtanh.pop %v3812
      %v4325 = vtanh.pop %v3813
      %v4326 = vtanh.pop %v3814
      %v4327 = vtanh.pop %v3815
      %v4328 = vtanh.pop %v3816
      %v4329 = vtanh.pop %v3817
      %v4330 = vtanh.pop %v3818
      %v4331 = vtanh.pop %v3819
      %v4332 = vtanh.pop %v3820
      %v4333 = vtanh.pop %v3821
      %v4334 = vtanh.pop %v3822
      %v4335 = vtanh.pop %v3823
      %v4336 = vtanh.pop %v3824
      %v4337 = vtanh.pop %v3825
      %v4338 = vtanh.pop %v3826
      %v4339 = vtanh.pop %v3827
      %v4340 = vtanh.pop %v3828
      %v4341 = vtanh.pop %v3829
      %v4342 = vtanh.pop %v3830
      %v4343 = vtanh.pop %v3831
      %v4344 = vtanh.pop %v3832
      %v4345 = vtanh.pop %v3833
      %v4346 = vtanh.pop %v3834
      %v4347 = vtanh.pop %v3835
      %v4348 = vtanh.pop %v3836
      %v4349 = vtanh.pop %v3837
      %v4350 = vtanh.pop %v3838
      %v4351 = vtanh.pop %v3839
      %v4352 = vtanh.pop %v3840
      %v4353 = vtanh.pop %v3841
      %v4354 = vtanh.pop %v3842
      %v4355 = vtanh.pop %v3843
      %v4356 = vtanh.pop %v3844
      %v4357 = vtanh.pop %v3845
      %v4358 = vtanh.pop %v3846
      %v4359 = vtanh.pop %v3847
      %v4360 = vtanh.pop %v3848
      %v4361 = vtanh.pop %v3849
      %v4362 = vtanh.pop %v3850
      %v4363 = vtanh.pop %v3851
      %v4364 = vtanh.pop %v3852
      %v4365 = vtanh.pop %v3853
      %v4366 = vtanh.pop %v3854
      %v4367 = vtanh.pop %v3855
      %v4368 = vtanh.pop %v3856
      %v4369 = vtanh.pop %v3857
      %v4370 = vtanh.pop %v3858
      %v4371 = vtanh.pop %v3859
      %v4372 = vtanh.pop %v3860
      %v4373 = vtanh.pop %v3861
      %v4374 = vtanh.pop %v3862
      %v4375 = vtanh.pop %v3863
      %v4376 = vtanh.pop %v3864
      %v4377 = vtanh.pop %v3865
      %v4378 = vtanh.pop %v3866
      %v4379 = vtanh.pop %v3867
      %v4380 = vtanh.pop %v3868
      %v4381 = vtanh.pop %v3869
      %v4382 = vtanh.pop %v3870
      %v4383 = vtanh.pop %v3871
      %v4384 = vtanh.pop %v3872
      %v4385 = vtanh.pop %v3873
      %v4386 = vtanh.pop %v3874
      %v4387 = vtanh.pop %v3875
      %v4388 = vtanh.pop %v3876
      %v4389 = vtanh.pop %v3877
      %v4390 = vtanh.pop %v3878
      %v4391 = vtanh.pop %v3879
      %v4392 = vtanh.pop %v3880
      %v4393 = vtanh.pop %v3881
      %v4394 = vtanh.pop %v3882
      %v4395 = vtanh.pop %v3883
      %v4396 = vtanh.pop %v3884
      %v4397 = vtanh.pop %v3885
      %v4398 = vtanh.pop %v3886
      %v4399 = vtanh.pop %v3887
      %v4400 = vtanh.pop %v3888
      %v4401 = vtanh.pop %v3889
      %v4402 = vtanh.pop %v3890
      %v4403 = vtanh.pop %v3891
      %v4404 = vtanh.pop %v3892
      %v4405 = vtanh.pop %v3893
      %v4406 = vtanh.pop %v3894
      %v4407 = vtanh.pop %v3895
      %v4408 = vtanh.pop %v3896
      %v4409 = vtanh.pop %v3897
      %v4410 = vtanh.pop %v3898
      %v4411 = vtanh.pop %v3899
      %v4412 = vtanh.pop %v3900
      %v4413 = vtanh.pop %v3901
      %v4414 = vtanh.pop %v3902
      %v4415 = vtanh.pop %v3903
      %v4416 = vtanh.pop %v3904
      %v4417 = vtanh.pop %v3905
      %v4418 = vtanh.pop %v3906
      %v4419 = vtanh.pop %v3907
      %v4420 = vtanh.pop %v3908
      %v4421 = vtanh.pop %v3909
      %v4422 = vtanh.pop %v3910
      %v4423 = vtanh.pop %v3911
      %v4424 = vtanh.pop %v3912
      %v4425 = vtanh.pop %v3913
      %v4426 = vtanh.pop %v3914
      %v4427 = vtanh.pop %v3915
      %v4428 = vtanh.pop %v3916
      %v4429 = vtanh.pop %v3917
      %v4430 = vtanh.pop %v3918
      %v4431 = vtanh.pop %v3919
      %v4432 = vtanh.pop %v3920
      %v4433 = vtanh.pop %v3921
      %v4434 = vtanh.pop %v3922
      %v4435 = vtanh.pop %v3923
      %v4436 = vtanh.pop %v3924
      %v4437 = vtanh.pop %v3925
      %v4438 = vtanh.pop %v3926
      %v4439 = vtanh.pop %v3927
      %v4440 = vtanh.pop %v3928
      %v4441 = vtanh.pop %v3929
      %v4442 = vtanh.pop %v3930
      %v4443 = vtanh.pop %v3931
      %v4444 = vtanh.pop %v3932
      %v4445 = vtanh.pop %v3933
      %v4446 = vtanh.pop %v3934
      %v4447 = vtanh.pop %v3935
      %v4448 = vtanh.pop %v3936
      %v4449 = vtanh.pop %v3937
      %v4450 = vtanh.pop %v3938
      %v4451 = vtanh.pop %v3939
      %v4452 = vtanh.pop %v3940
      %v4453 = vtanh.pop %v3941
      %v4454 = vtanh.pop %v3942
      %v4455 = vtanh.pop %v3943
      %v4456 = vtanh.pop %v3944
      %v4457 = vtanh.pop %v3945
      %v4458 = vtanh.pop %v3946
      %v4459 = vtanh.pop %v3947
      %v4460 = vtanh.pop %v3948
      %v4461 = vtanh.pop %v3949
      %v4462 = vtanh.pop %v3950
      %v4463 = vtanh.pop %v3951
      %v4464 = vtanh.pop %v3952
      %v4465 = vtanh.pop %v3953
      %v4466 = vtanh.pop %v3954
      %v4467 = vtanh.pop %v3955
      %v4468 = vtanh.pop %v3956
      %v4469 = vtanh.pop %v3957
      %v4470 = vtanh.pop %v3958
      %v4471 = vtanh.pop %v3959
      %v4472 = vtanh.pop %v3960
      %v4473 = vtanh.pop %v3961
      %v4474 = vtanh.pop %v3962
      %v4475 = vtanh.pop %v3963
      %v4476 = vtanh.pop %v3964
      %v4477 = vtanh.pop %v3965
      %v4478 = vtanh.pop %v3966
      %v4479 = vtanh.pop %v3967
      %v4480 = vtanh.pop %v3968
      %v4481 = vtanh.pop %v3969
      %v4482 = vtanh.pop %v3970
      %v4483 = vtanh.pop %v3971
      %v4484 = vtanh.pop %v3972
      %v4485 = vtanh.pop %v3973
      %v4486 = vtanh.pop %v3974
      %v4487 = vtanh.pop %v3975
      %v4488 = vtanh.pop %v3976
      %v4489 = vtanh.pop %v3977
      %v4490 = vtanh.pop %v3978
      %v4491 = vtanh.pop %v3979
      %v4492 = vtanh.pop %v3980
      %v4493 = vtanh.pop %v3981
      %v4494 = vtanh.pop %v3982
      %v4495 = vtanh.pop %v3983
      %v4496 = vtanh.pop %v3984
      %v4497 = vtanh.pop %v3985
      %v4498 = vtanh.pop %v3986
      %v4499 = vtanh.pop %v3987
      %v4500 = vtanh.pop %v3988
      %v4501 = vtanh.pop %v3989
      %v4502 = vtanh.pop %v3990
      %v4503 = vtanh.pop %v3991
      %v4504 = vtanh.pop %v3992
      %v4505 = vtanh.pop %v3993
      %v4506 = vtanh.pop %v3994
      %v4507 = vtanh.pop %v3995
      %v4508 = vtanh.pop %v3996
      %v4509 = vtanh.pop %v3997
      %v4510 = vtanh.pop %v3998
      %v4511 = vtanh.pop %v3999
      %v4512 = vtanh.pop %v4000
      %v4513 = vtanh.pop %v4001
      %v4514 = vtanh.pop %v4002
      %v4515 = vtanh.pop %v4003
      %v4516 = vtanh.pop %v4004
      %v4517 = vtanh.pop %v4005
      %v4518 = vtanh.pop %v4006
      %v4519 = vtanh.pop %v4007
      %v4520 = vtanh.pop %v4008
      %v4521 = vtanh.pop %v4009
      %v4522 = vtanh.pop %v4010
      %v4523 = vtanh.pop %v4011
      %v4524 = vtanh.pop %v4012
      %v4525 = vtanh.pop %v4013
      %v4526 = vtanh.pop %v4014
      %v4527 = vtanh.pop %v4015
      %v4528 = vtanh.pop %v4016
      %v4529 = vtanh.pop %v4017
      %v4530 = vtanh.pop %v4018
      %v4531 = vtanh.pop %v4019
      %v4532 = vtanh.pop %v4020
      %v4533 = vtanh.pop %v4021
      %v4534 = vtanh.pop %v4022
      %v4535 = vtanh.pop %v4023
      %v4536 = vtanh.pop %v4024
      %v4537 = vtanh.pop %v4025
      %v4538 = vtanh.pop %v4026
      %v4539 = vtanh.pop %v4027
      %v4540 = vtanh.pop %v4028
      %v4541 = vtanh.pop %v4029
      %v4542 = vtanh.pop %v4030
      %v4543 = vtanh.pop %v4031
      %v4544 = vtanh.pop %v4032
      %v4545 = vtanh.pop %v4033
      %v4546 = vtanh.pop %v4034
      %v4547 = vtanh.pop %v4035
      %v4548 = vtanh.pop %v4036
      %v4549 = vtanh.pop %v4037
      %v4550 = vtanh.pop %v4038
      %v4551 = vtanh.pop %v4039
      %v4552 = vtanh.pop %v4040
      %v4553 = vtanh.pop %v4041
      %v4554 = vtanh.pop %v4042
      %v4555 = vtanh.pop %v4043
      %v4556 = vtanh.pop %v4044
      %v4557 = vtanh.pop %v4045
      %v4558 = vtanh.pop %v4046
      %v4559 = vtanh.pop %v4047
      %v4560 = vtanh.pop %v4048
      %v4561 = vtanh.pop %v4049
      %v4562 = vtanh.pop %v4050
      %v4563 = vtanh.pop %v4051
      %v4564 = vtanh.pop %v4052
      %v4565 = vtanh.pop %v4053
      %v4566 = vtanh.pop %v4054
      %v4567 = vtanh.pop %v4055
      %v4568 = vtanh.pop %v4056
      %v4569 = vtanh.pop %v4057
      %v4570 = vtanh.pop %v4058
      %v4571 = vtanh.pop %v4059
      %v4572 = vtanh.pop %v4060
      %v4573 = vtanh.pop %v4061
      %v4574 = vtanh.pop %v4062
      %v4575 = vtanh.pop %v4063
      %v4576 = vtanh.pop %v4064
      %v4577 = vtanh.pop %v4065
      %v4578 = vtanh.pop %v4066
      %v4579 = vtanh.pop %v4067
      %v4580 = vtanh.pop %v4068
      %v4581 = vtanh.pop %v4069
      %v4582 = vtanh.pop %v4070
      %v4583 = vtanh.pop %v4071
      %v4584 = vtanh.pop %v4072
      %v4585 = vtanh.pop %v4073
      %v4586 = vtanh.pop %v4074
      %v4587 = vtanh.pop %v4075
      %v4588 = vtanh.pop %v4076
      %v4589 = vtanh.pop %v4077
      %v4590 = vtanh.pop %v4078
      %v4591 = vtanh.pop %v4079
      %v4592 = vtanh.pop %v4080
      %v4593 = vtanh.pop %v4081
      %v4594 = vtanh.pop %v4082
      %v4595 = vtanh.pop %v4083
      %v4596 = vtanh.pop %v4084
      %v4597 = vtanh.pop %v4085
      %v4598 = vtanh.pop %v4086
      %v4599 = vtanh.pop %v4087
      %v4600 = vtanh.pop %v4088
      %v4601 = vtanh.pop %v4089
      %v4602 = vtanh.pop %v4090
      %v4603 = vtanh.pop %v4091
      %v4604 = vtanh.pop %v4092
      %v4605 = vtanh.pop %v4093
      %v4606 = vtanh.pop %v4094
      %v4607 = vtanh.pop %v4095
      %v4608 = vtanh.pop %v4096
      %v4609 = vtanh.pop %v4097
      %v4610 = vtanh.pop %v4098
      %v4611 = vtanh.pop %v4099
      %v4612 = vtanh.pop %v4100
      %v4613 = vtanh.pop %v4101
      %v4614 = vtanh.pop %v4102
      %v4615 = vtanh.pop %v4103
      %v4616 = vtanh.pop %v4104
      %v4617 = vtanh.pop %v4105
      %v4618 = vtanh.pop %v4106
      %v4619 = vtanh.pop %v4107
      %v4620 = vtanh.pop %v4108
      %v4621 = vtanh.pop %v4109
      %v4622 = vtanh.pop %v4110
      %v4623 = vtanh.pop %v4111
      %v4624 = vtanh.pop %v4112
      %v4625 = vtanh.pop %v4113
      %v4626 = vtanh.pop %v4114
      %v4627 = vtanh.pop %v4115
      %v4628 = vtanh.pop %v4116
      %v4629 = vtanh.pop %v4117
      %v4630 = vtanh.pop %v4118
      %v4631 = vtanh.pop %v4119
      %v4632 = vtanh.pop %v4120
      %v4633 = vtanh.pop %v4121
      %v4634 = vtanh.pop %v4122
      %v4635 = vtanh.pop %v4123
      %v4636 = vtanh.pop %v4124
      %v4637 = vtanh.pop %v4125
      %v4638 = vtanh.pop %v4126
      %v4639 = vtanh.pop %v4127
      %v4640 = vtanh.pop %v4128
      %v4641 = vtanh.pop %v4129
      %v4642 = vtanh.pop %v4130
      %v4643 = vtanh.pop %v4131
      %v4644 = vtanh.pop %v4132
      %v4645 = vtanh.pop %v4133
      %v4646 = vtanh.pop %v4134
      %v4647 = vtanh.pop %v4135
      %v4648 = vtanh.pop %v4136
      %v4649 = vtanh.pop %v4137
      %v4650 = vtanh.pop %v4138
      %v4651 = vtanh.pop %v4139
      %v4652 = vtanh.pop %v4140
      %v4653 = vtanh.pop %v4141
      %v4654 = vtanh.pop %v4142
      %v4655 = vtanh.pop %v4143
      %v4656 = vtanh.pop %v4144
      %v4657 = vtanh.pop %v4145
      %v4658 = vtanh.pop %v4146
      %v4659 = vtanh.pop %v4147
      %v4660 = vtanh.pop %v4148
      %v4661 = vtanh.pop %v4149
      %v4662 = vtanh.pop %v4150
      %v4663 = vtanh.pop %v4151
      %v4664 = vtanh.pop %v4152
      %v4665 = vtanh.pop %v4153
      %v4666 = vtanh.pop %v4154
      %v4667 = vtanh.pop %v4155
      %v4668 = vtanh.pop %v4156
      %v4669 = vtanh.pop %v4157
      %v4670 = vtanh.pop %v4158
      %v4671 = vtanh.pop %v4159
      %v4672 = vtanh.pop %v4160
      %v4673 = vtanh.pop %v4161
      %v4674 = vtanh.pop %v4162
      %v4675 = vtanh.pop %v4163
      %v4676 = vtanh.pop %v4164
      %v4677 = vtanh.pop %v4165
      %v4678 = vtanh.pop %v4166
      %v4679 = vtanh.pop %v4167
      %v4680 = vtanh.pop %v4168
      %v4681 = vtanh.pop %v4169
      %v4682 = vtanh.pop %v4170
      %v4683 = vtanh.pop %v4171
      %v4684 = vtanh.pop %v4172
      %v4685 = vtanh.pop %v4173
      %v4686 = vtanh.pop %v4174
      %v4687 = vtanh.pop %v4175
      %v4688 = vtanh.pop %v4176
      %v4689 = vtanh.pop %v4177
      %v4690 = vtanh.pop %v4178
      %v4691 = vtanh.pop %v4179
      %v4692 = vtanh.pop %v4180
      %v4693 = vtanh.pop %v4181
      %v4694 = vtanh.pop %v4182
      %v4695 = vtanh.pop %v4183
      %v4696 = vtanh.pop %v4184
      %v4697 = vtanh.pop %v4185
      %v4698 = vtanh.pop %v4186
      %v4699 = vtanh.pop %v4187
      %v4700 = vtanh.pop %v4188
      %v4701 = vtanh.pop %v4189
      %v4702 = vtanh.pop %v4190
      %v4703 = vtanh.pop %v4191
      %v4704 = vtanh.pop %v4192
      %v4705 = vtanh.pop %v4193
      %v4706 = vtanh.pop %v4194
      %v4707 = vtanh.pop %v4195
      %v4708 = vtanh.pop %v4196
      %v4709 = vtanh.pop %v4197
      %v4710 = vtanh.pop %v4198
      %v4711 = vtanh.pop %v4199
      %v4712 = vtanh.pop %v4200
      %v4713 = vtanh.pop %v4201
      %v4714 = vtanh.pop %v4202
      %v4715 = vtanh.pop %v4203
      %v4716 = vtanh.pop %v4204
      %v4717 = vtanh.pop %v4205
      %v4718 = vtanh.pop %v4206
      %v4719 = vtanh.pop %v4207
      %v4720 = vtanh.pop %v4208
      %v4721 = vtanh.pop %v4209
      %v4722 = vtanh.pop %v4210
      %v4723 = vtanh.pop %v4211
      %v4724 = vtanh.pop %v4212
      %v4725 = vtanh.pop %v4213
      %v4726 = vtanh.pop %v4214
      %v4727 = vtanh.pop %v4215
      %v4728 = vtanh.pop %v4216
      %v4729 = vtanh.pop %v4217
      %v4730 = vtanh.pop %v4218
      %v4731 = vtanh.pop %v4219
      %v4732 = vtanh.pop %v4220
      %v4733 = vtanh.pop %v4221
      %v4734 = vtanh.pop %v4222
      %v4735 = vtanh.pop %v4223
      %v4736 = vtanh.pop %v4224
      %v4737 = vtanh.pop %v4225
      %v4738 = vtanh.pop %v4226
      %v4739 = vtanh.pop %v4227
      %v4740 = vtanh.pop %v4228
      %v4741 = vtanh.pop %v4229
      %v4742 = vtanh.pop %v4230
      %v4743 = vtanh.pop %v4231
      %v4744 = vtanh.pop %v4232
      %v4745 = vld [vmem:[%s6] sm:$0xff]
      %v4746 = vld [vmem:[%s6 + $0x8] sm:$0xff]
      %v4747 = vld [vmem:[%s6 + $0x10] sm:$0xff]
      %v4748 = vld [vmem:[%s6 + $0x18] sm:$0xff]
      %4750 = vset.pattern.permute.xlu0 0
      %4751 = vperm.xlu0 %4750, %v4745
      %v4752 = vpop.permute.xlu0 %4751
      %4755 = vset.pattern.permute.xlu0 0
      %4756 = vperm.xlu0 %4755, %v4746
      %v4757 = vpop.permute.xlu0 %4756
      %4760 = vset.pattern.permute.xlu0 0
      %4761 = vperm.xlu0 %4760, %v4747
      %v4762 = vpop.permute.xlu0 %4761
      %4765 = vset.pattern.permute.xlu0 0
      %4766 = vperm.xlu0 %4765, %v4748
      %v4767 = vpop.permute.xlu0 %4766
      %v4769 = vmul.f32 %v4233, %v4752
      %v4770 = vmul.f32 %v4234, %v4757
      %v4771 = vmul.f32 %v4235, %v4762
      %v4772 = vmul.f32 %v4236, %v4767
      %v4773 = vmul.f32 %v4237, %v4752
      %v4774 = vmul.f32 %v4238, %v4757
      %v4775 = vmul.f32 %v4239, %v4762
      %v4776 = vmul.f32 %v4240, %v4767
      %v4777 = vmul.f32 %v4241, %v4752
      %v4778 = vmul.f32 %v4242, %v4757
      %v4779 = vmul.f32 %v4243, %v4762
      %v4780 = vmul.f32 %v4244, %v4767
      %v4781 = vmul.f32 %v4245, %v4752
      %v4782 = vmul.f32 %v4246, %v4757
      %v4783 = vmul.f32 %v4247, %v4762
      %v4784 = vmul.f32 %v4248, %v4767
      %v4785 = vmul.f32 %v4249, %v4752
      %v4786 = vmul.f32 %v4250, %v4757
      %v4787 = vmul.f32 %v4251, %v4762
      %v4788 = vmul.f32 %v4252, %v4767
      %v4789 = vmul.f32 %v4253, %v4752
      %v4790 = vmul.f32 %v4254, %v4757
      %v4791 = vmul.f32 %v4255, %v4762
      %v4792 = vmul.f32 %v4256, %v4767
      %v4793 = vmul.f32 %v4257, %v4752
      %v4794 = vmul.f32 %v4258, %v4757
      %v4795 = vmul.f32 %v4259, %v4762
      %v4796 = vmul.f32 %v4260, %v4767
      %v4797 = vmul.f32 %v4261, %v4752
      %v4798 = vmul.f32 %v4262, %v4757
      %v4799 = vmul.f32 %v4263, %v4762
      %v4800 = vmul.f32 %v4264, %v4767
      %v4801 = vmul.f32 %v4265, %v4752
      %v4802 = vmul.f32 %v4266, %v4757
      %v4803 = vmul.f32 %v4267, %v4762
      %v4804 = vmul.f32 %v4268, %v4767
      %v4805 = vmul.f32 %v4269, %v4752
      %v4806 = vmul.f32 %v4270, %v4757
      %v4807 = vmul.f32 %v4271, %v4762
      %v4808 = vmul.f32 %v4272, %v4767
      %v4809 = vmul.f32 %v4273, %v4752
      %v4810 = vmul.f32 %v4274, %v4757
      %v4811 = vmul.f32 %v4275, %v4762
      %v4812 = vmul.f32 %v4276, %v4767
      %v4813 = vmul.f32 %v4277, %v4752
      %v4814 = vmul.f32 %v4278, %v4757
      %v4815 = vmul.f32 %v4279, %v4762
      %v4816 = vmul.f32 %v4280, %v4767
      %v4817 = vmul.f32 %v4281, %v4752
      %v4818 = vmul.f32 %v4282, %v4757
      %v4819 = vmul.f32 %v4283, %v4762
      %v4820 = vmul.f32 %v4284, %v4767
      %v4821 = vmul.f32 %v4285, %v4752
      %v4822 = vmul.f32 %v4286, %v4757
      %v4823 = vmul.f32 %v4287, %v4762
      %v4824 = vmul.f32 %v4288, %v4767
      %v4825 = vmul.f32 %v4289, %v4752
      %v4826 = vmul.f32 %v4290, %v4757
      %v4827 = vmul.f32 %v4291, %v4762
      %v4828 = vmul.f32 %v4292, %v4767
      %v4829 = vmul.f32 %v4293, %v4752
      %v4830 = vmul.f32 %v4294, %v4757
      %v4831 = vmul.f32 %v4295, %v4762
      %v4832 = vmul.f32 %v4296, %v4767
      %v4833 = vmul.f32 %v4297, %v4752
      %v4834 = vmul.f32 %v4298, %v4757
      %v4835 = vmul.f32 %v4299, %v4762
      %v4836 = vmul.f32 %v4300, %v4767
      %v4837 = vmul.f32 %v4301, %v4752
      %v4838 = vmul.f32 %v4302, %v4757
      %v4839 = vmul.f32 %v4303, %v4762
      %v4840 = vmul.f32 %v4304, %v4767
      %v4841 = vmul.f32 %v4305, %v4752
      %v4842 = vmul.f32 %v4306, %v4757
      %v4843 = vmul.f32 %v4307, %v4762
      %v4844 = vmul.f32 %v4308, %v4767
      %v4845 = vmul.f32 %v4309, %v4752
      %v4846 = vmul.f32 %v4310, %v4757
      %v4847 = vmul.f32 %v4311, %v4762
      %v4848 = vmul.f32 %v4312, %v4767
      %v4849 = vmul.f32 %v4313, %v4752
      %v4850 = vmul.f32 %v4314, %v4757
      %v4851 = vmul.f32 %v4315, %v4762
      %v4852 = vmul.f32 %v4316, %v4767
      %v4853 = vmul.f32 %v4317, %v4752
      %v4854 = vmul.f32 %v4318, %v4757
      %v4855 = vmul.f32 %v4319, %v4762
      %v4856 = vmul.f32 %v4320, %v4767
      %v4857 = vmul.f32 %v4321, %v4752
      %v4858 = vmul.f32 %v4322, %v4757
      %v4859 = vmul.f32 %v4323, %v4762
      %v4860 = vmul.f32 %v4324, %v4767
      %v4861 = vmul.f32 %v4325, %v4752
      %v4862 = vmul.f32 %v4326, %v4757
      %v4863 = vmul.f32 %v4327, %v4762
      %v4864 = vmul.f32 %v4328, %v4767
      %v4865 = vmul.f32 %v4329, %v4752
      %v4866 = vmul.f32 %v4330, %v4757
      %v4867 = vmul.f32 %v4331, %v4762
      %v4868 = vmul.f32 %v4332, %v4767
      %v4869 = vmul.f32 %v4333, %v4752
      %v4870 = vmul.f32 %v4334, %v4757
      %v4871 = vmul.f32 %v4335, %v4762
      %v4872 = vmul.f32 %v4336, %v4767
      %v4873 = vmul.f32 %v4337, %v4752
      %v4874 = vmul.f32 %v4338, %v4757
      %v4875 = vmul.f32 %v4339, %v4762
      %v4876 = vmul.f32 %v4340, %v4767
      %v4877 = vmul.f32 %v4341, %v4752
      %v4878 = vmul.f32 %v4342, %v4757
      %v4879 = vmul.f32 %v4343, %v4762
      %v4880 = vmul.f32 %v4344, %v4767
      %v4881 = vmul.f32 %v4345, %v4752
      %v4882 = vmul.f32 %v4346, %v4757
      %v4883 = vmul.f32 %v4347, %v4762
      %v4884 = vmul.f32 %v4348, %v4767
      %v4885 = vmul.f32 %v4349, %v4752
      %v4886 = vmul.f32 %v4350, %v4757
      %v4887 = vmul.f32 %v4351, %v4762
      %v4888 = vmul.f32 %v4352, %v4767
      %v4889 = vmul.f32 %v4353, %v4752
      %v4890 = vmul.f32 %v4354, %v4757
      %v4891 = vmul.f32 %v4355, %v4762
      %v4892 = vmul.f32 %v4356, %v4767
      %v4893 = vmul.f32 %v4357, %v4752
      %v4894 = vmul.f32 %v4358, %v4757
      %v4895 = vmul.f32 %v4359, %v4762
      %v4896 = vmul.f32 %v4360, %v4767
      %v4897 = vmul.f32 %v4361, %v4752
      %v4898 = vmul.f32 %v4362, %v4757
      %v4899 = vmul.f32 %v4363, %v4762
      %v4900 = vmul.f32 %v4364, %v4767
      %v4901 = vmul.f32 %v4365, %v4752
      %v4902 = vmul.f32 %v4366, %v4757
      %v4903 = vmul.f32 %v4367, %v4762
      %v4904 = vmul.f32 %v4368, %v4767
      %v4905 = vmul.f32 %v4369, %v4752
      %v4906 = vmul.f32 %v4370, %v4757
      %v4907 = vmul.f32 %v4371, %v4762
      %v4908 = vmul.f32 %v4372, %v4767
      %v4909 = vmul.f32 %v4373, %v4752
      %v4910 = vmul.f32 %v4374, %v4757
      %v4911 = vmul.f32 %v4375, %v4762
      %v4912 = vmul.f32 %v4376, %v4767
      %v4913 = vmul.f32 %v4377, %v4752
      %v4914 = vmul.f32 %v4378, %v4757
      %v4915 = vmul.f32 %v4379, %v4762
      %v4916 = vmul.f32 %v4380, %v4767
      %v4917 = vmul.f32 %v4381, %v4752
      %v4918 = vmul.f32 %v4382, %v4757
      %v4919 = vmul.f32 %v4383, %v4762
      %v4920 = vmul.f32 %v4384, %v4767
      %v4921 = vmul.f32 %v4385, %v4752
      %v4922 = vmul.f32 %v4386, %v4757
      %v4923 = vmul.f32 %v4387, %v4762
      %v4924 = vmul.f32 %v4388, %v4767
      %v4925 = vmul.f32 %v4389, %v4752
      %v4926 = vmul.f32 %v4390, %v4757
      %v4927 = vmul.f32 %v4391, %v4762
      %v4928 = vmul.f32 %v4392, %v4767
      %v4929 = vmul.f32 %v4393, %v4752
      %v4930 = vmul.f32 %v4394, %v4757
      %v4931 = vmul.f32 %v4395, %v4762
      %v4932 = vmul.f32 %v4396, %v4767
      %v4933 = vmul.f32 %v4397, %v4752
      %v4934 = vmul.f32 %v4398, %v4757
      %v4935 = vmul.f32 %v4399, %v4762
      %v4936 = vmul.f32 %v4400, %v4767
      %v4937 = vmul.f32 %v4401, %v4752
      %v4938 = vmul.f32 %v4402, %v4757
      %v4939 = vmul.f32 %v4403, %v4762
      %v4940 = vmul.f32 %v4404, %v4767
      %v4941 = vmul.f32 %v4405, %v4752
      %v4942 = vmul.f32 %v4406, %v4757
      %v4943 = vmul.f32 %v4407, %v4762
      %v4944 = vmul.f32 %v4408, %v4767
      %v4945 = vmul.f32 %v4409, %v4752
      %v4946 = vmul.f32 %v4410, %v4757
      %v4947 = vmul.f32 %v4411, %v4762
      %v4948 = vmul.f32 %v4412, %v4767
      %v4949 = vmul.f32 %v4413, %v4752
      %v4950 = vmul.f32 %v4414, %v4757
      %v4951 = vmul.f32 %v4415, %v4762
      %v4952 = vmul.f32 %v4416, %v4767
      %v4953 = vmul.f32 %v4417, %v4752
      %v4954 = vmul.f32 %v4418, %v4757
      %v4955 = vmul.f32 %v4419, %v4762
      %v4956 = vmul.f32 %v4420, %v4767
      %v4957 = vmul.f32 %v4421, %v4752
      %v4958 = vmul.f32 %v4422, %v4757
      %v4959 = vmul.f32 %v4423, %v4762
      %v4960 = vmul.f32 %v4424, %v4767
      %v4961 = vmul.f32 %v4425, %v4752
      %v4962 = vmul.f32 %v4426, %v4757
      %v4963 = vmul.f32 %v4427, %v4762
      %v4964 = vmul.f32 %v4428, %v4767
      %v4965 = vmul.f32 %v4429, %v4752
      %v4966 = vmul.f32 %v4430, %v4757
      %v4967 = vmul.f32 %v4431, %v4762
      %v4968 = vmul.f32 %v4432, %v4767
      %v4969 = vmul.f32 %v4433, %v4752
      %v4970 = vmul.f32 %v4434, %v4757
      %v4971 = vmul.f32 %v4435, %v4762
      %v4972 = vmul.f32 %v4436, %v4767
      %v4973 = vmul.f32 %v4437, %v4752
      %v4974 = vmul.f32 %v4438, %v4757
      %v4975 = vmul.f32 %v4439, %v4762
      %v4976 = vmul.f32 %v4440, %v4767
      %v4977 = vmul.f32 %v4441, %v4752
      %v4978 = vmul.f32 %v4442, %v4757
      %v4979 = vmul.f32 %v4443, %v4762
      %v4980 = vmul.f32 %v4444, %v4767
      %v4981 = vmul.f32 %v4445, %v4752
      %v4982 = vmul.f32 %v4446, %v4757
      %v4983 = vmul.f32 %v4447, %v4762
      %v4984 = vmul.f32 %v4448, %v4767
      %v4985 = vmul.f32 %v4449, %v4752
      %v4986 = vmul.f32 %v4450, %v4757
      %v4987 = vmul.f32 %v4451, %v4762
      %v4988 = vmul.f32 %v4452, %v4767
      %v4989 = vmul.f32 %v4453, %v4752
      %v4990 = vmul.f32 %v4454, %v4757
      %v4991 = vmul.f32 %v4455, %v4762
      %v4992 = vmul.f32 %v4456, %v4767
      %v4993 = vmul.f32 %v4457, %v4752
      %v4994 = vmul.f32 %v4458, %v4757
      %v4995 = vmul.f32 %v4459, %v4762
      %v4996 = vmul.f32 %v4460, %v4767
      %v4997 = vmul.f32 %v4461, %v4752
      %v4998 = vmul.f32 %v4462, %v4757
      %v4999 = vmul.f32 %v4463, %v4762
      %v5000 = vmul.f32 %v4464, %v4767
      %v5001 = vmul.f32 %v4465, %v4752
      %v5002 = vmul.f32 %v4466, %v4757
      %v5003 = vmul.f32 %v4467, %v4762
      %v5004 = vmul.f32 %v4468, %v4767
      %v5005 = vmul.f32 %v4469, %v4752
      %v5006 = vmul.f32 %v4470, %v4757
      %v5007 = vmul.f32 %v4471, %v4762
      %v5008 = vmul.f32 %v4472, %v4767
      %v5009 = vmul.f32 %v4473, %v4752
      %v5010 = vmul.f32 %v4474, %v4757
      %v5011 = vmul.f32 %v4475, %v4762
      %v5012 = vmul.f32 %v4476, %v4767
      %v5013 = vmul.f32 %v4477, %v4752
      %v5014 = vmul.f32 %v4478, %v4757
      %v5015 = vmul.f32 %v4479, %v4762
      %v5016 = vmul.f32 %v4480, %v4767
      %v5017 = vmul.f32 %v4481, %v4752
      %v5018 = vmul.f32 %v4482, %v4757
      %v5019 = vmul.f32 %v4483, %v4762
      %v5020 = vmul.f32 %v4484, %v4767
      %v5021 = vmul.f32 %v4485, %v4752
      %v5022 = vmul.f32 %v4486, %v4757
      %v5023 = vmul.f32 %v4487, %v4762
      %v5024 = vmul.f32 %v4488, %v4767
      %v5025 = vmul.f32 %v4489, %v4752
      %v5026 = vmul.f32 %v4490, %v4757
      %v5027 = vmul.f32 %v4491, %v4762
      %v5028 = vmul.f32 %v4492, %v4767
      %v5029 = vmul.f32 %v4493, %v4752
      %v5030 = vmul.f32 %v4494, %v4757
      %v5031 = vmul.f32 %v4495, %v4762
      %v5032 = vmul.f32 %v4496, %v4767
      %v5033 = vmul.f32 %v4497, %v4752
      %v5034 = vmul.f32 %v4498, %v4757
      %v5035 = vmul.f32 %v4499, %v4762
      %v5036 = vmul.f32 %v4500, %v4767
      %v5037 = vmul.f32 %v4501, %v4752
      %v5038 = vmul.f32 %v4502, %v4757
      %v5039 = vmul.f32 %v4503, %v4762
      %v5040 = vmul.f32 %v4504, %v4767
      %v5041 = vmul.f32 %v4505, %v4752
      %v5042 = vmul.f32 %v4506, %v4757
      %v5043 = vmul.f32 %v4507, %v4762
      %v5044 = vmul.f32 %v4508, %v4767
      %v5045 = vmul.f32 %v4509, %v4752
      %v5046 = vmul.f32 %v4510, %v4757
      %v5047 = vmul.f32 %v4511, %v4762
      %v5048 = vmul.f32 %v4512, %v4767
      %v5049 = vmul.f32 %v4513, %v4752
      %v5050 = vmul.f32 %v4514, %v4757
      %v5051 = vmul.f32 %v4515, %v4762
      %v5052 = vmul.f32 %v4516, %v4767
      %v5053 = vmul.f32 %v4517, %v4752
      %v5054 = vmul.f32 %v4518, %v4757
      %v5055 = vmul.f32 %v4519, %v4762
      %v5056 = vmul.f32 %v4520, %v4767
      %v5057 = vmul.f32 %v4521, %v4752
      %v5058 = vmul.f32 %v4522, %v4757
      %v5059 = vmul.f32 %v4523, %v4762
      %v5060 = vmul.f32 %v4524, %v4767
      %v5061 = vmul.f32 %v4525, %v4752
      %v5062 = vmul.f32 %v4526, %v4757
      %v5063 = vmul.f32 %v4527, %v4762
      %v5064 = vmul.f32 %v4528, %v4767
      %v5065 = vmul.f32 %v4529, %v4752
      %v5066 = vmul.f32 %v4530, %v4757
      %v5067 = vmul.f32 %v4531, %v4762
      %v5068 = vmul.f32 %v4532, %v4767
      %v5069 = vmul.f32 %v4533, %v4752
      %v5070 = vmul.f32 %v4534, %v4757
      %v5071 = vmul.f32 %v4535, %v4762
      %v5072 = vmul.f32 %v4536, %v4767
      %v5073 = vmul.f32 %v4537, %v4752
      %v5074 = vmul.f32 %v4538, %v4757
      %v5075 = vmul.f32 %v4539, %v4762
      %v5076 = vmul.f32 %v4540, %v4767
      %v5077 = vmul.f32 %v4541, %v4752
      %v5078 = vmul.f32 %v4542, %v4757
      %v5079 = vmul.f32 %v4543, %v4762
      %v5080 = vmul.f32 %v4544, %v4767
      %v5081 = vmul.f32 %v4545, %v4752
      %v5082 = vmul.f32 %v4546, %v4757
      %v5083 = vmul.f32 %v4547, %v4762
      %v5084 = vmul.f32 %v4548, %v4767
      %v5085 = vmul.f32 %v4549, %v4752
      %v5086 = vmul.f32 %v4550, %v4757
      %v5087 = vmul.f32 %v4551, %v4762
      %v5088 = vmul.f32 %v4552, %v4767
      %v5089 = vmul.f32 %v4553, %v4752
      %v5090 = vmul.f32 %v4554, %v4757
      %v5091 = vmul.f32 %v4555, %v4762
      %v5092 = vmul.f32 %v4556, %v4767
      %v5093 = vmul.f32 %v4557, %v4752
      %v5094 = vmul.f32 %v4558, %v4757
      %v5095 = vmul.f32 %v4559, %v4762
      %v5096 = vmul.f32 %v4560, %v4767
      %v5097 = vmul.f32 %v4561, %v4752
      %v5098 = vmul.f32 %v4562, %v4757
      %v5099 = vmul.f32 %v4563, %v4762
      %v5100 = vmul.f32 %v4564, %v4767
      %v5101 = vmul.f32 %v4565, %v4752
      %v5102 = vmul.f32 %v4566, %v4757
      %v5103 = vmul.f32 %v4567, %v4762
      %v5104 = vmul.f32 %v4568, %v4767
      %v5105 = vmul.f32 %v4569, %v4752
      %v5106 = vmul.f32 %v4570, %v4757
      %v5107 = vmul.f32 %v4571, %v4762
      %v5108 = vmul.f32 %v4572, %v4767
      %v5109 = vmul.f32 %v4573, %v4752
      %v5110 = vmul.f32 %v4574, %v4757
      %v5111 = vmul.f32 %v4575, %v4762
      %v5112 = vmul.f32 %v4576, %v4767
      %v5113 = vmul.f32 %v4577, %v4752
      %v5114 = vmul.f32 %v4578, %v4757
      %v5115 = vmul.f32 %v4579, %v4762
      %v5116 = vmul.f32 %v4580, %v4767
      %v5117 = vmul.f32 %v4581, %v4752
      %v5118 = vmul.f32 %v4582, %v4757
      %v5119 = vmul.f32 %v4583, %v4762
      %v5120 = vmul.f32 %v4584, %v4767
      %v5121 = vmul.f32 %v4585, %v4752
      %v5122 = vmul.f32 %v4586, %v4757
      %v5123 = vmul.f32 %v4587, %v4762
      %v5124 = vmul.f32 %v4588, %v4767
      %v5125 = vmul.f32 %v4589, %v4752
      %v5126 = vmul.f32 %v4590, %v4757
      %v5127 = vmul.f32 %v4591, %v4762
      %v5128 = vmul.f32 %v4592, %v4767
      %v5129 = vmul.f32 %v4593, %v4752
      %v5130 = vmul.f32 %v4594, %v4757
      %v5131 = vmul.f32 %v4595, %v4762
      %v5132 = vmul.f32 %v4596, %v4767
      %v5133 = vmul.f32 %v4597, %v4752
      %v5134 = vmul.f32 %v4598, %v4757
      %v5135 = vmul.f32 %v4599, %v4762
      %v5136 = vmul.f32 %v4600, %v4767
      %v5137 = vmul.f32 %v4601, %v4752
      %v5138 = vmul.f32 %v4602, %v4757
      %v5139 = vmul.f32 %v4603, %v4762
      %v5140 = vmul.f32 %v4604, %v4767
      %v5141 = vmul.f32 %v4605, %v4752
      %v5142 = vmul.f32 %v4606, %v4757
      %v5143 = vmul.f32 %v4607, %v4762
      %v5144 = vmul.f32 %v4608, %v4767
      %v5145 = vmul.f32 %v4609, %v4752
      %v5146 = vmul.f32 %v4610, %v4757
      %v5147 = vmul.f32 %v4611, %v4762
      %v5148 = vmul.f32 %v4612, %v4767
      %v5149 = vmul.f32 %v4613, %v4752
      %v5150 = vmul.f32 %v4614, %v4757
      %v5151 = vmul.f32 %v4615, %v4762
      %v5152 = vmul.f32 %v4616, %v4767
      %v5153 = vmul.f32 %v4617, %v4752
      %v5154 = vmul.f32 %v4618, %v4757
      %v5155 = vmul.f32 %v4619, %v4762
      %v5156 = vmul.f32 %v4620, %v4767
      %v5157 = vmul.f32 %v4621, %v4752
      %v5158 = vmul.f32 %v4622, %v4757
      %v5159 = vmul.f32 %v4623, %v4762
      %v5160 = vmul.f32 %v4624, %v4767
      %v5161 = vmul.f32 %v4625, %v4752
      %v5162 = vmul.f32 %v4626, %v4757
      %v5163 = vmul.f32 %v4627, %v4762
      %v5164 = vmul.f32 %v4628, %v4767
      %v5165 = vmul.f32 %v4629, %v4752
      %v5166 = vmul.f32 %v4630, %v4757
      %v5167 = vmul.f32 %v4631, %v4762
      %v5168 = vmul.f32 %v4632, %v4767
      %v5169 = vmul.f32 %v4633, %v4752
      %v5170 = vmul.f32 %v4634, %v4757
      %v5171 = vmul.f32 %v4635, %v4762
      %v5172 = vmul.f32 %v4636, %v4767
      %v5173 = vmul.f32 %v4637, %v4752
      %v5174 = vmul.f32 %v4638, %v4757
      %v5175 = vmul.f32 %v4639, %v4762
      %v5176 = vmul.f32 %v4640, %v4767
      %v5177 = vmul.f32 %v4641, %v4752
      %v5178 = vmul.f32 %v4642, %v4757
      %v5179 = vmul.f32 %v4643, %v4762
      %v5180 = vmul.f32 %v4644, %v4767
      %v5181 = vmul.f32 %v4645, %v4752
      %v5182 = vmul.f32 %v4646, %v4757
      %v5183 = vmul.f32 %v4647, %v4762
      %v5184 = vmul.f32 %v4648, %v4767
      %v5185 = vmul.f32 %v4649, %v4752
      %v5186 = vmul.f32 %v4650, %v4757
      %v5187 = vmul.f32 %v4651, %v4762
      %v5188 = vmul.f32 %v4652, %v4767
      %v5189 = vmul.f32 %v4653, %v4752
      %v5190 = vmul.f32 %v4654, %v4757
      %v5191 = vmul.f32 %v4655, %v4762
      %v5192 = vmul.f32 %v4656, %v4767
      %v5193 = vmul.f32 %v4657, %v4752
      %v5194 = vmul.f32 %v4658, %v4757
      %v5195 = vmul.f32 %v4659, %v4762
      %v5196 = vmul.f32 %v4660, %v4767
      %v5197 = vmul.f32 %v4661, %v4752
      %v5198 = vmul.f32 %v4662, %v4757
      %v5199 = vmul.f32 %v4663, %v4762
      %v5200 = vmul.f32 %v4664, %v4767
      %v5201 = vmul.f32 %v4665, %v4752
      %v5202 = vmul.f32 %v4666, %v4757
      %v5203 = vmul.f32 %v4667, %v4762
      %v5204 = vmul.f32 %v4668, %v4767
      %v5205 = vmul.f32 %v4669, %v4752
      %v5206 = vmul.f32 %v4670, %v4757
      %v5207 = vmul.f32 %v4671, %v4762
      %v5208 = vmul.f32 %v4672, %v4767
      %v5209 = vmul.f32 %v4673, %v4752
      %v5210 = vmul.f32 %v4674, %v4757
      %v5211 = vmul.f32 %v4675, %v4762
      %v5212 = vmul.f32 %v4676, %v4767
      %v5213 = vmul.f32 %v4677, %v4752
      %v5214 = vmul.f32 %v4678, %v4757
      %v5215 = vmul.f32 %v4679, %v4762
      %v5216 = vmul.f32 %v4680, %v4767
      %v5217 = vmul.f32 %v4681, %v4752
      %v5218 = vmul.f32 %v4682, %v4757
      %v5219 = vmul.f32 %v4683, %v4762
      %v5220 = vmul.f32 %v4684, %v4767
      %v5221 = vmul.f32 %v4685, %v4752
      %v5222 = vmul.f32 %v4686, %v4757
      %v5223 = vmul.f32 %v4687, %v4762
      %v5224 = vmul.f32 %v4688, %v4767
      %v5225 = vmul.f32 %v4689, %v4752
      %v5226 = vmul.f32 %v4690, %v4757
      %v5227 = vmul.f32 %v4691, %v4762
      %v5228 = vmul.f32 %v4692, %v4767
      %v5229 = vmul.f32 %v4693, %v4752
      %v5230 = vmul.f32 %v4694, %v4757
      %v5231 = vmul.f32 %v4695, %v4762
      %v5232 = vmul.f32 %v4696, %v4767
      %v5233 = vmul.f32 %v4697, %v4752
      %v5234 = vmul.f32 %v4698, %v4757
      %v5235 = vmul.f32 %v4699, %v4762
      %v5236 = vmul.f32 %v4700, %v4767
      %v5237 = vmul.f32 %v4701, %v4752
      %v5238 = vmul.f32 %v4702, %v4757
      %v5239 = vmul.f32 %v4703, %v4762
      %v5240 = vmul.f32 %v4704, %v4767
      %v5241 = vmul.f32 %v4705, %v4752
      %v5242 = vmul.f32 %v4706, %v4757
      %v5243 = vmul.f32 %v4707, %v4762
      %v5244 = vmul.f32 %v4708, %v4767
      %v5245 = vmul.f32 %v4709, %v4752
      %v5246 = vmul.f32 %v4710, %v4757
      %v5247 = vmul.f32 %v4711, %v4762
      %v5248 = vmul.f32 %v4712, %v4767
      %v5249 = vmul.f32 %v4713, %v4752
      %v5250 = vmul.f32 %v4714, %v4757
      %v5251 = vmul.f32 %v4715, %v4762
      %v5252 = vmul.f32 %v4716, %v4767
      %v5253 = vmul.f32 %v4717, %v4752
      %v5254 = vmul.f32 %v4718, %v4757
      %v5255 = vmul.f32 %v4719, %v4762
      %v5256 = vmul.f32 %v4720, %v4767
      %v5257 = vmul.f32 %v4721, %v4752
      %v5258 = vmul.f32 %v4722, %v4757
      %v5259 = vmul.f32 %v4723, %v4762
      %v5260 = vmul.f32 %v4724, %v4767
      %v5261 = vmul.f32 %v4725, %v4752
      %v5262 = vmul.f32 %v4726, %v4757
      %v5263 = vmul.f32 %v4727, %v4762
      %v5264 = vmul.f32 %v4728, %v4767
      %v5265 = vmul.f32 %v4729, %v4752
      %v5266 = vmul.f32 %v4730, %v4757
      %v5267 = vmul.f32 %v4731, %v4762
      %v5268 = vmul.f32 %v4732, %v4767
      %v5269 = vmul.f32 %v4733, %v4752
      %v5270 = vmul.f32 %v4734, %v4757
      %v5271 = vmul.f32 %v4735, %v4762
      %v5272 = vmul.f32 %v4736, %v4767
      %v5273 = vmul.f32 %v4737, %v4752
      %v5274 = vmul.f32 %v4738, %v4757
      %v5275 = vmul.f32 %v4739, %v4762
      %v5276 = vmul.f32 %v4740, %v4767
      %v5277 = vmul.f32 %v4741, %v4752
      %v5278 = vmul.f32 %v4742, %v4757
      %v5279 = vmul.f32 %v4743, %v4762
      %v5280 = vmul.f32 %v4744, %v4767
      %vm5281 = vcmask 64512
      %v5282 = vsel %vm5281, %v4769, 0.0
      %v5283 = vsel %vm5281, %v4770, 0.0
      %v5284 = vadd.f32 %v5282, %v5283
      %v5285 = vsel %vm5281, %v4771, 0.0
      %v5286 = vadd.f32 %v5284, %v5285
      %v5287 = vsel %vm5281, %v4772, 0.0
      %v5288 = vadd.f32 %v5286, %v5287
      %v5289 = vrot.slane %v5288, 4
      %v5290 = vadd.f32 %v5288, %v5289
      %v5291 = vrot.slane %v5290, 2
      %v5292 = vadd.f32 %v5290, %v5291
      %v5293 = vrot.slane %v5292, 1
      %v5294 = vadd.f32 %v5292, %v5293
      %v5295 = vsel %vm5281, %v4773, 0.0
      %v5296 = vsel %vm5281, %v4774, 0.0
      %v5297 = vadd.f32 %v5295, %v5296
      %v5298 = vsel %vm5281, %v4775, 0.0
      %v5299 = vadd.f32 %v5297, %v5298
      %v5300 = vsel %vm5281, %v4776, 0.0
      %v5301 = vadd.f32 %v5299, %v5300
      %v5302 = vrot.slane %v5301, 4
      %v5303 = vadd.f32 %v5301, %v5302
      %v5304 = vrot.slane %v5303, 2
      %v5305 = vadd.f32 %v5303, %v5304
      %v5306 = vrot.slane %v5305, 1
      %v5307 = vadd.f32 %v5305, %v5306
      %v5308 = vsel %vm5281, %v4777, 0.0
      %v5309 = vsel %vm5281, %v4778, 0.0
      %v5310 = vadd.f32 %v5308, %v5309
      %v5311 = vsel %vm5281, %v4779, 0.0
      %v5312 = vadd.f32 %v5310, %v5311
      %v5313 = vsel %vm5281, %v4780, 0.0
      %v5314 = vadd.f32 %v5312, %v5313
      %v5315 = vrot.slane %v5314, 4
      %v5316 = vadd.f32 %v5314, %v5315
      %v5317 = vrot.slane %v5316, 2
      %v5318 = vadd.f32 %v5316, %v5317
      %v5319 = vrot.slane %v5318, 1
      %v5320 = vadd.f32 %v5318, %v5319
      %v5321 = vsel %vm5281, %v4781, 0.0
      %v5322 = vsel %vm5281, %v4782, 0.0
      %v5323 = vadd.f32 %v5321, %v5322
      %v5324 = vsel %vm5281, %v4783, 0.0
      %v5325 = vadd.f32 %v5323, %v5324
      %v5326 = vsel %vm5281, %v4784, 0.0
      %v5327 = vadd.f32 %v5325, %v5326
      %v5328 = vrot.slane %v5327, 4
      %v5329 = vadd.f32 %v5327, %v5328
      %v5330 = vrot.slane %v5329, 2
      %v5331 = vadd.f32 %v5329, %v5330
      %v5332 = vrot.slane %v5331, 1
      %v5333 = vadd.f32 %v5331, %v5332
      %v5334 = vsel %vm5281, %v4785, 0.0
      %v5335 = vsel %vm5281, %v4786, 0.0
      %v5336 = vadd.f32 %v5334, %v5335
      %v5337 = vsel %vm5281, %v4787, 0.0
      %v5338 = vadd.f32 %v5336, %v5337
      %v5339 = vsel %vm5281, %v4788, 0.0
      %v5340 = vadd.f32 %v5338, %v5339
      %v5341 = vrot.slane %v5340, 4
      %v5342 = vadd.f32 %v5340, %v5341
      %v5343 = vrot.slane %v5342, 2
      %v5344 = vadd.f32 %v5342, %v5343
      %v5345 = vrot.slane %v5344, 1
      %v5346 = vadd.f32 %v5344, %v5345
      %v5347 = vsel %vm5281, %v4789, 0.0
      %v5348 = vsel %vm5281, %v4790, 0.0
      %v5349 = vadd.f32 %v5347, %v5348
      %v5350 = vsel %vm5281, %v4791, 0.0
      %v5351 = vadd.f32 %v5349, %v5350
      %v5352 = vsel %vm5281, %v4792, 0.0
      %v5353 = vadd.f32 %v5351, %v5352
      %v5354 = vrot.slane %v5353, 4
      %v5355 = vadd.f32 %v5353, %v5354
      %v5356 = vrot.slane %v5355, 2
      %v5357 = vadd.f32 %v5355, %v5356
      %v5358 = vrot.slane %v5357, 1
      %v5359 = vadd.f32 %v5357, %v5358
      %v5360 = vsel %vm5281, %v4793, 0.0
      %v5361 = vsel %vm5281, %v4794, 0.0
      %v5362 = vadd.f32 %v5360, %v5361
      %v5363 = vsel %vm5281, %v4795, 0.0
      %v5364 = vadd.f32 %v5362, %v5363
      %v5365 = vsel %vm5281, %v4796, 0.0
      %v5366 = vadd.f32 %v5364, %v5365
      %v5367 = vrot.slane %v5366, 4
      %v5368 = vadd.f32 %v5366, %v5367
      %v5369 = vrot.slane %v5368, 2
      %v5370 = vadd.f32 %v5368, %v5369
      %v5371 = vrot.slane %v5370, 1
      %v5372 = vadd.f32 %v5370, %v5371
      %v5373 = vsel %vm5281, %v4797, 0.0
      %v5374 = vsel %vm5281, %v4798, 0.0
      %v5375 = vadd.f32 %v5373, %v5374
      %v5376 = vsel %vm5281, %v4799, 0.0
      %v5377 = vadd.f32 %v5375, %v5376
      %v5378 = vsel %vm5281, %v4800, 0.0
      %v5379 = vadd.f32 %v5377, %v5378
      %v5380 = vrot.slane %v5379, 4
      %v5381 = vadd.f32 %v5379, %v5380
      %v5382 = vrot.slane %v5381, 2
      %v5383 = vadd.f32 %v5381, %v5382
      %v5384 = vrot.slane %v5383, 1
      %v5385 = vadd.f32 %v5383, %v5384
      %v5386 = vsel %vm5281, %v4801, 0.0
      %v5387 = vsel %vm5281, %v4802, 0.0
      %v5388 = vadd.f32 %v5386, %v5387
      %v5389 = vsel %vm5281, %v4803, 0.0
      %v5390 = vadd.f32 %v5388, %v5389
      %v5391 = vsel %vm5281, %v4804, 0.0
      %v5392 = vadd.f32 %v5390, %v5391
      %v5393 = vrot.slane %v5392, 4
      %v5394 = vadd.f32 %v5392, %v5393
      %v5395 = vrot.slane %v5394, 2
      %v5396 = vadd.f32 %v5394, %v5395
      %v5397 = vrot.slane %v5396, 1
      %v5398 = vadd.f32 %v5396, %v5397
      %v5399 = vsel %vm5281, %v4805, 0.0
      %v5400 = vsel %vm5281, %v4806, 0.0
      %v5401 = vadd.f32 %v5399, %v5400
      %v5402 = vsel %vm5281, %v4807, 0.0
      %v5403 = vadd.f32 %v5401, %v5402
      %v5404 = vsel %vm5281, %v4808, 0.0
      %v5405 = vadd.f32 %v5403, %v5404
      %v5406 = vrot.slane %v5405, 4
      %v5407 = vadd.f32 %v5405, %v5406
      %v5408 = vrot.slane %v5407, 2
      %v5409 = vadd.f32 %v5407, %v5408
      %v5410 = vrot.slane %v5409, 1
      %v5411 = vadd.f32 %v5409, %v5410
      %v5412 = vsel %vm5281, %v4809, 0.0
      %v5413 = vsel %vm5281, %v4810, 0.0
      %v5414 = vadd.f32 %v5412, %v5413
      %v5415 = vsel %vm5281, %v4811, 0.0
      %v5416 = vadd.f32 %v5414, %v5415
      %v5417 = vsel %vm5281, %v4812, 0.0
      %v5418 = vadd.f32 %v5416, %v5417
      %v5419 = vrot.slane %v5418, 4
      %v5420 = vadd.f32 %v5418, %v5419
      %v5421 = vrot.slane %v5420, 2
      %v5422 = vadd.f32 %v5420, %v5421
      %v5423 = vrot.slane %v5422, 1
      %v5424 = vadd.f32 %v5422, %v5423
      %v5425 = vsel %vm5281, %v4813, 0.0
      %v5426 = vsel %vm5281, %v4814, 0.0
      %v5427 = vadd.f32 %v5425, %v5426
      %v5428 = vsel %vm5281, %v4815, 0.0
      %v5429 = vadd.f32 %v5427, %v5428
      %v5430 = vsel %vm5281, %v4816, 0.0
      %v5431 = vadd.f32 %v5429, %v5430
      %v5432 = vrot.slane %v5431, 4
      %v5433 = vadd.f32 %v5431, %v5432
      %v5434 = vrot.slane %v5433, 2
      %v5435 = vadd.f32 %v5433, %v5434
      %v5436 = vrot.slane %v5435, 1
      %v5437 = vadd.f32 %v5435, %v5436
      %v5438 = vsel %vm5281, %v4817, 0.0
      %v5439 = vsel %vm5281, %v4818, 0.0
      %v5440 = vadd.f32 %v5438, %v5439
      %v5441 = vsel %vm5281, %v4819, 0.0
      %v5442 = vadd.f32 %v5440, %v5441
      %v5443 = vsel %vm5281, %v4820, 0.0
      %v5444 = vadd.f32 %v5442, %v5443
      %v5445 = vrot.slane %v5444, 4
      %v5446 = vadd.f32 %v5444, %v5445
      %v5447 = vrot.slane %v5446, 2
      %v5448 = vadd.f32 %v5446, %v5447
      %v5449 = vrot.slane %v5448, 1
      %v5450 = vadd.f32 %v5448, %v5449
      %v5451 = vsel %vm5281, %v4821, 0.0
      %v5452 = vsel %vm5281, %v4822, 0.0
      %v5453 = vadd.f32 %v5451, %v5452
      %v5454 = vsel %vm5281, %v4823, 0.0
      %v5455 = vadd.f32 %v5453, %v5454
      %v5456 = vsel %vm5281, %v4824, 0.0
      %v5457 = vadd.f32 %v5455, %v5456
      %v5458 = vrot.slane %v5457, 4
      %v5459 = vadd.f32 %v5457, %v5458
      %v5460 = vrot.slane %v5459, 2
      %v5461 = vadd.f32 %v5459, %v5460
      %v5462 = vrot.slane %v5461, 1
      %v5463 = vadd.f32 %v5461, %v5462
      %v5464 = vsel %vm5281, %v4825, 0.0
      %v5465 = vsel %vm5281, %v4826, 0.0
      %v5466 = vadd.f32 %v5464, %v5465
      %v5467 = vsel %vm5281, %v4827, 0.0
      %v5468 = vadd.f32 %v5466, %v5467
      %v5469 = vsel %vm5281, %v4828, 0.0
      %v5470 = vadd.f32 %v5468, %v5469
      %v5471 = vrot.slane %v5470, 4
      %v5472 = vadd.f32 %v5470, %v5471
      %v5473 = vrot.slane %v5472, 2
      %v5474 = vadd.f32 %v5472, %v5473
      %v5475 = vrot.slane %v5474, 1
      %v5476 = vadd.f32 %v5474, %v5475
      %v5477 = vsel %vm5281, %v4829, 0.0
      %v5478 = vsel %vm5281, %v4830, 0.0
      %v5479 = vadd.f32 %v5477, %v5478
      %v5480 = vsel %vm5281, %v4831, 0.0
      %v5481 = vadd.f32 %v5479, %v5480
      %v5482 = vsel %vm5281, %v4832, 0.0
      %v5483 = vadd.f32 %v5481, %v5482
      %v5484 = vrot.slane %v5483, 4
      %v5485 = vadd.f32 %v5483, %v5484
      %v5486 = vrot.slane %v5485, 2
      %v5487 = vadd.f32 %v5485, %v5486
      %v5488 = vrot.slane %v5487, 1
      %v5489 = vadd.f32 %v5487, %v5488
      %v5490 = vsel %vm5281, %v4833, 0.0
      %v5491 = vsel %vm5281, %v4834, 0.0
      %v5492 = vadd.f32 %v5490, %v5491
      %v5493 = vsel %vm5281, %v4835, 0.0
      %v5494 = vadd.f32 %v5492, %v5493
      %v5495 = vsel %vm5281, %v4836, 0.0
      %v5496 = vadd.f32 %v5494, %v5495
      %v5497 = vrot.slane %v5496, 4
      %v5498 = vadd.f32 %v5496, %v5497
      %v5499 = vrot.slane %v5498, 2
      %v5500 = vadd.f32 %v5498, %v5499
      %v5501 = vrot.slane %v5500, 1
      %v5502 = vadd.f32 %v5500, %v5501
      %v5503 = vsel %vm5281, %v4837, 0.0
      %v5504 = vsel %vm5281, %v4838, 0.0
      %v5505 = vadd.f32 %v5503, %v5504
      %v5506 = vsel %vm5281, %v4839, 0.0
      %v5507 = vadd.f32 %v5505, %v5506
      %v5508 = vsel %vm5281, %v4840, 0.0
      %v5509 = vadd.f32 %v5507, %v5508
      %v5510 = vrot.slane %v5509, 4
      %v5511 = vadd.f32 %v5509, %v5510
      %v5512 = vrot.slane %v5511, 2
      %v5513 = vadd.f32 %v5511, %v5512
      %v5514 = vrot.slane %v5513, 1
      %v5515 = vadd.f32 %v5513, %v5514
      %v5516 = vsel %vm5281, %v4841, 0.0
      %v5517 = vsel %vm5281, %v4842, 0.0
      %v5518 = vadd.f32 %v5516, %v5517
      %v5519 = vsel %vm5281, %v4843, 0.0
      %v5520 = vadd.f32 %v5518, %v5519
      %v5521 = vsel %vm5281, %v4844, 0.0
      %v5522 = vadd.f32 %v5520, %v5521
      %v5523 = vrot.slane %v5522, 4
      %v5524 = vadd.f32 %v5522, %v5523
      %v5525 = vrot.slane %v5524, 2
      %v5526 = vadd.f32 %v5524, %v5525
      %v5527 = vrot.slane %v5526, 1
      %v5528 = vadd.f32 %v5526, %v5527
      %v5529 = vsel %vm5281, %v4845, 0.0
      %v5530 = vsel %vm5281, %v4846, 0.0
      %v5531 = vadd.f32 %v5529, %v5530
      %v5532 = vsel %vm5281, %v4847, 0.0
      %v5533 = vadd.f32 %v5531, %v5532
      %v5534 = vsel %vm5281, %v4848, 0.0
      %v5535 = vadd.f32 %v5533, %v5534
      %v5536 = vrot.slane %v5535, 4
      %v5537 = vadd.f32 %v5535, %v5536
      %v5538 = vrot.slane %v5537, 2
      %v5539 = vadd.f32 %v5537, %v5538
      %v5540 = vrot.slane %v5539, 1
      %v5541 = vadd.f32 %v5539, %v5540
      %v5542 = vsel %vm5281, %v4849, 0.0
      %v5543 = vsel %vm5281, %v4850, 0.0
      %v5544 = vadd.f32 %v5542, %v5543
      %v5545 = vsel %vm5281, %v4851, 0.0
      %v5546 = vadd.f32 %v5544, %v5545
      %v5547 = vsel %vm5281, %v4852, 0.0
      %v5548 = vadd.f32 %v5546, %v5547
      %v5549 = vrot.slane %v5548, 4
      %v5550 = vadd.f32 %v5548, %v5549
      %v5551 = vrot.slane %v5550, 2
      %v5552 = vadd.f32 %v5550, %v5551
      %v5553 = vrot.slane %v5552, 1
      %v5554 = vadd.f32 %v5552, %v5553
      %v5555 = vsel %vm5281, %v4853, 0.0
      %v5556 = vsel %vm5281, %v4854, 0.0
      %v5557 = vadd.f32 %v5555, %v5556
      %v5558 = vsel %vm5281, %v4855, 0.0
      %v5559 = vadd.f32 %v5557, %v5558
      %v5560 = vsel %vm5281, %v4856, 0.0
      %v5561 = vadd.f32 %v5559, %v5560
      %v5562 = vrot.slane %v5561, 4
      %v5563 = vadd.f32 %v5561, %v5562
      %v5564 = vrot.slane %v5563, 2
      %v5565 = vadd.f32 %v5563, %v5564
      %v5566 = vrot.slane %v5565, 1
      %v5567 = vadd.f32 %v5565, %v5566
      %v5568 = vsel %vm5281, %v4857, 0.0
      %v5569 = vsel %vm5281, %v4858, 0.0
      %v5570 = vadd.f32 %v5568, %v5569
      %v5571 = vsel %vm5281, %v4859, 0.0
      %v5572 = vadd.f32 %v5570, %v5571
      %v5573 = vsel %vm5281, %v4860, 0.0
      %v5574 = vadd.f32 %v5572, %v5573
      %v5575 = vrot.slane %v5574, 4
      %v5576 = vadd.f32 %v5574, %v5575
      %v5577 = vrot.slane %v5576, 2
      %v5578 = vadd.f32 %v5576, %v5577
      %v5579 = vrot.slane %v5578, 1
      %v5580 = vadd.f32 %v5578, %v5579
      %v5581 = vsel %vm5281, %v4861, 0.0
      %v5582 = vsel %vm5281, %v4862, 0.0
      %v5583 = vadd.f32 %v5581, %v5582
      %v5584 = vsel %vm5281, %v4863, 0.0
      %v5585 = vadd.f32 %v5583, %v5584
      %v5586 = vsel %vm5281, %v4864, 0.0
      %v5587 = vadd.f32 %v5585, %v5586
      %v5588 = vrot.slane %v5587, 4
      %v5589 = vadd.f32 %v5587, %v5588
      %v5590 = vrot.slane %v5589, 2
      %v5591 = vadd.f32 %v5589, %v5590
      %v5592 = vrot.slane %v5591, 1
      %v5593 = vadd.f32 %v5591, %v5592
      %v5594 = vsel %vm5281, %v4865, 0.0
      %v5595 = vsel %vm5281, %v4866, 0.0
      %v5596 = vadd.f32 %v5594, %v5595
      %v5597 = vsel %vm5281, %v4867, 0.0
      %v5598 = vadd.f32 %v5596, %v5597
      %v5599 = vsel %vm5281, %v4868, 0.0
      %v5600 = vadd.f32 %v5598, %v5599
      %v5601 = vrot.slane %v5600, 4
      %v5602 = vadd.f32 %v5600, %v5601
      %v5603 = vrot.slane %v5602, 2
      %v5604 = vadd.f32 %v5602, %v5603
      %v5605 = vrot.slane %v5604, 1
      %v5606 = vadd.f32 %v5604, %v5605
      %v5607 = vsel %vm5281, %v4869, 0.0
      %v5608 = vsel %vm5281, %v4870, 0.0
      %v5609 = vadd.f32 %v5607, %v5608
      %v5610 = vsel %vm5281, %v4871, 0.0
      %v5611 = vadd.f32 %v5609, %v5610
      %v5612 = vsel %vm5281, %v4872, 0.0
      %v5613 = vadd.f32 %v5611, %v5612
      %v5614 = vrot.slane %v5613, 4
      %v5615 = vadd.f32 %v5613, %v5614
      %v5616 = vrot.slane %v5615, 2
      %v5617 = vadd.f32 %v5615, %v5616
      %v5618 = vrot.slane %v5617, 1
      %v5619 = vadd.f32 %v5617, %v5618
      %v5620 = vsel %vm5281, %v4873, 0.0
      %v5621 = vsel %vm5281, %v4874, 0.0
      %v5622 = vadd.f32 %v5620, %v5621
      %v5623 = vsel %vm5281, %v4875, 0.0
      %v5624 = vadd.f32 %v5622, %v5623
      %v5625 = vsel %vm5281, %v4876, 0.0
      %v5626 = vadd.f32 %v5624, %v5625
      %v5627 = vrot.slane %v5626, 4
      %v5628 = vadd.f32 %v5626, %v5627
      %v5629 = vrot.slane %v5628, 2
      %v5630 = vadd.f32 %v5628, %v5629
      %v5631 = vrot.slane %v5630, 1
      %v5632 = vadd.f32 %v5630, %v5631
      %v5633 = vsel %vm5281, %v4877, 0.0
      %v5634 = vsel %vm5281, %v4878, 0.0
      %v5635 = vadd.f32 %v5633, %v5634
      %v5636 = vsel %vm5281, %v4879, 0.0
      %v5637 = vadd.f32 %v5635, %v5636
      %v5638 = vsel %vm5281, %v4880, 0.0
      %v5639 = vadd.f32 %v5637, %v5638
      %v5640 = vrot.slane %v5639, 4
      %v5641 = vadd.f32 %v5639, %v5640
      %v5642 = vrot.slane %v5641, 2
      %v5643 = vadd.f32 %v5641, %v5642
      %v5644 = vrot.slane %v5643, 1
      %v5645 = vadd.f32 %v5643, %v5644
      %v5646 = vsel %vm5281, %v4881, 0.0
      %v5647 = vsel %vm5281, %v4882, 0.0
      %v5648 = vadd.f32 %v5646, %v5647
      %v5649 = vsel %vm5281, %v4883, 0.0
      %v5650 = vadd.f32 %v5648, %v5649
      %v5651 = vsel %vm5281, %v4884, 0.0
      %v5652 = vadd.f32 %v5650, %v5651
      %v5653 = vrot.slane %v5652, 4
      %v5654 = vadd.f32 %v5652, %v5653
      %v5655 = vrot.slane %v5654, 2
      %v5656 = vadd.f32 %v5654, %v5655
      %v5657 = vrot.slane %v5656, 1
      %v5658 = vadd.f32 %v5656, %v5657
      %v5659 = vsel %vm5281, %v4885, 0.0
      %v5660 = vsel %vm5281, %v4886, 0.0
      %v5661 = vadd.f32 %v5659, %v5660
      %v5662 = vsel %vm5281, %v4887, 0.0
      %v5663 = vadd.f32 %v5661, %v5662
      %v5664 = vsel %vm5281, %v4888, 0.0
      %v5665 = vadd.f32 %v5663, %v5664
      %v5666 = vrot.slane %v5665, 4
      %v5667 = vadd.f32 %v5665, %v5666
      %v5668 = vrot.slane %v5667, 2
      %v5669 = vadd.f32 %v5667, %v5668
      %v5670 = vrot.slane %v5669, 1
      %v5671 = vadd.f32 %v5669, %v5670
      %v5672 = vsel %vm5281, %v4889, 0.0
      %v5673 = vsel %vm5281, %v4890, 0.0
      %v5674 = vadd.f32 %v5672, %v5673
      %v5675 = vsel %vm5281, %v4891, 0.0
      %v5676 = vadd.f32 %v5674, %v5675
      %v5677 = vsel %vm5281, %v4892, 0.0
      %v5678 = vadd.f32 %v5676, %v5677
      %v5679 = vrot.slane %v5678, 4
      %v5680 = vadd.f32 %v5678, %v5679
      %v5681 = vrot.slane %v5680, 2
      %v5682 = vadd.f32 %v5680, %v5681
      %v5683 = vrot.slane %v5682, 1
      %v5684 = vadd.f32 %v5682, %v5683
      %v5685 = vsel %vm5281, %v4893, 0.0
      %v5686 = vsel %vm5281, %v4894, 0.0
      %v5687 = vadd.f32 %v5685, %v5686
      %v5688 = vsel %vm5281, %v4895, 0.0
      %v5689 = vadd.f32 %v5687, %v5688
      %v5690 = vsel %vm5281, %v4896, 0.0
      %v5691 = vadd.f32 %v5689, %v5690
      %v5692 = vrot.slane %v5691, 4
      %v5693 = vadd.f32 %v5691, %v5692
      %v5694 = vrot.slane %v5693, 2
      %v5695 = vadd.f32 %v5693, %v5694
      %v5696 = vrot.slane %v5695, 1
      %v5697 = vadd.f32 %v5695, %v5696
      %v5698 = vsel %vm5281, %v4897, 0.0
      %v5699 = vsel %vm5281, %v4898, 0.0
      %v5700 = vadd.f32 %v5698, %v5699
      %v5701 = vsel %vm5281, %v4899, 0.0
      %v5702 = vadd.f32 %v5700, %v5701
      %v5703 = vsel %vm5281, %v4900, 0.0
      %v5704 = vadd.f32 %v5702, %v5703
      %v5705 = vrot.slane %v5704, 4
      %v5706 = vadd.f32 %v5704, %v5705
      %v5707 = vrot.slane %v5706, 2
      %v5708 = vadd.f32 %v5706, %v5707
      %v5709 = vrot.slane %v5708, 1
      %v5710 = vadd.f32 %v5708, %v5709
      %v5711 = vsel %vm5281, %v4901, 0.0
      %v5712 = vsel %vm5281, %v4902, 0.0
      %v5713 = vadd.f32 %v5711, %v5712
      %v5714 = vsel %vm5281, %v4903, 0.0
      %v5715 = vadd.f32 %v5713, %v5714
      %v5716 = vsel %vm5281, %v4904, 0.0
      %v5717 = vadd.f32 %v5715, %v5716
      %v5718 = vrot.slane %v5717, 4
      %v5719 = vadd.f32 %v5717, %v5718
      %v5720 = vrot.slane %v5719, 2
      %v5721 = vadd.f32 %v5719, %v5720
      %v5722 = vrot.slane %v5721, 1
      %v5723 = vadd.f32 %v5721, %v5722
      %v5724 = vsel %vm5281, %v4905, 0.0
      %v5725 = vsel %vm5281, %v4906, 0.0
      %v5726 = vadd.f32 %v5724, %v5725
      %v5727 = vsel %vm5281, %v4907, 0.0
      %v5728 = vadd.f32 %v5726, %v5727
      %v5729 = vsel %vm5281, %v4908, 0.0
      %v5730 = vadd.f32 %v5728, %v5729
      %v5731 = vrot.slane %v5730, 4
      %v5732 = vadd.f32 %v5730, %v5731
      %v5733 = vrot.slane %v5732, 2
      %v5734 = vadd.f32 %v5732, %v5733
      %v5735 = vrot.slane %v5734, 1
      %v5736 = vadd.f32 %v5734, %v5735
      %v5737 = vsel %vm5281, %v4909, 0.0
      %v5738 = vsel %vm5281, %v4910, 0.0
      %v5739 = vadd.f32 %v5737, %v5738
      %v5740 = vsel %vm5281, %v4911, 0.0
      %v5741 = vadd.f32 %v5739, %v5740
      %v5742 = vsel %vm5281, %v4912, 0.0
      %v5743 = vadd.f32 %v5741, %v5742
      %v5744 = vrot.slane %v5743, 4
      %v5745 = vadd.f32 %v5743, %v5744
      %v5746 = vrot.slane %v5745, 2
      %v5747 = vadd.f32 %v5745, %v5746
      %v5748 = vrot.slane %v5747, 1
      %v5749 = vadd.f32 %v5747, %v5748
      %v5750 = vsel %vm5281, %v4913, 0.0
      %v5751 = vsel %vm5281, %v4914, 0.0
      %v5752 = vadd.f32 %v5750, %v5751
      %v5753 = vsel %vm5281, %v4915, 0.0
      %v5754 = vadd.f32 %v5752, %v5753
      %v5755 = vsel %vm5281, %v4916, 0.0
      %v5756 = vadd.f32 %v5754, %v5755
      %v5757 = vrot.slane %v5756, 4
      %v5758 = vadd.f32 %v5756, %v5757
      %v5759 = vrot.slane %v5758, 2
      %v5760 = vadd.f32 %v5758, %v5759
      %v5761 = vrot.slane %v5760, 1
      %v5762 = vadd.f32 %v5760, %v5761
      %v5763 = vsel %vm5281, %v4917, 0.0
      %v5764 = vsel %vm5281, %v4918, 0.0
      %v5765 = vadd.f32 %v5763, %v5764
      %v5766 = vsel %vm5281, %v4919, 0.0
      %v5767 = vadd.f32 %v5765, %v5766
      %v5768 = vsel %vm5281, %v4920, 0.0
      %v5769 = vadd.f32 %v5767, %v5768
      %v5770 = vrot.slane %v5769, 4
      %v5771 = vadd.f32 %v5769, %v5770
      %v5772 = vrot.slane %v5771, 2
      %v5773 = vadd.f32 %v5771, %v5772
      %v5774 = vrot.slane %v5773, 1
      %v5775 = vadd.f32 %v5773, %v5774
      %v5776 = vsel %vm5281, %v4921, 0.0
      %v5777 = vsel %vm5281, %v4922, 0.0
      %v5778 = vadd.f32 %v5776, %v5777
      %v5779 = vsel %vm5281, %v4923, 0.0
      %v5780 = vadd.f32 %v5778, %v5779
      %v5781 = vsel %vm5281, %v4924, 0.0
      %v5782 = vadd.f32 %v5780, %v5781
      %v5783 = vrot.slane %v5782, 4
      %v5784 = vadd.f32 %v5782, %v5783
      %v5785 = vrot.slane %v5784, 2
      %v5786 = vadd.f32 %v5784, %v5785
      %v5787 = vrot.slane %v5786, 1
      %v5788 = vadd.f32 %v5786, %v5787
      %v5789 = vsel %vm5281, %v4925, 0.0
      %v5790 = vsel %vm5281, %v4926, 0.0
      %v5791 = vadd.f32 %v5789, %v5790
      %v5792 = vsel %vm5281, %v4927, 0.0
      %v5793 = vadd.f32 %v5791, %v5792
      %v5794 = vsel %vm5281, %v4928, 0.0
      %v5795 = vadd.f32 %v5793, %v5794
      %v5796 = vrot.slane %v5795, 4
      %v5797 = vadd.f32 %v5795, %v5796
      %v5798 = vrot.slane %v5797, 2
      %v5799 = vadd.f32 %v5797, %v5798
      %v5800 = vrot.slane %v5799, 1
      %v5801 = vadd.f32 %v5799, %v5800
      %v5802 = vsel %vm5281, %v4929, 0.0
      %v5803 = vsel %vm5281, %v4930, 0.0
      %v5804 = vadd.f32 %v5802, %v5803
      %v5805 = vsel %vm5281, %v4931, 0.0
      %v5806 = vadd.f32 %v5804, %v5805
      %v5807 = vsel %vm5281, %v4932, 0.0
      %v5808 = vadd.f32 %v5806, %v5807
      %v5809 = vrot.slane %v5808, 4
      %v5810 = vadd.f32 %v5808, %v5809
      %v5811 = vrot.slane %v5810, 2
      %v5812 = vadd.f32 %v5810, %v5811
      %v5813 = vrot.slane %v5812, 1
      %v5814 = vadd.f32 %v5812, %v5813
      %v5815 = vsel %vm5281, %v4933, 0.0
      %v5816 = vsel %vm5281, %v4934, 0.0
      %v5817 = vadd.f32 %v5815, %v5816
      %v5818 = vsel %vm5281, %v4935, 0.0
      %v5819 = vadd.f32 %v5817, %v5818
      %v5820 = vsel %vm5281, %v4936, 0.0
      %v5821 = vadd.f32 %v5819, %v5820
      %v5822 = vrot.slane %v5821, 4
      %v5823 = vadd.f32 %v5821, %v5822
      %v5824 = vrot.slane %v5823, 2
      %v5825 = vadd.f32 %v5823, %v5824
      %v5826 = vrot.slane %v5825, 1
      %v5827 = vadd.f32 %v5825, %v5826
      %v5828 = vsel %vm5281, %v4937, 0.0
      %v5829 = vsel %vm5281, %v4938, 0.0
      %v5830 = vadd.f32 %v5828, %v5829
      %v5831 = vsel %vm5281, %v4939, 0.0
      %v5832 = vadd.f32 %v5830, %v5831
      %v5833 = vsel %vm5281, %v4940, 0.0
      %v5834 = vadd.f32 %v5832, %v5833
      %v5835 = vrot.slane %v5834, 4
      %v5836 = vadd.f32 %v5834, %v5835
      %v5837 = vrot.slane %v5836, 2
      %v5838 = vadd.f32 %v5836, %v5837
      %v5839 = vrot.slane %v5838, 1
      %v5840 = vadd.f32 %v5838, %v5839
      %v5841 = vsel %vm5281, %v4941, 0.0
      %v5842 = vsel %vm5281, %v4942, 0.0
      %v5843 = vadd.f32 %v5841, %v5842
      %v5844 = vsel %vm5281, %v4943, 0.0
      %v5845 = vadd.f32 %v5843, %v5844
      %v5846 = vsel %vm5281, %v4944, 0.0
      %v5847 = vadd.f32 %v5845, %v5846
      %v5848 = vrot.slane %v5847, 4
      %v5849 = vadd.f32 %v5847, %v5848
      %v5850 = vrot.slane %v5849, 2
      %v5851 = vadd.f32 %v5849, %v5850
      %v5852 = vrot.slane %v5851, 1
      %v5853 = vadd.f32 %v5851, %v5852
      %v5854 = vsel %vm5281, %v4945, 0.0
      %v5855 = vsel %vm5281, %v4946, 0.0
      %v5856 = vadd.f32 %v5854, %v5855
      %v5857 = vsel %vm5281, %v4947, 0.0
      %v5858 = vadd.f32 %v5856, %v5857
      %v5859 = vsel %vm5281, %v4948, 0.0
      %v5860 = vadd.f32 %v5858, %v5859
      %v5861 = vrot.slane %v5860, 4
      %v5862 = vadd.f32 %v5860, %v5861
      %v5863 = vrot.slane %v5862, 2
      %v5864 = vadd.f32 %v5862, %v5863
      %v5865 = vrot.slane %v5864, 1
      %v5866 = vadd.f32 %v5864, %v5865
      %v5867 = vsel %vm5281, %v4949, 0.0
      %v5868 = vsel %vm5281, %v4950, 0.0
      %v5869 = vadd.f32 %v5867, %v5868
      %v5870 = vsel %vm5281, %v4951, 0.0
      %v5871 = vadd.f32 %v5869, %v5870
      %v5872 = vsel %vm5281, %v4952, 0.0
      %v5873 = vadd.f32 %v5871, %v5872
      %v5874 = vrot.slane %v5873, 4
      %v5875 = vadd.f32 %v5873, %v5874
      %v5876 = vrot.slane %v5875, 2
      %v5877 = vadd.f32 %v5875, %v5876
      %v5878 = vrot.slane %v5877, 1
      %v5879 = vadd.f32 %v5877, %v5878
      %v5880 = vsel %vm5281, %v4953, 0.0
      %v5881 = vsel %vm5281, %v4954, 0.0
      %v5882 = vadd.f32 %v5880, %v5881
      %v5883 = vsel %vm5281, %v4955, 0.0
      %v5884 = vadd.f32 %v5882, %v5883
      %v5885 = vsel %vm5281, %v4956, 0.0
      %v5886 = vadd.f32 %v5884, %v5885
      %v5887 = vrot.slane %v5886, 4
      %v5888 = vadd.f32 %v5886, %v5887
      %v5889 = vrot.slane %v5888, 2
      %v5890 = vadd.f32 %v5888, %v5889
      %v5891 = vrot.slane %v5890, 1
      %v5892 = vadd.f32 %v5890, %v5891
      %v5893 = vsel %vm5281, %v4957, 0.0
      %v5894 = vsel %vm5281, %v4958, 0.0
      %v5895 = vadd.f32 %v5893, %v5894
      %v5896 = vsel %vm5281, %v4959, 0.0
      %v5897 = vadd.f32 %v5895, %v5896
      %v5898 = vsel %vm5281, %v4960, 0.0
      %v5899 = vadd.f32 %v5897, %v5898
      %v5900 = vrot.slane %v5899, 4
      %v5901 = vadd.f32 %v5899, %v5900
      %v5902 = vrot.slane %v5901, 2
      %v5903 = vadd.f32 %v5901, %v5902
      %v5904 = vrot.slane %v5903, 1
      %v5905 = vadd.f32 %v5903, %v5904
      %v5906 = vsel %vm5281, %v4961, 0.0
      %v5907 = vsel %vm5281, %v4962, 0.0
      %v5908 = vadd.f32 %v5906, %v5907
      %v5909 = vsel %vm5281, %v4963, 0.0
      %v5910 = vadd.f32 %v5908, %v5909
      %v5911 = vsel %vm5281, %v4964, 0.0
      %v5912 = vadd.f32 %v5910, %v5911
      %v5913 = vrot.slane %v5912, 4
      %v5914 = vadd.f32 %v5912, %v5913
      %v5915 = vrot.slane %v5914, 2
      %v5916 = vadd.f32 %v5914, %v5915
      %v5917 = vrot.slane %v5916, 1
      %v5918 = vadd.f32 %v5916, %v5917
      %v5919 = vsel %vm5281, %v4965, 0.0
      %v5920 = vsel %vm5281, %v4966, 0.0
      %v5921 = vadd.f32 %v5919, %v5920
      %v5922 = vsel %vm5281, %v4967, 0.0
      %v5923 = vadd.f32 %v5921, %v5922
      %v5924 = vsel %vm5281, %v4968, 0.0
      %v5925 = vadd.f32 %v5923, %v5924
      %v5926 = vrot.slane %v5925, 4
      %v5927 = vadd.f32 %v5925, %v5926
      %v5928 = vrot.slane %v5927, 2
      %v5929 = vadd.f32 %v5927, %v5928
      %v5930 = vrot.slane %v5929, 1
      %v5931 = vadd.f32 %v5929, %v5930
      %v5932 = vsel %vm5281, %v4969, 0.0
      %v5933 = vsel %vm5281, %v4970, 0.0
      %v5934 = vadd.f32 %v5932, %v5933
      %v5935 = vsel %vm5281, %v4971, 0.0
      %v5936 = vadd.f32 %v5934, %v5935
      %v5937 = vsel %vm5281, %v4972, 0.0
      %v5938 = vadd.f32 %v5936, %v5937
      %v5939 = vrot.slane %v5938, 4
      %v5940 = vadd.f32 %v5938, %v5939
      %v5941 = vrot.slane %v5940, 2
      %v5942 = vadd.f32 %v5940, %v5941
      %v5943 = vrot.slane %v5942, 1
      %v5944 = vadd.f32 %v5942, %v5943
      %v5945 = vsel %vm5281, %v4973, 0.0
      %v5946 = vsel %vm5281, %v4974, 0.0
      %v5947 = vadd.f32 %v5945, %v5946
      %v5948 = vsel %vm5281, %v4975, 0.0
      %v5949 = vadd.f32 %v5947, %v5948
      %v5950 = vsel %vm5281, %v4976, 0.0
      %v5951 = vadd.f32 %v5949, %v5950
      %v5952 = vrot.slane %v5951, 4
      %v5953 = vadd.f32 %v5951, %v5952
      %v5954 = vrot.slane %v5953, 2
      %v5955 = vadd.f32 %v5953, %v5954
      %v5956 = vrot.slane %v5955, 1
      %v5957 = vadd.f32 %v5955, %v5956
      %v5958 = vsel %vm5281, %v4977, 0.0
      %v5959 = vsel %vm5281, %v4978, 0.0
      %v5960 = vadd.f32 %v5958, %v5959
      %v5961 = vsel %vm5281, %v4979, 0.0
      %v5962 = vadd.f32 %v5960, %v5961
      %v5963 = vsel %vm5281, %v4980, 0.0
      %v5964 = vadd.f32 %v5962, %v5963
      %v5965 = vrot.slane %v5964, 4
      %v5966 = vadd.f32 %v5964, %v5965
      %v5967 = vrot.slane %v5966, 2
      %v5968 = vadd.f32 %v5966, %v5967
      %v5969 = vrot.slane %v5968, 1
      %v5970 = vadd.f32 %v5968, %v5969
      %v5971 = vsel %vm5281, %v4981, 0.0
      %v5972 = vsel %vm5281, %v4982, 0.0
      %v5973 = vadd.f32 %v5971, %v5972
      %v5974 = vsel %vm5281, %v4983, 0.0
      %v5975 = vadd.f32 %v5973, %v5974
      %v5976 = vsel %vm5281, %v4984, 0.0
      %v5977 = vadd.f32 %v5975, %v5976
      %v5978 = vrot.slane %v5977, 4
      %v5979 = vadd.f32 %v5977, %v5978
      %v5980 = vrot.slane %v5979, 2
      %v5981 = vadd.f32 %v5979, %v5980
      %v5982 = vrot.slane %v5981, 1
      %v5983 = vadd.f32 %v5981, %v5982
      %v5984 = vsel %vm5281, %v4985, 0.0
      %v5985 = vsel %vm5281, %v4986, 0.0
      %v5986 = vadd.f32 %v5984, %v5985
      %v5987 = vsel %vm5281, %v4987, 0.0
      %v5988 = vadd.f32 %v5986, %v5987
      %v5989 = vsel %vm5281, %v4988, 0.0
      %v5990 = vadd.f32 %v5988, %v5989
      %v5991 = vrot.slane %v5990, 4
      %v5992 = vadd.f32 %v5990, %v5991
      %v5993 = vrot.slane %v5992, 2
      %v5994 = vadd.f32 %v5992, %v5993
      %v5995 = vrot.slane %v5994, 1
      %v5996 = vadd.f32 %v5994, %v5995
      %v5997 = vsel %vm5281, %v4989, 0.0
      %v5998 = vsel %vm5281, %v4990, 0.0
      %v5999 = vadd.f32 %v5997, %v5998
      %v6000 = vsel %vm5281, %v4991, 0.0
      %v6001 = vadd.f32 %v5999, %v6000
      %v6002 = vsel %vm5281, %v4992, 0.0
      %v6003 = vadd.f32 %v6001, %v6002
      %v6004 = vrot.slane %v6003, 4
      %v6005 = vadd.f32 %v6003, %v6004
      %v6006 = vrot.slane %v6005, 2
      %v6007 = vadd.f32 %v6005, %v6006
      %v6008 = vrot.slane %v6007, 1
      %v6009 = vadd.f32 %v6007, %v6008
      %v6010 = vsel %vm5281, %v4993, 0.0
      %v6011 = vsel %vm5281, %v4994, 0.0
      %v6012 = vadd.f32 %v6010, %v6011
      %v6013 = vsel %vm5281, %v4995, 0.0
      %v6014 = vadd.f32 %v6012, %v6013
      %v6015 = vsel %vm5281, %v4996, 0.0
      %v6016 = vadd.f32 %v6014, %v6015
      %v6017 = vrot.slane %v6016, 4
      %v6018 = vadd.f32 %v6016, %v6017
      %v6019 = vrot.slane %v6018, 2
      %v6020 = vadd.f32 %v6018, %v6019
      %v6021 = vrot.slane %v6020, 1
      %v6022 = vadd.f32 %v6020, %v6021
      %v6023 = vsel %vm5281, %v4997, 0.0
      %v6024 = vsel %vm5281, %v4998, 0.0
      %v6025 = vadd.f32 %v6023, %v6024
      %v6026 = vsel %vm5281, %v4999, 0.0
      %v6027 = vadd.f32 %v6025, %v6026
      %v6028 = vsel %vm5281, %v5000, 0.0
      %v6029 = vadd.f32 %v6027, %v6028
      %v6030 = vrot.slane %v6029, 4
      %v6031 = vadd.f32 %v6029, %v6030
      %v6032 = vrot.slane %v6031, 2
      %v6033 = vadd.f32 %v6031, %v6032
      %v6034 = vrot.slane %v6033, 1
      %v6035 = vadd.f32 %v6033, %v6034
      %v6036 = vsel %vm5281, %v5001, 0.0
      %v6037 = vsel %vm5281, %v5002, 0.0
      %v6038 = vadd.f32 %v6036, %v6037
      %v6039 = vsel %vm5281, %v5003, 0.0
      %v6040 = vadd.f32 %v6038, %v6039
      %v6041 = vsel %vm5281, %v5004, 0.0
      %v6042 = vadd.f32 %v6040, %v6041
      %v6043 = vrot.slane %v6042, 4
      %v6044 = vadd.f32 %v6042, %v6043
      %v6045 = vrot.slane %v6044, 2
      %v6046 = vadd.f32 %v6044, %v6045
      %v6047 = vrot.slane %v6046, 1
      %v6048 = vadd.f32 %v6046, %v6047
      %v6049 = vsel %vm5281, %v5005, 0.0
      %v6050 = vsel %vm5281, %v5006, 0.0
      %v6051 = vadd.f32 %v6049, %v6050
      %v6052 = vsel %vm5281, %v5007, 0.0
      %v6053 = vadd.f32 %v6051, %v6052
      %v6054 = vsel %vm5281, %v5008, 0.0
      %v6055 = vadd.f32 %v6053, %v6054
      %v6056 = vrot.slane %v6055, 4
      %v6057 = vadd.f32 %v6055, %v6056
      %v6058 = vrot.slane %v6057, 2
      %v6059 = vadd.f32 %v6057, %v6058
      %v6060 = vrot.slane %v6059, 1
      %v6061 = vadd.f32 %v6059, %v6060
      %v6062 = vsel %vm5281, %v5009, 0.0
      %v6063 = vsel %vm5281, %v5010, 0.0
      %v6064 = vadd.f32 %v6062, %v6063
      %v6065 = vsel %vm5281, %v5011, 0.0
      %v6066 = vadd.f32 %v6064, %v6065
      %v6067 = vsel %vm5281, %v5012, 0.0
      %v6068 = vadd.f32 %v6066, %v6067
      %v6069 = vrot.slane %v6068, 4
      %v6070 = vadd.f32 %v6068, %v6069
      %v6071 = vrot.slane %v6070, 2
      %v6072 = vadd.f32 %v6070, %v6071
      %v6073 = vrot.slane %v6072, 1
      %v6074 = vadd.f32 %v6072, %v6073
      %v6075 = vsel %vm5281, %v5013, 0.0
      %v6076 = vsel %vm5281, %v5014, 0.0
      %v6077 = vadd.f32 %v6075, %v6076
      %v6078 = vsel %vm5281, %v5015, 0.0
      %v6079 = vadd.f32 %v6077, %v6078
      %v6080 = vsel %vm5281, %v5016, 0.0
      %v6081 = vadd.f32 %v6079, %v6080
      %v6082 = vrot.slane %v6081, 4
      %v6083 = vadd.f32 %v6081, %v6082
      %v6084 = vrot.slane %v6083, 2
      %v6085 = vadd.f32 %v6083, %v6084
      %v6086 = vrot.slane %v6085, 1
      %v6087 = vadd.f32 %v6085, %v6086
      %v6088 = vsel %vm5281, %v5017, 0.0
      %v6089 = vsel %vm5281, %v5018, 0.0
      %v6090 = vadd.f32 %v6088, %v6089
      %v6091 = vsel %vm5281, %v5019, 0.0
      %v6092 = vadd.f32 %v6090, %v6091
      %v6093 = vsel %vm5281, %v5020, 0.0
      %v6094 = vadd.f32 %v6092, %v6093
      %v6095 = vrot.slane %v6094, 4
      %v6096 = vadd.f32 %v6094, %v6095
      %v6097 = vrot.slane %v6096, 2
      %v6098 = vadd.f32 %v6096, %v6097
      %v6099 = vrot.slane %v6098, 1
      %v6100 = vadd.f32 %v6098, %v6099
      %v6101 = vsel %vm5281, %v5021, 0.0
      %v6102 = vsel %vm5281, %v5022, 0.0
      %v6103 = vadd.f32 %v6101, %v6102
      %v6104 = vsel %vm5281, %v5023, 0.0
      %v6105 = vadd.f32 %v6103, %v6104
      %v6106 = vsel %vm5281, %v5024, 0.0
      %v6107 = vadd.f32 %v6105, %v6106
      %v6108 = vrot.slane %v6107, 4
      %v6109 = vadd.f32 %v6107, %v6108
      %v6110 = vrot.slane %v6109, 2
      %v6111 = vadd.f32 %v6109, %v6110
      %v6112 = vrot.slane %v6111, 1
      %v6113 = vadd.f32 %v6111, %v6112
      %v6114 = vsel %vm5281, %v5025, 0.0
      %v6115 = vsel %vm5281, %v5026, 0.0
      %v6116 = vadd.f32 %v6114, %v6115
      %v6117 = vsel %vm5281, %v5027, 0.0
      %v6118 = vadd.f32 %v6116, %v6117
      %v6119 = vsel %vm5281, %v5028, 0.0
      %v6120 = vadd.f32 %v6118, %v6119
      %v6121 = vrot.slane %v6120, 4
      %v6122 = vadd.f32 %v6120, %v6121
      %v6123 = vrot.slane %v6122, 2
      %v6124 = vadd.f32 %v6122, %v6123
      %v6125 = vrot.slane %v6124, 1
      %v6126 = vadd.f32 %v6124, %v6125
      %v6127 = vsel %vm5281, %v5029, 0.0
      %v6128 = vsel %vm5281, %v5030, 0.0
      %v6129 = vadd.f32 %v6127, %v6128
      %v6130 = vsel %vm5281, %v5031, 0.0
      %v6131 = vadd.f32 %v6129, %v6130
      %v6132 = vsel %vm5281, %v5032, 0.0
      %v6133 = vadd.f32 %v6131, %v6132
      %v6134 = vrot.slane %v6133, 4
      %v6135 = vadd.f32 %v6133, %v6134
      %v6136 = vrot.slane %v6135, 2
      %v6137 = vadd.f32 %v6135, %v6136
      %v6138 = vrot.slane %v6137, 1
      %v6139 = vadd.f32 %v6137, %v6138
      %v6140 = vsel %vm5281, %v5033, 0.0
      %v6141 = vsel %vm5281, %v5034, 0.0
      %v6142 = vadd.f32 %v6140, %v6141
      %v6143 = vsel %vm5281, %v5035, 0.0
      %v6144 = vadd.f32 %v6142, %v6143
      %v6145 = vsel %vm5281, %v5036, 0.0
      %v6146 = vadd.f32 %v6144, %v6145
      %v6147 = vrot.slane %v6146, 4
      %v6148 = vadd.f32 %v6146, %v6147
      %v6149 = vrot.slane %v6148, 2
      %v6150 = vadd.f32 %v6148, %v6149
      %v6151 = vrot.slane %v6150, 1
      %v6152 = vadd.f32 %v6150, %v6151
      %v6153 = vsel %vm5281, %v5037, 0.0
      %v6154 = vsel %vm5281, %v5038, 0.0
      %v6155 = vadd.f32 %v6153, %v6154
      %v6156 = vsel %vm5281, %v5039, 0.0
      %v6157 = vadd.f32 %v6155, %v6156
      %v6158 = vsel %vm5281, %v5040, 0.0
      %v6159 = vadd.f32 %v6157, %v6158
      %v6160 = vrot.slane %v6159, 4
      %v6161 = vadd.f32 %v6159, %v6160
      %v6162 = vrot.slane %v6161, 2
      %v6163 = vadd.f32 %v6161, %v6162
      %v6164 = vrot.slane %v6163, 1
      %v6165 = vadd.f32 %v6163, %v6164
      %v6166 = vsel %vm5281, %v5041, 0.0
      %v6167 = vsel %vm5281, %v5042, 0.0
      %v6168 = vadd.f32 %v6166, %v6167
      %v6169 = vsel %vm5281, %v5043, 0.0
      %v6170 = vadd.f32 %v6168, %v6169
      %v6171 = vsel %vm5281, %v5044, 0.0
      %v6172 = vadd.f32 %v6170, %v6171
      %v6173 = vrot.slane %v6172, 4
      %v6174 = vadd.f32 %v6172, %v6173
      %v6175 = vrot.slane %v6174, 2
      %v6176 = vadd.f32 %v6174, %v6175
      %v6177 = vrot.slane %v6176, 1
      %v6178 = vadd.f32 %v6176, %v6177
      %v6179 = vsel %vm5281, %v5045, 0.0
      %v6180 = vsel %vm5281, %v5046, 0.0
      %v6181 = vadd.f32 %v6179, %v6180
      %v6182 = vsel %vm5281, %v5047, 0.0
      %v6183 = vadd.f32 %v6181, %v6182
      %v6184 = vsel %vm5281, %v5048, 0.0
      %v6185 = vadd.f32 %v6183, %v6184
      %v6186 = vrot.slane %v6185, 4
      %v6187 = vadd.f32 %v6185, %v6186
      %v6188 = vrot.slane %v6187, 2
      %v6189 = vadd.f32 %v6187, %v6188
      %v6190 = vrot.slane %v6189, 1
      %v6191 = vadd.f32 %v6189, %v6190
      %v6192 = vsel %vm5281, %v5049, 0.0
      %v6193 = vsel %vm5281, %v5050, 0.0
      %v6194 = vadd.f32 %v6192, %v6193
      %v6195 = vsel %vm5281, %v5051, 0.0
      %v6196 = vadd.f32 %v6194, %v6195
      %v6197 = vsel %vm5281, %v5052, 0.0
      %v6198 = vadd.f32 %v6196, %v6197
      %v6199 = vrot.slane %v6198, 4
      %v6200 = vadd.f32 %v6198, %v6199
      %v6201 = vrot.slane %v6200, 2
      %v6202 = vadd.f32 %v6200, %v6201
      %v6203 = vrot.slane %v6202, 1
      %v6204 = vadd.f32 %v6202, %v6203
      %v6205 = vsel %vm5281, %v5053, 0.0
      %v6206 = vsel %vm5281, %v5054, 0.0
      %v6207 = vadd.f32 %v6205, %v6206
      %v6208 = vsel %vm5281, %v5055, 0.0
      %v6209 = vadd.f32 %v6207, %v6208
      %v6210 = vsel %vm5281, %v5056, 0.0
      %v6211 = vadd.f32 %v6209, %v6210
      %v6212 = vrot.slane %v6211, 4
      %v6213 = vadd.f32 %v6211, %v6212
      %v6214 = vrot.slane %v6213, 2
      %v6215 = vadd.f32 %v6213, %v6214
      %v6216 = vrot.slane %v6215, 1
      %v6217 = vadd.f32 %v6215, %v6216
      %v6218 = vsel %vm5281, %v5057, 0.0
      %v6219 = vsel %vm5281, %v5058, 0.0
      %v6220 = vadd.f32 %v6218, %v6219
      %v6221 = vsel %vm5281, %v5059, 0.0
      %v6222 = vadd.f32 %v6220, %v6221
      %v6223 = vsel %vm5281, %v5060, 0.0
      %v6224 = vadd.f32 %v6222, %v6223
      %v6225 = vrot.slane %v6224, 4
      %v6226 = vadd.f32 %v6224, %v6225
      %v6227 = vrot.slane %v6226, 2
      %v6228 = vadd.f32 %v6226, %v6227
      %v6229 = vrot.slane %v6228, 1
      %v6230 = vadd.f32 %v6228, %v6229
      %v6231 = vsel %vm5281, %v5061, 0.0
      %v6232 = vsel %vm5281, %v5062, 0.0
      %v6233 = vadd.f32 %v6231, %v6232
      %v6234 = vsel %vm5281, %v5063, 0.0
      %v6235 = vadd.f32 %v6233, %v6234
      %v6236 = vsel %vm5281, %v5064, 0.0
      %v6237 = vadd.f32 %v6235, %v6236
      %v6238 = vrot.slane %v6237, 4
      %v6239 = vadd.f32 %v6237, %v6238
      %v6240 = vrot.slane %v6239, 2
      %v6241 = vadd.f32 %v6239, %v6240
      %v6242 = vrot.slane %v6241, 1
      %v6243 = vadd.f32 %v6241, %v6242
      %v6244 = vsel %vm5281, %v5065, 0.0
      %v6245 = vsel %vm5281, %v5066, 0.0
      %v6246 = vadd.f32 %v6244, %v6245
      %v6247 = vsel %vm5281, %v5067, 0.0
      %v6248 = vadd.f32 %v6246, %v6247
      %v6249 = vsel %vm5281, %v5068, 0.0
      %v6250 = vadd.f32 %v6248, %v6249
      %v6251 = vrot.slane %v6250, 4
      %v6252 = vadd.f32 %v6250, %v6251
      %v6253 = vrot.slane %v6252, 2
      %v6254 = vadd.f32 %v6252, %v6253
      %v6255 = vrot.slane %v6254, 1
      %v6256 = vadd.f32 %v6254, %v6255
      %v6257 = vsel %vm5281, %v5069, 0.0
      %v6258 = vsel %vm5281, %v5070, 0.0
      %v6259 = vadd.f32 %v6257, %v6258
      %v6260 = vsel %vm5281, %v5071, 0.0
      %v6261 = vadd.f32 %v6259, %v6260
      %v6262 = vsel %vm5281, %v5072, 0.0
      %v6263 = vadd.f32 %v6261, %v6262
      %v6264 = vrot.slane %v6263, 4
      %v6265 = vadd.f32 %v6263, %v6264
      %v6266 = vrot.slane %v6265, 2
      %v6267 = vadd.f32 %v6265, %v6266
      %v6268 = vrot.slane %v6267, 1
      %v6269 = vadd.f32 %v6267, %v6268
      %v6270 = vsel %vm5281, %v5073, 0.0
      %v6271 = vsel %vm5281, %v5074, 0.0
      %v6272 = vadd.f32 %v6270, %v6271
      %v6273 = vsel %vm5281, %v5075, 0.0
      %v6274 = vadd.f32 %v6272, %v6273
      %v6275 = vsel %vm5281, %v5076, 0.0
      %v6276 = vadd.f32 %v6274, %v6275
      %v6277 = vrot.slane %v6276, 4
      %v6278 = vadd.f32 %v6276, %v6277
      %v6279 = vrot.slane %v6278, 2
      %v6280 = vadd.f32 %v6278, %v6279
      %v6281 = vrot.slane %v6280, 1
      %v6282 = vadd.f32 %v6280, %v6281
      %v6283 = vsel %vm5281, %v5077, 0.0
      %v6284 = vsel %vm5281, %v5078, 0.0
      %v6285 = vadd.f32 %v6283, %v6284
      %v6286 = vsel %vm5281, %v5079, 0.0
      %v6287 = vadd.f32 %v6285, %v6286
      %v6288 = vsel %vm5281, %v5080, 0.0
      %v6289 = vadd.f32 %v6287, %v6288
      %v6290 = vrot.slane %v6289, 4
      %v6291 = vadd.f32 %v6289, %v6290
      %v6292 = vrot.slane %v6291, 2
      %v6293 = vadd.f32 %v6291, %v6292
      %v6294 = vrot.slane %v6293, 1
      %v6295 = vadd.f32 %v6293, %v6294
      %v6296 = vsel %vm5281, %v5081, 0.0
      %v6297 = vsel %vm5281, %v5082, 0.0
      %v6298 = vadd.f32 %v6296, %v6297
      %v6299 = vsel %vm5281, %v5083, 0.0
      %v6300 = vadd.f32 %v6298, %v6299
      %v6301 = vsel %vm5281, %v5084, 0.0
      %v6302 = vadd.f32 %v6300, %v6301
      %v6303 = vrot.slane %v6302, 4
      %v6304 = vadd.f32 %v6302, %v6303
      %v6305 = vrot.slane %v6304, 2
      %v6306 = vadd.f32 %v6304, %v6305
      %v6307 = vrot.slane %v6306, 1
      %v6308 = vadd.f32 %v6306, %v6307
      %v6309 = vsel %vm5281, %v5085, 0.0
      %v6310 = vsel %vm5281, %v5086, 0.0
      %v6311 = vadd.f32 %v6309, %v6310
      %v6312 = vsel %vm5281, %v5087, 0.0
      %v6313 = vadd.f32 %v6311, %v6312
      %v6314 = vsel %vm5281, %v5088, 0.0
      %v6315 = vadd.f32 %v6313, %v6314
      %v6316 = vrot.slane %v6315, 4
      %v6317 = vadd.f32 %v6315, %v6316
      %v6318 = vrot.slane %v6317, 2
      %v6319 = vadd.f32 %v6317, %v6318
      %v6320 = vrot.slane %v6319, 1
      %v6321 = vadd.f32 %v6319, %v6320
      %v6322 = vsel %vm5281, %v5089, 0.0
      %v6323 = vsel %vm5281, %v5090, 0.0
      %v6324 = vadd.f32 %v6322, %v6323
      %v6325 = vsel %vm5281, %v5091, 0.0
      %v6326 = vadd.f32 %v6324, %v6325
      %v6327 = vsel %vm5281, %v5092, 0.0
      %v6328 = vadd.f32 %v6326, %v6327
      %v6329 = vrot.slane %v6328, 4
      %v6330 = vadd.f32 %v6328, %v6329
      %v6331 = vrot.slane %v6330, 2
      %v6332 = vadd.f32 %v6330, %v6331
      %v6333 = vrot.slane %v6332, 1
      %v6334 = vadd.f32 %v6332, %v6333
      %v6335 = vsel %vm5281, %v5093, 0.0
      %v6336 = vsel %vm5281, %v5094, 0.0
      %v6337 = vadd.f32 %v6335, %v6336
      %v6338 = vsel %vm5281, %v5095, 0.0
      %v6339 = vadd.f32 %v6337, %v6338
      %v6340 = vsel %vm5281, %v5096, 0.0
      %v6341 = vadd.f32 %v6339, %v6340
      %v6342 = vrot.slane %v6341, 4
      %v6343 = vadd.f32 %v6341, %v6342
      %v6344 = vrot.slane %v6343, 2
      %v6345 = vadd.f32 %v6343, %v6344
      %v6346 = vrot.slane %v6345, 1
      %v6347 = vadd.f32 %v6345, %v6346
      %v6348 = vsel %vm5281, %v5097, 0.0
      %v6349 = vsel %vm5281, %v5098, 0.0
      %v6350 = vadd.f32 %v6348, %v6349
      %v6351 = vsel %vm5281, %v5099, 0.0
      %v6352 = vadd.f32 %v6350, %v6351
      %v6353 = vsel %vm5281, %v5100, 0.0
      %v6354 = vadd.f32 %v6352, %v6353
      %v6355 = vrot.slane %v6354, 4
      %v6356 = vadd.f32 %v6354, %v6355
      %v6357 = vrot.slane %v6356, 2
      %v6358 = vadd.f32 %v6356, %v6357
      %v6359 = vrot.slane %v6358, 1
      %v6360 = vadd.f32 %v6358, %v6359
      %v6361 = vsel %vm5281, %v5101, 0.0
      %v6362 = vsel %vm5281, %v5102, 0.0
      %v6363 = vadd.f32 %v6361, %v6362
      %v6364 = vsel %vm5281, %v5103, 0.0
      %v6365 = vadd.f32 %v6363, %v6364
      %v6366 = vsel %vm5281, %v5104, 0.0
      %v6367 = vadd.f32 %v6365, %v6366
      %v6368 = vrot.slane %v6367, 4
      %v6369 = vadd.f32 %v6367, %v6368
      %v6370 = vrot.slane %v6369, 2
      %v6371 = vadd.f32 %v6369, %v6370
      %v6372 = vrot.slane %v6371, 1
      %v6373 = vadd.f32 %v6371, %v6372
      %v6374 = vsel %vm5281, %v5105, 0.0
      %v6375 = vsel %vm5281, %v5106, 0.0
      %v6376 = vadd.f32 %v6374, %v6375
      %v6377 = vsel %vm5281, %v5107, 0.0
      %v6378 = vadd.f32 %v6376, %v6377
      %v6379 = vsel %vm5281, %v5108, 0.0
      %v6380 = vadd.f32 %v6378, %v6379
      %v6381 = vrot.slane %v6380, 4
      %v6382 = vadd.f32 %v6380, %v6381
      %v6383 = vrot.slane %v6382, 2
      %v6384 = vadd.f32 %v6382, %v6383
      %v6385 = vrot.slane %v6384, 1
      %v6386 = vadd.f32 %v6384, %v6385
      %v6387 = vsel %vm5281, %v5109, 0.0
      %v6388 = vsel %vm5281, %v5110, 0.0
      %v6389 = vadd.f32 %v6387, %v6388
      %v6390 = vsel %vm5281, %v5111, 0.0
      %v6391 = vadd.f32 %v6389, %v6390
      %v6392 = vsel %vm5281, %v5112, 0.0
      %v6393 = vadd.f32 %v6391, %v6392
      %v6394 = vrot.slane %v6393, 4
      %v6395 = vadd.f32 %v6393, %v6394
      %v6396 = vrot.slane %v6395, 2
      %v6397 = vadd.f32 %v6395, %v6396
      %v6398 = vrot.slane %v6397, 1
      %v6399 = vadd.f32 %v6397, %v6398
      %v6400 = vsel %vm5281, %v5113, 0.0
      %v6401 = vsel %vm5281, %v5114, 0.0
      %v6402 = vadd.f32 %v6400, %v6401
      %v6403 = vsel %vm5281, %v5115, 0.0
      %v6404 = vadd.f32 %v6402, %v6403
      %v6405 = vsel %vm5281, %v5116, 0.0
      %v6406 = vadd.f32 %v6404, %v6405
      %v6407 = vrot.slane %v6406, 4
      %v6408 = vadd.f32 %v6406, %v6407
      %v6409 = vrot.slane %v6408, 2
      %v6410 = vadd.f32 %v6408, %v6409
      %v6411 = vrot.slane %v6410, 1
      %v6412 = vadd.f32 %v6410, %v6411
      %v6413 = vsel %vm5281, %v5117, 0.0
      %v6414 = vsel %vm5281, %v5118, 0.0
      %v6415 = vadd.f32 %v6413, %v6414
      %v6416 = vsel %vm5281, %v5119, 0.0
      %v6417 = vadd.f32 %v6415, %v6416
      %v6418 = vsel %vm5281, %v5120, 0.0
      %v6419 = vadd.f32 %v6417, %v6418
      %v6420 = vrot.slane %v6419, 4
      %v6421 = vadd.f32 %v6419, %v6420
      %v6422 = vrot.slane %v6421, 2
      %v6423 = vadd.f32 %v6421, %v6422
      %v6424 = vrot.slane %v6423, 1
      %v6425 = vadd.f32 %v6423, %v6424
      %v6426 = vsel %vm5281, %v5121, 0.0
      %v6427 = vsel %vm5281, %v5122, 0.0
      %v6428 = vadd.f32 %v6426, %v6427
      %v6429 = vsel %vm5281, %v5123, 0.0
      %v6430 = vadd.f32 %v6428, %v6429
      %v6431 = vsel %vm5281, %v5124, 0.0
      %v6432 = vadd.f32 %v6430, %v6431
      %v6433 = vrot.slane %v6432, 4
      %v6434 = vadd.f32 %v6432, %v6433
      %v6435 = vrot.slane %v6434, 2
      %v6436 = vadd.f32 %v6434, %v6435
      %v6437 = vrot.slane %v6436, 1
      %v6438 = vadd.f32 %v6436, %v6437
      %v6439 = vsel %vm5281, %v5125, 0.0
      %v6440 = vsel %vm5281, %v5126, 0.0
      %v6441 = vadd.f32 %v6439, %v6440
      %v6442 = vsel %vm5281, %v5127, 0.0
      %v6443 = vadd.f32 %v6441, %v6442
      %v6444 = vsel %vm5281, %v5128, 0.0
      %v6445 = vadd.f32 %v6443, %v6444
      %v6446 = vrot.slane %v6445, 4
      %v6447 = vadd.f32 %v6445, %v6446
      %v6448 = vrot.slane %v6447, 2
      %v6449 = vadd.f32 %v6447, %v6448
      %v6450 = vrot.slane %v6449, 1
      %v6451 = vadd.f32 %v6449, %v6450
      %v6452 = vsel %vm5281, %v5129, 0.0
      %v6453 = vsel %vm5281, %v5130, 0.0
      %v6454 = vadd.f32 %v6452, %v6453
      %v6455 = vsel %vm5281, %v5131, 0.0
      %v6456 = vadd.f32 %v6454, %v6455
      %v6457 = vsel %vm5281, %v5132, 0.0
      %v6458 = vadd.f32 %v6456, %v6457
      %v6459 = vrot.slane %v6458, 4
      %v6460 = vadd.f32 %v6458, %v6459
      %v6461 = vrot.slane %v6460, 2
      %v6462 = vadd.f32 %v6460, %v6461
      %v6463 = vrot.slane %v6462, 1
      %v6464 = vadd.f32 %v6462, %v6463
      %v6465 = vsel %vm5281, %v5133, 0.0
      %v6466 = vsel %vm5281, %v5134, 0.0
      %v6467 = vadd.f32 %v6465, %v6466
      %v6468 = vsel %vm5281, %v5135, 0.0
      %v6469 = vadd.f32 %v6467, %v6468
      %v6470 = vsel %vm5281, %v5136, 0.0
      %v6471 = vadd.f32 %v6469, %v6470
      %v6472 = vrot.slane %v6471, 4
      %v6473 = vadd.f32 %v6471, %v6472
      %v6474 = vrot.slane %v6473, 2
      %v6475 = vadd.f32 %v6473, %v6474
      %v6476 = vrot.slane %v6475, 1
      %v6477 = vadd.f32 %v6475, %v6476
      %v6478 = vsel %vm5281, %v5137, 0.0
      %v6479 = vsel %vm5281, %v5138, 0.0
      %v6480 = vadd.f32 %v6478, %v6479
      %v6481 = vsel %vm5281, %v5139, 0.0
      %v6482 = vadd.f32 %v6480, %v6481
      %v6483 = vsel %vm5281, %v5140, 0.0
      %v6484 = vadd.f32 %v6482, %v6483
      %v6485 = vrot.slane %v6484, 4
      %v6486 = vadd.f32 %v6484, %v6485
      %v6487 = vrot.slane %v6486, 2
      %v6488 = vadd.f32 %v6486, %v6487
      %v6489 = vrot.slane %v6488, 1
      %v6490 = vadd.f32 %v6488, %v6489
      %v6491 = vsel %vm5281, %v5141, 0.0
      %v6492 = vsel %vm5281, %v5142, 0.0
      %v6493 = vadd.f32 %v6491, %v6492
      %v6494 = vsel %vm5281, %v5143, 0.0
      %v6495 = vadd.f32 %v6493, %v6494
      %v6496 = vsel %vm5281, %v5144, 0.0
      %v6497 = vadd.f32 %v6495, %v6496
      %v6498 = vrot.slane %v6497, 4
      %v6499 = vadd.f32 %v6497, %v6498
      %v6500 = vrot.slane %v6499, 2
      %v6501 = vadd.f32 %v6499, %v6500
      %v6502 = vrot.slane %v6501, 1
      %v6503 = vadd.f32 %v6501, %v6502
      %v6504 = vsel %vm5281, %v5145, 0.0
      %v6505 = vsel %vm5281, %v5146, 0.0
      %v6506 = vadd.f32 %v6504, %v6505
      %v6507 = vsel %vm5281, %v5147, 0.0
      %v6508 = vadd.f32 %v6506, %v6507
      %v6509 = vsel %vm5281, %v5148, 0.0
      %v6510 = vadd.f32 %v6508, %v6509
      %v6511 = vrot.slane %v6510, 4
      %v6512 = vadd.f32 %v6510, %v6511
      %v6513 = vrot.slane %v6512, 2
      %v6514 = vadd.f32 %v6512, %v6513
      %v6515 = vrot.slane %v6514, 1
      %v6516 = vadd.f32 %v6514, %v6515
      %v6517 = vsel %vm5281, %v5149, 0.0
      %v6518 = vsel %vm5281, %v5150, 0.0
      %v6519 = vadd.f32 %v6517, %v6518
      %v6520 = vsel %vm5281, %v5151, 0.0
      %v6521 = vadd.f32 %v6519, %v6520
      %v6522 = vsel %vm5281, %v5152, 0.0
      %v6523 = vadd.f32 %v6521, %v6522
      %v6524 = vrot.slane %v6523, 4
      %v6525 = vadd.f32 %v6523, %v6524
      %v6526 = vrot.slane %v6525, 2
      %v6527 = vadd.f32 %v6525, %v6526
      %v6528 = vrot.slane %v6527, 1
      %v6529 = vadd.f32 %v6527, %v6528
      %v6530 = vsel %vm5281, %v5153, 0.0
      %v6531 = vsel %vm5281, %v5154, 0.0
      %v6532 = vadd.f32 %v6530, %v6531
      %v6533 = vsel %vm5281, %v5155, 0.0
      %v6534 = vadd.f32 %v6532, %v6533
      %v6535 = vsel %vm5281, %v5156, 0.0
      %v6536 = vadd.f32 %v6534, %v6535
      %v6537 = vrot.slane %v6536, 4
      %v6538 = vadd.f32 %v6536, %v6537
      %v6539 = vrot.slane %v6538, 2
      %v6540 = vadd.f32 %v6538, %v6539
      %v6541 = vrot.slane %v6540, 1
      %v6542 = vadd.f32 %v6540, %v6541
      %v6543 = vsel %vm5281, %v5157, 0.0
      %v6544 = vsel %vm5281, %v5158, 0.0
      %v6545 = vadd.f32 %v6543, %v6544
      %v6546 = vsel %vm5281, %v5159, 0.0
      %v6547 = vadd.f32 %v6545, %v6546
      %v6548 = vsel %vm5281, %v5160, 0.0
      %v6549 = vadd.f32 %v6547, %v6548
      %v6550 = vrot.slane %v6549, 4
      %v6551 = vadd.f32 %v6549, %v6550
      %v6552 = vrot.slane %v6551, 2
      %v6553 = vadd.f32 %v6551, %v6552
      %v6554 = vrot.slane %v6553, 1
      %v6555 = vadd.f32 %v6553, %v6554
      %v6556 = vsel %vm5281, %v5161, 0.0
      %v6557 = vsel %vm5281, %v5162, 0.0
      %v6558 = vadd.f32 %v6556, %v6557
      %v6559 = vsel %vm5281, %v5163, 0.0
      %v6560 = vadd.f32 %v6558, %v6559
      %v6561 = vsel %vm5281, %v5164, 0.0
      %v6562 = vadd.f32 %v6560, %v6561
      %v6563 = vrot.slane %v6562, 4
      %v6564 = vadd.f32 %v6562, %v6563
      %v6565 = vrot.slane %v6564, 2
      %v6566 = vadd.f32 %v6564, %v6565
      %v6567 = vrot.slane %v6566, 1
      %v6568 = vadd.f32 %v6566, %v6567
      %v6569 = vsel %vm5281, %v5165, 0.0
      %v6570 = vsel %vm5281, %v5166, 0.0
      %v6571 = vadd.f32 %v6569, %v6570
      %v6572 = vsel %vm5281, %v5167, 0.0
      %v6573 = vadd.f32 %v6571, %v6572
      %v6574 = vsel %vm5281, %v5168, 0.0
      %v6575 = vadd.f32 %v6573, %v6574
      %v6576 = vrot.slane %v6575, 4
      %v6577 = vadd.f32 %v6575, %v6576
      %v6578 = vrot.slane %v6577, 2
      %v6579 = vadd.f32 %v6577, %v6578
      %v6580 = vrot.slane %v6579, 1
      %v6581 = vadd.f32 %v6579, %v6580
      %v6582 = vsel %vm5281, %v5169, 0.0
      %v6583 = vsel %vm5281, %v5170, 0.0
      %v6584 = vadd.f32 %v6582, %v6583
      %v6585 = vsel %vm5281, %v5171, 0.0
      %v6586 = vadd.f32 %v6584, %v6585
      %v6587 = vsel %vm5281, %v5172, 0.0
      %v6588 = vadd.f32 %v6586, %v6587
      %v6589 = vrot.slane %v6588, 4
      %v6590 = vadd.f32 %v6588, %v6589
      %v6591 = vrot.slane %v6590, 2
      %v6592 = vadd.f32 %v6590, %v6591
      %v6593 = vrot.slane %v6592, 1
      %v6594 = vadd.f32 %v6592, %v6593
      %v6595 = vsel %vm5281, %v5173, 0.0
      %v6596 = vsel %vm5281, %v5174, 0.0
      %v6597 = vadd.f32 %v6595, %v6596
      %v6598 = vsel %vm5281, %v5175, 0.0
      %v6599 = vadd.f32 %v6597, %v6598
      %v6600 = vsel %vm5281, %v5176, 0.0
      %v6601 = vadd.f32 %v6599, %v6600
      %v6602 = vrot.slane %v6601, 4
      %v6603 = vadd.f32 %v6601, %v6602
      %v6604 = vrot.slane %v6603, 2
      %v6605 = vadd.f32 %v6603, %v6604
      %v6606 = vrot.slane %v6605, 1
      %v6607 = vadd.f32 %v6605, %v6606
      %v6608 = vsel %vm5281, %v5177, 0.0
      %v6609 = vsel %vm5281, %v5178, 0.0
      %v6610 = vadd.f32 %v6608, %v6609
      %v6611 = vsel %vm5281, %v5179, 0.0
      %v6612 = vadd.f32 %v6610, %v6611
      %v6613 = vsel %vm5281, %v5180, 0.0
      %v6614 = vadd.f32 %v6612, %v6613
      %v6615 = vrot.slane %v6614, 4
      %v6616 = vadd.f32 %v6614, %v6615
      %v6617 = vrot.slane %v6616, 2
      %v6618 = vadd.f32 %v6616, %v6617
      %v6619 = vrot.slane %v6618, 1
      %v6620 = vadd.f32 %v6618, %v6619
      %v6621 = vsel %vm5281, %v5181, 0.0
      %v6622 = vsel %vm5281, %v5182, 0.0
      %v6623 = vadd.f32 %v6621, %v6622
      %v6624 = vsel %vm5281, %v5183, 0.0
      %v6625 = vadd.f32 %v6623, %v6624
      %v6626 = vsel %vm5281, %v5184, 0.0
      %v6627 = vadd.f32 %v6625, %v6626
      %v6628 = vrot.slane %v6627, 4
      %v6629 = vadd.f32 %v6627, %v6628
      %v6630 = vrot.slane %v6629, 2
      %v6631 = vadd.f32 %v6629, %v6630
      %v6632 = vrot.slane %v6631, 1
      %v6633 = vadd.f32 %v6631, %v6632
      %v6634 = vsel %vm5281, %v5185, 0.0
      %v6635 = vsel %vm5281, %v5186, 0.0
      %v6636 = vadd.f32 %v6634, %v6635
      %v6637 = vsel %vm5281, %v5187, 0.0
      %v6638 = vadd.f32 %v6636, %v6637
      %v6639 = vsel %vm5281, %v5188, 0.0
      %v6640 = vadd.f32 %v6638, %v6639
      %v6641 = vrot.slane %v6640, 4
      %v6642 = vadd.f32 %v6640, %v6641
      %v6643 = vrot.slane %v6642, 2
      %v6644 = vadd.f32 %v6642, %v6643
      %v6645 = vrot.slane %v6644, 1
      %v6646 = vadd.f32 %v6644, %v6645
      %v6647 = vsel %vm5281, %v5189, 0.0
      %v6648 = vsel %vm5281, %v5190, 0.0
      %v6649 = vadd.f32 %v6647, %v6648
      %v6650 = vsel %vm5281, %v5191, 0.0
      %v6651 = vadd.f32 %v6649, %v6650
      %v6652 = vsel %vm5281, %v5192, 0.0
      %v6653 = vadd.f32 %v6651, %v6652
      %v6654 = vrot.slane %v6653, 4
      %v6655 = vadd.f32 %v6653, %v6654
      %v6656 = vrot.slane %v6655, 2
      %v6657 = vadd.f32 %v6655, %v6656
      %v6658 = vrot.slane %v6657, 1
      %v6659 = vadd.f32 %v6657, %v6658
      %v6660 = vsel %vm5281, %v5193, 0.0
      %v6661 = vsel %vm5281, %v5194, 0.0
      %v6662 = vadd.f32 %v6660, %v6661
      %v6663 = vsel %vm5281, %v5195, 0.0
      %v6664 = vadd.f32 %v6662, %v6663
      %v6665 = vsel %vm5281, %v5196, 0.0
      %v6666 = vadd.f32 %v6664, %v6665
      %v6667 = vrot.slane %v6666, 4
      %v6668 = vadd.f32 %v6666, %v6667
      %v6669 = vrot.slane %v6668, 2
      %v6670 = vadd.f32 %v6668, %v6669
      %v6671 = vrot.slane %v6670, 1
      %v6672 = vadd.f32 %v6670, %v6671
      %v6673 = vsel %vm5281, %v5197, 0.0
      %v6674 = vsel %vm5281, %v5198, 0.0
      %v6675 = vadd.f32 %v6673, %v6674
      %v6676 = vsel %vm5281, %v5199, 0.0
      %v6677 = vadd.f32 %v6675, %v6676
      %v6678 = vsel %vm5281, %v5200, 0.0
      %v6679 = vadd.f32 %v6677, %v6678
      %v6680 = vrot.slane %v6679, 4
      %v6681 = vadd.f32 %v6679, %v6680
      %v6682 = vrot.slane %v6681, 2
      %v6683 = vadd.f32 %v6681, %v6682
      %v6684 = vrot.slane %v6683, 1
      %v6685 = vadd.f32 %v6683, %v6684
      %v6686 = vsel %vm5281, %v5201, 0.0
      %v6687 = vsel %vm5281, %v5202, 0.0
      %v6688 = vadd.f32 %v6686, %v6687
      %v6689 = vsel %vm5281, %v5203, 0.0
      %v6690 = vadd.f32 %v6688, %v6689
      %v6691 = vsel %vm5281, %v5204, 0.0
      %v6692 = vadd.f32 %v6690, %v6691
      %v6693 = vrot.slane %v6692, 4
      %v6694 = vadd.f32 %v6692, %v6693
      %v6695 = vrot.slane %v6694, 2
      %v6696 = vadd.f32 %v6694, %v6695
      %v6697 = vrot.slane %v6696, 1
      %v6698 = vadd.f32 %v6696, %v6697
      %v6699 = vsel %vm5281, %v5205, 0.0
      %v6700 = vsel %vm5281, %v5206, 0.0
      %v6701 = vadd.f32 %v6699, %v6700
      %v6702 = vsel %vm5281, %v5207, 0.0
      %v6703 = vadd.f32 %v6701, %v6702
      %v6704 = vsel %vm5281, %v5208, 0.0
      %v6705 = vadd.f32 %v6703, %v6704
      %v6706 = vrot.slane %v6705, 4
      %v6707 = vadd.f32 %v6705, %v6706
      %v6708 = vrot.slane %v6707, 2
      %v6709 = vadd.f32 %v6707, %v6708
      %v6710 = vrot.slane %v6709, 1
      %v6711 = vadd.f32 %v6709, %v6710
      %v6712 = vsel %vm5281, %v5209, 0.0
      %v6713 = vsel %vm5281, %v5210, 0.0
      %v6714 = vadd.f32 %v6712, %v6713
      %v6715 = vsel %vm5281, %v5211, 0.0
      %v6716 = vadd.f32 %v6714, %v6715
      %v6717 = vsel %vm5281, %v5212, 0.0
      %v6718 = vadd.f32 %v6716, %v6717
      %v6719 = vrot.slane %v6718, 4
      %v6720 = vadd.f32 %v6718, %v6719
      %v6721 = vrot.slane %v6720, 2
      %v6722 = vadd.f32 %v6720, %v6721
      %v6723 = vrot.slane %v6722, 1
      %v6724 = vadd.f32 %v6722, %v6723
      %v6725 = vsel %vm5281, %v5213, 0.0
      %v6726 = vsel %vm5281, %v5214, 0.0
      %v6727 = vadd.f32 %v6725, %v6726
      %v6728 = vsel %vm5281, %v5215, 0.0
      %v6729 = vadd.f32 %v6727, %v6728
      %v6730 = vsel %vm5281, %v5216, 0.0
      %v6731 = vadd.f32 %v6729, %v6730
      %v6732 = vrot.slane %v6731, 4
      %v6733 = vadd.f32 %v6731, %v6732
      %v6734 = vrot.slane %v6733, 2
      %v6735 = vadd.f32 %v6733, %v6734
      %v6736 = vrot.slane %v6735, 1
      %v6737 = vadd.f32 %v6735, %v6736
      %v6738 = vsel %vm5281, %v5217, 0.0
      %v6739 = vsel %vm5281, %v5218, 0.0
      %v6740 = vadd.f32 %v6738, %v6739
      %v6741 = vsel %vm5281, %v5219, 0.0
      %v6742 = vadd.f32 %v6740, %v6741
      %v6743 = vsel %vm5281, %v5220, 0.0
      %v6744 = vadd.f32 %v6742, %v6743
      %v6745 = vrot.slane %v6744, 4
      %v6746 = vadd.f32 %v6744, %v6745
      %v6747 = vrot.slane %v6746, 2
      %v6748 = vadd.f32 %v6746, %v6747
      %v6749 = vrot.slane %v6748, 1
      %v6750 = vadd.f32 %v6748, %v6749
      %v6751 = vsel %vm5281, %v5221, 0.0
      %v6752 = vsel %vm5281, %v5222, 0.0
      %v6753 = vadd.f32 %v6751, %v6752
      %v6754 = vsel %vm5281, %v5223, 0.0
      %v6755 = vadd.f32 %v6753, %v6754
      %v6756 = vsel %vm5281, %v5224, 0.0
      %v6757 = vadd.f32 %v6755, %v6756
      %v6758 = vrot.slane %v6757, 4
      %v6759 = vadd.f32 %v6757, %v6758
      %v6760 = vrot.slane %v6759, 2
      %v6761 = vadd.f32 %v6759, %v6760
      %v6762 = vrot.slane %v6761, 1
      %v6763 = vadd.f32 %v6761, %v6762
      %v6764 = vsel %vm5281, %v5225, 0.0
      %v6765 = vsel %vm5281, %v5226, 0.0
      %v6766 = vadd.f32 %v6764, %v6765
      %v6767 = vsel %vm5281, %v5227, 0.0
      %v6768 = vadd.f32 %v6766, %v6767
      %v6769 = vsel %vm5281, %v5228, 0.0
      %v6770 = vadd.f32 %v6768, %v6769
      %v6771 = vrot.slane %v6770, 4
      %v6772 = vadd.f32 %v6770, %v6771
      %v6773 = vrot.slane %v6772, 2
      %v6774 = vadd.f32 %v6772, %v6773
      %v6775 = vrot.slane %v6774, 1
      %v6776 = vadd.f32 %v6774, %v6775
      %v6777 = vsel %vm5281, %v5229, 0.0
      %v6778 = vsel %vm5281, %v5230, 0.0
      %v6779 = vadd.f32 %v6777, %v6778
      %v6780 = vsel %vm5281, %v5231, 0.0
      %v6781 = vadd.f32 %v6779, %v6780
      %v6782 = vsel %vm5281, %v5232, 0.0
      %v6783 = vadd.f32 %v6781, %v6782
      %v6784 = vrot.slane %v6783, 4
      %v6785 = vadd.f32 %v6783, %v6784
      %v6786 = vrot.slane %v6785, 2
      %v6787 = vadd.f32 %v6785, %v6786
      %v6788 = vrot.slane %v6787, 1
      %v6789 = vadd.f32 %v6787, %v6788
      %v6790 = vsel %vm5281, %v5233, 0.0
      %v6791 = vsel %vm5281, %v5234, 0.0
      %v6792 = vadd.f32 %v6790, %v6791
      %v6793 = vsel %vm5281, %v5235, 0.0
      %v6794 = vadd.f32 %v6792, %v6793
      %v6795 = vsel %vm5281, %v5236, 0.0
      %v6796 = vadd.f32 %v6794, %v6795
      %v6797 = vrot.slane %v6796, 4
      %v6798 = vadd.f32 %v6796, %v6797
      %v6799 = vrot.slane %v6798, 2
      %v6800 = vadd.f32 %v6798, %v6799
      %v6801 = vrot.slane %v6800, 1
      %v6802 = vadd.f32 %v6800, %v6801
      %v6803 = vsel %vm5281, %v5237, 0.0
      %v6804 = vsel %vm5281, %v5238, 0.0
      %v6805 = vadd.f32 %v6803, %v6804
      %v6806 = vsel %vm5281, %v5239, 0.0
      %v6807 = vadd.f32 %v6805, %v6806
      %v6808 = vsel %vm5281, %v5240, 0.0
      %v6809 = vadd.f32 %v6807, %v6808
      %v6810 = vrot.slane %v6809, 4
      %v6811 = vadd.f32 %v6809, %v6810
      %v6812 = vrot.slane %v6811, 2
      %v6813 = vadd.f32 %v6811, %v6812
      %v6814 = vrot.slane %v6813, 1
      %v6815 = vadd.f32 %v6813, %v6814
      %v6816 = vsel %vm5281, %v5241, 0.0
      %v6817 = vsel %vm5281, %v5242, 0.0
      %v6818 = vadd.f32 %v6816, %v6817
      %v6819 = vsel %vm5281, %v5243, 0.0
      %v6820 = vadd.f32 %v6818, %v6819
      %v6821 = vsel %vm5281, %v5244, 0.0
      %v6822 = vadd.f32 %v6820, %v6821
      %v6823 = vrot.slane %v6822, 4
      %v6824 = vadd.f32 %v6822, %v6823
      %v6825 = vrot.slane %v6824, 2
      %v6826 = vadd.f32 %v6824, %v6825
      %v6827 = vrot.slane %v6826, 1
      %v6828 = vadd.f32 %v6826, %v6827
      %v6829 = vsel %vm5281, %v5245, 0.0
      %v6830 = vsel %vm5281, %v5246, 0.0
      %v6831 = vadd.f32 %v6829, %v6830
      %v6832 = vsel %vm5281, %v5247, 0.0
      %v6833 = vadd.f32 %v6831, %v6832
      %v6834 = vsel %vm5281, %v5248, 0.0
      %v6835 = vadd.f32 %v6833, %v6834
      %v6836 = vrot.slane %v6835, 4
      %v6837 = vadd.f32 %v6835, %v6836
      %v6838 = vrot.slane %v6837, 2
      %v6839 = vadd.f32 %v6837, %v6838
      %v6840 = vrot.slane %v6839, 1
      %v6841 = vadd.f32 %v6839, %v6840
      %v6842 = vsel %vm5281, %v5249, 0.0
      %v6843 = vsel %vm5281, %v5250, 0.0
      %v6844 = vadd.f32 %v6842, %v6843
      %v6845 = vsel %vm5281, %v5251, 0.0
      %v6846 = vadd.f32 %v6844, %v6845
      %v6847 = vsel %vm5281, %v5252, 0.0
      %v6848 = vadd.f32 %v6846, %v6847
      %v6849 = vrot.slane %v6848, 4
      %v6850 = vadd.f32 %v6848, %v6849
      %v6851 = vrot.slane %v6850, 2
      %v6852 = vadd.f32 %v6850, %v6851
      %v6853 = vrot.slane %v6852, 1
      %v6854 = vadd.f32 %v6852, %v6853
      %v6855 = vsel %vm5281, %v5253, 0.0
      %v6856 = vsel %vm5281, %v5254, 0.0
      %v6857 = vadd.f32 %v6855, %v6856
      %v6858 = vsel %vm5281, %v5255, 0.0
      %v6859 = vadd.f32 %v6857, %v6858
      %v6860 = vsel %vm5281, %v5256, 0.0
      %v6861 = vadd.f32 %v6859, %v6860
      %v6862 = vrot.slane %v6861, 4
      %v6863 = vadd.f32 %v6861, %v6862
      %v6864 = vrot.slane %v6863, 2
      %v6865 = vadd.f32 %v6863, %v6864
      %v6866 = vrot.slane %v6865, 1
      %v6867 = vadd.f32 %v6865, %v6866
      %v6868 = vsel %vm5281, %v5257, 0.0
      %v6869 = vsel %vm5281, %v5258, 0.0
      %v6870 = vadd.f32 %v6868, %v6869
      %v6871 = vsel %vm5281, %v5259, 0.0
      %v6872 = vadd.f32 %v6870, %v6871
      %v6873 = vsel %vm5281, %v5260, 0.0
      %v6874 = vadd.f32 %v6872, %v6873
      %v6875 = vrot.slane %v6874, 4
      %v6876 = vadd.f32 %v6874, %v6875
      %v6877 = vrot.slane %v6876, 2
      %v6878 = vadd.f32 %v6876, %v6877
      %v6879 = vrot.slane %v6878, 1
      %v6880 = vadd.f32 %v6878, %v6879
      %v6881 = vsel %vm5281, %v5261, 0.0
      %v6882 = vsel %vm5281, %v5262, 0.0
      %v6883 = vadd.f32 %v6881, %v6882
      %v6884 = vsel %vm5281, %v5263, 0.0
      %v6885 = vadd.f32 %v6883, %v6884
      %v6886 = vsel %vm5281, %v5264, 0.0
      %v6887 = vadd.f32 %v6885, %v6886
      %v6888 = vrot.slane %v6887, 4
      %v6889 = vadd.f32 %v6887, %v6888
      %v6890 = vrot.slane %v6889, 2
      %v6891 = vadd.f32 %v6889, %v6890
      %v6892 = vrot.slane %v6891, 1
      %v6893 = vadd.f32 %v6891, %v6892
      %v6894 = vsel %vm5281, %v5265, 0.0
      %v6895 = vsel %vm5281, %v5266, 0.0
      %v6896 = vadd.f32 %v6894, %v6895
      %v6897 = vsel %vm5281, %v5267, 0.0
      %v6898 = vadd.f32 %v6896, %v6897
      %v6899 = vsel %vm5281, %v5268, 0.0
      %v6900 = vadd.f32 %v6898, %v6899
      %v6901 = vrot.slane %v6900, 4
      %v6902 = vadd.f32 %v6900, %v6901
      %v6903 = vrot.slane %v6902, 2
      %v6904 = vadd.f32 %v6902, %v6903
      %v6905 = vrot.slane %v6904, 1
      %v6906 = vadd.f32 %v6904, %v6905
      %v6907 = vsel %vm5281, %v5269, 0.0
      %v6908 = vsel %vm5281, %v5270, 0.0
      %v6909 = vadd.f32 %v6907, %v6908
      %v6910 = vsel %vm5281, %v5271, 0.0
      %v6911 = vadd.f32 %v6909, %v6910
      %v6912 = vsel %vm5281, %v5272, 0.0
      %v6913 = vadd.f32 %v6911, %v6912
      %v6914 = vrot.slane %v6913, 4
      %v6915 = vadd.f32 %v6913, %v6914
      %v6916 = vrot.slane %v6915, 2
      %v6917 = vadd.f32 %v6915, %v6916
      %v6918 = vrot.slane %v6917, 1
      %v6919 = vadd.f32 %v6917, %v6918
      %v6920 = vsel %vm5281, %v5273, 0.0
      %v6921 = vsel %vm5281, %v5274, 0.0
      %v6922 = vadd.f32 %v6920, %v6921
      %v6923 = vsel %vm5281, %v5275, 0.0
      %v6924 = vadd.f32 %v6922, %v6923
      %v6925 = vsel %vm5281, %v5276, 0.0
      %v6926 = vadd.f32 %v6924, %v6925
      %v6927 = vrot.slane %v6926, 4
      %v6928 = vadd.f32 %v6926, %v6927
      %v6929 = vrot.slane %v6928, 2
      %v6930 = vadd.f32 %v6928, %v6929
      %v6931 = vrot.slane %v6930, 1
      %v6932 = vadd.f32 %v6930, %v6931
      %v6933 = vsel %vm5281, %v5277, 0.0
      %v6934 = vsel %vm5281, %v5278, 0.0
      %v6935 = vadd.f32 %v6933, %v6934
      %v6936 = vsel %vm5281, %v5279, 0.0
      %v6937 = vadd.f32 %v6935, %v6936
      %v6938 = vsel %vm5281, %v5280, 0.0
      %v6939 = vadd.f32 %v6937, %v6938
      %v6940 = vrot.slane %v6939, 4
      %v6941 = vadd.f32 %v6939, %v6940
      %v6942 = vrot.slane %v6941, 2
      %v6943 = vadd.f32 %v6941, %v6942
      %v6944 = vrot.slane %v6943, 1
      %v6945 = vadd.f32 %v6943, %v6944
      %v6946 = vld [vmem:[%s322] sm:$0xff]
      %v6947 = vld [vmem:[%s322 + $0x8] sm:$0xff]
      %v6948 = vld [vmem:[%s322 + $0x10] sm:$0xff]
      %v6949 = vld [vmem:[%s322 + $0x18] sm:$0xff]
      %v6950 = vld [vmem:[%s322 + $0x20] sm:$0xff]
      %v6951 = vld [vmem:[%s322 + $0x28] sm:$0xff]
      %v6952 = vld [vmem:[%s322 + $0x30] sm:$0xff]
      %v6953 = vld [vmem:[%s322 + $0x38] sm:$0xff]
      %v6954 = vld [vmem:[%s322 + $0x40] sm:$0xff]
      %v6955 = vld [vmem:[%s322 + $0x48] sm:$0xff]
      %v6956 = vld [vmem:[%s322 + $0x50] sm:$0xff]
      %v6957 = vld [vmem:[%s322 + $0x58] sm:$0xff]
      %v6958 = vld [vmem:[%s322 + $0x60] sm:$0xff]
      %v6959 = vld [vmem:[%s322 + $0x68] sm:$0xff]
      %v6960 = vld [vmem:[%s322 + $0x70] sm:$0xff]
      %v6961 = vld [vmem:[%s322 + $0x78] sm:$0xff]
      %v6962 = vlaneseq
      %v6963 = vand.u32 %v6962, 127
      %6964 = vset.pattern.permute.xlu0 0
      %6965 = vperm.xlu0 %6964, %v6946
      %v6966 = vpop.permute.xlu0 %6965
      %6967 = vset.pattern.permute.xlu0 0
      %6968 = vperm.xlu0 %6967, %v6947
      %v6969 = vpop.permute.xlu0 %6968
      %6970 = vset.pattern.permute.xlu0 0
      %6971 = vperm.xlu0 %6970, %v6948
      %v6972 = vpop.permute.xlu0 %6971
      %6973 = vset.pattern.permute.xlu0 0
      %6974 = vperm.xlu0 %6973, %v6949
      %v6975 = vpop.permute.xlu0 %6974
      %6976 = vset.pattern.permute.xlu0 0
      %6977 = vperm.xlu0 %6976, %v6950
      %v6978 = vpop.permute.xlu0 %6977
      %6979 = vset.pattern.permute.xlu0 0
      %6980 = vperm.xlu0 %6979, %v6951
      %v6981 = vpop.permute.xlu0 %6980
      %6982 = vset.pattern.permute.xlu0 0
      %6983 = vperm.xlu0 %6982, %v6952
      %v6984 = vpop.permute.xlu0 %6983
      %6985 = vset.pattern.permute.xlu0 0
      %6986 = vperm.xlu0 %6985, %v6953
      %v6987 = vpop.permute.xlu0 %6986
      %6988 = vset.pattern.permute.xlu0 0
      %6989 = vperm.xlu0 %6988, %v6954
      %v6990 = vpop.permute.xlu0 %6989
      %6991 = vset.pattern.permute.xlu0 0
      %6992 = vperm.xlu0 %6991, %v6955
      %v6993 = vpop.permute.xlu0 %6992
      %6994 = vset.pattern.permute.xlu0 0
      %6995 = vperm.xlu0 %6994, %v6956
      %v6996 = vpop.permute.xlu0 %6995
      %6997 = vset.pattern.permute.xlu0 0
      %6998 = vperm.xlu0 %6997, %v6957
      %v6999 = vpop.permute.xlu0 %6998
      %7000 = vset.pattern.permute.xlu0 0
      %7001 = vperm.xlu0 %7000, %v6958
      %v7002 = vpop.permute.xlu0 %7001
      %7003 = vset.pattern.permute.xlu0 0
      %7004 = vperm.xlu0 %7003, %v6959
      %v7005 = vpop.permute.xlu0 %7004
      %7006 = vset.pattern.permute.xlu0 0
      %7007 = vperm.xlu0 %7006, %v6960
      %v7008 = vpop.permute.xlu0 %7007
      %7009 = vset.pattern.permute.xlu0 0
      %7010 = vperm.xlu0 %7009, %v6961
      %v7011 = vpop.permute.xlu0 %7010
      %vm7012 = vcmp.lt.s32.totalorder %v6963, %v6966
      %vm7013 = vcmp.lt.s32.totalorder %v6963, %v6969
      %vm7014 = vcmp.lt.s32.totalorder %v6963, %v6972
      %vm7015 = vcmp.lt.s32.totalorder %v6963, %v6975
      %vm7016 = vcmp.lt.s32.totalorder %v6963, %v6978
      %vm7017 = vcmp.lt.s32.totalorder %v6963, %v6981
      %vm7018 = vcmp.lt.s32.totalorder %v6963, %v6984
      %vm7019 = vcmp.lt.s32.totalorder %v6963, %v6987
      %vm7020 = vcmp.lt.s32.totalorder %v6963, %v6990
      %vm7021 = vcmp.lt.s32.totalorder %v6963, %v6993
      %vm7022 = vcmp.lt.s32.totalorder %v6963, %v6996
      %vm7023 = vcmp.lt.s32.totalorder %v6963, %v6999
      %vm7024 = vcmp.lt.s32.totalorder %v6963, %v7002
      %vm7025 = vcmp.lt.s32.totalorder %v6963, %v7005
      %vm7026 = vcmp.lt.s32.totalorder %v6963, %v7008
      %vm7027 = vcmp.lt.s32.totalorder %v6963, %v7011
      %vm7156 = vcmask 1041409
      %v7157 = vsel %vm7156, %v5307, %v5294
      %vm7158 = vcmask 1042434
      %v7159 = vsel %vm7158, %v5320, %v7157
      %vm7160 = vcmask 1043459
      %v7161 = vsel %vm7160, %v5333, %v7159
      %vm7162 = vcmask 1044484
      %v7163 = vsel %vm7162, %v5346, %v7161
      %vm7164 = vcmask 1045509
      %v7165 = vsel %vm7164, %v5359, %v7163
      %vm7166 = vcmask 1046534
      %v7167 = vsel %vm7166, %v5372, %v7165
      %vm7168 = vcmask 1047559
      %v7169 = vsel %vm7168, %v5385, %v7167
      %v7170 = vsel %vm7156, %v5411, %v5398
      %v7171 = vsel %vm7158, %v5424, %v7170
      %v7172 = vsel %vm7160, %v5437, %v7171
      %v7173 = vsel %vm7162, %v5450, %v7172
      %v7174 = vsel %vm7164, %v5463, %v7173
      %v7175 = vsel %vm7166, %v5476, %v7174
      %v7176 = vsel %vm7168, %v5489, %v7175
      %v7177 = vsel %vm7156, %v5515, %v5502
      %v7178 = vsel %vm7158, %v5528, %v7177
      %v7179 = vsel %vm7160, %v5541, %v7178
      %v7180 = vsel %vm7162, %v5554, %v7179
      %v7181 = vsel %vm7164, %v5567, %v7180
      %v7182 = vsel %vm7166, %v5580, %v7181
      %v7183 = vsel %vm7168, %v5593, %v7182
      %v7184 = vsel %vm7156, %v5619, %v5606
      %v7185 = vsel %vm7158, %v5632, %v7184
      %v7186 = vsel %vm7160, %v5645, %v7185
      %v7187 = vsel %vm7162, %v5658, %v7186
      %v7188 = vsel %vm7164, %v5671, %v7187
      %v7189 = vsel %vm7166, %v5684, %v7188
      %v7190 = vsel %vm7168, %v5697, %v7189
      %v7191 = vsel %vm7156, %v5723, %v5710
      %v7192 = vsel %vm7158, %v5736, %v7191
      %v7193 = vsel %vm7160, %v5749, %v7192
      %v7194 = vsel %vm7162, %v5762, %v7193
      %v7195 = vsel %vm7164, %v5775, %v7194
      %v7196 = vsel %vm7166, %v5788, %v7195
      %v7197 = vsel %vm7168, %v5801, %v7196
      %v7198 = vsel %vm7156, %v5827, %v5814
      %v7199 = vsel %vm7158, %v5840, %v7198
      %v7200 = vsel %vm7160, %v5853, %v7199
      %v7201 = vsel %vm7162, %v5866, %v7200
      %v7202 = vsel %vm7164, %v5879, %v7201
      %v7203 = vsel %vm7166, %v5892, %v7202
      %v7204 = vsel %vm7168, %v5905, %v7203
      %v7205 = vsel %vm7156, %v5931, %v5918
      %v7206 = vsel %vm7158, %v5944, %v7205
      %v7207 = vsel %vm7160, %v5957, %v7206
      %v7208 = vsel %vm7162, %v5970, %v7207
      %v7209 = vsel %vm7164, %v5983, %v7208
      %v7210 = vsel %vm7166, %v5996, %v7209
      %v7211 = vsel %vm7168, %v6009, %v7210
      %v7212 = vsel %vm7156, %v6035, %v6022
      %v7213 = vsel %vm7158, %v6048, %v7212
      %v7214 = vsel %vm7160, %v6061, %v7213
      %v7215 = vsel %vm7162, %v6074, %v7214
      %v7216 = vsel %vm7164, %v6087, %v7215
      %v7217 = vsel %vm7166, %v6100, %v7216
      %v7218 = vsel %vm7168, %v6113, %v7217
      %v7219 = vsel %vm7156, %v6139, %v6126
      %v7220 = vsel %vm7158, %v6152, %v7219
      %v7221 = vsel %vm7160, %v6165, %v7220
      %v7222 = vsel %vm7162, %v6178, %v7221
      %v7223 = vsel %vm7164, %v6191, %v7222
      %v7224 = vsel %vm7166, %v6204, %v7223
      %v7225 = vsel %vm7168, %v6217, %v7224
      %v7226 = vsel %vm7156, %v6243, %v6230
      %v7227 = vsel %vm7158, %v6256, %v7226
      %v7228 = vsel %vm7160, %v6269, %v7227
      %v7229 = vsel %vm7162, %v6282, %v7228
      %v7230 = vsel %vm7164, %v6295, %v7229
      %v7231 = vsel %vm7166, %v6308, %v7230
      %v7232 = vsel %vm7168, %v6321, %v7231
      %v7233 = vsel %vm7156, %v6347, %v6334
      %v7234 = vsel %vm7158, %v6360, %v7233
      %v7235 = vsel %vm7160, %v6373, %v7234
      %v7236 = vsel %vm7162, %v6386, %v7235
      %v7237 = vsel %vm7164, %v6399, %v7236
      %v7238 = vsel %vm7166, %v6412, %v7237
      %v7239 = vsel %vm7168, %v6425, %v7238
      %v7240 = vsel %vm7156, %v6451, %v6438
      %v7241 = vsel %vm7158, %v6464, %v7240
      %v7242 = vsel %vm7160, %v6477, %v7241
      %v7243 = vsel %vm7162, %v6490, %v7242
      %v7244 = vsel %vm7164, %v6503, %v7243
      %v7245 = vsel %vm7166, %v6516, %v7244
      %v7246 = vsel %vm7168, %v6529, %v7245
      %v7247 = vsel %vm7156, %v6555, %v6542
      %v7248 = vsel %vm7158, %v6568, %v7247
      %v7249 = vsel %vm7160, %v6581, %v7248
      %v7250 = vsel %vm7162, %v6594, %v7249
      %v7251 = vsel %vm7164, %v6607, %v7250
      %v7252 = vsel %vm7166, %v6620, %v7251
      %v7253 = vsel %vm7168, %v6633, %v7252
      %v7254 = vsel %vm7156, %v6659, %v6646
      %v7255 = vsel %vm7158, %v6672, %v7254
      %v7256 = vsel %vm7160, %v6685, %v7255
      %v7257 = vsel %vm7162, %v6698, %v7256
      %v7258 = vsel %vm7164, %v6711, %v7257
      %v7259 = vsel %vm7166, %v6724, %v7258
      %v7260 = vsel %vm7168, %v6737, %v7259
      %v7261 = vsel %vm7156, %v6763, %v6750
      %v7262 = vsel %vm7158, %v6776, %v7261
      %v7263 = vsel %vm7160, %v6789, %v7262
      %v7264 = vsel %vm7162, %v6802, %v7263
      %v7265 = vsel %vm7164, %v6815, %v7264
      %v7266 = vsel %vm7166, %v6828, %v7265
      %v7267 = vsel %vm7168, %v6841, %v7266
      %v7268 = vsel %vm7156, %v6867, %v6854
      %v7269 = vsel %vm7158, %v6880, %v7268
      %v7270 = vsel %vm7160, %v6893, %v7269
      %v7271 = vsel %vm7162, %v6906, %v7270
      %v7272 = vsel %vm7164, %v6919, %v7271
      %v7273 = vsel %vm7166, %v6932, %v7272
      %v7274 = vsel %vm7168, %v6945, %v7273
      %v7291 = vsel %vm7012, %v7169, -1000000.0
      %v7292 = vsel %vm7013, %v7176, -1000000.0
      %v7293 = vsel %vm7014, %v7183, -1000000.0
      %v7294 = vsel %vm7015, %v7190, -1000000.0
      %v7295 = vsel %vm7016, %v7197, -1000000.0
      %v7296 = vsel %vm7017, %v7204, -1000000.0
      %v7297 = vsel %vm7018, %v7211, -1000000.0
      %v7298 = vsel %vm7019, %v7218, -1000000.0
      %v7299 = vsel %vm7020, %v7225, -1000000.0
      %v7300 = vsel %vm7021, %v7232, -1000000.0
      %v7301 = vsel %vm7022, %v7239, -1000000.0
      %v7302 = vsel %vm7023, %v7246, -1000000.0
      %v7303 = vsel %vm7024, %v7253, -1000000.0
      %v7304 = vsel %vm7025, %v7260, -1000000.0
      %v7305 = vsel %vm7026, %v7267, -1000000.0
      %v7306 = vsel %vm7027, %v7274, -1000000.0
      %v7307 = vsel %vm5281, %v7291, -inf
      %7308 = vmax.xlane.f32.xlu0 %v7307
      %v7309 = vpop.xlane.xlu0 %7308
      %v7310 = vsel %vm5281, %v7292, -inf
      %7311 = vmax.xlane.f32.xlu0 %v7310
      %v7312 = vpop.xlane.xlu0 %7311
      %v7313 = vsel %vm5281, %v7293, -inf
      %7314 = vmax.xlane.f32.xlu0 %v7313
      %v7315 = vpop.xlane.xlu0 %7314
      %v7316 = vsel %vm5281, %v7294, -inf
      %7317 = vmax.xlane.f32.xlu0 %v7316
      %v7318 = vpop.xlane.xlu0 %7317
      %v7319 = vsel %vm5281, %v7295, -inf
      %7320 = vmax.xlane.f32.xlu0 %v7319
      %v7321 = vpop.xlane.xlu0 %7320
      %v7322 = vsel %vm5281, %v7296, -inf
      %7323 = vmax.xlane.f32.xlu0 %v7322
      %v7324 = vpop.xlane.xlu0 %7323
      %v7325 = vsel %vm5281, %v7297, -inf
      %7326 = vmax.xlane.f32.xlu0 %v7325
      %v7327 = vpop.xlane.xlu0 %7326
      %v7328 = vsel %vm5281, %v7298, -inf
      %7329 = vmax.xlane.f32.xlu0 %v7328
      %v7330 = vpop.xlane.xlu0 %7329
      %v7331 = vsel %vm5281, %v7299, -inf
      %7332 = vmax.xlane.f32.xlu0 %v7331
      %v7333 = vpop.xlane.xlu0 %7332
      %v7334 = vsel %vm5281, %v7300, -inf
      %7335 = vmax.xlane.f32.xlu0 %v7334
      %v7336 = vpop.xlane.xlu0 %7335
      %v7337 = vsel %vm5281, %v7301, -inf
      %7338 = vmax.xlane.f32.xlu0 %v7337
      %v7339 = vpop.xlane.xlu0 %7338
      %v7340 = vsel %vm5281, %v7302, -inf
      %7341 = vmax.xlane.f32.xlu0 %v7340
      %v7342 = vpop.xlane.xlu0 %7341
      %v7343 = vsel %vm5281, %v7303, -inf
      %7344 = vmax.xlane.f32.xlu0 %v7343
      %v7345 = vpop.xlane.xlu0 %7344
      %v7346 = vsel %vm5281, %v7304, -inf
      %7347 = vmax.xlane.f32.xlu0 %v7346
      %v7348 = vpop.xlane.xlu0 %7347
      %v7349 = vsel %vm5281, %v7305, -inf
      %7350 = vmax.xlane.f32.xlu0 %v7349
      %v7351 = vpop.xlane.xlu0 %7350
      %v7352 = vsel %vm5281, %v7306, -inf
      %7353 = vmax.xlane.f32.xlu0 %v7352
      %v7354 = vpop.xlane.xlu0 %7353
      %v7355 = vsub.f32 %v7291, %v7309
      %v7356 = vsub.f32 %v7292, %v7312
      %v7357 = vsub.f32 %v7293, %v7315
      %v7358 = vsub.f32 %v7294, %v7318
      %v7359 = vsub.f32 %v7295, %v7321
      %v7360 = vsub.f32 %v7296, %v7324
      %v7361 = vsub.f32 %v7297, %v7327
      %v7362 = vsub.f32 %v7298, %v7330
      %v7363 = vsub.f32 %v7299, %v7333
      %v7364 = vsub.f32 %v7300, %v7336
      %v7365 = vsub.f32 %v7301, %v7339
      %v7366 = vsub.f32 %v7302, %v7342
      %v7367 = vsub.f32 %v7303, %v7345
      %v7368 = vsub.f32 %v7304, %v7348
      %v7369 = vsub.f32 %v7305, %v7351
      %v7370 = vsub.f32 %v7306, %v7354
      %v7371 = vmul.f32 %v7355, 1.442695
      %v7372 = vpow.pop %v7371
      %v7373 = vmul.f32 %v7356, 1.442695
      %v7374 = vpow.pop %v7373
      %v7375 = vmul.f32 %v7357, 1.442695
      %v7376 = vpow.pop %v7375
      %v7377 = vmul.f32 %v7358, 1.442695
      %v7378 = vpow.pop %v7377
      %v7379 = vmul.f32 %v7359, 1.442695
      %v7380 = vpow.pop %v7379
      %v7381 = vmul.f32 %v7360, 1.442695
      %v7382 = vpow.pop %v7381
      %v7383 = vmul.f32 %v7361, 1.442695
      %v7384 = vpow.pop %v7383
      %v7385 = vmul.f32 %v7362, 1.442695
      %v7386 = vpow.pop %v7385
      %v7387 = vmul.f32 %v7363, 1.442695
      %v7388 = vpow.pop %v7387
      %v7389 = vmul.f32 %v7364, 1.442695
      %v7390 = vpow.pop %v7389
      %v7391 = vmul.f32 %v7365, 1.442695
      %v7392 = vpow.pop %v7391
      %v7393 = vmul.f32 %v7366, 1.442695
      %v7394 = vpow.pop %v7393
      %v7395 = vmul.f32 %v7367, 1.442695
      %v7396 = vpow.pop %v7395
      %v7397 = vmul.f32 %v7368, 1.442695
      %v7398 = vpow.pop %v7397
      %v7399 = vmul.f32 %v7369, 1.442695
      %v7400 = vpow.pop %v7399
      %v7401 = vmul.f32 %v7370, 1.442695
      %v7402 = vpow.pop %v7401
      %v7403 = vsel %vm5281, %v7372, 0.0
      %7404 = vadd.xlane.f32.xlu0 %v7403
      %v7405 = vpop.xlane.xlu0 %7404
      %v7406 = vsel %vm5281, %v7374, 0.0
      %7407 = vadd.xlane.f32.xlu0 %v7406
      %v7408 = vpop.xlane.xlu0 %7407
      %v7409 = vsel %vm5281, %v7376, 0.0
      %7410 = vadd.xlane.f32.xlu0 %v7409
      %v7411 = vpop.xlane.xlu0 %7410
      %v7412 = vsel %vm5281, %v7378, 0.0
      %7413 = vadd.xlane.f32.xlu0 %v7412
      %v7414 = vpop.xlane.xlu0 %7413
      %v7415 = vsel %vm5281, %v7380, 0.0
      %7416 = vadd.xlane.f32.xlu0 %v7415
      %v7417 = vpop.xlane.xlu0 %7416
      %v7418 = vsel %vm5281, %v7382, 0.0
      %7419 = vadd.xlane.f32.xlu0 %v7418
      %v7420 = vpop.xlane.xlu0 %7419
      %v7421 = vsel %vm5281, %v7384, 0.0
      %7422 = vadd.xlane.f32.xlu0 %v7421
      %v7423 = vpop.xlane.xlu0 %7422
      %v7424 = vsel %vm5281, %v7386, 0.0
      %7425 = vadd.xlane.f32.xlu0 %v7424
      %v7426 = vpop.xlane.xlu0 %7425
      %v7427 = vsel %vm5281, %v7388, 0.0
      %7428 = vadd.xlane.f32.xlu0 %v7427
      %v7429 = vpop.xlane.xlu0 %7428
      %v7430 = vsel %vm5281, %v7390, 0.0
      %7431 = vadd.xlane.f32.xlu0 %v7430
      %v7432 = vpop.xlane.xlu0 %7431
      %v7433 = vsel %vm5281, %v7392, 0.0
      %7434 = vadd.xlane.f32.xlu0 %v7433
      %v7435 = vpop.xlane.xlu0 %7434
      %v7436 = vsel %vm5281, %v7394, 0.0
      %7437 = vadd.xlane.f32.xlu0 %v7436
      %v7438 = vpop.xlane.xlu0 %7437
      %v7439 = vsel %vm5281, %v7396, 0.0
      %7440 = vadd.xlane.f32.xlu0 %v7439
      %v7441 = vpop.xlane.xlu0 %7440
      %v7442 = vsel %vm5281, %v7398, 0.0
      %7443 = vadd.xlane.f32.xlu0 %v7442
      %v7444 = vpop.xlane.xlu0 %7443
      %v7445 = vsel %vm5281, %v7400, 0.0
      %7446 = vadd.xlane.f32.xlu0 %v7445
      %v7447 = vpop.xlane.xlu0 %7446
      %v7448 = vsel %vm5281, %v7402, 0.0
      %7449 = vadd.xlane.f32.xlu0 %v7448
      %v7450 = vpop.xlane.xlu0 %7449
      %v7451 = vrcp.pop %v7405
      %v7452 = vrcp.pop %v7408
      %v7453 = vrcp.pop %v7411
      %v7454 = vrcp.pop %v7414
      %v7455 = vrcp.pop %v7417
      %v7456 = vrcp.pop %v7420
      %v7457 = vrcp.pop %v7423
      %v7458 = vrcp.pop %v7426
      %v7459 = vrcp.pop %v7429
      %v7460 = vrcp.pop %v7432
      %v7461 = vrcp.pop %v7435
      %v7462 = vrcp.pop %v7438
      %v7463 = vrcp.pop %v7441
      %v7464 = vrcp.pop %v7444
      %v7465 = vrcp.pop %v7447
      %v7466 = vrcp.pop %v7450
      %v7467 = vmul.f32 %v7372, %v7451
      %v7468 = vmul.f32 %v7374, %v7452
      %v7469 = vmul.f32 %v7376, %v7453
      %v7470 = vmul.f32 %v7378, %v7454
      %v7471 = vmul.f32 %v7380, %v7455
      %v7472 = vmul.f32 %v7382, %v7456
      %v7473 = vmul.f32 %v7384, %v7457
      %v7474 = vmul.f32 %v7386, %v7458
      %v7475 = vmul.f32 %v7388, %v7459
      %v7476 = vmul.f32 %v7390, %v7460
      %v7477 = vmul.f32 %v7392, %v7461
      %v7478 = vmul.f32 %v7394, %v7462
      %v7479 = vmul.f32 %v7396, %v7463
      %v7480 = vmul.f32 %v7398, %v7464
      %v7481 = vmul.f32 %v7400, %v7465
      %v7482 = vmul.f32 %v7402, %v7466
      %v7483 = vld [vmem:[%s340] sm:$0xff]
      %v7484 = vld [vmem:[%s340 + $0x8] sm:$0xff]
      %v7485 = vld [vmem:[%s340 + $0x10] sm:$0xff]
      %v7486 = vld [vmem:[%s340 + $0x18] sm:$0xff]
      %v7487 = vld [vmem:[%s340 + $0x20] sm:$0xff]
      %v7488 = vld [vmem:[%s340 + $0x28] sm:$0xff]
      %v7489 = vld [vmem:[%s340 + $0x30] sm:$0xff]
      %v7490 = vld [vmem:[%s340 + $0x38] sm:$0xff]
      %v7491 = vld [vmem:[%s340 + $0x40] sm:$0xff]
      %v7492 = vld [vmem:[%s340 + $0x48] sm:$0xff]
      %v7493 = vld [vmem:[%s340 + $0x50] sm:$0xff]
      %v7494 = vld [vmem:[%s340 + $0x58] sm:$0xff]
      %v7495 = vld [vmem:[%s340 + $0x60] sm:$0xff]
      %v7496 = vld [vmem:[%s340 + $0x68] sm:$0xff]
      %v7497 = vld [vmem:[%s340 + $0x70] sm:$0xff]
      %v7498 = vld [vmem:[%s340 + $0x78] sm:$0xff]
      %v7500 = vsel %vm5281, %v7467, 0
      %7502 = vmatprep.subr.mxu0 0.0
      %7503 = vmatpush1.msra.mxu0 %v7483
      %7504 = vmatprep.subr.mxu0 0.0
      %7505 = vmatpush1.msra.mxu0 0.0
      %7506 = vmatprep.subr.mxu0 0.0
      %7507 = vmatpush1.msra.mxu0 0.0
      %7508 = vmatprep.subr.mxu0 0.0
      %7509 = vmatpush1.msra.mxu0 0.0
      %7510 = vmatprep.subr.mxu0 0.0
      %7511 = vmatpush1.msra.mxu0 0.0
      %7512 = vmatprep.subr.mxu0 0.0
      %7513 = vmatpush1.msra.mxu0 0.0
      %7514 = vmatprep.subr.mxu0 0.0
      %7515 = vmatpush1.msra.mxu0 0.0
      %7516 = vmatprep.subr.mxu0 0.0
      %7517 = vmatpush1.msra.mxu0 0.0
      %7518 = vmatprep.subr.mxu0 0.0
      %7519 = vmatpush1.msra.mxu0 0.0
      %7520 = vmatprep.subr.mxu0 0.0
      %7521 = vmatpush1.msra.mxu0 0.0
      %7522 = vmatprep.subr.mxu0 0.0
      %7523 = vmatpush1.msra.mxu0 0.0
      %7524 = vmatprep.subr.mxu0 0.0
      %7525 = vmatpush1.msra.mxu0 0.0
      %7526 = vmatprep.subr.mxu0 0.0
      %7527 = vmatpush1.msra.mxu0 0.0
      %7528 = vmatprep.subr.mxu0 0.0
      %7529 = vmatpush1.msra.mxu0 0.0
      %7530 = vmatprep.subr.mxu0 0.0
      %7531 = vmatpush1.msra.mxu0 0.0
      %7532 = vmatprep.subr.mxu0 0.0
      %7533 = vmatpush1.msra.mxu0 0.0
      %7534 = vmatprep.subr.mxu0 0.0
      %7535 = vmatpush1.msra.mxu0 0.0
      %7536 = vmatprep.subr.mxu0 0.0
      %7537 = vmatpush1.msra.mxu0 0.0
      %7538 = vmatprep.subr.mxu0 0.0
      %7539 = vmatpush1.msra.mxu0 0.0
      %7540 = vmatprep.subr.mxu0 0.0
      %7541 = vmatpush1.msra.mxu0 0.0
      %7542 = vmatprep.subr.mxu0 0.0
      %7543 = vmatpush1.msra.mxu0 0.0
      %7544 = vmatprep.subr.mxu0 0.0
      %7545 = vmatpush1.msra.mxu0 0.0
      %7546 = vmatprep.subr.mxu0 0.0
      %7547 = vmatpush1.msra.mxu0 0.0
      %7548 = vmatprep.subr.mxu0 0.0
      %7549 = vmatpush1.msra.mxu0 0.0
      %7550 = vmatprep.subr.mxu0 0.0
      %7551 = vmatpush1.msra.mxu0 0.0
      %7552 = vmatprep.subr.mxu0 0.0
      %7553 = vmatpush1.msra.mxu0 0.0
      %7554 = vmatprep.subr.mxu0 0.0
      %7555 = vmatpush1.msra.mxu0 0.0
      %7556 = vmatprep.subr.mxu0 0.0
      %7557 = vmatpush1.msra.mxu0 0.0
      %7558 = vmatprep.subr.mxu0 0.0
      %7559 = vmatpush1.msra.mxu0 0.0
      %7560 = vmatprep.subr.mxu0 0.0
      %7561 = vmatpush1.msra.mxu0 0.0
      %7562 = vmatprep.subr.mxu0 0.0
      %7563 = vmatpush1.msra.mxu0 0.0
      %7564 = vmatprep.subr.mxu0 0.0
      %7565 = vmatpush1.msra.mxu0 0.0
      %7566 = vmatprep.mubr.f32.mxu0 0.0
      %7567 = vmatmul.mubr.f32.gmra.mrb[0].mxu0 %v7500
      %v7568 = vpop.f32.mrb[0].mxu0
      %v7569 = vadd.f32 0.0, %v7568
      %v7570 = vpop.f32.mrb[0].mxu0
      %7571 = vdwg.mxu0
      %v7573 = vsel %vm5281, %v7468, 0
      %7575 = vmatprep.subr.mxu0 0.0
      %7576 = vmatpush1.msra.mxu0 %v7484
      %7577 = vmatprep.subr.mxu0 0.0
      %7578 = vmatpush1.msra.mxu0 0.0
      %7579 = vmatprep.subr.mxu0 0.0
      %7580 = vmatpush1.msra.mxu0 0.0
      %7581 = vmatprep.subr.mxu0 0.0
      %7582 = vmatpush1.msra.mxu0 0.0
      %7583 = vmatprep.subr.mxu0 0.0
      %7584 = vmatpush1.msra.mxu0 0.0
      %7585 = vmatprep.subr.mxu0 0.0
      %7586 = vmatpush1.msra.mxu0 0.0
      %7587 = vmatprep.subr.mxu0 0.0
      %7588 = vmatpush1.msra.mxu0 0.0
      %7589 = vmatprep.subr.mxu0 0.0
      %7590 = vmatpush1.msra.mxu0 0.0
      %7591 = vmatprep.subr.mxu0 0.0
      %7592 = vmatpush1.msra.mxu0 0.0
      %7593 = vmatprep.subr.mxu0 0.0
      %7594 = vmatpush1.msra.mxu0 0.0
      %7595 = vmatprep.subr.mxu0 0.0
      %7596 = vmatpush1.msra.mxu0 0.0
      %7597 = vmatprep.subr.mxu0 0.0
      %7598 = vmatpush1.msra.mxu0 0.0
      %7599 = vmatprep.subr.mxu0 0.0
      %7600 = vmatpush1.msra.mxu0 0.0
      %7601 = vmatprep.subr.mxu0 0.0
      %7602 = vmatpush1.msra.mxu0 0.0
      %7603 = vmatprep.subr.mxu0 0.0
      %7604 = vmatpush1.msra.mxu0 0.0
      %7605 = vmatprep.subr.mxu0 0.0
      %7606 = vmatpush1.msra.mxu0 0.0
      %7607 = vmatprep.subr.mxu0 0.0
      %7608 = vmatpush1.msra.mxu0 0.0
      %7609 = vmatprep.subr.mxu0 0.0
      %7610 = vmatpush1.msra.mxu0 0.0
      %7611 = vmatprep.subr.mxu0 0.0
      %7612 = vmatpush1.msra.mxu0 0.0
      %7613 = vmatprep.subr.mxu0 0.0
      %7614 = vmatpush1.msra.mxu0 0.0
      %7615 = vmatprep.subr.mxu0 0.0
      %7616 = vmatpush1.msra.mxu0 0.0
      %7617 = vmatprep.subr.mxu0 0.0
      %7618 = vmatpush1.msra.mxu0 0.0
      %7619 = vmatprep.subr.mxu0 0.0
      %7620 = vmatpush1.msra.mxu0 0.0
      %7621 = vmatprep.subr.mxu0 0.0
      %7622 = vmatpush1.msra.mxu0 0.0
      %7623 = vmatprep.subr.mxu0 0.0
      %7624 = vmatpush1.msra.mxu0 0.0
      %7625 = vmatprep.subr.mxu0 0.0
      %7626 = vmatpush1.msra.mxu0 0.0
      %7627 = vmatprep.subr.mxu0 0.0
      %7628 = vmatpush1.msra.mxu0 0.0
      %7629 = vmatprep.subr.mxu0 0.0
      %7630 = vmatpush1.msra.mxu0 0.0
      %7631 = vmatprep.subr.mxu0 0.0
      %7632 = vmatpush1.msra.mxu0 0.0
      %7633 = vmatprep.subr.mxu0 0.0
      %7634 = vmatpush1.msra.mxu0 0.0
      %7635 = vmatprep.subr.mxu0 0.0
      %7636 = vmatpush1.msra.mxu0 0.0
      %7637 = vmatprep.subr.mxu0 0.0
      %7638 = vmatpush1.msra.mxu0 0.0
      %7639 = vmatprep.mubr.f32.mxu0 0.0
      %7640 = vmatmul.mubr.f32.gmra.mrb[0].mxu0 %v7573
      %v7641 = vpop.f32.mrb[0].mxu0
      %v7642 = vadd.f32 0.0, %v7641
      %v7643 = vpop.f32.mrb[0].mxu0
      %7644 = vdwg.mxu0
      %v7646 = vsel %vm5281, %v7469, 0
      %7648 = vmatprep.subr.mxu0 0.0
      %7649 = vmatpush1.msra.mxu0 %v7485
      %7650 = vmatprep.subr.mxu0 0.0
      %7651 = vmatpush1.msra.mxu0 0.0
      %7652 = vmatprep.subr.mxu0 0.0
      %7653 = vmatpush1.msra.mxu0 0.0
      %7654 = vmatprep.subr.mxu0 0.0
      %7655 = vmatpush1.msra.mxu0 0.0
      %7656 = vmatprep.subr.mxu0 0.0
      %7657 = vmatpush1.msra.mxu0 0.0
      %7658 = vmatprep.subr.mxu0 0.0
      %7659 = vmatpush1.msra.mxu0 0.0
      %7660 = vmatprep.subr.mxu0 0.0
      %7661 = vmatpush1.msra.mxu0 0.0
      %7662 = vmatprep.subr.mxu0 0.0
      %7663 = vmatpush1.msra.mxu0 0.0
      %7664 = vmatprep.subr.mxu0 0.0
      %7665 = vmatpush1.msra.mxu0 0.0
      %7666 = vmatprep.subr.mxu0 0.0
      %7667 = vmatpush1.msra.mxu0 0.0
      %7668 = vmatprep.subr.mxu0 0.0
      %7669 = vmatpush1.msra.mxu0 0.0
      %7670 = vmatprep.subr.mxu0 0.0
      %7671 = vmatpush1.msra.mxu0 0.0
      %7672 = vmatprep.subr.mxu0 0.0
      %7673 = vmatpush1.msra.mxu0 0.0
      %7674 = vmatprep.subr.mxu0 0.0
      %7675 = vmatpush1.msra.mxu0 0.0
      %7676 = vmatprep.subr.mxu0 0.0
      %7677 = vmatpush1.msra.mxu0 0.0
      %7678 = vmatprep.subr.mxu0 0.0
      %7679 = vmatpush1.msra.mxu0 0.0
      %7680 = vmatprep.subr.mxu0 0.0
      %7681 = vmatpush1.msra.mxu0 0.0
      %7682 = vmatprep.subr.mxu0 0.0
      %7683 = vmatpush1.msra.mxu0 0.0
      %7684 = vmatprep.subr.mxu0 0.0
      %7685 = vmatpush1.msra.mxu0 0.0
      %7686 = vmatprep.subr.mxu0 0.0
      %7687 = vmatpush1.msra.mxu0 0.0
      %7688 = vmatprep.subr.mxu0 0.0
      %7689 = vmatpush1.msra.mxu0 0.0
      %7690 = vmatprep.subr.mxu0 0.0
      %7691 = vmatpush1.msra.mxu0 0.0
      %7692 = vmatprep.subr.mxu0 0.0
      %7693 = vmatpush1.msra.mxu0 0.0
      %7694 = vmatprep.subr.mxu0 0.0
      %7695 = vmatpush1.msra.mxu0 0.0
      %7696 = vmatprep.subr.mxu0 0.0
      %7697 = vmatpush1.msra.mxu0 0.0
      %7698 = vmatprep.subr.mxu0 0.0
      %7699 = vmatpush1.msra.mxu0 0.0
      %7700 = vmatprep.subr.mxu0 0.0
      %7701 = vmatpush1.msra.mxu0 0.0
      %7702 = vmatprep.subr.mxu0 0.0
      %7703 = vmatpush1.msra.mxu0 0.0
      %7704 = vmatprep.subr.mxu0 0.0
      %7705 = vmatpush1.msra.mxu0 0.0
      %7706 = vmatprep.subr.mxu0 0.0
      %7707 = vmatpush1.msra.mxu0 0.0
      %7708 = vmatprep.subr.mxu0 0.0
      %7709 = vmatpush1.msra.mxu0 0.0
      %7710 = vmatprep.subr.mxu0 0.0
      %7711 = vmatpush1.msra.mxu0 0.0
      %7712 = vmatprep.mubr.f32.mxu0 0.0
      %7713 = vmatmul.mubr.f32.gmra.mrb[0].mxu0 %v7646
      %v7714 = vpop.f32.mrb[0].mxu0
      %v7715 = vadd.f32 0.0, %v7714
      %v7716 = vpop.f32.mrb[0].mxu0
      %7717 = vdwg.mxu0
      %v7719 = vsel %vm5281, %v7470, 0
      %7721 = vmatprep.subr.mxu0 0.0
      %7722 = vmatpush1.msra.mxu0 %v7486
      %7723 = vmatprep.subr.mxu0 0.0
      %7724 = vmatpush1.msra.mxu0 0.0
      %7725 = vmatprep.subr.mxu0 0.0
      %7726 = vmatpush1.msra.mxu0 0.0
      %7727 = vmatprep.subr.mxu0 0.0
      %7728 = vmatpush1.msra.mxu0 0.0
      %7729 = vmatprep.subr.mxu0 0.0
      %7730 = vmatpush1.msra.mxu0 0.0
      %7731 = vmatprep.subr.mxu0 0.0
      %7732 = vmatpush1.msra.mxu0 0.0
      %7733 = vmatprep.subr.mxu0 0.0
      %7734 = vmatpush1.msra.mxu0 0.0
      %7735 = vmatprep.subr.mxu0 0.0
      %7736 = vmatpush1.msra.mxu0 0.0
      %7737 = vmatprep.subr.mxu0 0.0
      %7738 = vmatpush1.msra.mxu0 0.0
      %7739 = vmatprep.subr.mxu0 0.0
      %7740 = vmatpush1.msra.mxu0 0.0
      %7741 = vmatprep.subr.mxu0 0.0
      %7742 = vmatpush1.msra.mxu0 0.0
      %7743 = vmatprep.subr.mxu0 0.0
      %7744 = vmatpush1.msra.mxu0 0.0
      %7745 = vmatprep.subr.mxu0 0.0
      %7746 = vmatpush1.msra.mxu0 0.0
      %7747 = vmatprep.subr.mxu0 0.0
      %7748 = vmatpush1.msra.mxu0 0.0
      %7749 = vmatprep.subr.mxu0 0.0
      %7750 = vmatpush1.msra.mxu0 0.0
      %7751 = vmatprep.subr.mxu0 0.0
      %7752 = vmatpush1.msra.mxu0 0.0
      %7753 = vmatprep.subr.mxu0 0.0
      %7754 = vmatpush1.msra.mxu0 0.0
      %7755 = vmatprep.subr.mxu0 0.0
      %7756 = vmatpush1.msra.mxu0 0.0
      %7757 = vmatprep.subr.mxu0 0.0
      %7758 = vmatpush1.msra.mxu0 0.0
      %7759 = vmatprep.subr.mxu0 0.0
      %7760 = vmatpush1.msra.mxu0 0.0
      %7761 = vmatprep.subr.mxu0 0.0
      %7762 = vmatpush1.msra.mxu0 0.0
      %7763 = vmatprep.subr.mxu0 0.0
      %7764 = vmatpush1.msra.mxu0 0.0
      %7765 = vmatprep.subr.mxu0 0.0
      %7766 = vmatpush1.msra.mxu0 0.0
      %7767 = vmatprep.subr.mxu0 0.0
      %7768 = vmatpush1.msra.mxu0 0.0
      %7769 = vmatprep.subr.mxu0 0.0
      %7770 = vmatpush1.msra.mxu0 0.0
      %7771 = vmatprep.subr.mxu0 0.0
      %7772 = vmatpush1.msra.mxu0 0.0
      %7773 = vmatprep.subr.mxu0 0.0
      %7774 = vmatpush1.msra.mxu0 0.0
      %7775 = vmatprep.subr.mxu0 0.0
      %7776 = vmatpush1.msra.mxu0 0.0
      %7777 = vmatprep.subr.mxu0 0.0
      %7778 = vmatpush1.msra.mxu0 0.0
      %7779 = vmatprep.subr.mxu0 0.0
      %7780 = vmatpush1.msra.mxu0 0.0
      %7781 = vmatprep.subr.mxu0 0.0
      %7782 = vmatpush1.msra.mxu0 0.0
      %7783 = vmatprep.subr.mxu0 0.0
      %7784 = vmatpush1.msra.mxu0 0.0
      %7785 = vmatprep.mubr.f32.mxu0 0.0
      %7786 = vmatmul.mubr.f32.gmra.mrb[0].mxu0 %v7719
      %v7787 = vpop.f32.mrb[0].mxu0
      %v7788 = vadd.f32 0.0, %v7787
      %v7789 = vpop.f32.mrb[0].mxu0
      %7790 = vdwg.mxu0
      %v7792 = vsel %vm5281, %v7471, 0
      %7794 = vmatprep.subr.mxu0 0.0
      %7795 = vmatpush1.msra.mxu0 %v7487
      %7796 = vmatprep.subr.mxu0 0.0
      %7797 = vmatpush1.msra.mxu0 0.0
      %7798 = vmatprep.subr.mxu0 0.0
      %7799 = vmatpush1.msra.mxu0 0.0
      %7800 = vmatprep.subr.mxu0 0.0
      %7801 = vmatpush1.msra.mxu0 0.0
      %7802 = vmatprep.subr.mxu0 0.0
      %7803 = vmatpush1.msra.mxu0 0.0
      %7804 = vmatprep.subr.mxu0 0.0
      %7805 = vmatpush1.msra.mxu0 0.0
      %7806 = vmatprep.subr.mxu0 0.0
      %7807 = vmatpush1.msra.mxu0 0.0
      %7808 = vmatprep.subr.mxu0 0.0
      %7809 = vmatpush1.msra.mxu0 0.0
      %7810 = vmatprep.subr.mxu0 0.0
      %7811 = vmatpush1.msra.mxu0 0.0
      %7812 = vmatprep.subr.mxu0 0.0
      %7813 = vmatpush1.msra.mxu0 0.0
      %7814 = vmatprep.subr.mxu0 0.0
      %7815 = vmatpush1.msra.mxu0 0.0
      %7816 = vmatprep.subr.mxu0 0.0
      %7817 = vmatpush1.msra.mxu0 0.0
      %7818 = vmatprep.subr.mxu0 0.0
      %7819 = vmatpush1.msra.mxu0 0.0
      %7820 = vmatprep.subr.mxu0 0.0
      %7821 = vmatpush1.msra.mxu0 0.0
      %7822 = vmatprep.subr.mxu0 0.0
      %7823 = vmatpush1.msra.mxu0 0.0
      %7824 = vmatprep.subr.mxu0 0.0
      %7825 = vmatpush1.msra.mxu0 0.0
      %7826 = vmatprep.subr.mxu0 0.0
      %7827 = vmatpush1.msra.mxu0 0.0
      %7828 = vmatprep.subr.mxu0 0.0
      %7829 = vmatpush1.msra.mxu0 0.0
      %7830 = vmatprep.subr.mxu0 0.0
      %7831 = vmatpush1.msra.mxu0 0.0
      %7832 = vmatprep.subr.mxu0 0.0
      %7833 = vmatpush1.msra.mxu0 0.0
      %7834 = vmatprep.subr.mxu0 0.0
      %7835 = vmatpush1.msra.mxu0 0.0
      %7836 = vmatprep.subr.mxu0 0.0
      %7837 = vmatpush1.msra.mxu0 0.0
      %7838 = vmatprep.subr.mxu0 0.0
      %7839 = vmatpush1.msra.mxu0 0.0
      %7840 = vmatprep.subr.mxu0 0.0
      %7841 = vmatpush1.msra.mxu0 0.0
      %7842 = vmatprep.subr.mxu0 0.0
      %7843 = vmatpush1.msra.mxu0 0.0
      %7844 = vmatprep.subr.mxu0 0.0
      %7845 = vmatpush1.msra.mxu0 0.0
      %7846 = vmatprep.subr.mxu0 0.0
      %7847 = vmatpush1.msra.mxu0 0.0
      %7848 = vmatprep.subr.mxu0 0.0
      %7849 = vmatpush1.msra.mxu0 0.0
      %7850 = vmatprep.subr.mxu0 0.0
      %7851 = vmatpush1.msra.mxu0 0.0
      %7852 = vmatprep.subr.mxu0 0.0
      %7853 = vmatpush1.msra.mxu0 0.0
      %7854 = vmatprep.subr.mxu0 0.0
      %7855 = vmatpush1.msra.mxu0 0.0
      %7856 = vmatprep.subr.mxu0 0.0
      %7857 = vmatpush1.msra.mxu0 0.0
      %7858 = vmatprep.mubr.f32.mxu0 0.0
      %7859 = vmatmul.mubr.f32.gmra.mrb[0].mxu0 %v7792
      %v7860 = vpop.f32.mrb[0].mxu0
      %v7861 = vadd.f32 0.0, %v7860
      %v7862 = vpop.f32.mrb[0].mxu0
      %7863 = vdwg.mxu0
      %v7865 = vsel %vm5281, %v7472, 0
      %7867 = vmatprep.subr.mxu0 0.0
      %7868 = vmatpush1.msra.mxu0 %v7488
      %7869 = vmatprep.subr.mxu0 0.0
      %7870 = vmatpush1.msra.mxu0 0.0
      %7871 = vmatprep.subr.mxu0 0.0
      %7872 = vmatpush1.msra.mxu0 0.0
      %7873 = vmatprep.subr.mxu0 0.0
      %7874 = vmatpush1.msra.mxu0 0.0
      %7875 = vmatprep.subr.mxu0 0.0
      %7876 = vmatpush1.msra.mxu0 0.0
      %7877 = vmatprep.subr.mxu0 0.0
      %7878 = vmatpush1.msra.mxu0 0.0
      %7879 = vmatprep.subr.mxu0 0.0
      %7880 = vmatpush1.msra.mxu0 0.0
      %7881 = vmatprep.subr.mxu0 0.0
      %7882 = vmatpush1.msra.mxu0 0.0
      %7883 = vmatprep.subr.mxu0 0.0
      %7884 = vmatpush1.msra.mxu0 0.0
      %7885 = vmatprep.subr.mxu0 0.0
      %7886 = vmatpush1.msra.mxu0 0.0
      %7887 = vmatprep.subr.mxu0 0.0
      %7888 = vmatpush1.msra.mxu0 0.0
      %7889 = vmatprep.subr.mxu0 0.0
      %7890 = vmatpush1.msra.mxu0 0.0
      %7891 = vmatprep.subr.mxu0 0.0
      %7892 = vmatpush1.msra.mxu0 0.0
      %7893 = vmatprep.subr.mxu0 0.0
      %7894 = vmatpush1.msra.mxu0 0.0
      %7895 = vmatprep.subr.mxu0 0.0
      %7896 = vmatpush1.msra.mxu0 0.0
      %7897 = vmatprep.subr.mxu0 0.0
      %7898 = vmatpush1.msra.mxu0 0.0
      %7899 = vmatprep.subr.mxu0 0.0
      %7900 = vmatpush1.msra.mxu0 0.0
      %7901 = vmatprep.subr.mxu0 0.0
      %7902 = vmatpush1.msra.mxu0 0.0
      %7903 = vmatprep.subr.mxu0 0.0
      %7904 = vmatpush1.msra.mxu0 0.0
      %7905 = vmatprep.subr.mxu0 0.0
      %7906 = vmatpush1.msra.mxu0 0.0
      %7907 = vmatprep.subr.mxu0 0.0
      %7908 = vmatpush1.msra.mxu0 0.0
      %7909 = vmatprep.subr.mxu0 0.0
      %7910 = vmatpush1.msra.mxu0 0.0
      %7911 = vmatprep.subr.mxu0 0.0
      %7912 = vmatpush1.msra.mxu0 0.0
      %7913 = vmatprep.subr.mxu0 0.0
      %7914 = vmatpush1.msra.mxu0 0.0
      %7915 = vmatprep.subr.mxu0 0.0
      %7916 = vmatpush1.msra.mxu0 0.0
      %7917 = vmatprep.subr.mxu0 0.0
      %7918 = vmatpush1.msra.mxu0 0.0
      %7919 = vmatprep.subr.mxu0 0.0
      %7920 = vmatpush1.msra.mxu0 0.0
      %7921 = vmatprep.subr.mxu0 0.0
      %7922 = vmatpush1.msra.mxu0 0.0
      %7923 = vmatprep.subr.mxu0 0.0
      %7924 = vmatpush1.msra.mxu0 0.0
      %7925 = vmatprep.subr.mxu0 0.0
      %7926 = vmatpush1.msra.mxu0 0.0
      %7927 = vmatprep.subr.mxu0 0.0
      %7928 = vmatpush1.msra.mxu0 0.0
      %7929 = vmatprep.subr.mxu0 0.0
      %7930 = vmatpush1.msra.mxu0 0.0
      %7931 = vmatprep.mubr.f32.mxu0 0.0
      %7932 = vmatmul.mubr.f32.gmra.mrb[0].mxu0 %v7865
      %v7933 = vpop.f32.mrb[0].mxu0
      %v7934 = vadd.f32 0.0, %v7933
      %v7935 = vpop.f32.mrb[0].mxu0
      %7936 = vdwg.mxu0
      %v7938 = vsel %vm5281, %v7473, 0
      %7940 = vmatprep.subr.mxu0 0.0
      %7941 = vmatpush1.msra.mxu0 %v7489
      %7942 = vmatprep.subr.mxu0 0.0
      %7943 = vmatpush1.msra.mxu0 0.0
      %7944 = vmatprep.subr.mxu0 0.0
      %7945 = vmatpush1.msra.mxu0 0.0
      %7946 = vmatprep.subr.mxu0 0.0
      %7947 = vmatpush1.msra.mxu0 0.0
      %7948 = vmatprep.subr.mxu0 0.0
      %7949 = vmatpush1.msra.mxu0 0.0
      %7950 = vmatprep.subr.mxu0 0.0
      %7951 = vmatpush1.msra.mxu0 0.0
      %7952 = vmatprep.subr.mxu0 0.0
      %7953 = vmatpush1.msra.mxu0 0.0
      %7954 = vmatprep.subr.mxu0 0.0
      %7955 = vmatpush1.msra.mxu0 0.0
      %7956 = vmatprep.subr.mxu0 0.0
      %7957 = vmatpush1.msra.mxu0 0.0
      %7958 = vmatprep.subr.mxu0 0.0
      %7959 = vmatpush1.msra.mxu0 0.0
      %7960 = vmatprep.subr.mxu0 0.0
      %7961 = vmatpush1.msra.mxu0 0.0
      %7962 = vmatprep.subr.mxu0 0.0
      %7963 = vmatpush1.msra.mxu0 0.0
      %7964 = vmatprep.subr.mxu0 0.0
      %7965 = vmatpush1.msra.mxu0 0.0
      %7966 = vmatprep.subr.mxu0 0.0
      %7967 = vmatpush1.msra.mxu0 0.0
      %7968 = vmatprep.subr.mxu0 0.0
      %7969 = vmatpush1.msra.mxu0 0.0
      %7970 = vmatprep.subr.mxu0 0.0
      %7971 = vmatpush1.msra.mxu0 0.0
      %7972 = vmatprep.subr.mxu0 0.0
      %7973 = vmatpush1.msra.mxu0 0.0
      %7974 = vmatprep.subr.mxu0 0.0
      %7975 = vmatpush1.msra.mxu0 0.0
      %7976 = vmatprep.subr.mxu0 0.0
      %7977 = vmatpush1.msra.mxu0 0.0
      %7978 = vmatprep.subr.mxu0 0.0
      %7979 = vmatpush1.msra.mxu0 0.0
      %7980 = vmatprep.subr.mxu0 0.0
      %7981 = vmatpush1.msra.mxu0 0.0
      %7982 = vmatprep.subr.mxu0 0.0
      %7983 = vmatpush1.msra.mxu0 0.0
      %7984 = vmatprep.subr.mxu0 0.0
      %7985 = vmatpush1.msra.mxu0 0.0
      %7986 = vmatprep.subr.mxu0 0.0
      %7987 = vmatpush1.msra.mxu0 0.0
      %7988 = vmatprep.subr.mxu0 0.0
      %7989 = vmatpush1.msra.mxu0 0.0
      %7990 = vmatprep.subr.mxu0 0.0
      %7991 = vmatpush1.msra.mxu0 0.0
      %7992 = vmatprep.subr.mxu0 0.0
      %7993 = vmatpush1.msra.mxu0 0.0
      %7994 = vmatprep.subr.mxu0 0.0
      %7995 = vmatpush1.msra.mxu0 0.0
      %7996 = vmatprep.subr.mxu0 0.0
      %7997 = vmatpush1.msra.mxu0 0.0
      %7998 = vmatprep.subr.mxu0 0.0
      %7999 = vmatpush1.msra.mxu0 0.0
      %8000 = vmatprep.subr.mxu0 0.0
      %8001 = vmatpush1.msra.mxu0 0.0
      %8002 = vmatprep.subr.mxu0 0.0
      %8003 = vmatpush1.msra.mxu0 0.0
      %8004 = vmatprep.mubr.f32.mxu0 0.0
      %8005 = vmatmul.mubr.f32.gmra.mrb[0].mxu0 %v7938
      %v8006 = vpop.f32.mrb[0].mxu0
      %v8007 = vadd.f32 0.0, %v8006
      %v8008 = vpop.f32.mrb[0].mxu0
      %8009 = vdwg.mxu0
      %v8011 = vsel %vm5281, %v7474, 0
      %8013 = vmatprep.subr.mxu0 0.0
      %8014 = vmatpush1.msra.mxu0 %v7490
      %8015 = vmatprep.subr.mxu0 0.0
      %8016 = vmatpush1.msra.mxu0 0.0
      %8017 = vmatprep.subr.mxu0 0.0
      %8018 = vmatpush1.msra.mxu0 0.0
      %8019 = vmatprep.subr.mxu0 0.0
      %8020 = vmatpush1.msra.mxu0 0.0
      %8021 = vmatprep.subr.mxu0 0.0
      %8022 = vmatpush1.msra.mxu0 0.0
      %8023 = vmatprep.subr.mxu0 0.0
      %8024 = vmatpush1.msra.mxu0 0.0
      %8025 = vmatprep.subr.mxu0 0.0
      %8026 = vmatpush1.msra.mxu0 0.0
      %8027 = vmatprep.subr.mxu0 0.0
      %8028 = vmatpush1.msra.mxu0 0.0
      %8029 = vmatprep.subr.mxu0 0.0
      %8030 = vmatpush1.msra.mxu0 0.0
      %8031 = vmatprep.subr.mxu0 0.0
      %8032 = vmatpush1.msra.mxu0 0.0
      %8033 = vmatprep.subr.mxu0 0.0
      %8034 = vmatpush1.msra.mxu0 0.0
      %8035 = vmatprep.subr.mxu0 0.0
      %8036 = vmatpush1.msra.mxu0 0.0
      %8037 = vmatprep.subr.mxu0 0.0
      %8038 = vmatpush1.msra.mxu0 0.0
      %8039 = vmatprep.subr.mxu0 0.0
      %8040 = vmatpush1.msra.mxu0 0.0
      %8041 = vmatprep.subr.mxu0 0.0
      %8042 = vmatpush1.msra.mxu0 0.0
      %8043 = vmatprep.subr.mxu0 0.0
      %8044 = vmatpush1.msra.mxu0 0.0
      %8045 = vmatprep.subr.mxu0 0.0
      %8046 = vmatpush1.msra.mxu0 0.0
      %8047 = vmatprep.subr.mxu0 0.0
      %8048 = vmatpush1.msra.mxu0 0.0
      %8049 = vmatprep.subr.mxu0 0.0
      %8050 = vmatpush1.msra.mxu0 0.0
      %8051 = vmatprep.subr.mxu0 0.0
      %8052 = vmatpush1.msra.mxu0 0.0
      %8053 = vmatprep.subr.mxu0 0.0
      %8054 = vmatpush1.msra.mxu0 0.0
      %8055 = vmatprep.subr.mxu0 0.0
      %8056 = vmatpush1.msra.mxu0 0.0
      %8057 = vmatprep.subr.mxu0 0.0
      %8058 = vmatpush1.msra.mxu0 0.0
      %8059 = vmatprep.subr.mxu0 0.0
      %8060 = vmatpush1.msra.mxu0 0.0
      %8061 = vmatprep.subr.mxu0 0.0
      %8062 = vmatpush1.msra.mxu0 0.0
      %8063 = vmatprep.subr.mxu0 0.0
      %8064 = vmatpush1.msra.mxu0 0.0
      %8065 = vmatprep.subr.mxu0 0.0
      %8066 = vmatpush1.msra.mxu0 0.0
      %8067 = vmatprep.subr.mxu0 0.0
      %8068 = vmatpush1.msra.mxu0 0.0
      %8069 = vmatprep.subr.mxu0 0.0
      %8070 = vmatpush1.msra.mxu0 0.0
      %8071 = vmatprep.subr.mxu0 0.0
      %8072 = vmatpush1.msra.mxu0 0.0
      %8073 = vmatprep.subr.mxu0 0.0
      %8074 = vmatpush1.msra.mxu0 0.0
      %8075 = vmatprep.subr.mxu0 0.0
      %8076 = vmatpush1.msra.mxu0 0.0
      %8077 = vmatprep.mubr.f32.mxu0 0.0
      %8078 = vmatmul.mubr.f32.gmra.mrb[0].mxu0 %v8011
      %v8079 = vpop.f32.mrb[0].mxu0
      %v8080 = vadd.f32 0.0, %v8079
      %v8081 = vpop.f32.mrb[0].mxu0
      %8082 = vdwg.mxu0
      %v8084 = vsel %vm5281, %v7475, 0
      %8086 = vmatprep.subr.mxu0 0.0
      %8087 = vmatpush1.msra.mxu0 %v7491
      %8088 = vmatprep.subr.mxu0 0.0
      %8089 = vmatpush1.msra.mxu0 0.0
      %8090 = vmatprep.subr.mxu0 0.0
      %8091 = vmatpush1.msra.mxu0 0.0
      %8092 = vmatprep.subr.mxu0 0.0
      %8093 = vmatpush1.msra.mxu0 0.0
      %8094 = vmatprep.subr.mxu0 0.0
      %8095 = vmatpush1.msra.mxu0 0.0
      %8096 = vmatprep.subr.mxu0 0.0
      %8097 = vmatpush1.msra.mxu0 0.0
      %8098 = vmatprep.subr.mxu0 0.0
      %8099 = vmatpush1.msra.mxu0 0.0
      %8100 = vmatprep.subr.mxu0 0.0
      %8101 = vmatpush1.msra.mxu0 0.0
      %8102 = vmatprep.subr.mxu0 0.0
      %8103 = vmatpush1.msra.mxu0 0.0
      %8104 = vmatprep.subr.mxu0 0.0
      %8105 = vmatpush1.msra.mxu0 0.0
      %8106 = vmatprep.subr.mxu0 0.0
      %8107 = vmatpush1.msra.mxu0 0.0
      %8108 = vmatprep.subr.mxu0 0.0
      %8109 = vmatpush1.msra.mxu0 0.0
      %8110 = vmatprep.subr.mxu0 0.0
      %8111 = vmatpush1.msra.mxu0 0.0
      %8112 = vmatprep.subr.mxu0 0.0
      %8113 = vmatpush1.msra.mxu0 0.0
      %8114 = vmatprep.subr.mxu0 0.0
      %8115 = vmatpush1.msra.mxu0 0.0
      %8116 = vmatprep.subr.mxu0 0.0
      %8117 = vmatpush1.msra.mxu0 0.0
      %8118 = vmatprep.subr.mxu0 0.0
      %8119 = vmatpush1.msra.mxu0 0.0
      %8120 = vmatprep.subr.mxu0 0.0
      %8121 = vmatpush1.msra.mxu0 0.0
      %8122 = vmatprep.subr.mxu0 0.0
      %8123 = vmatpush1.msra.mxu0 0.0
      %8124 = vmatprep.subr.mxu0 0.0
      %8125 = vmatpush1.msra.mxu0 0.0
      %8126 = vmatprep.subr.mxu0 0.0
      %8127 = vmatpush1.msra.mxu0 0.0
      %8128 = vmatprep.subr.mxu0 0.0
      %8129 = vmatpush1.msra.mxu0 0.0
      %8130 = vmatprep.subr.mxu0 0.0
      %8131 = vmatpush1.msra.mxu0 0.0
      %8132 = vmatprep.subr.mxu0 0.0
      %8133 = vmatpush1.msra.mxu0 0.0
      %8134 = vmatprep.subr.mxu0 0.0
      %8135 = vmatpush1.msra.mxu0 0.0
      %8136 = vmatprep.subr.mxu0 0.0
      %8137 = vmatpush1.msra.mxu0 0.0
      %8138 = vmatprep.subr.mxu0 0.0
      %8139 = vmatpush1.msra.mxu0 0.0
      %8140 = vmatprep.subr.mxu0 0.0
      %8141 = vmatpush1.msra.mxu0 0.0
      %8142 = vmatprep.subr.mxu0 0.0
      %8143 = vmatpush1.msra.mxu0 0.0
      %8144 = vmatprep.subr.mxu0 0.0
      %8145 = vmatpush1.msra.mxu0 0.0
      %8146 = vmatprep.subr.mxu0 0.0
      %8147 = vmatpush1.msra.mxu0 0.0
      %8148 = vmatprep.subr.mxu0 0.0
      %8149 = vmatpush1.msra.mxu0 0.0
      %8150 = vmatprep.mubr.f32.mxu0 0.0
      %8151 = vmatmul.mubr.f32.gmra.mrb[0].mxu0 %v8084
      %v8152 = vpop.f32.mrb[0].mxu0
      %v8153 = vadd.f32 0.0, %v8152
      %v8154 = vpop.f32.mrb[0].mxu0
      %8155 = vdwg.mxu0
      %v8157 = vsel %vm5281, %v7476, 0
      %8159 = vmatprep.subr.mxu0 0.0
      %8160 = vmatpush1.msra.mxu0 %v7492
      %8161 = vmatprep.subr.mxu0 0.0
      %8162 = vmatpush1.msra.mxu0 0.0
      %8163 = vmatprep.subr.mxu0 0.0
      %8164 = vmatpush1.msra.mxu0 0.0
      %8165 = vmatprep.subr.mxu0 0.0
      %8166 = vmatpush1.msra.mxu0 0.0
      %8167 = vmatprep.subr.mxu0 0.0
      %8168 = vmatpush1.msra.mxu0 0.0
      %8169 = vmatprep.subr.mxu0 0.0
      %8170 = vmatpush1.msra.mxu0 0.0
      %8171 = vmatprep.subr.mxu0 0.0
      %8172 = vmatpush1.msra.mxu0 0.0
      %8173 = vmatprep.subr.mxu0 0.0
      %8174 = vmatpush1.msra.mxu0 0.0
      %8175 = vmatprep.subr.mxu0 0.0
      %8176 = vmatpush1.msra.mxu0 0.0
      %8177 = vmatprep.subr.mxu0 0.0
      %8178 = vmatpush1.msra.mxu0 0.0
      %8179 = vmatprep.subr.mxu0 0.0
      %8180 = vmatpush1.msra.mxu0 0.0
      %8181 = vmatprep.subr.mxu0 0.0
      %8182 = vmatpush1.msra.mxu0 0.0
      %8183 = vmatprep.subr.mxu0 0.0
      %8184 = vmatpush1.msra.mxu0 0.0
      %8185 = vmatprep.subr.mxu0 0.0
      %8186 = vmatpush1.msra.mxu0 0.0
      %8187 = vmatprep.subr.mxu0 0.0
      %8188 = vmatpush1.msra.mxu0 0.0
      %8189 = vmatprep.subr.mxu0 0.0
      %8190 = vmatpush1.msra.mxu0 0.0
      %8191 = vmatprep.subr.mxu0 0.0
      %8192 = vmatpush1.msra.mxu0 0.0
      %8193 = vmatprep.subr.mxu0 0.0
      %8194 = vmatpush1.msra.mxu0 0.0
      %8195 = vmatprep.subr.mxu0 0.0
      %8196 = vmatpush1.msra.mxu0 0.0
      %8197 = vmatprep.subr.mxu0 0.0
      %8198 = vmatpush1.msra.mxu0 0.0
      %8199 = vmatprep.subr.mxu0 0.0
      %8200 = vmatpush1.msra.mxu0 0.0
      %8201 = vmatprep.subr.mxu0 0.0
      %8202 = vmatpush1.msra.mxu0 0.0
      %8203 = vmatprep.subr.mxu0 0.0
      %8204 = vmatpush1.msra.mxu0 0.0
      %8205 = vmatprep.subr.mxu0 0.0
      %8206 = vmatpush1.msra.mxu0 0.0
      %8207 = vmatprep.subr.mxu0 0.0
      %8208 = vmatpush1.msra.mxu0 0.0
      %8209 = vmatprep.subr.mxu0 0.0
      %8210 = vmatpush1.msra.mxu0 0.0
      %8211 = vmatprep.subr.mxu0 0.0
      %8212 = vmatpush1.msra.mxu0 0.0
      %8213 = vmatprep.subr.mxu0 0.0
      %8214 = vmatpush1.msra.mxu0 0.0
      %8215 = vmatprep.subr.mxu0 0.0
      %8216 = vmatpush1.msra.mxu0 0.0
      %8217 = vmatprep.subr.mxu0 0.0
      %8218 = vmatpush1.msra.mxu0 0.0
      %8219 = vmatprep.subr.mxu0 0.0
      %8220 = vmatpush1.msra.mxu0 0.0
      %8221 = vmatprep.subr.mxu0 0.0
      %8222 = vmatpush1.msra.mxu0 0.0
      %8223 = vmatprep.mubr.f32.mxu0 0.0
      %8224 = vmatmul.mubr.f32.gmra.mrb[0].mxu0 %v8157
      %v8225 = vpop.f32.mrb[0].mxu0
      %v8226 = vadd.f32 0.0, %v8225
      %v8227 = vpop.f32.mrb[0].mxu0
      %8228 = vdwg.mxu0
      %v8230 = vsel %vm5281, %v7477, 0
      %8232 = vmatprep.subr.mxu0 0.0
      %8233 = vmatpush1.msra.mxu0 %v7493
      %8234 = vmatprep.subr.mxu0 0.0
      %8235 = vmatpush1.msra.mxu0 0.0
      %8236 = vmatprep.subr.mxu0 0.0
      %8237 = vmatpush1.msra.mxu0 0.0
      %8238 = vmatprep.subr.mxu0 0.0
      %8239 = vmatpush1.msra.mxu0 0.0
      %8240 = vmatprep.subr.mxu0 0.0
      %8241 = vmatpush1.msra.mxu0 0.0
      %8242 = vmatprep.subr.mxu0 0.0
      %8243 = vmatpush1.msra.mxu0 0.0
      %8244 = vmatprep.subr.mxu0 0.0
      %8245 = vmatpush1.msra.mxu0 0.0
      %8246 = vmatprep.subr.mxu0 0.0
      %8247 = vmatpush1.msra.mxu0 0.0
      %8248 = vmatprep.subr.mxu0 0.0
      %8249 = vmatpush1.msra.mxu0 0.0
      %8250 = vmatprep.subr.mxu0 0.0
      %8251 = vmatpush1.msra.mxu0 0.0
      %8252 = vmatprep.subr.mxu0 0.0
      %8253 = vmatpush1.msra.mxu0 0.0
      %8254 = vmatprep.subr.mxu0 0.0
      %8255 = vmatpush1.msra.mxu0 0.0
      %8256 = vmatprep.subr.mxu0 0.0
      %8257 = vmatpush1.msra.mxu0 0.0
      %8258 = vmatprep.subr.mxu0 0.0
      %8259 = vmatpush1.msra.mxu0 0.0
      %8260 = vmatprep.subr.mxu0 0.0
      %8261 = vmatpush1.msra.mxu0 0.0
      %8262 = vmatprep.subr.mxu0 0.0
      %8263 = vmatpush1.msra.mxu0 0.0
      %8264 = vmatprep.subr.mxu0 0.0
      %8265 = vmatpush1.msra.mxu0 0.0
      %8266 = vmatprep.subr.mxu0 0.0
      %8267 = vmatpush1.msra.mxu0 0.0
      %8268 = vmatprep.subr.mxu0 0.0
      %8269 = vmatpush1.msra.mxu0 0.0
      %8270 = vmatprep.subr.mxu0 0.0
      %8271 = vmatpush1.msra.mxu0 0.0
      %8272 = vmatprep.subr.mxu0 0.0
      %8273 = vmatpush1.msra.mxu0 0.0
      %8274 = vmatprep.subr.mxu0 0.0
      %8275 = vmatpush1.msra.mxu0 0.0
      %8276 = vmatprep.subr.mxu0 0.0
      %8277 = vmatpush1.msra.mxu0 0.0
      %8278 = vmatprep.subr.mxu0 0.0
      %8279 = vmatpush1.msra.mxu0 0.0
      %8280 = vmatprep.subr.mxu0 0.0
      %8281 = vmatpush1.msra.mxu0 0.0
      %8282 = vmatprep.subr.mxu0 0.0
      %8283 = vmatpush1.msra.mxu0 0.0
      %8284 = vmatprep.subr.mxu0 0.0
      %8285 = vmatpush1.msra.mxu0 0.0
      %8286 = vmatprep.subr.mxu0 0.0
      %8287 = vmatpush1.msra.mxu0 0.0
      %8288 = vmatprep.subr.mxu0 0.0
      %8289 = vmatpush1.msra.mxu0 0.0
      %8290 = vmatprep.subr.mxu0 0.0
      %8291 = vmatpush1.msra.mxu0 0.0
      %8292 = vmatprep.subr.mxu0 0.0
      %8293 = vmatpush1.msra.mxu0 0.0
      %8294 = vmatprep.subr.mxu0 0.0
      %8295 = vmatpush1.msra.mxu0 0.0
      %8296 = vmatprep.mubr.f32.mxu0 0.0
      %8297 = vmatmul.mubr.f32.gmra.mrb[0].mxu0 %v8230
      %v8298 = vpop.f32.mrb[0].mxu0
      %v8299 = vadd.f32 0.0, %v8298
      %v8300 = vpop.f32.mrb[0].mxu0
      %8301 = vdwg.mxu0
      %v8303 = vsel %vm5281, %v7478, 0
      %8305 = vmatprep.subr.mxu0 0.0
      %8306 = vmatpush1.msra.mxu0 %v7494
      %8307 = vmatprep.subr.mxu0 0.0
      %8308 = vmatpush1.msra.mxu0 0.0
      %8309 = vmatprep.subr.mxu0 0.0
      %8310 = vmatpush1.msra.mxu0 0.0
      %8311 = vmatprep.subr.mxu0 0.0
      %8312 = vmatpush1.msra.mxu0 0.0
      %8313 = vmatprep.subr.mxu0 0.0
      %8314 = vmatpush1.msra.mxu0 0.0
      %8315 = vmatprep.subr.mxu0 0.0
      %8316 = vmatpush1.msra.mxu0 0.0
      %8317 = vmatprep.subr.mxu0 0.0
      %8318 = vmatpush1.msra.mxu0 0.0
      %8319 = vmatprep.subr.mxu0 0.0
      %8320 = vmatpush1.msra.mxu0 0.0
      %8321 = vmatprep.subr.mxu0 0.0
      %8322 = vmatpush1.msra.mxu0 0.0
      %8323 = vmatprep.subr.mxu0 0.0
      %8324 = vmatpush1.msra.mxu0 0.0
      %8325 = vmatprep.subr.mxu0 0.0
      %8326 = vmatpush1.msra.mxu0 0.0
      %8327 = vmatprep.subr.mxu0 0.0
      %8328 = vmatpush1.msra.mxu0 0.0
      %8329 = vmatprep.subr.mxu0 0.0
      %8330 = vmatpush1.msra.mxu0 0.0
      %8331 = vmatprep.subr.mxu0 0.0
      %8332 = vmatpush1.msra.mxu0 0.0
      %8333 = vmatprep.subr.mxu0 0.0
      %8334 = vmatpush1.msra.mxu0 0.0
      %8335 = vmatprep.subr.mxu0 0.0
      %8336 = vmatpush1.msra.mxu0 0.0
      %8337 = vmatprep.subr.mxu0 0.0
      %8338 = vmatpush1.msra.mxu0 0.0
      %8339 = vmatprep.subr.mxu0 0.0
      %8340 = vmatpush1.msra.mxu0 0.0
      %8341 = vmatprep.subr.mxu0 0.0
      %8342 = vmatpush1.msra.mxu0 0.0
      %8343 = vmatprep.subr.mxu0 0.0
      %8344 = vmatpush1.msra.mxu0 0.0
      %8345 = vmatprep.subr.mxu0 0.0
      %8346 = vmatpush1.msra.mxu0 0.0
      %8347 = vmatprep.subr.mxu0 0.0
      %8348 = vmatpush1.msra.mxu0 0.0
      %8349 = vmatprep.subr.mxu0 0.0
      %8350 = vmatpush1.msra.mxu0 0.0
      %8351 = vmatprep.subr.mxu0 0.0
      %8352 = vmatpush1.msra.mxu0 0.0
      %8353 = vmatprep.subr.mxu0 0.0
      %8354 = vmatpush1.msra.mxu0 0.0
      %8355 = vmatprep.subr.mxu0 0.0
      %8356 = vmatpush1.msra.mxu0 0.0
      %8357 = vmatprep.subr.mxu0 0.0
      %8358 = vmatpush1.msra.mxu0 0.0
      %8359 = vmatprep.subr.mxu0 0.0
      %8360 = vmatpush1.msra.mxu0 0.0
      %8361 = vmatprep.subr.mxu0 0.0
      %8362 = vmatpush1.msra.mxu0 0.0
      %8363 = vmatprep.subr.mxu0 0.0
      %8364 = vmatpush1.msra.mxu0 0.0
      %8365 = vmatprep.subr.mxu0 0.0
      %8366 = vmatpush1.msra.mxu0 0.0
      %8367 = vmatprep.subr.mxu0 0.0
      %8368 = vmatpush1.msra.mxu0 0.0
      %8369 = vmatprep.mubr.f32.mxu0 0.0
      %8370 = vmatmul.mubr.f32.gmra.mrb[0].mxu0 %v8303
      %v8371 = vpop.f32.mrb[0].mxu0
      %v8372 = vadd.f32 0.0, %v8371
      %v8373 = vpop.f32.mrb[0].mxu0
      %8374 = vdwg.mxu0
      %v8376 = vsel %vm5281, %v7479, 0
      %8378 = vmatprep.subr.mxu0 0.0
      %8379 = vmatpush1.msra.mxu0 %v7495
      %8380 = vmatprep.subr.mxu0 0.0
      %8381 = vmatpush1.msra.mxu0 0.0
      %8382 = vmatprep.subr.mxu0 0.0
      %8383 = vmatpush1.msra.mxu0 0.0
      %8384 = vmatprep.subr.mxu0 0.0
      %8385 = vmatpush1.msra.mxu0 0.0
      %8386 = vmatprep.subr.mxu0 0.0
      %8387 = vmatpush1.msra.mxu0 0.0
      %8388 = vmatprep.subr.mxu0 0.0
      %8389 = vmatpush1.msra.mxu0 0.0
      %8390 = vmatprep.subr.mxu0 0.0
      %8391 = vmatpush1.msra.mxu0 0.0
      %8392 = vmatprep.subr.mxu0 0.0
      %8393 = vmatpush1.msra.mxu0 0.0
      %8394 = vmatprep.subr.mxu0 0.0
      %8395 = vmatpush1.msra.mxu0 0.0
      %8396 = vmatprep.subr.mxu0 0.0
      %8397 = vmatpush1.msra.mxu0 0.0
      %8398 = vmatprep.subr.mxu0 0.0
      %8399 = vmatpush1.msra.mxu0 0.0
      %8400 = vmatprep.subr.mxu0 0.0
      %8401 = vmatpush1.msra.mxu0 0.0
      %8402 = vmatprep.subr.mxu0 0.0
      %8403 = vmatpush1.msra.mxu0 0.0
      %8404 = vmatprep.subr.mxu0 0.0
      %8405 = vmatpush1.msra.mxu0 0.0
      %8406 = vmatprep.subr.mxu0 0.0
      %8407 = vmatpush1.msra.mxu0 0.0
      %8408 = vmatprep.subr.mxu0 0.0
      %8409 = vmatpush1.msra.mxu0 0.0
      %8410 = vmatprep.subr.mxu0 0.0
      %8411 = vmatpush1.msra.mxu0 0.0
      %8412 = vmatprep.subr.mxu0 0.0
      %8413 = vmatpush1.msra.mxu0 0.0
      %8414 = vmatprep.subr.mxu0 0.0
      %8415 = vmatpush1.msra.mxu0 0.0
      %8416 = vmatprep.subr.mxu0 0.0
      %8417 = vmatpush1.msra.mxu0 0.0
      %8418 = vmatprep.subr.mxu0 0.0
      %8419 = vmatpush1.msra.mxu0 0.0
      %8420 = vmatprep.subr.mxu0 0.0
      %8421 = vmatpush1.msra.mxu0 0.0
      %8422 = vmatprep.subr.mxu0 0.0
      %8423 = vmatpush1.msra.mxu0 0.0
      %8424 = vmatprep.subr.mxu0 0.0
      %8425 = vmatpush1.msra.mxu0 0.0
      %8426 = vmatprep.subr.mxu0 0.0
      %8427 = vmatpush1.msra.mxu0 0.0
      %8428 = vmatprep.subr.mxu0 0.0
      %8429 = vmatpush1.msra.mxu0 0.0
      %8430 = vmatprep.subr.mxu0 0.0
      %8431 = vmatpush1.msra.mxu0 0.0
      %8432 = vmatprep.subr.mxu0 0.0
      %8433 = vmatpush1.msra.mxu0 0.0
      %8434 = vmatprep.subr.mxu0 0.0
      %8435 = vmatpush1.msra.mxu0 0.0
      %8436 = vmatprep.subr.mxu0 0.0
      %8437 = vmatpush1.msra.mxu0 0.0
      %8438 = vmatprep.subr.mxu0 0.0
      %8439 = vmatpush1.msra.mxu0 0.0
      %8440 = vmatprep.subr.mxu0 0.0
      %8441 = vmatpush1.msra.mxu0 0.0
      %8442 = vmatprep.mubr.f32.mxu0 0.0
      %8443 = vmatmul.mubr.f32.gmra.mrb[0].mxu0 %v8376
      %v8444 = vpop.f32.mrb[0].mxu0
      %v8445 = vadd.f32 0.0, %v8444
      %v8446 = vpop.f32.mrb[0].mxu0
      %8447 = vdwg.mxu0
      %v8449 = vsel %vm5281, %v7480, 0
      %8451 = vmatprep.subr.mxu0 0.0
      %8452 = vmatpush1.msra.mxu0 %v7496
      %8453 = vmatprep.subr.mxu0 0.0
      %8454 = vmatpush1.msra.mxu0 0.0
      %8455 = vmatprep.subr.mxu0 0.0
      %8456 = vmatpush1.msra.mxu0 0.0
      %8457 = vmatprep.subr.mxu0 0.0
      %8458 = vmatpush1.msra.mxu0 0.0
      %8459 = vmatprep.subr.mxu0 0.0
      %8460 = vmatpush1.msra.mxu0 0.0
      %8461 = vmatprep.subr.mxu0 0.0
      %8462 = vmatpush1.msra.mxu0 0.0
      %8463 = vmatprep.subr.mxu0 0.0
      %8464 = vmatpush1.msra.mxu0 0.0
      %8465 = vmatprep.subr.mxu0 0.0
      %8466 = vmatpush1.msra.mxu0 0.0
      %8467 = vmatprep.subr.mxu0 0.0
      %8468 = vmatpush1.msra.mxu0 0.0
      %8469 = vmatprep.subr.mxu0 0.0
      %8470 = vmatpush1.msra.mxu0 0.0
      %8471 = vmatprep.subr.mxu0 0.0
      %8472 = vmatpush1.msra.mxu0 0.0
      %8473 = vmatprep.subr.mxu0 0.0
      %8474 = vmatpush1.msra.mxu0 0.0
      %8475 = vmatprep.subr.mxu0 0.0
      %8476 = vmatpush1.msra.mxu0 0.0
      %8477 = vmatprep.subr.mxu0 0.0
      %8478 = vmatpush1.msra.mxu0 0.0
      %8479 = vmatprep.subr.mxu0 0.0
      %8480 = vmatpush1.msra.mxu0 0.0
      %8481 = vmatprep.subr.mxu0 0.0
      %8482 = vmatpush1.msra.mxu0 0.0
      %8483 = vmatprep.subr.mxu0 0.0
      %8484 = vmatpush1.msra.mxu0 0.0
      %8485 = vmatprep.subr.mxu0 0.0
      %8486 = vmatpush1.msra.mxu0 0.0
      %8487 = vmatprep.subr.mxu0 0.0
      %8488 = vmatpush1.msra.mxu0 0.0
      %8489 = vmatprep.subr.mxu0 0.0
      %8490 = vmatpush1.msra.mxu0 0.0
      %8491 = vmatprep.subr.mxu0 0.0
      %8492 = vmatpush1.msra.mxu0 0.0
      %8493 = vmatprep.subr.mxu0 0.0
      %8494 = vmatpush1.msra.mxu0 0.0
      %8495 = vmatprep.subr.mxu0 0.0
      %8496 = vmatpush1.msra.mxu0 0.0
      %8497 = vmatprep.subr.mxu0 0.0
      %8498 = vmatpush1.msra.mxu0 0.0
      %8499 = vmatprep.subr.mxu0 0.0
      %8500 = vmatpush1.msra.mxu0 0.0
      %8501 = vmatprep.subr.mxu0 0.0
      %8502 = vmatpush1.msra.mxu0 0.0
      %8503 = vmatprep.subr.mxu0 0.0
      %8504 = vmatpush1.msra.mxu0 0.0
      %8505 = vmatprep.subr.mxu0 0.0
      %8506 = vmatpush1.msra.mxu0 0.0
      %8507 = vmatprep.subr.mxu0 0.0
      %8508 = vmatpush1.msra.mxu0 0.0
      %8509 = vmatprep.subr.mxu0 0.0
      %8510 = vmatpush1.msra.mxu0 0.0
      %8511 = vmatprep.subr.mxu0 0.0
      %8512 = vmatpush1.msra.mxu0 0.0
      %8513 = vmatprep.subr.mxu0 0.0
      %8514 = vmatpush1.msra.mxu0 0.0
      %8515 = vmatprep.mubr.f32.mxu0 0.0
      %8516 = vmatmul.mubr.f32.gmra.mrb[0].mxu0 %v8449
      %v8517 = vpop.f32.mrb[0].mxu0
      %v8518 = vadd.f32 0.0, %v8517
      %v8519 = vpop.f32.mrb[0].mxu0
      %8520 = vdwg.mxu0
      %v8522 = vsel %vm5281, %v7481, 0
      %8524 = vmatprep.subr.mxu0 0.0
      %8525 = vmatpush1.msra.mxu0 %v7497
      %8526 = vmatprep.subr.mxu0 0.0
      %8527 = vmatpush1.msra.mxu0 0.0
      %8528 = vmatprep.subr.mxu0 0.0
      %8529 = vmatpush1.msra.mxu0 0.0
      %8530 = vmatprep.subr.mxu0 0.0
      %8531 = vmatpush1.msra.mxu0 0.0
      %8532 = vmatprep.subr.mxu0 0.0
      %8533 = vmatpush1.msra.mxu0 0.0
      %8534 = vmatprep.subr.mxu0 0.0
      %8535 = vmatpush1.msra.mxu0 0.0
      %8536 = vmatprep.subr.mxu0 0.0
      %8537 = vmatpush1.msra.mxu0 0.0
      %8538 = vmatprep.subr.mxu0 0.0
      %8539 = vmatpush1.msra.mxu0 0.0
      %8540 = vmatprep.subr.mxu0 0.0
      %8541 = vmatpush1.msra.mxu0 0.0
      %8542 = vmatprep.subr.mxu0 0.0
      %8543 = vmatpush1.msra.mxu0 0.0
      %8544 = vmatprep.subr.mxu0 0.0
      %8545 = vmatpush1.msra.mxu0 0.0
      %8546 = vmatprep.subr.mxu0 0.0
      %8547 = vmatpush1.msra.mxu0 0.0
      %8548 = vmatprep.subr.mxu0 0.0
      %8549 = vmatpush1.msra.mxu0 0.0
      %8550 = vmatprep.subr.mxu0 0.0
      %8551 = vmatpush1.msra.mxu0 0.0
      %8552 = vmatprep.subr.mxu0 0.0
      %8553 = vmatpush1.msra.mxu0 0.0
      %8554 = vmatprep.subr.mxu0 0.0
      %8555 = vmatpush1.msra.mxu0 0.0
      %8556 = vmatprep.subr.mxu0 0.0
      %8557 = vmatpush1.msra.mxu0 0.0
      %8558 = vmatprep.subr.mxu0 0.0
      %8559 = vmatpush1.msra.mxu0 0.0
      %8560 = vmatprep.subr.mxu0 0.0
      %8561 = vmatpush1.msra.mxu0 0.0
      %8562 = vmatprep.subr.mxu0 0.0
      %8563 = vmatpush1.msra.mxu0 0.0
      %8564 = vmatprep.subr.mxu0 0.0
      %8565 = vmatpush1.msra.mxu0 0.0
      %8566 = vmatprep.subr.mxu0 0.0
      %8567 = vmatpush1.msra.mxu0 0.0
      %8568 = vmatprep.subr.mxu0 0.0
      %8569 = vmatpush1.msra.mxu0 0.0
      %8570 = vmatprep.subr.mxu0 0.0
      %8571 = vmatpush1.msra.mxu0 0.0
      %8572 = vmatprep.subr.mxu0 0.0
      %8573 = vmatpush1.msra.mxu0 0.0
      %8574 = vmatprep.subr.mxu0 0.0
      %8575 = vmatpush1.msra.mxu0 0.0
      %8576 = vmatprep.subr.mxu0 0.0
      %8577 = vmatpush1.msra.mxu0 0.0
      %8578 = vmatprep.subr.mxu0 0.0
      %8579 = vmatpush1.msra.mxu0 0.0
      %8580 = vmatprep.subr.mxu0 0.0
      %8581 = vmatpush1.msra.mxu0 0.0
      %8582 = vmatprep.subr.mxu0 0.0
      %8583 = vmatpush1.msra.mxu0 0.0
      %8584 = vmatprep.subr.mxu0 0.0
      %8585 = vmatpush1.msra.mxu0 0.0
      %8586 = vmatprep.subr.mxu0 0.0
      %8587 = vmatpush1.msra.mxu0 0.0
      %8588 = vmatprep.mubr.f32.mxu0 0.0
      %8589 = vmatmul.mubr.f32.gmra.mrb[0].mxu0 %v8522
      %v8590 = vpop.f32.mrb[0].mxu0
      %v8591 = vadd.f32 0.0, %v8590
      %v8592 = vpop.f32.mrb[0].mxu0
      %8593 = vdwg.mxu0
      %v8595 = vsel %vm5281, %v7482, 0
      %8597 = vmatprep.subr.mxu0 0.0
      %8598 = vmatpush1.msra.mxu0 %v7498
      %8599 = vmatprep.subr.mxu0 0.0
      %8600 = vmatpush1.msra.mxu0 0.0
      %8601 = vmatprep.subr.mxu0 0.0
      %8602 = vmatpush1.msra.mxu0 0.0
      %8603 = vmatprep.subr.mxu0 0.0
      %8604 = vmatpush1.msra.mxu0 0.0
      %8605 = vmatprep.subr.mxu0 0.0
      %8606 = vmatpush1.msra.mxu0 0.0
      %8607 = vmatprep.subr.mxu0 0.0
      %8608 = vmatpush1.msra.mxu0 0.0
      %8609 = vmatprep.subr.mxu0 0.0
      %8610 = vmatpush1.msra.mxu0 0.0
      %8611 = vmatprep.subr.mxu0 0.0
      %8612 = vmatpush1.msra.mxu0 0.0
      %8613 = vmatprep.subr.mxu0 0.0
      %8614 = vmatpush1.msra.mxu0 0.0
      %8615 = vmatprep.subr.mxu0 0.0
      %8616 = vmatpush1.msra.mxu0 0.0
      %8617 = vmatprep.subr.mxu0 0.0
      %8618 = vmatpush1.msra.mxu0 0.0
      %8619 = vmatprep.subr.mxu0 0.0
      %8620 = vmatpush1.msra.mxu0 0.0
      %8621 = vmatprep.subr.mxu0 0.0
      %8622 = vmatpush1.msra.mxu0 0.0
      %8623 = vmatprep.subr.mxu0 0.0
      %8624 = vmatpush1.msra.mxu0 0.0
      %8625 = vmatprep.subr.mxu0 0.0
      %8626 = vmatpush1.msra.mxu0 0.0
      %8627 = vmatprep.subr.mxu0 0.0
      %8628 = vmatpush1.msra.mxu0 0.0
      %8629 = vmatprep.subr.mxu0 0.0
      %8630 = vmatpush1.msra.mxu0 0.0
      %8631 = vmatprep.subr.mxu0 0.0
      %8632 = vmatpush1.msra.mxu0 0.0
      %8633 = vmatprep.subr.mxu0 0.0
      %8634 = vmatpush1.msra.mxu0 0.0
      %8635 = vmatprep.subr.mxu0 0.0
      %8636 = vmatpush1.msra.mxu0 0.0
      %8637 = vmatprep.subr.mxu0 0.0
      %8638 = vmatpush1.msra.mxu0 0.0
      %8639 = vmatprep.subr.mxu0 0.0
      %8640 = vmatpush1.msra.mxu0 0.0
      %8641 = vmatprep.subr.mxu0 0.0
      %8642 = vmatpush1.msra.mxu0 0.0
      %8643 = vmatprep.subr.mxu0 0.0
      %8644 = vmatpush1.msra.mxu0 0.0
      %8645 = vmatprep.subr.mxu0 0.0
      %8646 = vmatpush1.msra.mxu0 0.0
      %8647 = vmatprep.subr.mxu0 0.0
      %8648 = vmatpush1.msra.mxu0 0.0
      %8649 = vmatprep.subr.mxu0 0.0
      %8650 = vmatpush1.msra.mxu0 0.0
      %8651 = vmatprep.subr.mxu0 0.0
      %8652 = vmatpush1.msra.mxu0 0.0
      %8653 = vmatprep.subr.mxu0 0.0
      %8654 = vmatpush1.msra.mxu0 0.0
      %8655 = vmatprep.subr.mxu0 0.0
      %8656 = vmatpush1.msra.mxu0 0.0
      %8657 = vmatprep.subr.mxu0 0.0
      %8658 = vmatpush1.msra.mxu0 0.0
      %8659 = vmatprep.subr.mxu0 0.0
      %8660 = vmatpush1.msra.mxu0 0.0
      %8661 = vmatprep.mubr.f32.mxu0 0.0
      %8662 = vmatmul.mubr.f32.gmra.mrb[0].mxu0 %v8595
      %v8663 = vpop.f32.mrb[0].mxu0
      %v8664 = vadd.f32 0.0, %v8663
      %v8665 = vpop.f32.mrb[0].mxu0
      %8666 = vdwg.mxu0
      %vm8667 = vcmask 195584
      %8668 = vst.msk [vmem:[%s346] sm:$0xff] %vm8667, %v7569
      %8669 = vst.msk [vmem:[%s346 + $0x8] sm:$0xff] %vm8667, %v7642
      %8670 = vst.msk [vmem:[%s346 + $0x10] sm:$0xff] %vm8667, %v7715
      %8671 = vst.msk [vmem:[%s346 + $0x18] sm:$0xff] %vm8667, %v7788
      %8672 = vst.msk [vmem:[%s346 + $0x20] sm:$0xff] %vm8667, %v7861
      %8673 = vst.msk [vmem:[%s346 + $0x28] sm:$0xff] %vm8667, %v7934
      %8674 = vst.msk [vmem:[%s346 + $0x30] sm:$0xff] %vm8667, %v8007
      %8675 = vst.msk [vmem:[%s346 + $0x38] sm:$0xff] %vm8667, %v8080
      %8676 = vst.msk [vmem:[%s346 + $0x40] sm:$0xff] %vm8667, %v8153
      %8677 = vst.msk [vmem:[%s346 + $0x48] sm:$0xff] %vm8667, %v8226
      %8678 = vst.msk [vmem:[%s346 + $0x50] sm:$0xff] %vm8667, %v8299
      %8679 = vst.msk [vmem:[%s346 + $0x58] sm:$0xff] %vm8667, %v8372
      %8680 = vst.msk [vmem:[%s346 + $0x60] sm:$0xff] %vm8667, %v8445
      %8681 = vst.msk [vmem:[%s346 + $0x68] sm:$0xff] %vm8667, %v8518
      %8682 = vst.msk [vmem:[%s346 + $0x70] sm:$0xff] %vm8667, %v8591
      %8683 = vst.msk [vmem:[%s346 + $0x78] sm:$0xff] %vm8667, %v8664
      %s8684 = smul.u32 16, %s18
      %p8685 = scmp.lt.s32.totalorder %s8684, 31
      %s8686 = scalar_select %p8685, %s8684, 31
      %s8687 = smul.addr %s8686, 8
      %s8688 = scalar_lea.vmem %s7, %s8687
      // Predicated region
      $region49: #{tpu_custom_call.1} parent=47 // pred_check
        %p8689 = pneg %p203
      $region50: #{tpu_custom_call.1} parent=47 // pred_check_branch
        %8691 = sbr.rel (%p8689) target = $region52
      $region51: #{tpu_custom_call.1} parent=47 // pred_region
        %s8692 = smul.u32 16, %s18
      $region52: #{tpu_custom_call.1} parent=47 // pred_fallthru
        _
    $region48: #{tpu_custom_call.1} parent=5 // pred_fallthru
      _
    %p8693 = scmp.le.s32.totalorder 2, %s13
    // Predicated region
    $region53: #{tpu_custom_call.1} parent=5 // pred_check
      %p8694 = pneg %p8693
    $region54: #{tpu_custom_call.1} parent=5 // pred_check_branch
      %8696 = sbr.rel (%p8694) target = $region56
    $region55: #{tpu_custom_call.1} parent=5 // pred_region
      %s8697 = ssub.s32 %s13, 2
      // Predicated region
      $region57: #{tpu_custom_call.1} parent=55 // pred_check
        %p8698 = pneg %p209
      $region58: #{tpu_custom_call.1} parent=55 // pred_check_branch
        %8700 = sbr.rel (%p8698) target = $region60
      $region59: #{tpu_custom_call.1} parent=55 // pred_region
        %s8701 = smul.u32 16, %s19
        %p8702 = scmp.lt.s32.totalorder %s8701, 31
        %s8703 = scalar_select %p8702, %s8701, 31
        %s8704 = smul.addr %s8703, 8
        %s8705 = scalar_lea.vmem %s7, %s8704
      $region60: #{tpu_custom_call.1} parent=55 // pred_fallthru
        _
    $region56: #{tpu_custom_call.1} parent=5 // pred_fallthru
      _
  $region6: #{tpu_custom_call.1} parent=0 // loop_footer
    %s17 = sadd.s32 1, %s13
  $region7: #{tpu_custom_call.1} parent=0 // loop_footer_branch
    %12 = sbr.rel target = $region3
  $region8: #{tpu_custom_call.1} parent=0 // loop_exit
    _

</llo_original>
